<compile_context>
chip_gen: v6e
topology: v6e:2x2x1
jax: 0.10.0
libtpu: 0.0.40
codegen_flags: <defaults>
</compile_context>

<pallas_src>
import jax
import jax.numpy as jnp
import numpy as np
from jax import lax
from jax.experimental import pallas as pl
from jax.experimental.pallas import tpu as pltpu

COMPUTE_DTYPE = jnp.bfloat16  # MXU operand dtype; accumulation is f32.


# ---------------- kernel 1: conv1 -> relu -> pool -> conv2 -> relu -> pool ----

def conv_stack_kernel(q1_ref, w1_ref, b1_ref, w2_ref, b2_ref, out_ref, a1s_ref):
    """Fused conv stack for one image.

    q1_ref : (1, 4, 9, 196) conv1 im2col patches. Axis 1 = conv1 2x2 pool offset.
             Columns are parity-ordered: n = pb*49 + u*7 + v corresponds to the
             pooled conv1 position (y, x) = (2u+pr, 2v+pc), pb = pr*2 + pc.
    w1_ref : (32, 9)       conv1 weights (bf16)
    b1_ref : (32, 1)       conv1 bias (f32)
    w2_ref : (9, 64, 32)   conv2 weights, tap-major (bf16)
    b2_ref : (64, 1)       conv2 bias (f32)
    out_ref: (1, 64, 49)   pooled conv2 output, column m = i*7 + j (bf16)
    a1s_ref: (4, 32, 128)  scratch; parity block pb occupies columns [8, 57),
             the rest is kept zero so 3x3-tap shifts that fall off a row land
             on zeros (== conv2's zero padding).
    """
    # ---- conv1: max over pool offsets first, then one bias+ReLU (hoisted) ----
    w1 = w1_ref[...]
    acc1 = jnp.dot(w1, q1_ref[0, 0], preferred_element_type=jnp.float32)
    for p in range(1, 4):
        acc1 = jnp.maximum(
            acc1, jnp.dot(w1, q1_ref[0, p], preferred_element_type=jnp.float32))
    a1 = jnp.maximum(acc1 + b1_ref[...], 0.0).astype(COMPUTE_DTYPE)  # (32, 196)

    # Scatter the 4 parity sub-maps of the 14x14 activation into the padded
    # scratch so every conv2 tap / pool offset becomes a static 49-wide slice.
    a1s_ref[...] = jnp.zeros_like(a1s_ref)
    for pb in range(4):
        a1s_ref[pb, :, 8:57] = a1[:, pb * 49:(pb + 1) * 49]
    blks = [a1s_ref[pb] for pb in range(4)]  # 4 x (32, 128) bf16

    # Column masks for taps that shift across the 7-wide row boundary.
    col = lax.broadcasted_iota(jnp.int32, (1, 49), 1) % 7
    mask_l = (col != 0).astype(jnp.float32)  # column shift -1
    mask_r = (col != 6).astype(jnp.float32)  # column shift +1

    # ---- conv2 as 9 shift-matmuls per 2x2 pool offset, pooled via max -------
    pooled = None
    for dh in range(2):
        for dw in range(2):
            acc2 = None
            for kh in range(3):
                for kw in range(3):
                    ar = dh + kh - 1
                    ac = dw + kw - 1
                    pr, ro = ar % 2, ar // 2
                    pc, co = ac % 2, ac // 2
                    pb = pr * 2 + pc
                    s = ro * 7 + co
                    act = blks[pb][:, 8 + s:57 + s]                    # (32, 49)
                    y = jnp.dot(w2_ref[kh * 3 + kw], act,
                                preferred_element_type=jnp.float32)    # (64, 49)
                    if co == -1:
                        y = y * mask_l
                    elif co == 1:
                        y = y * mask_r
                    acc2 = y if acc2 is None else acc2 + y
            pooled = acc2 if pooled is None else jnp.maximum(pooled, acc2)

    a2 = jnp.maximum(pooled + b2_ref[...], 0.0)                        # (64, 49)
    out_ref[0] = a2.astype(out_ref.dtype)


# ---------------- kernel 2: Linear(3136,128) -> ReLU -> Linear(128,10 pad 128)

def fc_kernel(x_ref, w1_ref, b1_ref, w2_ref, out_ref):
    """One half of the 128 hidden units; partial fc2 products summed outside."""
    h = jnp.dot(x_ref[...], w1_ref[0],
                preferred_element_type=jnp.float32) + b1_ref[0]
    h = jnp.maximum(h, 0.0).astype(COMPUTE_DTYPE)
    out_ref[0] = jnp.dot(h, w2_ref[0], preferred_element_type=jnp.float32)


# ------------------------------ layout glue ---------------------------------

def _conv1_patches(x, dtype):
    """x: (B,1,28,28) -> (B,4,9,196) conv1 im2col, pooled columns parity-ordered."""
    B = x.shape[0]
    xp = jnp.pad(x[:, 0], ((0, 0), (1, 1), (1, 1)))                    # (B,30,30)
    offs = []
    for pdh in range(2):
        for pdw in range(2):
            taps = [xp[:, pdh + kh: pdh + kh + 28: 2, pdw + kw: pdw + kw + 28: 2]
                    for kh in range(3) for kw in range(3)]
            offs.append(jnp.stack(taps, axis=1))                       # (B,9,14,14)
    q = jnp.stack(offs, axis=1)                                        # (B,4,9,14,14)
    # (Y, X) -> (pr, pc, u, v) with Y = 2u+pr, X = 2v+pc (parity-major blocks).
    q = q.reshape(B, 4, 9, 7, 2, 7, 2).transpose(0, 1, 2, 4, 6, 3, 5)
    return q.reshape(B, 4, 9, 196).astype(dtype)


def conv_stack(x, params):
    B = x.shape[0]
    q1 = _conv1_patches(x, COMPUTE_DTYPE)
    w1 = params["w_conv1"].reshape(32, 9).astype(COMPUTE_DTYPE)
    b1 = params["b_conv1"].reshape(32, 1)
    w2 = jnp.transpose(params["w_conv2"], (2, 3, 0, 1)).reshape(9, 64, 32)
    w2 = w2.astype(COMPUTE_DTYPE)
    b2 = params["b_conv2"].reshape(64, 1)
    return pl.pallas_call(
        conv_stack_kernel,
        out_shape=jax.ShapeDtypeStruct((B, 64, 49), COMPUTE_DTYPE),
        grid=(B,),
        in_specs=[
            pl.BlockSpec((1, 4, 9, 196), lambda i: (i, 0, 0, 0)),
            pl.BlockSpec((32, 9), lambda i: (0, 0)),
            pl.BlockSpec((32, 1), lambda i: (0, 0)),
            pl.BlockSpec((9, 64, 32), lambda i: (0, 0, 0)),
            pl.BlockSpec((64, 1), lambda i: (0, 0)),
        ],
        out_specs=pl.BlockSpec((1, 64, 49), lambda i: (i, 0, 0)),
        scratch_shapes=[pltpu.VMEM((4, 32, 128), COMPUTE_DTYPE)],
        compiler_params=pltpu.CompilerParams(dimension_semantics=("parallel",)),
    )(q1, w1, b1, w2, b2)


def fc_stack(a2, params):
    B = a2.shape[0]
    x = a2.reshape(B, 64 * 49)                       # torch view order: c*49+h*7+w
    w1 = params["w_fc1_t"].astype(COMPUTE_DTYPE)
    w1 = w1.reshape(3136, 2, 64).transpose(1, 0, 2)                    # (2,3136,64)
    b1 = params["b_fc1"].reshape(1, 2, 64).transpose(1, 0, 2)          # (2,1,64)
    w2 = jnp.pad(params["w_fc2_t"], ((0, 0), (0, 118))).astype(COMPUTE_DTYPE)
    w2 = w2.reshape(2, 64, 128)                                        # (2,64,128)
    parts = pl.pallas_call(
        fc_kernel,
        out_shape=jax.ShapeDtypeStruct((2, B, 128), jnp.float32),
        grid=(2,),
        in_specs=[
            pl.BlockSpec((B, 3136), lambda h: (0, 0)),
            pl.BlockSpec((1, 3136, 64), lambda h: (h, 0, 0)),
            pl.BlockSpec((1, 1, 64), lambda h: (h, 0, 0)),
            pl.BlockSpec((1, 64, 128), lambda h: (h, 0, 0)),
        ],
        out_specs=pl.BlockSpec((1, B, 128), lambda h: (h, 0, 0)),
        compiler_params=pltpu.CompilerParams(dimension_semantics=("parallel",)),
    )(x, w1, b1, w2)
    return parts.sum(axis=0)[:, :10] + params["b_fc2"]


def simple_cnn_forward(x, params):
    """Forward of SimpleCNN. x: (B, 1, 28, 28) float32 -> (B, 10) float32."""
    a2 = conv_stack(x, params)        # (B, 64, 49)  pooled conv2 activations
    return fc_stack(a2, params)       # (B, 10)


# -------------------------- reference (pure JAX) ----------------------------

def reference_forward(x, params):
    dn = ("NCHW", "OIHW", "NCHW")
    y = jax.lax.conv_general_dilated(x, params["w_conv1"], (1, 1),
                                     ((1, 1), (1, 1)), dimension_numbers=dn)
    y = jnp.maximum(y + params["b_conv1"][None, :, None, None], 0.0)
    y = jax.lax.reduce_window(y, -jnp.inf, jax.lax.max, (1, 1, 2, 2), (1, 1, 2, 2), "VALID")
    y = jax.lax.conv_general_dilated(y, params["w_conv2"], (1, 1),
                                     ((1, 1), (1, 1)), dimension_numbers=dn)
    y = jnp.maximum(y + params["b_conv2"][None, :, None, None], 0.0)
    y = jax.lax.reduce_window(y, -jnp.inf, jax.lax.max, (1, 1, 2, 2), (1, 1, 2, 2), "VALID")
    flat = y.reshape(y.shape[0], -1)
    h = jnp.maximum(flat @ params["w_fc1_t"] + params["b_fc1"], 0.0)
    return h @ params["w_fc2_t"] + params["b_fc2"]


# --------------------------------- params -----------------------------------

def init_params(key):
    ks = jax.random.split(key, 8)
    return {
        # nn.Conv2d(1, 32, 3, padding=1)
        "w_conv1": jax.random.normal(ks[0], (32, 1, 3, 3), jnp.float32) * 0.1,
        "b_conv1": jax.random.normal(ks[1], (32,), jnp.float32) * 0.1,
        # nn.Conv2d(32, 64, 3, padding=1)
        "w_conv2": jax.random.normal(ks[2], (64, 32, 3, 3), jnp.float32) * 0.05,
        "b_conv2": jax.random.normal(ks[3], (64,), jnp.float32) * 0.05,
        # nn.Linear(64*7*7, 128)  (stored pre-transposed: (in, out))
        "w_fc1_t": jax.random.normal(ks[4], (3136, 128), jnp.float32) * 0.02,
        "b_fc1":   jax.random.normal(ks[5], (1, 128), jnp.float32) * 0.02,
        # nn.Linear(128, 10)
        "w_fc2_t": jax.random.normal(ks[6], (128, 10), jnp.float32) * 0.1,
        "b_fc2":   jax.random.normal(ks[7], (1, 10), jnp.float32) * 0.1,
    }


if __name__ == "__main__":
    key = jax.random.PRNGKey(0)
    pkey, xkey = jax.random.split(key)
    params = init_params(pkey)

    # FC layer hard-codes 64*7*7, so spatial must be 28x28; batch kept small.
    x = jax.random.normal(xkey, (2, 1, 28, 28), jnp.float32)

    out = jax.jit(simple_cnn_forward)(x, params)
    out = jax.block_until_ready(out)

    ref = reference_forward(x, params)
    # bf16 MXU operands with f32 accumulation -> slightly relaxed tolerance.
    np.testing.assert_allclose(np.asarray(out), np.asarray(ref), rtol=2e-2, atol=2e-2)
    assert out.shape == (2, 10) and out.dtype == jnp.float32

    print("KERNEL_OK")
</pallas_src>

<mosaic_0001>
module attributes {stable_mosaic.version = 11 : i64} {
  func.func @conv_stack_kernel(%arg0: i32, %arg1: memref<1x4x9x196xbf16, #tpu.memory_space<vmem>>, %arg2: memref<32x9xbf16, #tpu.memory_space<vmem>>, %arg3: memref<32x1xf32, #tpu.memory_space<vmem>>, %arg4: memref<9x64x32xbf16, #tpu.memory_space<vmem>>, %arg5: memref<64x1xf32, #tpu.memory_space<vmem>>, %arg6: memref<1x64x49xbf16, #tpu.memory_space<vmem>>, %arg7: memref<4x32x128xbf16, #tpu.memory_space<vmem>>) attributes {dimension_semantics = [#tpu.dimension_semantics<parallel>], iteration_bounds = array<i64: 2>, scalar_prefetch = 0 : i64, scratch_operands = 1 : i64, tpu.core_type = #tpu.core_type<tc>, window_params = [{transform_indices = @transform_0, window_bounds = array<i64: 1, 4, 9, 196>}, {pipeline_mode = #tpu.pipeline_mode<synchronous>, transform_indices = @transform_1, window_bounds = array<i64: 32, 9>}, {pipeline_mode = #tpu.pipeline_mode<synchronous>, transform_indices = @transform_2, window_bounds = array<i64: 32, 1>}, {pipeline_mode = #tpu.pipeline_mode<synchronous>, transform_indices = @transform_3, window_bounds = array<i64: 9, 64, 32>}, {pipeline_mode = #tpu.pipeline_mode<synchronous>, transform_indices = @transform_4, window_bounds = array<i64: 64, 1>}, {transform_indices = @transform_5, window_bounds = array<i64: 1, 64, 49>}]} {
    %c0 = arith.constant 0 : index
    %c0_0 = arith.constant 0 : index
    %0 = vector.load %arg2[%c0, %c0_0] : memref<32x9xbf16, #tpu.memory_space<vmem>>, vector<32x9xbf16>
    %c0_1 = arith.constant 0 : index
    %c0_2 = arith.constant 0 : index
    %c0_3 = arith.constant 0 : index
    %c0_4 = arith.constant 0 : index
    %1 = vector.load %arg1[%c0_1, %c0_2, %c0_3, %c0_4] : memref<1x4x9x196xbf16, #tpu.memory_space<vmem>>, vector<1x1x9x196xbf16>
    %2 = vector.shape_cast %1 : vector<1x1x9x196xbf16> to vector<9x196xbf16>
    %cst = arith.constant dense<0.000000e+00> : vector<32x196xf32>
    %3 = tpu.matmul %0, %2, %cst {dimension_numbers = #tpu.dot_dimension_numbers<[1], [0], [0], [1], [0, 0, 1, 1], [], []>} : vector<32x9xbf16>, vector<9x196xbf16>, vector<32x196xf32> -> vector<32x196xf32>
    %c0_5 = arith.constant 0 : index
    %c1 = arith.constant 1 : index
    %c0_6 = arith.constant 0 : index
    %c0_7 = arith.constant 0 : index
    %4 = vector.load %arg1[%c0_5, %c1, %c0_6, %c0_7] : memref<1x4x9x196xbf16, #tpu.memory_space<vmem>>, vector<1x1x9x196xbf16>
    %5 = vector.shape_cast %4 : vector<1x1x9x196xbf16> to vector<9x196xbf16>
    %cst_8 = arith.constant dense<0.000000e+00> : vector<32x196xf32>
    %6 = tpu.matmul %0, %5, %cst_8 {dimension_numbers = #tpu.dot_dimension_numbers<[1], [0], [0], [1], [0, 0, 1, 1], [], []>} : vector<32x9xbf16>, vector<9x196xbf16>, vector<32x196xf32> -> vector<32x196xf32>
    %7 = arith.maximumf %3, %6 : vector<32x196xf32>
    %c0_9 = arith.constant 0 : index
    %c2 = arith.constant 2 : index
    %c0_10 = arith.constant 0 : index
    %c0_11 = arith.constant 0 : index
    %8 = vector.load %arg1[%c0_9, %c2, %c0_10, %c0_11] : memref<1x4x9x196xbf16, #tpu.memory_space<vmem>>, vector<1x1x9x196xbf16>
    %9 = vector.shape_cast %8 : vector<1x1x9x196xbf16> to vector<9x196xbf16>
    %cst_12 = arith.constant dense<0.000000e+00> : vector<32x196xf32>
    %10 = tpu.matmul %0, %9, %cst_12 {dimension_numbers = #tpu.dot_dimension_numbers<[1], [0], [0], [1], [0, 0, 1, 1], [], []>} : vector<32x9xbf16>, vector<9x196xbf16>, vector<32x196xf32> -> vector<32x196xf32>
    %11 = arith.maximumf %7, %10 : vector<32x196xf32>
    %c0_13 = arith.constant 0 : index
    %c3 = arith.constant 3 : index
    %c0_14 = arith.constant 0 : index
    %c0_15 = arith.constant 0 : index
    %12 = vector.load %arg1[%c0_13, %c3, %c0_14, %c0_15] : memref<1x4x9x196xbf16, #tpu.memory_space<vmem>>, vector<1x1x9x196xbf16>
    %13 = vector.shape_cast %12 : vector<1x1x9x196xbf16> to vector<9x196xbf16>
    %cst_16 = arith.constant dense<0.000000e+00> : vector<32x196xf32>
    %14 = tpu.matmul %0, %13, %cst_16 {dimension_numbers = #tpu.dot_dimension_numbers<[1], [0], [0], [1], [0, 0, 1, 1], [], []>} : vector<32x9xbf16>, vector<9x196xbf16>, vector<32x196xf32> -> vector<32x196xf32>
    %15 = arith.maximumf %11, %14 : vector<32x196xf32>
    %c0_17 = arith.constant 0 : index
    %c0_18 = arith.constant 0 : index
    %16 = vector.load %arg3[%c0_17, %c0_18] : memref<32x1xf32, #tpu.memory_space<vmem>>, vector<32x1xf32>
    %17 = vector.broadcast %16 : vector<32x1xf32> to vector<32x196xf32>
    %18 = arith.addf %15, %17 : vector<32x196xf32>
    %cst_19 = arith.constant 0.000000e+00 : f32
    %19 = vector.broadcast %cst_19 : f32 to vector<32x196xf32>
    %20 = arith.maximumf %18, %19 : vector<32x196xf32>
    %21 = arith.truncf %20 : vector<32x196xf32> to vector<32x196xbf16>
    %cst_20 = arith.constant 0.000000e+00 : bf16
    %22 = vector.broadcast %cst_20 : bf16 to vector<4x32x128xbf16>
    %c0_21 = arith.constant 0 : index
    %c0_22 = arith.constant 0 : index
    %c0_23 = arith.constant 0 : index
    %23 = vector.load %arg7[%c0_21, %c0_22, %c0_23] : memref<4x32x128xbf16, #tpu.memory_space<vmem>>, vector<4x32x128xbf16>
    tpu.vector_store %arg7[%c0_21, %c0_22, %c0_23], %22 {strides = array<i32>} : memref<4x32x128xbf16, #tpu.memory_space<vmem>>, vector<4x32x128xbf16>,
    %24 = vector.extract_strided_slice %21 {offsets = [0, 0], sizes = [32, 49], strides = [1, 1]} : vector<32x196xbf16> to vector<32x49xbf16>
    %c0_24 = arith.constant 0 : index
    %c0_25 = arith.constant 0 : index
    %c8 = arith.constant 8 : index
    %25 = vector.load %arg7[%c0_24, %c0_25, %c8] : memref<4x32x128xbf16, #tpu.memory_space<vmem>>, vector<1x32x49xbf16>
    %26 = vector.shape_cast %25 : vector<1x32x49xbf16> to vector<32x49xbf16>
    %27 = vector.shape_cast %24 : vector<32x49xbf16> to vector<1x32x49xbf16>
    tpu.vector_store %arg7[%c0_24, %c0_25, %c8], %27 {strides = array<i32>} : memref<4x32x128xbf16, #tpu.memory_space<vmem>>, vector<1x32x49xbf16>,
    %28 = vector.extract_strided_slice %21 {offsets = [0, 49], sizes = [32, 49], strides = [1, 1]} : vector<32x196xbf16> to vector<32x49xbf16>
    %c1_26 = arith.constant 1 : index
    %c0_27 = arith.constant 0 : index
    %c8_28 = arith.constant 8 : index
    %29 = vector.load %arg7[%c1_26, %c0_27, %c8_28] : memref<4x32x128xbf16, #tpu.memory_space<vmem>>, vector<1x32x49xbf16>
    %30 = vector.shape_cast %29 : vector<1x32x49xbf16> to vector<32x49xbf16>
    %31 = vector.shape_cast %28 : vector<32x49xbf16> to vector<1x32x49xbf16>
    tpu.vector_store %arg7[%c1_26, %c0_27, %c8_28], %31 {strides = array<i32>} : memref<4x32x128xbf16, #tpu.memory_space<vmem>>, vector<1x32x49xbf16>,
    %32 = vector.extract_strided_slice %21 {offsets = [0, 98], sizes = [32, 49], strides = [1, 1]} : vector<32x196xbf16> to vector<32x49xbf16>
    %c2_29 = arith.constant 2 : index
    %c0_30 = arith.constant 0 : index
    %c8_31 = arith.constant 8 : index
    %33 = vector.load %arg7[%c2_29, %c0_30, %c8_31] : memref<4x32x128xbf16, #tpu.memory_space<vmem>>, vector<1x32x49xbf16>
    %34 = vector.shape_cast %33 : vector<1x32x49xbf16> to vector<32x49xbf16>
    %35 = vector.shape_cast %32 : vector<32x49xbf16> to vector<1x32x49xbf16>
    tpu.vector_store %arg7[%c2_29, %c0_30, %c8_31], %35 {strides = array<i32>} : memref<4x32x128xbf16, #tpu.memory_space<vmem>>, vector<1x32x49xbf16>,
    %36 = vector.extract_strided_slice %21 {offsets = [0, 147], sizes = [32, 49], strides = [1, 1]} : vector<32x196xbf16> to vector<32x49xbf16>
    %c3_32 = arith.constant 3 : index
    %c0_33 = arith.constant 0 : index
    %c8_34 = arith.constant 8 : index
    %37 = vector.load %arg7[%c3_32, %c0_33, %c8_34] : memref<4x32x128xbf16, #tpu.memory_space<vmem>>, vector<1x32x49xbf16>
    %38 = vector.shape_cast %37 : vector<1x32x49xbf16> to vector<32x49xbf16>
    %39 = vector.shape_cast %36 : vector<32x49xbf16> to vector<1x32x49xbf16>
    tpu.vector_store %arg7[%c3_32, %c0_33, %c8_34], %39 {strides = array<i32>} : memref<4x32x128xbf16, #tpu.memory_space<vmem>>, vector<1x32x49xbf16>,
    %c0_35 = arith.constant 0 : index
    %c0_36 = arith.constant 0 : index
    %c0_37 = arith.constant 0 : index
    %40 = vector.load %arg7[%c0_35, %c0_36, %c0_37] : memref<4x32x128xbf16, #tpu.memory_space<vmem>>, vector<1x32x128xbf16>
    %41 = vector.shape_cast %40 : vector<1x32x128xbf16> to vector<32x128xbf16>
    %c1_38 = arith.constant 1 : index
    %c0_39 = arith.constant 0 : index
    %c0_40 = arith.constant 0 : index
    %42 = vector.load %arg7[%c1_38, %c0_39, %c0_40] : memref<4x32x128xbf16, #tpu.memory_space<vmem>>, vector<1x32x128xbf16>
    %43 = vector.shape_cast %42 : vector<1x32x128xbf16> to vector<32x128xbf16>
    %c2_41 = arith.constant 2 : index
    %c0_42 = arith.constant 0 : index
    %c0_43 = arith.constant 0 : index
    %44 = vector.load %arg7[%c2_41, %c0_42, %c0_43] : memref<4x32x128xbf16, #tpu.memory_space<vmem>>, vector<1x32x128xbf16>
    %45 = vector.shape_cast %44 : vector<1x32x128xbf16> to vector<32x128xbf16>
    %c3_44 = arith.constant 3 : index
    %c0_45 = arith.constant 0 : index
    %c0_46 = arith.constant 0 : index
    %46 = vector.load %arg7[%c3_44, %c0_45, %c0_46] : memref<4x32x128xbf16, #tpu.memory_space<vmem>>, vector<1x32x128xbf16>
    %47 = vector.shape_cast %46 : vector<1x32x128xbf16> to vector<32x128xbf16>
    %48 = tpu.iota {dimensions = array<i32: 1>} : vector<1x49xi32>
    %c7_i32 = arith.constant 7 : i32
    %c0_i32 = arith.constant 0 : i32
    %49 = arith.cmpi eq, %c7_i32, %c0_i32 : i32
    %c1_i32 = arith.constant 1 : i32
    %50 = arith.select %49, %c1_i32, %c7_i32 : i32
    %51 = vector.broadcast %50 : i32 to vector<1x49xi32>
    %52 = arith.remsi %48, %51 : vector<1x49xi32>
    %c0_i32_47 = arith.constant 0 : i32
    %53 = vector.broadcast %c0_i32_47 : i32 to vector<1x49xi32>
    %54 = arith.cmpi ne, %52, %53 : vector<1x49xi32>
    %c0_i32_48 = arith.constant 0 : i32
    %55 = vector.broadcast %c0_i32_48 : i32 to vector<1x49xi32>
    %56 = arith.cmpi slt, %52, %55 : vector<1x49xi32>
    %c0_i32_49 = arith.constant 0 : i32
    %57 = arith.cmpi slt, %50, %c0_i32_49 : i32
    %58 = vector.broadcast %57 : i1 to vector<1x49xi1>
    %59 = vector.broadcast %58 : vector<1x49xi1> to vector<1x49xi1>
    %60 = arith.xori %56, %59 : vector<1x49xi1>
    %61 = arith.andi %60, %54 : vector<1x49xi1>
    %62 = vector.broadcast %50 : i32 to vector<1x49xi32>
    %63 = arith.addi %52, %62 : vector<1x49xi32>
    %64 = arith.select %61, %63, %52 : vector<1x49xi1>, vector<1x49xi32>
    %c0_i32_50 = arith.constant 0 : i32
    %65 = vector.broadcast %c0_i32_50 : i32 to vector<1x49xi32>
    %66 = arith.cmpi ne, %64, %65 : vector<1x49xi32>
    %67 = arith.extui %66 : vector<1x49xi1> to vector<1x49xi32>
    %68 = arith.sitofp %67 : vector<1x49xi32> to vector<1x49xf32>
    %c6_i32 = arith.constant 6 : i32
    %69 = vector.broadcast %c6_i32 : i32 to vector<1x49xi32>
    %70 = arith.cmpi ne, %64, %69 : vector<1x49xi32>
    %71 = arith.extui %70 : vector<1x49xi1> to vector<1x49xi32>
    %72 = arith.sitofp %71 : vector<1x49xi32> to vector<1x49xf32>
    %73 = vector.extract_strided_slice %47 {offsets = [0, 0], sizes = [32, 49], strides = [1, 1]} : vector<32x128xbf16> to vector<32x49xbf16>
    %c0_51 = arith.constant 0 : index
    %c0_52 = arith.constant 0 : index
    %c0_53 = arith.constant 0 : index
    %74 = vector.load %arg4[%c0_51, %c0_52, %c0_53] : memref<9x64x32xbf16, #tpu.memory_space<vmem>>, vector<1x64x32xbf16>
    %75 = vector.shape_cast %74 : vector<1x64x32xbf16> to vector<64x32xbf16>
    %cst_54 = arith.constant dense<0.000000e+00> : vector<64x49xf32>
    %76 = tpu.matmul %75, %73, %cst_54 {dimension_numbers = #tpu.dot_dimension_numbers<[1], [0], [0], [1], [0, 0, 1, 1], [], []>} : vector<64x32xbf16>, vector<32x49xbf16>, vector<64x49xf32> -> vector<64x49xf32>
    %77 = vector.broadcast %68 : vector<1x49xf32> to vector<64x49xf32>
    %78 = arith.mulf %76, %77 : vector<64x49xf32>
    %79 = vector.extract_strided_slice %45 {offsets = [0, 1], sizes = [32, 49], strides = [1, 1]} : vector<32x128xbf16> to vector<32x49xbf16>
    %c1_55 = arith.constant 1 : index
    %c0_56 = arith.constant 0 : index
    %c0_57 = arith.constant 0 : index
    %80 = vector.load %arg4[%c1_55, %c0_56, %c0_57] : memref<9x64x32xbf16, #tpu.memory_space<vmem>>, vector<1x64x32xbf16>
    %81 = vector.shape_cast %80 : vector<1x64x32xbf16> to vector<64x32xbf16>
    %cst_58 = arith.constant dense<0.000000e+00> : vector<64x49xf32>
    %82 = tpu.matmul %81, %79, %cst_58 {dimension_numbers = #tpu.dot_dimension_numbers<[1], [0], [0], [1], [0, 0, 1, 1], [], []>} : vector<64x32xbf16>, vector<32x49xbf16>, vector<64x49xf32> -> vector<64x49xf32>
    %83 = arith.addf %78, %82 : vector<64x49xf32>
    %84 = vector.extract_strided_slice %47 {offsets = [0, 1], sizes = [32, 49], strides = [1, 1]} : vector<32x128xbf16> to vector<32x49xbf16>
    %c2_59 = arith.constant 2 : index
    %c0_60 = arith.constant 0 : index
    %c0_61 = arith.constant 0 : index
    %85 = vector.load %arg4[%c2_59, %c0_60, %c0_61] : memref<9x64x32xbf16, #tpu.memory_space<vmem>>, vector<1x64x32xbf16>
    %86 = vector.shape_cast %85 : vector<1x64x32xbf16> to vector<64x32xbf16>
    %cst_62 = arith.constant dense<0.000000e+00> : vector<64x49xf32>
    %87 = tpu.matmul %86, %84, %cst_62 {dimension_numbers = #tpu.dot_dimension_numbers<[1], [0], [0], [1], [0, 0, 1, 1], [], []>} : vector<64x32xbf16>, vector<32x49xbf16>, vector<64x49xf32> -> vector<64x49xf32>
    %88 = arith.addf %83, %87 : vector<64x49xf32>
    %89 = vector.extract_strided_slice %43 {offsets = [0, 7], sizes = [32, 49], strides = [1, 1]} : vector<32x128xbf16> to vector<32x49xbf16>
    %c3_63 = arith.constant 3 : index
    %c0_64 = arith.constant 0 : index
    %c0_65 = arith.constant 0 : index
    %90 = vector.load %arg4[%c3_63, %c0_64, %c0_65] : memref<9x64x32xbf16, #tpu.memory_space<vmem>>, vector<1x64x32xbf16>
    %91 = vector.shape_cast %90 : vector<1x64x32xbf16> to vector<64x32xbf16>
    %cst_66 = arith.constant dense<0.000000e+00> : vector<64x49xf32>
    %92 = tpu.matmul %91, %89, %cst_66 {dimension_numbers = #tpu.dot_dimension_numbers<[1], [0], [0], [1], [0, 0, 1, 1], [], []>} : vector<64x32xbf16>, vector<32x49xbf16>, vector<64x49xf32> -> vector<64x49xf32>
    %93 = vector.broadcast %68 : vector<1x49xf32> to vector<64x49xf32>
    %94 = arith.mulf %92, %93 : vector<64x49xf32>
    %95 = arith.addf %88, %94 : vector<64x49xf32>
    %96 = vector.extract_strided_slice %41 {offsets = [0, 8], sizes = [32, 49], strides = [1, 1]} : vector<32x128xbf16> to vector<32x49xbf16>
    %c4 = arith.constant 4 : index
    %c0_67 = arith.constant 0 : index
    %c0_68 = arith.constant 0 : index
    %97 = vector.load %arg4[%c4, %c0_67, %c0_68] : memref<9x64x32xbf16, #tpu.memory_space<vmem>>, vector<1x64x32xbf16>
    %98 = vector.shape_cast %97 : vector<1x64x32xbf16> to vector<64x32xbf16>
    %cst_69 = arith.constant dense<0.000000e+00> : vector<64x49xf32>
    %99 = tpu.matmul %98, %96, %cst_69 {dimension_numbers = #tpu.dot_dimension_numbers<[1], [0], [0], [1], [0, 0, 1, 1], [], []>} : vector<64x32xbf16>, vector<32x49xbf16>, vector<64x49xf32> -> vector<64x49xf32>
    %100 = arith.addf %95, %99 : vector<64x49xf32>
    %101 = vector.extract_strided_slice %43 {offsets = [0, 8], sizes = [32, 49], strides = [1, 1]} : vector<32x128xbf16> to vector<32x49xbf16>
    %c5 = arith.constant 5 : index
    %c0_70 = arith.constant 0 : index
    %c0_71 = arith.constant 0 : index
    %102 = vector.load %arg4[%c5, %c0_70, %c0_71] : memref<9x64x32xbf16, #tpu.memory_space<vmem>>, vector<1x64x32xbf16>
    %103 = vector.shape_cast %102 : vector<1x64x32xbf16> to vector<64x32xbf16>
    %cst_72 = arith.constant dense<0.000000e+00> : vector<64x49xf32>
    %104 = tpu.matmul %103, %101, %cst_72 {dimension_numbers = #tpu.dot_dimension_numbers<[1], [0], [0], [1], [0, 0, 1, 1], [], []>} : vector<64x32xbf16>, vector<32x49xbf16>, vector<64x49xf32> -> vector<64x49xf32>
    %105 = arith.addf %100, %104 : vector<64x49xf32>
    %106 = vector.extract_strided_slice %47 {offsets = [0, 7], sizes = [32, 49], strides = [1, 1]} : vector<32x128xbf16> to vector<32x49xbf16>
    %c6 = arith.constant 6 : index
    %c0_73 = arith.constant 0 : index
    %c0_74 = arith.constant 0 : index
    %107 = vector.load %arg4[%c6, %c0_73, %c0_74] : memref<9x64x32xbf16, #tpu.memory_space<vmem>>, vector<1x64x32xbf16>
    %108 = vector.shape_cast %107 : vector<1x64x32xbf16> to vector<64x32xbf16>
    %cst_75 = arith.constant dense<0.000000e+00> : vector<64x49xf32>
    %109 = tpu.matmul %108, %106, %cst_75 {dimension_numbers = #tpu.dot_dimension_numbers<[1], [0], [0], [1], [0, 0, 1, 1], [], []>} : vector<64x32xbf16>, vector<32x49xbf16>, vector<64x49xf32> -> vector<64x49xf32>
    %110 = vector.broadcast %68 : vector<1x49xf32> to vector<64x49xf32>
    %111 = arith.mulf %109, %110 : vector<64x49xf32>
    %112 = arith.addf %105, %111 : vector<64x49xf32>
    %113 = vector.extract_strided_slice %45 {offsets = [0, 8], sizes = [32, 49], strides = [1, 1]} : vector<32x128xbf16> to vector<32x49xbf16>
    %c7 = arith.constant 7 : index
    %c0_76 = arith.constant 0 : index
    %c0_77 = arith.constant 0 : index
    %114 = vector.load %arg4[%c7, %c0_76, %c0_77] : memref<9x64x32xbf16, #tpu.memory_space<vmem>>, vector<1x64x32xbf16>
    %115 = vector.shape_cast %114 : vector<1x64x32xbf16> to vector<64x32xbf16>
    %cst_78 = arith.constant dense<0.000000e+00> : vector<64x49xf32>
    %116 = tpu.matmul %115, %113, %cst_78 {dimension_numbers = #tpu.dot_dimension_numbers<[1], [0], [0], [1], [0, 0, 1, 1], [], []>} : vector<64x32xbf16>, vector<32x49xbf16>, vector<64x49xf32> -> vector<64x49xf32>
    %117 = arith.addf %112, %116 : vector<64x49xf32>
    %118 = vector.extract_strided_slice %47 {offsets = [0, 8], sizes = [32, 49], strides = [1, 1]} : vector<32x128xbf16> to vector<32x49xbf16>
    %c8_79 = arith.constant 8 : index
    %c0_80 = arith.constant 0 : index
    %c0_81 = arith.constant 0 : index
    %119 = vector.load %arg4[%c8_79, %c0_80, %c0_81] : memref<9x64x32xbf16, #tpu.memory_space<vmem>>, vector<1x64x32xbf16>
    %120 = vector.shape_cast %119 : vector<1x64x32xbf16> to vector<64x32xbf16>
    %cst_82 = arith.constant dense<0.000000e+00> : vector<64x49xf32>
    %121 = tpu.matmul %120, %118, %cst_82 {dimension_numbers = #tpu.dot_dimension_numbers<[1], [0], [0], [1], [0, 0, 1, 1], [], []>} : vector<64x32xbf16>, vector<32x49xbf16>, vector<64x49xf32> -> vector<64x49xf32>
    %122 = arith.addf %117, %121 : vector<64x49xf32>
    %123 = vector.extract_strided_slice %45 {offsets = [0, 1], sizes = [32, 49], strides = [1, 1]} : vector<32x128xbf16> to vector<32x49xbf16>
    %c0_83 = arith.constant 0 : index
    %c0_84 = arith.constant 0 : index
    %c0_85 = arith.constant 0 : index
    %124 = vector.load %arg4[%c0_83, %c0_84, %c0_85] : memref<9x64x32xbf16, #tpu.memory_space<vmem>>, vector<1x64x32xbf16>
    %125 = vector.shape_cast %124 : vector<1x64x32xbf16> to vector<64x32xbf16>
    %cst_86 = arith.constant dense<0.000000e+00> : vector<64x49xf32>
    %126 = tpu.matmul %125, %123, %cst_86 {dimension_numbers = #tpu.dot_dimension_numbers<[1], [0], [0], [1], [0, 0, 1, 1], [], []>} : vector<64x32xbf16>, vector<32x49xbf16>, vector<64x49xf32> -> vector<64x49xf32>
    %127 = vector.extract_strided_slice %47 {offsets = [0, 1], sizes = [32, 49], strides = [1, 1]} : vector<32x128xbf16> to vector<32x49xbf16>
    %c1_87 = arith.constant 1 : index
    %c0_88 = arith.constant 0 : index
    %c0_89 = arith.constant 0 : index
    %128 = vector.load %arg4[%c1_87, %c0_88, %c0_89] : memref<9x64x32xbf16, #tpu.memory_space<vmem>>, vector<1x64x32xbf16>
    %129 = vector.shape_cast %128 : vector<1x64x32xbf16> to vector<64x32xbf16>
    %cst_90 = arith.constant dense<0.000000e+00> : vector<64x49xf32>
    %130 = tpu.matmul %129, %127, %cst_90 {dimension_numbers = #tpu.dot_dimension_numbers<[1], [0], [0], [1], [0, 0, 1, 1], [], []>} : vector<64x32xbf16>, vector<32x49xbf16>, vector<64x49xf32> -> vector<64x49xf32>
    %131 = arith.addf %126, %130 : vector<64x49xf32>
    %132 = vector.extract_strided_slice %45 {offsets = [0, 2], sizes = [32, 49], strides = [1, 1]} : vector<32x128xbf16> to vector<32x49xbf16>
    %c2_91 = arith.constant 2 : index
    %c0_92 = arith.constant 0 : index
    %c0_93 = arith.constant 0 : index
    %133 = vector.load %arg4[%c2_91, %c0_92, %c0_93] : memref<9x64x32xbf16, #tpu.memory_space<vmem>>, vector<1x64x32xbf16>
    %134 = vector.shape_cast %133 : vector<1x64x32xbf16> to vector<64x32xbf16>
    %cst_94 = arith.constant dense<0.000000e+00> : vector<64x49xf32>
    %135 = tpu.matmul %134, %132, %cst_94 {dimension_numbers = #tpu.dot_dimension_numbers<[1], [0], [0], [1], [0, 0, 1, 1], [], []>} : vector<64x32xbf16>, vector<32x49xbf16>, vector<64x49xf32> -> vector<64x49xf32>
    %136 = vector.broadcast %72 : vector<1x49xf32> to vector<64x49xf32>
    %137 = arith.mulf %135, %136 : vector<64x49xf32>
    %138 = arith.addf %131, %137 : vector<64x49xf32>
    %139 = vector.extract_strided_slice %41 {offsets = [0, 8], sizes = [32, 49], strides = [1, 1]} : vector<32x128xbf16> to vector<32x49xbf16>
    %c3_95 = arith.constant 3 : index
    %c0_96 = arith.constant 0 : index
    %c0_97 = arith.constant 0 : index
    %140 = vector.load %arg4[%c3_95, %c0_96, %c0_97] : memref<9x64x32xbf16, #tpu.memory_space<vmem>>, vector<1x64x32xbf16>
    %141 = vector.shape_cast %140 : vector<1x64x32xbf16> to vector<64x32xbf16>
    %cst_98 = arith.constant dense<0.000000e+00> : vector<64x49xf32>
    %142 = tpu.matmul %141, %139, %cst_98 {dimension_numbers = #tpu.dot_dimension_numbers<[1], [0], [0], [1], [0, 0, 1, 1], [], []>} : vector<64x32xbf16>, vector<32x49xbf16>, vector<64x49xf32> -> vector<64x49xf32>
    %143 = arith.addf %138, %142 : vector<64x49xf32>
    %144 = vector.extract_strided_slice %43 {offsets = [0, 8], sizes = [32, 49], strides = [1, 1]} : vector<32x128xbf16> to vector<32x49xbf16>
    %c4_99 = arith.constant 4 : index
    %c0_100 = arith.constant 0 : index
    %c0_101 = arith.constant 0 : index
    %145 = vector.load %arg4[%c4_99, %c0_100, %c0_101] : memref<9x64x32xbf16, #tpu.memory_space<vmem>>, vector<1x64x32xbf16>
    %146 = vector.shape_cast %145 : vector<1x64x32xbf16> to vector<64x32xbf16>
    %cst_102 = arith.constant dense<0.000000e+00> : vector<64x49xf32>
    %147 = tpu.matmul %146, %144, %cst_102 {dimension_numbers = #tpu.dot_dimension_numbers<[1], [0], [0], [1], [0, 0, 1, 1], [], []>} : vector<64x32xbf16>, vector<32x49xbf16>, vector<64x49xf32> -> vector<64x49xf32>
    %148 = arith.addf %143, %147 : vector<64x49xf32>
    %149 = vector.extract_strided_slice %41 {offsets = [0, 9], sizes = [32, 49], strides = [1, 1]} : vector<32x128xbf16> to vector<32x49xbf16>
    %c5_103 = arith.constant 5 : index
    %c0_104 = arith.constant 0 : index
    %c0_105 = arith.constant 0 : index
    %150 = vector.load %arg4[%c5_103, %c0_104, %c0_105] : memref<9x64x32xbf16, #tpu.memory_space<vmem>>, vector<1x64x32xbf16>
    %151 = vector.shape_cast %150 : vector<1x64x32xbf16> to vector<64x32xbf16>
    %cst_106 = arith.constant dense<0.000000e+00> : vector<64x49xf32>
    %152 = tpu.matmul %151, %149, %cst_106 {dimension_numbers = #tpu.dot_dimension_numbers<[1], [0], [0], [1], [0, 0, 1, 1], [], []>} : vector<64x32xbf16>, vector<32x49xbf16>, vector<64x49xf32> -> vector<64x49xf32>
    %153 = vector.broadcast %72 : vector<1x49xf32> to vector<64x49xf32>
    %154 = arith.mulf %152, %153 : vector<64x49xf32>
    %155 = arith.addf %148, %154 : vector<64x49xf32>
    %156 = vector.extract_strided_slice %45 {offsets = [0, 8], sizes = [32, 49], strides = [1, 1]} : vector<32x128xbf16> to vector<32x49xbf16>
    %c6_107 = arith.constant 6 : index
    %c0_108 = arith.constant 0 : index
    %c0_109 = arith.constant 0 : index
    %157 = vector.load %arg4[%c6_107, %c0_108, %c0_109] : memref<9x64x32xbf16, #tpu.memory_space<vmem>>, vector<1x64x32xbf16>
    %158 = vector.shape_cast %157 : vector<1x64x32xbf16> to vector<64x32xbf16>
    %cst_110 = arith.constant dense<0.000000e+00> : vector<64x49xf32>
    %159 = tpu.matmul %158, %156, %cst_110 {dimension_numbers = #tpu.dot_dimension_numbers<[1], [0], [0], [1], [0, 0, 1, 1], [], []>} : vector<64x32xbf16>, vector<32x49xbf16>, vector<64x49xf32> -> vector<64x49xf32>
    %160 = arith.addf %155, %159 : vector<64x49xf32>
    %161 = vector.extract_strided_slice %47 {offsets = [0, 8], sizes = [32, 49], strides = [1, 1]} : vector<32x128xbf16> to vector<32x49xbf16>
    %c7_111 = arith.constant 7 : index
    %c0_112 = arith.constant 0 : index
    %c0_113 = arith.constant 0 : index
    %162 = vector.load %arg4[%c7_111, %c0_112, %c0_113] : memref<9x64x32xbf16, #tpu.memory_space<vmem>>, vector<1x64x32xbf16>
    %163 = vector.shape_cast %162 : vector<1x64x32xbf16> to vector<64x32xbf16>
    %cst_114 = arith.constant dense<0.000000e+00> : vector<64x49xf32>
    %164 = tpu.matmul %163, %161, %cst_114 {dimension_numbers = #tpu.dot_dimension_numbers<[1], [0], [0], [1], [0, 0, 1, 1], [], []>} : vector<64x32xbf16>, vector<32x49xbf16>, vector<64x49xf32> -> vector<64x49xf32>
    %165 = arith.addf %160, %164 : vector<64x49xf32>
    %166 = vector.extract_strided_slice %45 {offsets = [0, 9], sizes = [32, 49], strides = [1, 1]} : vector<32x128xbf16> to vector<32x49xbf16>
    %c8_115 = arith.constant 8 : index
    %c0_116 = arith.constant 0 : index
    %c0_117 = arith.constant 0 : index
    %167 = vector.load %arg4[%c8_115, %c0_116, %c0_117] : memref<9x64x32xbf16, #tpu.memory_space<vmem>>, vector<1x64x32xbf16>
    %168 = vector.shape_cast %167 : vector<1x64x32xbf16> to vector<64x32xbf16>
    %cst_118 = arith.constant dense<0.000000e+00> : vector<64x49xf32>
    %169 = tpu.matmul %168, %166, %cst_118 {dimension_numbers = #tpu.dot_dimension_numbers<[1], [0], [0], [1], [0, 0, 1, 1], [], []>} : vector<64x32xbf16>, vector<32x49xbf16>, vector<64x49xf32> -> vector<64x49xf32>
    %170 = vector.broadcast %72 : vector<1x49xf32> to vector<64x49xf32>
    %171 = arith.mulf %169, %170 : vector<64x49xf32>
    %172 = arith.addf %165, %171 : vector<64x49xf32>
    %173 = arith.maximumf %122, %172 : vector<64x49xf32>
    %174 = vector.extract_strided_slice %43 {offsets = [0, 7], sizes = [32, 49], strides = [1, 1]} : vector<32x128xbf16> to vector<32x49xbf16>
    %c0_119 = arith.constant 0 : index
    %c0_120 = arith.constant 0 : index
    %c0_121 = arith.constant 0 : index
    %175 = vector.load %arg4[%c0_119, %c0_120, %c0_121] : memref<9x64x32xbf16, #tpu.memory_space<vmem>>, vector<1x64x32xbf16>
    %176 = vector.shape_cast %175 : vector<1x64x32xbf16> to vector<64x32xbf16>
    %cst_122 = arith.constant dense<0.000000e+00> : vector<64x49xf32>
    %177 = tpu.matmul %176, %174, %cst_122 {dimension_numbers = #tpu.dot_dimension_numbers<[1], [0], [0], [1], [0, 0, 1, 1], [], []>} : vector<64x32xbf16>, vector<32x49xbf16>, vector<64x49xf32> -> vector<64x49xf32>
    %178 = vector.broadcast %68 : vector<1x49xf32> to vector<64x49xf32>
    %179 = arith.mulf %177, %178 : vector<64x49xf32>
    %180 = vector.extract_strided_slice %41 {offsets = [0, 8], sizes = [32, 49], strides = [1, 1]} : vector<32x128xbf16> to vector<32x49xbf16>
    %c1_123 = arith.constant 1 : index
    %c0_124 = arith.constant 0 : index
    %c0_125 = arith.constant 0 : index
    %181 = vector.load %arg4[%c1_123, %c0_124, %c0_125] : memref<9x64x32xbf16, #tpu.memory_space<vmem>>, vector<1x64x32xbf16>
    %182 = vector.shape_cast %181 : vector<1x64x32xbf16> to vector<64x32xbf16>
    %cst_126 = arith.constant dense<0.000000e+00> : vector<64x49xf32>
    %183 = tpu.matmul %182, %180, %cst_126 {dimension_numbers = #tpu.dot_dimension_numbers<[1], [0], [0], [1], [0, 0, 1, 1], [], []>} : vector<64x32xbf16>, vector<32x49xbf16>, vector<64x49xf32> -> vector<64x49xf32>
    %184 = arith.addf %179, %183 : vector<64x49xf32>
    %185 = vector.extract_strided_slice %43 {offsets = [0, 8], sizes = [32, 49], strides = [1, 1]} : vector<32x128xbf16> to vector<32x49xbf16>
    %c2_127 = arith.constant 2 : index
    %c0_128 = arith.constant 0 : index
    %c0_129 = arith.constant 0 : index
    %186 = vector.load %arg4[%c2_127, %c0_128, %c0_129] : memref<9x64x32xbf16, #tpu.memory_space<vmem>>, vector<1x64x32xbf16>
    %187 = vector.shape_cast %186 : vector<1x64x32xbf16> to vector<64x32xbf16>
    %cst_130 = arith.constant dense<0.000000e+00> : vector<64x49xf32>
    %188 = tpu.matmul %187, %185, %cst_130 {dimension_numbers = #tpu.dot_dimension_numbers<[1], [0], [0], [1], [0, 0, 1, 1], [], []>} : vector<64x32xbf16>, vector<32x49xbf16>, vector<64x49xf32> -> vector<64x49xf32>
    %189 = arith.addf %184, %188 : vector<64x49xf32>
    %190 = vector.extract_strided_slice %47 {offsets = [0, 7], sizes = [32, 49], strides = [1, 1]} : vector<32x128xbf16> to vector<32x49xbf16>
    %c3_131 = arith.constant 3 : index
    %c0_132 = arith.constant 0 : index
    %c0_133 = arith.constant 0 : index
    %191 = vector.load %arg4[%c3_131, %c0_132, %c0_133] : memref<9x64x32xbf16, #tpu.memory_space<vmem>>, vector<1x64x32xbf16>
    %192 = vector.shape_cast %191 : vector<1x64x32xbf16> to vector<64x32xbf16>
    %cst_134 = arith.constant dense<0.000000e+00> : vector<64x49xf32>
    %193 = tpu.matmul %192, %190, %cst_134 {dimension_numbers = #tpu.dot_dimension_numbers<[1], [0], [0], [1], [0, 0, 1, 1], [], []>} : vector<64x32xbf16>, vector<32x49xbf16>, vector<64x49xf32> -> vector<64x49xf32>
    %194 = vector.broadcast %68 : vector<1x49xf32> to vector<64x49xf32>
    %195 = arith.mulf %193, %194 : vector<64x49xf32>
    %196 = arith.addf %189, %195 : vector<64x49xf32>
    %197 = vector.extract_strided_slice %45 {offsets = [0, 8], sizes = [32, 49], strides = [1, 1]} : vector<32x128xbf16> to vector<32x49xbf16>
    %c4_135 = arith.constant 4 : index
    %c0_136 = arith.constant 0 : index
    %c0_137 = arith.constant 0 : index
    %198 = vector.load %arg4[%c4_135, %c0_136, %c0_137] : memref<9x64x32xbf16, #tpu.memory_space<vmem>>, vector<1x64x32xbf16>
    %199 = vector.shape_cast %198 : vector<1x64x32xbf16> to vector<64x32xbf16>
    %cst_138 = arith.constant dense<0.000000e+00> : vector<64x49xf32>
    %200 = tpu.matmul %199, %197, %cst_138 {dimension_numbers = #tpu.dot_dimension_numbers<[1], [0], [0], [1], [0, 0, 1, 1], [], []>} : vector<64x32xbf16>, vector<32x49xbf16>, vector<64x49xf32> -> vector<64x49xf32>
    %201 = arith.addf %196, %200 : vector<64x49xf32>
    %202 = vector.extract_strided_slice %47 {offsets = [0, 8], sizes = [32, 49], strides = [1, 1]} : vector<32x128xbf16> to vector<32x49xbf16>
    %c5_139 = arith.constant 5 : index
    %c0_140 = arith.constant 0 : index
    %c0_141 = arith.constant 0 : index
    %203 = vector.load %arg4[%c5_139, %c0_140, %c0_141] : memref<9x64x32xbf16, #tpu.memory_space<vmem>>, vector<1x64x32xbf16>
    %204 = vector.shape_cast %203 : vector<1x64x32xbf16> to vector<64x32xbf16>
    %cst_142 = arith.constant dense<0.000000e+00> : vector<64x49xf32>
    %205 = tpu.matmul %204, %202, %cst_142 {dimension_numbers = #tpu.dot_dimension_numbers<[1], [0], [0], [1], [0, 0, 1, 1], [], []>} : vector<64x32xbf16>, vector<32x49xbf16>, vector<64x49xf32> -> vector<64x49xf32>
    %206 = arith.addf %201, %205 : vector<64x49xf32>
    %207 = vector.extract_strided_slice %43 {offsets = [0, 14], sizes = [32, 49], strides = [1, 1]} : vector<32x128xbf16> to vector<32x49xbf16>
    %c6_143 = arith.constant 6 : index
    %c0_144 = arith.constant 0 : index
    %c0_145 = arith.constant 0 : index
    %208 = vector.load %arg4[%c6_143, %c0_144, %c0_145] : memref<9x64x32xbf16, #tpu.memory_space<vmem>>, vector<1x64x32xbf16>
    %209 = vector.shape_cast %208 : vector<1x64x32xbf16> to vector<64x32xbf16>
    %cst_146 = arith.constant dense<0.000000e+00> : vector<64x49xf32>
    %210 = tpu.matmul %209, %207, %cst_146 {dimension_numbers = #tpu.dot_dimension_numbers<[1], [0], [0], [1], [0, 0, 1, 1], [], []>} : vector<64x32xbf16>, vector<32x49xbf16>, vector<64x49xf32> -> vector<64x49xf32>
    %211 = vector.broadcast %68 : vector<1x49xf32> to vector<64x49xf32>
    %212 = arith.mulf %210, %211 : vector<64x49xf32>
    %213 = arith.addf %206, %212 : vector<64x49xf32>
    %214 = vector.extract_strided_slice %41 {offsets = [0, 15], sizes = [32, 49], strides = [1, 1]} : vector<32x128xbf16> to vector<32x49xbf16>
    %c7_147 = arith.constant 7 : index
    %c0_148 = arith.constant 0 : index
    %c0_149 = arith.constant 0 : index
    %215 = vector.load %arg4[%c7_147, %c0_148, %c0_149] : memref<9x64x32xbf16, #tpu.memory_space<vmem>>, vector<1x64x32xbf16>
    %216 = vector.shape_cast %215 : vector<1x64x32xbf16> to vector<64x32xbf16>
    %cst_150 = arith.constant dense<0.000000e+00> : vector<64x49xf32>
    %217 = tpu.matmul %216, %214, %cst_150 {dimension_numbers = #tpu.dot_dimension_numbers<[1], [0], [0], [1], [0, 0, 1, 1], [], []>} : vector<64x32xbf16>, vector<32x49xbf16>, vector<64x49xf32> -> vector<64x49xf32>
    %218 = arith.addf %213, %217 : vector<64x49xf32>
    %219 = vector.extract_strided_slice %43 {offsets = [0, 15], sizes = [32, 49], strides = [1, 1]} : vector<32x128xbf16> to vector<32x49xbf16>
    %c8_151 = arith.constant 8 : index
    %c0_152 = arith.constant 0 : index
    %c0_153 = arith.constant 0 : index
    %220 = vector.load %arg4[%c8_151, %c0_152, %c0_153] : memref<9x64x32xbf16, #tpu.memory_space<vmem>>, vector<1x64x32xbf16>
    %221 = vector.shape_cast %220 : vector<1x64x32xbf16> to vector<64x32xbf16>
    %cst_154 = arith.constant dense<0.000000e+00> : vector<64x49xf32>
    %222 = tpu.matmul %221, %219, %cst_154 {dimension_numbers = #tpu.dot_dimension_numbers<[1], [0], [0], [1], [0, 0, 1, 1], [], []>} : vector<64x32xbf16>, vector<32x49xbf16>, vector<64x49xf32> -> vector<64x49xf32>
    %223 = arith.addf %218, %222 : vector<64x49xf32>
    %224 = arith.maximumf %173, %223 : vector<64x49xf32>
    %225 = vector.extract_strided_slice %41 {offsets = [0, 8], sizes = [32, 49], strides = [1, 1]} : vector<32x128xbf16> to vector<32x49xbf16>
    %c0_155 = arith.constant 0 : index
    %c0_156 = arith.constant 0 : index
    %c0_157 = arith.constant 0 : index
    %226 = vector.load %arg4[%c0_155, %c0_156, %c0_157] : memref<9x64x32xbf16, #tpu.memory_space<vmem>>, vector<1x64x32xbf16>
    %227 = vector.shape_cast %226 : vector<1x64x32xbf16> to vector<64x32xbf16>
    %cst_158 = arith.constant dense<0.000000e+00> : vector<64x49xf32>
    %228 = tpu.matmul %227, %225, %cst_158 {dimension_numbers = #tpu.dot_dimension_numbers<[1], [0], [0], [1], [0, 0, 1, 1], [], []>} : vector<64x32xbf16>, vector<32x49xbf16>, vector<64x49xf32> -> vector<64x49xf32>
    %229 = vector.extract_strided_slice %43 {offsets = [0, 8], sizes = [32, 49], strides = [1, 1]} : vector<32x128xbf16> to vector<32x49xbf16>
    %c1_159 = arith.constant 1 : index
    %c0_160 = arith.constant 0 : index
    %c0_161 = arith.constant 0 : index
    %230 = vector.load %arg4[%c1_159, %c0_160, %c0_161] : memref<9x64x32xbf16, #tpu.memory_space<vmem>>, vector<1x64x32xbf16>
    %231 = vector.shape_cast %230 : vector<1x64x32xbf16> to vector<64x32xbf16>
    %cst_162 = arith.constant dense<0.000000e+00> : vector<64x49xf32>
    %232 = tpu.matmul %231, %229, %cst_162 {dimension_numbers = #tpu.dot_dimension_numbers<[1], [0], [0], [1], [0, 0, 1, 1], [], []>} : vector<64x32xbf16>, vector<32x49xbf16>, vector<64x49xf32> -> vector<64x49xf32>
    %233 = arith.addf %228, %232 : vector<64x49xf32>
    %234 = vector.extract_strided_slice %41 {offsets = [0, 9], sizes = [32, 49], strides = [1, 1]} : vector<32x128xbf16> to vector<32x49xbf16>
    %c2_163 = arith.constant 2 : index
    %c0_164 = arith.constant 0 : index
    %c0_165 = arith.constant 0 : index
    %235 = vector.load %arg4[%c2_163, %c0_164, %c0_165] : memref<9x64x32xbf16, #tpu.memory_space<vmem>>, vector<1x64x32xbf16>
    %236 = vector.shape_cast %235 : vector<1x64x32xbf16> to vector<64x32xbf16>
    %cst_166 = arith.constant dense<0.000000e+00> : vector<64x49xf32>
    %237 = tpu.matmul %236, %234, %cst_166 {dimension_numbers = #tpu.dot_dimension_numbers<[1], [0], [0], [1], [0, 0, 1, 1], [], []>} : vector<64x32xbf16>, vector<32x49xbf16>, vector<64x49xf32> -> vector<64x49xf32>
    %238 = vector.broadcast %72 : vector<1x49xf32> to vector<64x49xf32>
    %239 = arith.mulf %237, %238 : vector<64x49xf32>
    %240 = arith.addf %233, %239 : vector<64x49xf32>
    %241 = vector.extract_strided_slice %45 {offsets = [0, 8], sizes = [32, 49], strides = [1, 1]} : vector<32x128xbf16> to vector<32x49xbf16>
    %c3_167 = arith.constant 3 : index
    %c0_168 = arith.constant 0 : index
    %c0_169 = arith.constant 0 : index
    %242 = vector.load %arg4[%c3_167, %c0_168, %c0_169] : memref<9x64x32xbf16, #tpu.memory_space<vmem>>, vector<1x64x32xbf16>
    %243 = vector.shape_cast %242 : vector<1x64x32xbf16> to vector<64x32xbf16>
    %cst_170 = arith.constant dense<0.000000e+00> : vector<64x49xf32>
    %244 = tpu.matmul %243, %241, %cst_170 {dimension_numbers = #tpu.dot_dimension_numbers<[1], [0], [0], [1], [0, 0, 1, 1], [], []>} : vector<64x32xbf16>, vector<32x49xbf16>, vector<64x49xf32> -> vector<64x49xf32>
    %245 = arith.addf %240, %244 : vector<64x49xf32>
    %246 = vector.extract_strided_slice %47 {offsets = [0, 8], sizes = [32, 49], strides = [1, 1]} : vector<32x128xbf16> to vector<32x49xbf16>
    %c4_171 = arith.constant 4 : index
    %c0_172 = arith.constant 0 : index
    %c0_173 = arith.constant 0 : index
    %247 = vector.load %arg4[%c4_171, %c0_172, %c0_173] : memref<9x64x32xbf16, #tpu.memory_space<vmem>>, vector<1x64x32xbf16>
    %248 = vector.shape_cast %247 : vector<1x64x32xbf16> to vector<64x32xbf16>
    %cst_174 = arith.constant dense<0.000000e+00> : vector<64x49xf32>
    %249 = tpu.matmul %248, %246, %cst_174 {dimension_numbers = #tpu.dot_dimension_numbers<[1], [0], [0], [1], [0, 0, 1, 1], [], []>} : vector<64x32xbf16>, vector<32x49xbf16>, vector<64x49xf32> -> vector<64x49xf32>
    %250 = arith.addf %245, %249 : vector<64x49xf32>
    %251 = vector.extract_strided_slice %45 {offsets = [0, 9], sizes = [32, 49], strides = [1, 1]} : vector<32x128xbf16> to vector<32x49xbf16>
    %c5_175 = arith.constant 5 : index
    %c0_176 = arith.constant 0 : index
    %c0_177 = arith.constant 0 : index
    %252 = vector.load %arg4[%c5_175, %c0_176, %c0_177] : memref<9x64x32xbf16, #tpu.memory_space<vmem>>, vector<1x64x32xbf16>
    %253 = vector.shape_cast %252 : vector<1x64x32xbf16> to vector<64x32xbf16>
    %cst_178 = arith.constant dense<0.000000e+00> : vector<64x49xf32>
    %254 = tpu.matmul %253, %251, %cst_178 {dimension_numbers = #tpu.dot_dimension_numbers<[1], [0], [0], [1], [0, 0, 1, 1], [], []>} : vector<64x32xbf16>, vector<32x49xbf16>, vector<64x49xf32> -> vector<64x49xf32>
    %255 = vector.broadcast %72 : vector<1x49xf32> to vector<64x49xf32>
    %256 = arith.mulf %254, %255 : vector<64x49xf32>
    %257 = arith.addf %250, %256 : vector<64x49xf32>
    %258 = vector.extract_strided_slice %41 {offsets = [0, 15], sizes = [32, 49], strides = [1, 1]} : vector<32x128xbf16> to vector<32x49xbf16>
    %c6_179 = arith.constant 6 : index
    %c0_180 = arith.constant 0 : index
    %c0_181 = arith.constant 0 : index
    %259 = vector.load %arg4[%c6_179, %c0_180, %c0_181] : memref<9x64x32xbf16, #tpu.memory_space<vmem>>, vector<1x64x32xbf16>
    %260 = vector.shape_cast %259 : vector<1x64x32xbf16> to vector<64x32xbf16>
    %cst_182 = arith.constant dense<0.000000e+00> : vector<64x49xf32>
    %261 = tpu.matmul %260, %258, %cst_182 {dimension_numbers = #tpu.dot_dimension_numbers<[1], [0], [0], [1], [0, 0, 1, 1], [], []>} : vector<64x32xbf16>, vector<32x49xbf16>, vector<64x49xf32> -> vector<64x49xf32>
    %262 = arith.addf %257, %261 : vector<64x49xf32>
    %263 = vector.extract_strided_slice %43 {offsets = [0, 15], sizes = [32, 49], strides = [1, 1]} : vector<32x128xbf16> to vector<32x49xbf16>
    %c7_183 = arith.constant 7 : index
    %c0_184 = arith.constant 0 : index
    %c0_185 = arith.constant 0 : index
    %264 = vector.load %arg4[%c7_183, %c0_184, %c0_185] : memref<9x64x32xbf16, #tpu.memory_space<vmem>>, vector<1x64x32xbf16>
    %265 = vector.shape_cast %264 : vector<1x64x32xbf16> to vector<64x32xbf16>
    %cst_186 = arith.constant dense<0.000000e+00> : vector<64x49xf32>
    %266 = tpu.matmul %265, %263, %cst_186 {dimension_numbers = #tpu.dot_dimension_numbers<[1], [0], [0], [1], [0, 0, 1, 1], [], []>} : vector<64x32xbf16>, vector<32x49xbf16>, vector<64x49xf32> -> vector<64x49xf32>
    %267 = arith.addf %262, %266 : vector<64x49xf32>
    %268 = vector.extract_strided_slice %41 {offsets = [0, 16], sizes = [32, 49], strides = [1, 1]} : vector<32x128xbf16> to vector<32x49xbf16>
    %c8_187 = arith.constant 8 : index
    %c0_188 = arith.constant 0 : index
    %c0_189 = arith.constant 0 : index
    %269 = vector.load %arg4[%c8_187, %c0_188, %c0_189] : memref<9x64x32xbf16, #tpu.memory_space<vmem>>, vector<1x64x32xbf16>
    %270 = vector.shape_cast %269 : vector<1x64x32xbf16> to vector<64x32xbf16>
    %cst_190 = arith.constant dense<0.000000e+00> : vector<64x49xf32>
    %271 = tpu.matmul %270, %268, %cst_190 {dimension_numbers = #tpu.dot_dimension_numbers<[1], [0], [0], [1], [0, 0, 1, 1], [], []>} : vector<64x32xbf16>, vector<32x49xbf16>, vector<64x49xf32> -> vector<64x49xf32>
    %272 = vector.broadcast %72 : vector<1x49xf32> to vector<64x49xf32>
    %273 = arith.mulf %271, %272 : vector<64x49xf32>
    %274 = arith.addf %267, %273 : vector<64x49xf32>
    %275 = arith.maximumf %224, %274 : vector<64x49xf32>
    %c0_191 = arith.constant 0 : index
    %c0_192 = arith.constant 0 : index
    %276 = vector.load %arg5[%c0_191, %c0_192] : memref<64x1xf32, #tpu.memory_space<vmem>>, vector<64x1xf32>
    %277 = vector.broadcast %276 : vector<64x1xf32> to vector<64x49xf32>
    %278 = arith.addf %275, %277 : vector<64x49xf32>
    %cst_193 = arith.constant 0.000000e+00 : f32
    %279 = vector.broadcast %cst_193 : f32 to vector<64x49xf32>
    %280 = arith.maximumf %278, %279 : vector<64x49xf32>
    %281 = arith.truncf %280 : vector<64x49xf32> to vector<64x49xbf16>
    %c0_194 = arith.constant 0 : index
    %c0_195 = arith.constant 0 : index
    %c0_196 = arith.constant 0 : index
    %282 = vector.load %arg6[%c0_194, %c0_195, %c0_196] : memref<1x64x49xbf16, #tpu.memory_space<vmem>>, vector<1x64x49xbf16>
    %283 = vector.shape_cast %282 : vector<1x64x49xbf16> to vector<64x49xbf16>
    %284 = vector.shape_cast %281 : vector<64x49xbf16> to vector<1x64x49xbf16>
    tpu.vector_store %arg6[%c0_194, %c0_195, %c0_196], %284 {strides = array<i32>} : memref<1x64x49xbf16, #tpu.memory_space<vmem>>, vector<1x64x49xbf16>,
    return
  }
  func.func @transform_0(%arg0: i32) -> (i32, i32, i32, i32) {
    %c0_i32 = arith.constant 0 : i32
    %c0_i32_0 = arith.constant 0 : i32
    %c0_i32_1 = arith.constant 0 : i32
    %c0_i32_2 = arith.constant 0 : i32
    return %arg0, %c0_i32, %c0_i32_0, %c0_i32_1 : i32, i32, i32, i32
  }
  func.func @transform_1(%arg0: i32) -> (i32, i32) {
    %c0_i32 = arith.constant 0 : i32
    %c0_i32_0 = arith.constant 0 : i32
    %c0_i32_1 = arith.constant 0 : i32
    return %c0_i32, %c0_i32_0 : i32, i32
  }
  func.func @transform_2(%arg0: i32) -> (i32, i32) {
    %c0_i32 = arith.constant 0 : i32
    %c0_i32_0 = arith.constant 0 : i32
    %c0_i32_1 = arith.constant 0 : i32
    return %c0_i32, %c0_i32_0 : i32, i32
  }
  func.func @transform_3(%arg0: i32) -> (i32, i32, i32) {
    %c0_i32 = arith.constant 0 : i32
    %c0_i32_0 = arith.constant 0 : i32
    %c0_i32_1 = arith.constant 0 : i32
    %c0_i32_2 = arith.constant 0 : i32
    return %c0_i32, %c0_i32_0, %c0_i32_1 : i32, i32, i32
  }
  func.func @transform_4(%arg0: i32) -> (i32, i32) {
    %c0_i32 = arith.constant 0 : i32
    %c0_i32_0 = arith.constant 0 : i32
    %c0_i32_1 = arith.constant 0 : i32
    return %c0_i32, %c0_i32_0 : i32, i32
  }
  func.func @transform_5(%arg0: i32) -> (i32, i32, i32) {
    %c0_i32 = arith.constant 0 : i32
    %c0_i32_0 = arith.constant 0 : i32
    %c0_i32_1 = arith.constant 0 : i32
    return %arg0, %c0_i32, %c0_i32_0 : i32, i32, i32
  }
}

module attributes {stable_mosaic.version = 11 : i64} {
  func.func @fc_kernel(%arg0: i32, %arg1: memref<2x3136xbf16, #tpu.memory_space<vmem>>, %arg2: memref<1x3136x64xbf16, #tpu.memory_space<vmem>>, %arg3: memref<1x1x64xf32, #tpu.memory_space<vmem>>, %arg4: memref<1x64x128xbf16, #tpu.memory_space<vmem>>, %arg5: memref<1x2x128xf32, #tpu.memory_space<vmem>>) attributes {dimension_semantics = [#tpu.dimension_semantics<parallel>], iteration_bounds = array<i64: 2>, scalar_prefetch = 0 : i64, scratch_operands = 0 : i64, tpu.core_type = #tpu.core_type<tc>, window_params = [{pipeline_mode = #tpu.pipeline_mode<synchronous>, transform_indices = @transform_0, window_bounds = array<i64: 2, 3136>}, {transform_indices = @transform_1, window_bounds = array<i64: 1, 3136, 64>}, {transform_indices = @transform_2, window_bounds = array<i64: 1, 1, 64>}, {transform_indices = @transform_3, window_bounds = array<i64: 1, 64, 128>}, {transform_indices = @transform_4, window_bounds = array<i64: 1, 2, 128>}]} {
    %c0 = arith.constant 0 : index
    %c0_0 = arith.constant 0 : index
    %0 = vector.load %arg1[%c0, %c0_0] : memref<2x3136xbf16, #tpu.memory_space<vmem>>, vector<2x3136xbf16>
    %c0_1 = arith.constant 0 : index
    %c0_2 = arith.constant 0 : index
    %c0_3 = arith.constant 0 : index
    %1 = vector.load %arg2[%c0_1, %c0_2, %c0_3] : memref<1x3136x64xbf16, #tpu.memory_space<vmem>>, vector<1x3136x64xbf16>
    %2 = vector.shape_cast %1 : vector<1x3136x64xbf16> to vector<3136x64xbf16>
    %cst = arith.constant dense<0.000000e+00> : vector<2x64xf32>
    %3 = tpu.matmul %0, %2, %cst {dimension_numbers = #tpu.dot_dimension_numbers<[1], [0], [0], [1], [0, 0, 1, 1], [], []>} : vector<2x3136xbf16>, vector<3136x64xbf16>, vector<2x64xf32> -> vector<2x64xf32>
    %c0_4 = arith.constant 0 : index
    %c0_5 = arith.constant 0 : index
    %c0_6 = arith.constant 0 : index
    %4 = vector.load %arg3[%c0_4, %c0_5, %c0_6] : memref<1x1x64xf32, #tpu.memory_space<vmem>>, vector<1x1x64xf32>
    %5 = vector.shape_cast %4 : vector<1x1x64xf32> to vector<1x64xf32>
    %6 = vector.broadcast %5 : vector<1x64xf32> to vector<2x64xf32>
    %7 = arith.addf %3, %6 : vector<2x64xf32>
    %cst_7 = arith.constant 0.000000e+00 : f32
    %8 = vector.broadcast %cst_7 : f32 to vector<2x64xf32>
    %9 = arith.maximumf %7, %8 : vector<2x64xf32>
    %10 = arith.truncf %9 : vector<2x64xf32> to vector<2x64xbf16>
    %c0_8 = arith.constant 0 : index
    %c0_9 = arith.constant 0 : index
    %c0_10 = arith.constant 0 : index
    %11 = vector.load %arg4[%c0_8, %c0_9, %c0_10] : memref<1x64x128xbf16, #tpu.memory_space<vmem>>, vector<1x64x128xbf16>
    %12 = vector.shape_cast %11 : vector<1x64x128xbf16> to vector<64x128xbf16>
    %cst_11 = arith.constant dense<0.000000e+00> : vector<2x128xf32>
    %13 = tpu.matmul %10, %12, %cst_11 {dimension_numbers = #tpu.dot_dimension_numbers<[1], [0], [0], [1], [0, 0, 1, 1], [], []>} : vector<2x64xbf16>, vector<64x128xbf16>, vector<2x128xf32> -> vector<2x128xf32>
    %c0_12 = arith.constant 0 : index
    %c0_13 = arith.constant 0 : index
    %c0_14 = arith.constant 0 : index
    %14 = vector.load %arg5[%c0_12, %c0_13, %c0_14] : memref<1x2x128xf32, #tpu.memory_space<vmem>>, vector<1x2x128xf32>
    %15 = vector.shape_cast %14 : vector<1x2x128xf32> to vector<2x128xf32>
    %16 = vector.shape_cast %13 : vector<2x128xf32> to vector<1x2x128xf32>
    tpu.vector_store %arg5[%c0_12, %c0_13, %c0_14], %16 {strides = array<i32>} : memref<1x2x128xf32, #tpu.memory_space<vmem>>, vector<1x2x128xf32>,
    return
  }
  func.func @transform_0(%arg0: i32) -> (i32, i32) {
    %c0_i32 = arith.constant 0 : i32
    %c0_i32_0 = arith.constant 0 : i32
    %c0_i32_1 = arith.constant 0 : i32
    return %c0_i32, %c0_i32_0 : i32, i32
  }
  func.func @transform_1(%arg0: i32) -> (i32, i32, i32) {
    %c0_i32 = arith.constant 0 : i32
    %c0_i32_0 = arith.constant 0 : i32
    %c0_i32_1 = arith.constant 0 : i32
    return %arg0, %c0_i32, %c0_i32_0 : i32, i32, i32
  }
  func.func @transform_2(%arg0: i32) -> (i32, i32, i32) {
    %c0_i32 = arith.constant 0 : i32
    %c0_i32_0 = arith.constant 0 : i32
    %c0_i32_1 = arith.constant 0 : i32
    return %arg0, %c0_i32, %c0_i32_0 : i32, i32, i32
  }
  func.func @transform_3(%arg0: i32) -> (i32, i32, i32) {
    %c0_i32 = arith.constant 0 : i32
    %c0_i32_0 = arith.constant 0 : i32
    %c0_i32_1 = arith.constant 0 : i32
    return %arg0, %c0_i32, %c0_i32_0 : i32, i32, i32
  }
  func.func @transform_4(%arg0: i32) -> (i32, i32, i32) {
    %c0_i32 = arith.constant 0 : i32
    %c0_i32_0 = arith.constant 0 : i32
    %c0_i32_1 = arith.constant 0 : i32
    return %arg0, %c0_i32, %c0_i32_0 : i32, i32, i32
  }
}

</mosaic_0001>

<llo_original>
// kernel: simple_cnn_forward.2
$region0: #{simple_cnn_forward.2}
  #allocation0 [shape = 'u32[]', space=smem, size = 0x4, offset = 0x4, fixed_abs, tag = 'smem constant byte address 0x4 - core index']
  #allocation1 [shape = 'u32[144,128]{1,0:T(1,128)}', space=vmem, size = 0x12000, scoped, tag = 'internal scratch']
  #allocation2 [shape = 'bf16[4,32,128]{2,1,0:T(8,128)(2,1)}', space=vmem, size = 0x8000, scoped, tag = 'scratch operand']
  %s0 = inlined_call_operand.vmem [shape: bf16[2,4,9,196], index: 0, kind: input, shape index: {}]
  %s1 = inlined_call_operand.vmem [shape: bf16[32,9], index: 1, kind: input, shape index: {}]
  %s2 = inlined_call_operand.vmem [shape: f32[32,1], index: 2, kind: input, shape index: {}]
  %s3 = inlined_call_operand.vmem [shape: bf16[9,64,32], index: 3, kind: input, shape index: {}]
  %s4 = inlined_call_operand.vmem [shape: f32[64,1], index: 4, kind: input, shape index: {}]
  %s5 = inlined_call_operand.vmem [shape: bf16[2,64,49], index: 5, kind: output, shape index: {}]
  %s6 = sld [smem:[#allocation0]]
  $region53: #{simple_cnn_forward.2} parent=0
    _
  %s8 = ssub.s32 1, %s6
  %s9 = scalar_select 0, %s8, %s6
  loop: start=0, step=1, limit=4
  $region2: #{simple_cnn_forward.2} parent=0 // loop_pre_header
    _
  $region3: #{simple_cnn_forward.2} parent=0 // loop_header
    %s11 = sphi 0, %s15
    %p12 = scmp.ge.s32.totalorder %s11, 4
    %s21 = sphi 0, %s23
    %s24 = sphi 0, %s21
    %s25 = sphi 0, %s24
    %s41 = sphi 0, %s25
    %s45 = sphi 0, %s45
    %s47 = sphi 0, %s45
    %s48 = sphi 0, %s47
    %s62 = sphi 0, %s48
    %s66 = sphi 0, %s66
    %s68 = sphi 0, %s66
    %s69 = sphi 0, %s68
    %s83 = sphi 0, %s69
    %s87 = sphi 0, %s87
    %s89 = sphi 0, %s87
    %s90 = sphi 0, %s89
    %s104 = sphi 0, %s90
    %s108 = sphi 0, %s108
    %s110 = sphi 0, %s108
    %s111 = sphi 0, %s110
    %s125 = sphi 0, %s111
    %s131 = sphi 0, %s133
    %s134 = sphi 0, %s131
    %s135 = sphi 0, %s134
    %s151 = sphi 0, %s135
  $region4: #{simple_cnn_forward.2} parent=0 // loop_header_branch
    %14 = sbr.rel (%p12) target = $region8
  $region5: #{simple_cnn_forward.2} parent=0 // loop_body
    %s16 = ssub.s32 %s11, 1
    %s17 = ssub.s32 %s11, 2
    %s18 = sadd.s32 %s11, 1
    %s19 = ssub.s32 %s11, %s18
    %p20 = scmp.eq.s32.totalorder %s19, 0
    %s22 = sadd.s32 %s21, 1
    %s23 = scalar_select %p20, %s21, %s22
    %p26 = pneg %p20
    %p27 = scmp.eq.s32.totalorder %s11, 1
    %p28 = por %p26, %p27
    %p29 = scmp.ne.s32.totalorder %s21, %s24
    %p30 = scmp.eq.s32.totalorder %s11, 0
    %p31 = por %p29, %p30
    %p32 = scmp.ne.s32.totalorder %s21, %s24
    %p33 = scmp.eq.s32.totalorder %s16, 1
    %p34 = por %p32, %p33
    %p35 = scmp.ne.s32.totalorder %s24, %s25
    %p36 = scmp.eq.s32.totalorder %s16, 0
    %p37 = por %p35, %p36
    %p38 = scmp.ne.s32.totalorder %s24, %s25
    %p39 = scmp.eq.s32.totalorder %s17, 1
    %p40 = por %p38, %p39
    %p42 = scmp.ne.s32.totalorder %s25, %s41
    %p43 = scmp.eq.s32.totalorder %s17, 0
    %p44 = por %p42, %p43
    %s46 = sadd.s32 %s45, 1
    %p49 = scmp.eq.s32.totalorder %s11, 1
    %p50 = scmp.ne.s32.totalorder %s45, %s47
    %p51 = scmp.eq.s32.totalorder %s11, 0
    %p52 = por %p50, %p51
    %p53 = scmp.ne.s32.totalorder %s45, %s47
    %p54 = scmp.eq.s32.totalorder %s16, 1
    %p55 = por %p53, %p54
    %p56 = scmp.ne.s32.totalorder %s47, %s48
    %p57 = scmp.eq.s32.totalorder %s16, 0
    %p58 = por %p56, %p57
    %p59 = scmp.ne.s32.totalorder %s47, %s48
    %p60 = scmp.eq.s32.totalorder %s17, 1
    %p61 = por %p59, %p60
    %p63 = scmp.ne.s32.totalorder %s48, %s62
    %p64 = scmp.eq.s32.totalorder %s17, 0
    %p65 = por %p63, %p64
    %s67 = sadd.s32 %s66, 1
    %p70 = scmp.eq.s32.totalorder %s11, 1
    %p71 = scmp.ne.s32.totalorder %s66, %s68
    %p72 = scmp.eq.s32.totalorder %s11, 0
    %p73 = por %p71, %p72
    %p74 = scmp.ne.s32.totalorder %s66, %s68
    %p75 = scmp.eq.s32.totalorder %s16, 1
    %p76 = por %p74, %p75
    %p77 = scmp.ne.s32.totalorder %s68, %s69
    %p78 = scmp.eq.s32.totalorder %s16, 0
    %p79 = por %p77, %p78
    %p80 = scmp.ne.s32.totalorder %s68, %s69
    %p81 = scmp.eq.s32.totalorder %s17, 1
    %p82 = por %p80, %p81
    %p84 = scmp.ne.s32.totalorder %s69, %s83
    %p85 = scmp.eq.s32.totalorder %s17, 0
    %p86 = por %p84, %p85
    %s88 = sadd.s32 %s87, 1
    %p91 = scmp.eq.s32.totalorder %s11, 1
    %p92 = scmp.ne.s32.totalorder %s87, %s89
    %p93 = scmp.eq.s32.totalorder %s11, 0
    %p94 = por %p92, %p93
    %p95 = scmp.ne.s32.totalorder %s87, %s89
    %p96 = scmp.eq.s32.totalorder %s16, 1
    %p97 = por %p95, %p96
    %p98 = scmp.ne.s32.totalorder %s89, %s90
    %p99 = scmp.eq.s32.totalorder %s16, 0
    %p100 = por %p98, %p99
    %p101 = scmp.ne.s32.totalorder %s89, %s90
    %p102 = scmp.eq.s32.totalorder %s17, 1
    %p103 = por %p101, %p102
    %p105 = scmp.ne.s32.totalorder %s90, %s104
    %p106 = scmp.eq.s32.totalorder %s17, 0
    %p107 = por %p105, %p106
    %s109 = sadd.s32 %s108, 1
    %p112 = scmp.eq.s32.totalorder %s11, 1
    %p113 = scmp.ne.s32.totalorder %s108, %s110
    %p114 = scmp.eq.s32.totalorder %s11, 0
    %p115 = por %p113, %p114
    %p116 = scmp.ne.s32.totalorder %s108, %s110
    %p117 = scmp.eq.s32.totalorder %s16, 1
    %p118 = por %p116, %p117
    %p119 = scmp.ne.s32.totalorder %s110, %s111
    %p120 = scmp.eq.s32.totalorder %s16, 0
    %p121 = por %p119, %p120
    %p122 = scmp.ne.s32.totalorder %s110, %s111
    %p123 = scmp.eq.s32.totalorder %s17, 1
    %p124 = por %p122, %p123
    %p126 = scmp.ne.s32.totalorder %s111, %s125
    %p127 = scmp.eq.s32.totalorder %s17, 0
    %p128 = por %p126, %p127
    %s129 = ssub.s32 %s11, %s18
    %p130 = scmp.eq.s32.totalorder %s129, 0
    %s132 = sadd.s32 %s131, 1
    %s133 = scalar_select %p130, %s131, %s132
    %p136 = pneg %p130
    %p137 = scmp.eq.s32.totalorder %s11, 1
    %p138 = por %p136, %p137
    %p139 = scmp.ne.s32.totalorder %s131, %s134
    %p140 = scmp.eq.s32.totalorder %s11, 0
    %p141 = por %p139, %p140
    %p142 = scmp.ne.s32.totalorder %s131, %s134
    %p143 = scmp.eq.s32.totalorder %s16, 1
    %p144 = por %p142, %p143
    %p145 = scmp.ne.s32.totalorder %s134, %s135
    %p146 = scmp.eq.s32.totalorder %s16, 0
    %p147 = por %p145, %p146
    %p148 = scmp.ne.s32.totalorder %s134, %s135
    %p149 = scmp.eq.s32.totalorder %s17, 1
    %p150 = por %p148, %p149
    %p152 = scmp.ne.s32.totalorder %s135, %s151
    %p153 = scmp.eq.s32.totalorder %s17, 0
    %p154 = por %p152, %p153
    %p155 = scmp.le.s32.totalorder 1, %s11
    %p156 = scmp.lt.s32.totalorder %s11, 3
    %p157 = pnand %p155, %p156
    %p158 = pneg %p157
    // Predicated region
    $region9: #{simple_cnn_forward.2} parent=5 // pred_check
      _
    $region10: #{simple_cnn_forward.2} parent=5 // pred_check_branch
      %160 = sbr.rel (%p157) target = $region12
    $region11: #{simple_cnn_forward.2} parent=5 // pred_region
      %s161 = ssub.s32 %s11, 1
      // Predicated region
      $region13: #{simple_cnn_forward.2} parent=11 // pred_check
        %p162 = pneg %p58
      $region14: #{simple_cnn_forward.2} parent=11 // pred_check_branch
        %164 = sbr.rel (%p162) target = $region16
      $region15: #{simple_cnn_forward.2} parent=11 // pred_region
        _
      $region16: #{simple_cnn_forward.2} parent=11 // pred_fallthru
        _
      // Predicated region
      $region17: #{simple_cnn_forward.2} parent=11 // pred_check
        %p165 = pneg %p79
      $region18: #{simple_cnn_forward.2} parent=11 // pred_check_branch
        %167 = sbr.rel (%p165) target = $region20
      $region19: #{simple_cnn_forward.2} parent=11 // pred_region
        _
      $region20: #{simple_cnn_forward.2} parent=11 // pred_fallthru
        _
      // Predicated region
      $region21: #{simple_cnn_forward.2} parent=11 // pred_check
        %p168 = pneg %p100
      $region22: #{simple_cnn_forward.2} parent=11 // pred_check_branch
        %170 = sbr.rel (%p168) target = $region24
      $region23: #{simple_cnn_forward.2} parent=11 // pred_region
        _
      $region24: #{simple_cnn_forward.2} parent=11 // pred_fallthru
        _
      // Predicated region
      $region25: #{simple_cnn_forward.2} parent=11 // pred_check
        %p171 = pneg %p121
      $region26: #{simple_cnn_forward.2} parent=11 // pred_check_branch
        %173 = sbr.rel (%p171) target = $region28
      $region27: #{simple_cnn_forward.2} parent=11 // pred_region
        _
      $region28: #{simple_cnn_forward.2} parent=11 // pred_fallthru
        _
    $region12: #{simple_cnn_forward.2} parent=5 // pred_fallthru
      _
    %p174 = scmp.lt.s32.totalorder %s11, 2
    // Predicated region
    $region29: #{simple_cnn_forward.2} parent=5 // pred_check
      %p175 = pneg %p174
    $region30: #{simple_cnn_forward.2} parent=5 // pred_check_branch
      %177 = sbr.rel (%p175) target = $region32
    $region31: #{simple_cnn_forward.2} parent=5 // pred_region
      // Predicated region
      $region33: #{simple_cnn_forward.2} parent=31 // pred_check
        %p178 = pneg %p31
      $region34: #{simple_cnn_forward.2} parent=31 // pred_check_branch
        %180 = sbr.rel (%p178) target = $region36
      $region35: #{simple_cnn_forward.2} parent=31 // pred_region
        %p181 = scmp.lt.s32.totalorder %s11, 1
        %s182 = scalar_select %p181, %s11, 1
        %s183 = smul.addr %s182, 16
        %s184 = smul.addr %s183, 4
        %s185 = scalar_lea.vmem %s0, %s184
      $region36: #{simple_cnn_forward.2} parent=31 // pred_fallthru
        _
    $region32: #{simple_cnn_forward.2} parent=5 // pred_fallthru
      _
    %p186 = scmp.le.s32.totalorder 1, %s11
    %p187 = scmp.lt.s32.totalorder %s11, 3
    %p188 = pnand %p186, %p187
    %p189 = pneg %p188
    // Predicated region
    $region37: #{simple_cnn_forward.2} parent=5 // pred_check
      _
    $region38: #{simple_cnn_forward.2} parent=5 // pred_check_branch
      %191 = sbr.rel (%p188) target = $region40
    $region39: #{simple_cnn_forward.2} parent=5 // pred_region
      %s192 = ssub.s32 %s11, 1
      %p193 = scmp.lt.s32.totalorder %s16, 1
      %s194 = scalar_select %p193, %s16, 1
      %s195 = smul.addr %s194, 16
      %s196 = smul.addr %s195, 4
      %s197 = scalar_lea.vmem %s0, %s196
      %p198 = pneg %p37
      %p199 = pneg %p34
      %p200 = pneg %p58
      %p201 = pneg %p55
      %p202 = pneg %p79
      %p203 = pneg %p76
      %p204 = pneg %p100
      %p205 = pneg %p97
      %p206 = pneg %p121
      %p207 = pneg %p118
      %p208 = pneg %p147
      %p209 = pneg %p144
      %p210 = scmp.lt.s32.totalorder %s16, 1
      %s211 = scalar_select %p210, %s16, 1
      %s212 = smul.addr %s211, 8
      %s213 = smul.addr %s212, 4
      %s214 = scalar_lea.vmem %s5, %s213
      %p215 = scmp.lt.s32.totalorder %s16, 1
      %s216 = scalar_select %p215, %s16, 1
      %s217 = smul.addr %s216, 16
      %s218 = smul.addr %s217, 4
      %s219 = scalar_lea.vmem %s0, %s218
      %p220 = scmp.lt.s32.totalorder %s16, 1
      %s221 = scalar_select %p220, %s16, 1
      %s222 = smul.addr %s221, 8
      %s223 = smul.addr %s222, 4
      %s224 = scalar_lea.vmem %s5, %s223
      %v226 = vld [vmem:[%s1] sm:$0xf]
      %v227 = vld [vmem:[%s1 + $0x4] sm:$0xf]
      %v228 = vld [vmem:[%s1 + $0x8] sm:$0xf]
      %v229 = vld [vmem:[%s1 + $0xc] sm:$0xf]
      %v230 = vld [vmem:[%s219] sm:$0xff]
      %v231 = vld [vmem:[%s219 + $0x8] sm:$0x11]
      %v236 = vunpack.c.l.b16 %v226
      %v237 = vunpack.c.l.b16 %v227
      %v238 = vunpack.c.l.b16 %v228
      %v239 = vunpack.c.l.b16 %v229
      %v240 = vpack.c.b16 %v237, %v236
      %v241 = vpack.c.b16 %v239, %v238
      %v244 = vunpack.c.l.b16 %v230
      %v245 = vunpack.c.h.b16 %v230
      %v246 = vunpack.c.l.b16 %v231
      %v247 = vunpack.c.h.b16 %v231
      %v248 = vpack.c.b16 %v246, %v244
      %v249 = vpack.c.b16 %v247, %v245
      %vm250 = vcmask 72704
      %v252 = vsel %vm250, %v240, 0
      %v255 = vsel %vm250, %v241, 0
      %vm257 = vcmask 1043456
      %vm258 = vcmask 1044480
      %v259 = vsel %vm257, 4294967295, 65535
      %v260 = vsel %vm258, %v259, 0
      %v262 = vand.u32 %v248, %v260
      %v265 = vand.u32 %v249, %v260
      %267 = vmatprep.subr.bf16.mxu0 0
      %268 = vmatpush1.bf16.msra.mxu0 0
      %269 = vmatprep.subr.bf16.mxu0 0
      %270 = vmatpush1.bf16.msra.mxu0 0
      %271 = vmatprep.subr.bf16.mxu0 0
      %272 = vmatpush1.bf16.msra.mxu0 0
      %273 = vmatprep.subr.bf16.mxu0 0
      %274 = vmatpush1.bf16.msra.mxu0 0
      %275 = vmatprep.subr.bf16.mxu0 0
      %276 = vmatpush1.bf16.msra.mxu0 0
      %277 = vmatprep.subr.bf16.mxu0 0
      %278 = vmatpush1.bf16.msra.mxu0 0
      %279 = vmatprep.subr.bf16.mxu0 0
      %280 = vmatpush1.bf16.msra.mxu0 0
      %281 = vmatprep.subr.bf16.mxu0 %v265
      %282 = vmatpush1.bf16.msra.mxu0 %v262
      %283 = vmatprep.subr.bf16.mxu0 0
      %284 = vmatpush2.bf16.msra.mxu0 0
      %285 = vmatprep.subr.bf16.mxu0 0
      %286 = vmatpush2.bf16.msra.mxu0 0
      %287 = vmatprep.subr.bf16.mxu0 0
      %288 = vmatpush2.bf16.msra.mxu0 0
      %289 = vmatprep.subr.bf16.mxu0 0
      %290 = vmatpush2.bf16.msra.mxu0 0
      %291 = vmatprep.subr.bf16.mxu0 0
      %292 = vmatpush2.bf16.msra.mxu0 0
      %293 = vmatprep.subr.bf16.mxu0 0
      %294 = vmatpush2.bf16.msra.mxu0 0
      %295 = vmatprep.subr.bf16.mxu0 0
      %296 = vmatpush2.bf16.msra.mxu0 0
      %297 = vmatprep.subr.bf16.mxu0 0
      %298 = vmatpush2.bf16.msra.mxu0 0
      %299 = vmatprep.mubr.bf16.mxu0 0
      %300 = vmatmul.mubr.bf16.gmra.mxu0 %v252
      %v301 = vpop.f32.mrf.mxu0
      %v302 = vadd.f32 0.0, %v301
      %v303 = vpop.f32.mrf.mxu0
      %v304 = vadd.f32 0.0, %v303
      %v305 = vpop.f32.mrf.mxu0
      %v306 = vadd.f32 0.0, %v305
      %v307 = vpop.f32.mrf.mxu0
      %v308 = vadd.f32 0.0, %v307
      %309 = vmatprep.mubr.bf16.mxu0 0
      %310 = vmatmul.mubr.bf16.gmra.mxu0 %v255
      %v311 = vpop.f32.mrf.mxu0
      %v312 = vadd.f32 0.0, %v311
      %v313 = vpop.f32.mrf.mxu0
      %v314 = vadd.f32 0.0, %v313
      %v315 = vpop.f32.mrf.mxu0
      %v316 = vadd.f32 0.0, %v315
      %v317 = vpop.f32.mrf.mxu0
      %v318 = vadd.f32 0.0, %v317
      %319 = vdwg.mxu0
      %s320 = scalar_lea.vmem %s219, 16
      %v321 = vld [vmem:[%s320] sm:$0xff]
      %v322 = vld [vmem:[%s320 + $0x8] sm:$0x11]
      %v325 = vunpack.c.l.b16 %v321
      %v326 = vunpack.c.h.b16 %v321
      %v327 = vunpack.c.l.b16 %v322
      %v328 = vunpack.c.h.b16 %v322
      %v329 = vpack.c.b16 %v327, %v325
      %v330 = vpack.c.b16 %v328, %v326
      %v332 = vand.u32 %v329, %v260
      %v335 = vand.u32 %v330, %v260
      %337 = vmatprep.subr.bf16.mxu0 0
      %338 = vmatpush1.bf16.msra.mxu0 0
      %339 = vmatprep.subr.bf16.mxu0 0
      %340 = vmatpush1.bf16.msra.mxu0 0
      %341 = vmatprep.subr.bf16.mxu0 0
      %342 = vmatpush1.bf16.msra.mxu0 0
      %343 = vmatprep.subr.bf16.mxu0 0
      %344 = vmatpush1.bf16.msra.mxu0 0
      %345 = vmatprep.subr.bf16.mxu0 0
      %346 = vmatpush1.bf16.msra.mxu0 0
      %347 = vmatprep.subr.bf16.mxu0 0
      %348 = vmatpush1.bf16.msra.mxu0 0
      %349 = vmatprep.subr.bf16.mxu0 0
      %350 = vmatpush1.bf16.msra.mxu0 0
      %351 = vmatprep.subr.bf16.mxu0 %v335
      %352 = vmatpush1.bf16.msra.mxu0 %v332
      %353 = vmatprep.subr.bf16.mxu0 0
      %354 = vmatpush2.bf16.msra.mxu0 0
      %355 = vmatprep.subr.bf16.mxu0 0
      %356 = vmatpush2.bf16.msra.mxu0 0
      %357 = vmatprep.subr.bf16.mxu0 0
      %358 = vmatpush2.bf16.msra.mxu0 0
      %359 = vmatprep.subr.bf16.mxu0 0
      %360 = vmatpush2.bf16.msra.mxu0 0
      %361 = vmatprep.subr.bf16.mxu0 0
      %362 = vmatpush2.bf16.msra.mxu0 0
      %363 = vmatprep.subr.bf16.mxu0 0
      %364 = vmatpush2.bf16.msra.mxu0 0
      %365 = vmatprep.subr.bf16.mxu0 0
      %366 = vmatpush2.bf16.msra.mxu0 0
      %367 = vmatprep.subr.bf16.mxu0 0
      %368 = vmatpush2.bf16.msra.mxu0 0
      %369 = vmatprep.mubr.bf16.mxu0 0
      %370 = vmatmul.mubr.bf16.gmra.mxu0 %v252
      %v371 = vpop.f32.mrf.mxu0
      %v372 = vadd.f32 0.0, %v371
      %v373 = vpop.f32.mrf.mxu0
      %v374 = vadd.f32 0.0, %v373
      %v375 = vpop.f32.mrf.mxu0
      %v376 = vadd.f32 0.0, %v375
      %v377 = vpop.f32.mrf.mxu0
      %v378 = vadd.f32 0.0, %v377
      %379 = vmatprep.mubr.bf16.mxu0 0
      %380 = vmatmul.mubr.bf16.gmra.mxu0 %v255
      %v381 = vpop.f32.mrf.mxu0
      %v382 = vadd.f32 0.0, %v381
      %v383 = vpop.f32.mrf.mxu0
      %v384 = vadd.f32 0.0, %v383
      %v385 = vpop.f32.mrf.mxu0
      %v386 = vadd.f32 0.0, %v385
      %v387 = vpop.f32.mrf.mxu0
      %v388 = vadd.f32 0.0, %v387
      %389 = vdwg.mxu0
      %v390 = vmax.f32 %v302, %v372
      %v391 = vmax.f32 %v304, %v374
      %v392 = vmax.f32 %v306, %v376
      %v393 = vmax.f32 %v308, %v378
      %v394 = vmax.f32 %v312, %v382
      %v395 = vmax.f32 %v314, %v384
      %v396 = vmax.f32 %v316, %v386
      %v397 = vmax.f32 %v318, %v388
      %s398 = scalar_lea.vmem %s219, 32
      %v399 = vld [vmem:[%s398] sm:$0xff]
      %v400 = vld [vmem:[%s398 + $0x8] sm:$0x11]
      %v403 = vunpack.c.l.b16 %v399
      %v404 = vunpack.c.h.b16 %v399
      %v405 = vunpack.c.l.b16 %v400
      %v406 = vunpack.c.h.b16 %v400
      %v407 = vpack.c.b16 %v405, %v403
      %v408 = vpack.c.b16 %v406, %v404
      %v410 = vand.u32 %v407, %v260
      %v413 = vand.u32 %v408, %v260
      %415 = vmatprep.subr.bf16.mxu0 0
      %416 = vmatpush1.bf16.msra.mxu0 0
      %417 = vmatprep.subr.bf16.mxu0 0
      %418 = vmatpush1.bf16.msra.mxu0 0
      %419 = vmatprep.subr.bf16.mxu0 0
      %420 = vmatpush1.bf16.msra.mxu0 0
      %421 = vmatprep.subr.bf16.mxu0 0
      %422 = vmatpush1.bf16.msra.mxu0 0
      %423 = vmatprep.subr.bf16.mxu0 0
      %424 = vmatpush1.bf16.msra.mxu0 0
      %425 = vmatprep.subr.bf16.mxu0 0
      %426 = vmatpush1.bf16.msra.mxu0 0
      %427 = vmatprep.subr.bf16.mxu0 0
      %428 = vmatpush1.bf16.msra.mxu0 0
      %429 = vmatprep.subr.bf16.mxu0 %v413
      %430 = vmatpush1.bf16.msra.mxu0 %v410
      %431 = vmatprep.subr.bf16.mxu0 0
      %432 = vmatpush2.bf16.msra.mxu0 0
      %433 = vmatprep.subr.bf16.mxu0 0
      %434 = vmatpush2.bf16.msra.mxu0 0
      %435 = vmatprep.subr.bf16.mxu0 0
      %436 = vmatpush2.bf16.msra.mxu0 0
      %437 = vmatprep.subr.bf16.mxu0 0
      %438 = vmatpush2.bf16.msra.mxu0 0
      %439 = vmatprep.subr.bf16.mxu0 0
      %440 = vmatpush2.bf16.msra.mxu0 0
      %441 = vmatprep.subr.bf16.mxu0 0
      %442 = vmatpush2.bf16.msra.mxu0 0
      %443 = vmatprep.subr.bf16.mxu0 0
      %444 = vmatpush2.bf16.msra.mxu0 0
      %445 = vmatprep.subr.bf16.mxu0 0
      %446 = vmatpush2.bf16.msra.mxu0 0
      %447 = vmatprep.mubr.bf16.mxu0 0
      %448 = vmatmul.mubr.bf16.gmra.mxu0 %v252
      %v449 = vpop.f32.mrf.mxu0
      %v450 = vadd.f32 0.0, %v449
      %v451 = vpop.f32.mrf.mxu0
      %v452 = vadd.f32 0.0, %v451
      %v453 = vpop.f32.mrf.mxu0
      %v454 = vadd.f32 0.0, %v453
      %v455 = vpop.f32.mrf.mxu0
      %v456 = vadd.f32 0.0, %v455
      %457 = vmatprep.mubr.bf16.mxu0 0
      %458 = vmatmul.mubr.bf16.gmra.mxu0 %v255
      %v459 = vpop.f32.mrf.mxu0
      %v460 = vadd.f32 0.0, %v459
      %v461 = vpop.f32.mrf.mxu0
      %v462 = vadd.f32 0.0, %v461
      %v463 = vpop.f32.mrf.mxu0
      %v464 = vadd.f32 0.0, %v463
      %v465 = vpop.f32.mrf.mxu0
      %v466 = vadd.f32 0.0, %v465
      %467 = vdwg.mxu0
      %v468 = vmax.f32 %v390, %v450
      %v469 = vmax.f32 %v391, %v452
      %v470 = vmax.f32 %v392, %v454
      %v471 = vmax.f32 %v393, %v456
      %v472 = vmax.f32 %v394, %v460
      %v473 = vmax.f32 %v395, %v462
      %v474 = vmax.f32 %v396, %v464
      %v475 = vmax.f32 %v397, %v466
      %s476 = scalar_lea.vmem %s219, 48
      %v477 = vld [vmem:[%s476] sm:$0xff]
      %v478 = vld [vmem:[%s476 + $0x8] sm:$0x11]
      %v481 = vunpack.c.l.b16 %v477
      %v482 = vunpack.c.h.b16 %v477
      %v483 = vunpack.c.l.b16 %v478
      %v484 = vunpack.c.h.b16 %v478
      %v485 = vpack.c.b16 %v483, %v481
      %v486 = vpack.c.b16 %v484, %v482
      %v488 = vand.u32 %v485, %v260
      %v491 = vand.u32 %v486, %v260
      %493 = vmatprep.subr.bf16.mxu0 0
      %494 = vmatpush1.bf16.msra.mxu0 0
      %495 = vmatprep.subr.bf16.mxu0 0
      %496 = vmatpush1.bf16.msra.mxu0 0
      %497 = vmatprep.subr.bf16.mxu0 0
      %498 = vmatpush1.bf16.msra.mxu0 0
      %499 = vmatprep.subr.bf16.mxu0 0
      %500 = vmatpush1.bf16.msra.mxu0 0
      %501 = vmatprep.subr.bf16.mxu0 0
      %502 = vmatpush1.bf16.msra.mxu0 0
      %503 = vmatprep.subr.bf16.mxu0 0
      %504 = vmatpush1.bf16.msra.mxu0 0
      %505 = vmatprep.subr.bf16.mxu0 0
      %506 = vmatpush1.bf16.msra.mxu0 0
      %507 = vmatprep.subr.bf16.mxu0 %v491
      %508 = vmatpush1.bf16.msra.mxu0 %v488
      %509 = vmatprep.subr.bf16.mxu0 0
      %510 = vmatpush2.bf16.msra.mxu0 0
      %511 = vmatprep.subr.bf16.mxu0 0
      %512 = vmatpush2.bf16.msra.mxu0 0
      %513 = vmatprep.subr.bf16.mxu0 0
      %514 = vmatpush2.bf16.msra.mxu0 0
      %515 = vmatprep.subr.bf16.mxu0 0
      %516 = vmatpush2.bf16.msra.mxu0 0
      %517 = vmatprep.subr.bf16.mxu0 0
      %518 = vmatpush2.bf16.msra.mxu0 0
      %519 = vmatprep.subr.bf16.mxu0 0
      %520 = vmatpush2.bf16.msra.mxu0 0
      %521 = vmatprep.subr.bf16.mxu0 0
      %522 = vmatpush2.bf16.msra.mxu0 0
      %523 = vmatprep.subr.bf16.mxu0 0
      %524 = vmatpush2.bf16.msra.mxu0 0
      %525 = vmatprep.mubr.bf16.mxu0 0
      %526 = vmatmul.mubr.bf16.gmra.mxu0 %v252
      %v527 = vpop.f32.mrf.mxu0
      %v528 = vadd.f32 0.0, %v527
      %v529 = vpop.f32.mrf.mxu0
      %v530 = vadd.f32 0.0, %v529
      %v531 = vpop.f32.mrf.mxu0
      %v532 = vadd.f32 0.0, %v531
      %v533 = vpop.f32.mrf.mxu0
      %v534 = vadd.f32 0.0, %v533
      %535 = vmatprep.mubr.bf16.mxu0 0
      %536 = vmatmul.mubr.bf16.gmra.mxu0 %v255
      %v537 = vpop.f32.mrf.mxu0
      %v538 = vadd.f32 0.0, %v537
      %v539 = vpop.f32.mrf.mxu0
      %v540 = vadd.f32 0.0, %v539
      %v541 = vpop.f32.mrf.mxu0
      %v542 = vadd.f32 0.0, %v541
      %v543 = vpop.f32.mrf.mxu0
      %v544 = vadd.f32 0.0, %v543
      %545 = vdwg.mxu0
      %v546 = vmax.f32 %v468, %v528
      %v547 = vmax.f32 %v469, %v530
      %v548 = vmax.f32 %v470, %v532
      %v549 = vmax.f32 %v471, %v534
      %v550 = vmax.f32 %v472, %v538
      %v551 = vmax.f32 %v473, %v540
      %v552 = vmax.f32 %v474, %v542
      %v553 = vmax.f32 %v475, %v544
      %v554 = vld [vmem:[%s2] sm:$0xff]
      %v555 = vld [vmem:[%s2 + $0x8] sm:$0xff]
      %v556 = vld [vmem:[%s2 + $0x10] sm:$0xff]
      %v557 = vld [vmem:[%s2 + $0x18] sm:$0xff]
      %559 = vset.pattern.permute.xlu0 0
      %560 = vperm.xlu0 %559, %v554
      %v561 = vpop.permute.xlu0 %560
      %564 = vset.pattern.permute.xlu0 0
      %565 = vperm.xlu0 %564, %v555
      %v566 = vpop.permute.xlu0 %565
      %569 = vset.pattern.permute.xlu0 0
      %570 = vperm.xlu0 %569, %v556
      %v571 = vpop.permute.xlu0 %570
      %574 = vset.pattern.permute.xlu0 0
      %575 = vperm.xlu0 %574, %v557
      %v576 = vpop.permute.xlu0 %575
      %v578 = vadd.f32 %v546, %v561
      %v579 = vadd.f32 %v547, %v561
      %v580 = vadd.f32 %v548, %v566
      %v581 = vadd.f32 %v549, %v566
      %v582 = vadd.f32 %v550, %v571
      %v583 = vadd.f32 %v551, %v571
      %v584 = vadd.f32 %v552, %v576
      %v585 = vadd.f32 %v553, %v576
      %v586 = vmax.f32 %v578, 0.0
      %v587 = vmax.f32 %v579, 0.0
      %v588 = vmax.f32 %v580, 0.0
      %v589 = vmax.f32 %v581, 0.0
      %v590 = vmax.f32 %v582, 0.0
      %v591 = vmax.f32 %v583, 0.0
      %v592 = vmax.f32 %v584, 0.0
      %v593 = vmax.f32 %v585, 0.0
      %v594 = vpack.c.bf16 %v588, %v586
      %v595 = vpack.c.bf16 %v589, %v587
      %v596 = vpack.c.bf16 %v592, %v590
      %v597 = vpack.c.bf16 %v593, %v591
      %598 = vst [vmem:[#allocation2] sm:$0xf] 0
      %599 = vst [vmem:[#allocation2 + $0x4] sm:$0xf] 0
      %600 = vst [vmem:[#allocation2 + $0x8] sm:$0xf] 0
      %601 = vst [vmem:[#allocation2 + $0xc] sm:$0xf] 0
      %602 = vst [vmem:[#allocation2 + $0x10] sm:$0xf] 0
      %603 = vst [vmem:[#allocation2 + $0x14] sm:$0xf] 0
      %604 = vst [vmem:[#allocation2 + $0x18] sm:$0xf] 0
      %605 = vst [vmem:[#allocation2 + $0x1c] sm:$0xf] 0
      %606 = vst [vmem:[#allocation2 + $0x20] sm:$0xf] 0
      %607 = vst [vmem:[#allocation2 + $0x24] sm:$0xf] 0
      %608 = vst [vmem:[#allocation2 + $0x28] sm:$0xf] 0
      %609 = vst [vmem:[#allocation2 + $0x2c] sm:$0xf] 0
      %610 = vst [vmem:[#allocation2 + $0x30] sm:$0xf] 0
      %611 = vst [vmem:[#allocation2 + $0x34] sm:$0xf] 0
      %612 = vst [vmem:[#allocation2 + $0x38] sm:$0xf] 0
      %613 = vst [vmem:[#allocation2 + $0x3c] sm:$0xf] 0
      %v616 = vunpack.c.l.b16 %v594
      %v617 = vunpack.c.h.b16 %v594
      %v618 = vunpack.c.l.b16 %v596
      %v619 = vunpack.c.h.b16 %v596
      %v620 = vpack.c.b16 %v616, %v616
      %v621 = vpack.c.b16 %v617, %v617
      %v622 = vpack.c.b16 %v618, %v618
      %v623 = vpack.c.b16 %v619, %v619
      %624 = vrot.lane.b32.xlu0 %v620, 8
      %v625 = vpop.permute.xlu0 %624
      %626 = vrot.lane.b32.xlu0 %v621, 8
      %v627 = vpop.permute.xlu0 %626
      %628 = vrot.lane.b32.xlu0 %v622, 8
      %v629 = vpop.permute.xlu0 %628
      %630 = vrot.lane.b32.xlu0 %v623, 8
      %v631 = vpop.permute.xlu0 %630
      %vm636 = vcmask 461888
      %637 = vst.msk [vmem:[#allocation2] sm:$0xf] %vm636, %v625
      %638 = vst.msk [vmem:[#allocation2 + $0x4] sm:$0xf] %vm636, %v627
      %639 = vst.msk [vmem:[#allocation2 + $0x8] sm:$0xf] %vm636, %v629
      %640 = vst.msk [vmem:[#allocation2 + $0xc] sm:$0xf] %vm636, %v631
      %641 = vrot.lane.b32.xlu0 %v620, 87
      %v642 = vpop.permute.xlu0 %641
      %643 = vrot.lane.b32.xlu0 %v621, 87
      %v644 = vpop.permute.xlu0 %643
      %645 = vrot.lane.b32.xlu0 %v622, 87
      %v646 = vpop.permute.xlu0 %645
      %647 = vrot.lane.b32.xlu0 %v623, 87
      %v648 = vpop.permute.xlu0 %647
      %s653 = scalar_lea.vmem [#allocation2], 16
      %654 = vst.msk [vmem:[%s653] sm:$0xf] %vm636, %v642
      %655 = vst.msk [vmem:[%s653 + $0x4] sm:$0xf] %vm636, %v644
      %656 = vst.msk [vmem:[%s653 + $0x8] sm:$0xf] %vm636, %v646
      %657 = vst.msk [vmem:[%s653 + $0xc] sm:$0xf] %vm636, %v648
      %v660 = vunpack.c.l.b16 %v595
      %v661 = vunpack.c.h.b16 %v595
      %v662 = vunpack.c.l.b16 %v597
      %v663 = vunpack.c.h.b16 %v597
      %v664 = vpack.c.b16 %v660, %v616
      %v665 = vpack.c.b16 %v661, %v617
      %v666 = vpack.c.b16 %v662, %v618
      %v667 = vpack.c.b16 %v663, %v619
      %668 = vrot.lane.b32.xlu0 %v664, 38
      %v669 = vpop.permute.xlu0 %668
      %670 = vrot.lane.b32.xlu0 %v665, 38
      %v671 = vpop.permute.xlu0 %670
      %672 = vrot.lane.b32.xlu0 %v666, 38
      %v673 = vpop.permute.xlu0 %672
      %674 = vrot.lane.b32.xlu0 %v667, 38
      %v675 = vpop.permute.xlu0 %674
      %v676 = vrot.slane %v669, 4
      %v677 = vrot.slane %v671, 4
      %v678 = vrot.slane %v673, 4
      %v679 = vrot.slane %v675, 4
      %vm680 = vcmask 310272
      %v681 = vsel %vm680, %v669, %v676
      %v682 = vsel %vm680, %v671, %v677
      %v683 = vsel %vm680, %v673, %v678
      %v684 = vsel %vm680, %v675, %v679
      %s689 = scalar_lea.vmem [#allocation2], 32
      %690 = vst.msk [vmem:[%s689] sm:$0xf] %vm636, %v681
      %691 = vst.msk [vmem:[%s689 + $0x4] sm:$0xf] %vm636, %v682
      %692 = vst.msk [vmem:[%s689 + $0x8] sm:$0xf] %vm636, %v683
      %693 = vst.msk [vmem:[%s689 + $0xc] sm:$0xf] %vm636, %v684
      %v694 = vpack.c.b16 %v660, %v660
      %v695 = vpack.c.b16 %v661, %v661
      %v696 = vpack.c.b16 %v662, %v662
      %v697 = vpack.c.b16 %v663, %v663
      %698 = vrot.lane.b32.xlu0 %v694, 117
      %v699 = vpop.permute.xlu0 %698
      %700 = vrot.lane.b32.xlu0 %v695, 117
      %v701 = vpop.permute.xlu0 %700
      %702 = vrot.lane.b32.xlu0 %v696, 117
      %v703 = vpop.permute.xlu0 %702
      %704 = vrot.lane.b32.xlu0 %v697, 117
      %v705 = vpop.permute.xlu0 %704
      %s710 = scalar_lea.vmem [#allocation2], 48
      %711 = vst.msk [vmem:[%s710] sm:$0xf] %vm636, %v699
      %712 = vst.msk [vmem:[%s710 + $0x4] sm:$0xf] %vm636, %v701
      %713 = vst.msk [vmem:[%s710 + $0x8] sm:$0xf] %vm636, %v703
      %714 = vst.msk [vmem:[%s710 + $0xc] sm:$0xf] %vm636, %v705
      %v715 = vld [vmem:[#allocation2] sm:$0xf]
      %v716 = vld [vmem:[#allocation2 + $0x4] sm:$0xf]
      %v717 = vld [vmem:[#allocation2 + $0x8] sm:$0xf]
      %v718 = vld [vmem:[#allocation2 + $0xc] sm:$0xf]
      %v719 = vld [vmem:[%s653] sm:$0xf]
      %v720 = vld [vmem:[%s653 + $0x4] sm:$0xf]
      %v721 = vld [vmem:[%s653 + $0x8] sm:$0xf]
      %v722 = vld [vmem:[%s653 + $0xc] sm:$0xf]
      %v723 = vld [vmem:[%s689] sm:$0xf]
      %v724 = vld [vmem:[%s689 + $0x4] sm:$0xf]
      %v725 = vld [vmem:[%s689 + $0x8] sm:$0xf]
      %v726 = vld [vmem:[%s689 + $0xc] sm:$0xf]
      %v727 = vld [vmem:[%s710] sm:$0xf]
      %v728 = vld [vmem:[%s710 + $0x4] sm:$0xf]
      %v729 = vld [vmem:[%s710 + $0x8] sm:$0xf]
      %v730 = vld [vmem:[%s710 + $0xc] sm:$0xf]
      %v731 = vlaneseq
      %v732 = vand.u32 %v731, 127
      %vm733 = vcmp.lt.s32.totalorder %v732, 0
      %v734 = vsub.s32 0, %v732
      %v735 = vsel %vm733, %v734, %v732
      %v736 = vmul.u32.u64.compose %v735, 2454267026
      %v737 = vextract.low.u32 %v736
      %v738 = vextract.high.u32 %v736
      %vm739 = vc.u32 %v737, 2454267026
      %v740 = vsel %vm739, 1, 0
      %v741 = vadd.s32 %v738, %v740
      %v742 = vshrl.u32 %v741, 2
      %v743 = vmul.u32 %v742, 7
      %v744 = vsub.s32 %v735, %v743
      %v745 = vsub.s32 0, %v744
      %v746 = vsel %vm733, %v745, %v744
      %vm747 = vcmp.ne.s32.totalorder %v746, 0
      %vm748 = vcmp.lt.s32.totalorder %v746, 0
      %vm749 = vmand %vm748, %vm747
      %v750 = vadd.s32 %v746, 7
      %v751 = vsel %vm749, %v750, %v746
      %vm752 = vcmp.ne.s32.totalorder %v751, 0
      %v753 = vsel %vm752, 1, 0
      %v754 = vcvt.s32.f32 %v753
      %vm755 = vcmp.ne.s32.totalorder %v751, 6
      %v756 = vsel %vm755, 1, 0
      %v757 = vcvt.s32.f32 %v756
      %v758 = vld [vmem:[%s3] sm:$0xf]
      %v759 = vld [vmem:[%s3 + $0x4] sm:$0xf]
      %v760 = vld [vmem:[%s3 + $0x8] sm:$0xf]
      %v761 = vld [vmem:[%s3 + $0xc] sm:$0xf]
      %v762 = vld [vmem:[%s3 + $0x10] sm:$0xf]
      %v763 = vld [vmem:[%s3 + $0x14] sm:$0xf]
      %v764 = vld [vmem:[%s3 + $0x18] sm:$0xf]
      %v765 = vld [vmem:[%s3 + $0x1c] sm:$0xf]
      %v774 = vunpack.c.l.b16 %v758
      %v775 = vunpack.c.l.b16 %v759
      %v776 = vunpack.c.l.b16 %v760
      %v777 = vunpack.c.l.b16 %v761
      %v778 = vunpack.c.l.b16 %v762
      %v779 = vunpack.c.l.b16 %v763
      %v780 = vunpack.c.l.b16 %v764
      %v781 = vunpack.c.l.b16 %v765
      %v782 = vpack.c.b16 %v775, %v774
      %v783 = vpack.c.b16 %v777, %v776
      %v784 = vpack.c.b16 %v779, %v778
      %v785 = vpack.c.b16 %v781, %v780
      %v790 = vunpack.c.l.b16 %v727
      %v791 = vunpack.c.l.b16 %v728
      %v792 = vunpack.c.l.b16 %v729
      %v793 = vunpack.c.l.b16 %v730
      %v794 = vpack.c.b16 %v791, %v790
      %v795 = vpack.c.b16 %v793, %v792
      %vm798 = vcmask 261120
      %v800 = vsel %vm798, %v782, 0
      %v803 = vsel %vm798, %v783, 0
      %v806 = vsel %vm798, %v784, 0
      %v809 = vsel %vm798, %v785, 0
      %811 = vmatprep.subr.bf16.mxu0 0
      %812 = vmatpush1.bf16.msra.mxu0 0
      %813 = vmatprep.subr.bf16.mxu0 0
      %814 = vmatpush1.bf16.msra.mxu0 0
      %815 = vmatprep.subr.bf16.mxu0 0
      %816 = vmatpush1.bf16.msra.mxu0 0
      %817 = vmatprep.subr.bf16.mxu0 0
      %818 = vmatpush1.bf16.msra.mxu0 0
      %819 = vmatprep.subr.bf16.mxu0 0
      %820 = vmatpush1.bf16.msra.mxu0 0
      %821 = vmatprep.subr.bf16.mxu0 0
      %822 = vmatpush1.bf16.msra.mxu0 0
      %823 = vmatprep.subr.bf16.mxu0 0
      %824 = vmatpush1.bf16.msra.mxu0 %v795
      %825 = vmatprep.subr.bf16.mxu0 0
      %826 = vmatpush1.bf16.msra.mxu0 %v794
      %827 = vmatprep.subr.bf16.mxu0 0
      %828 = vmatpush2.bf16.msra.mxu0 0
      %829 = vmatprep.subr.bf16.mxu0 0
      %830 = vmatpush2.bf16.msra.mxu0 0
      %831 = vmatprep.subr.bf16.mxu0 0
      %832 = vmatpush2.bf16.msra.mxu0 0
      %833 = vmatprep.subr.bf16.mxu0 0
      %834 = vmatpush2.bf16.msra.mxu0 0
      %835 = vmatprep.subr.bf16.mxu0 0
      %836 = vmatpush2.bf16.msra.mxu0 0
      %837 = vmatprep.subr.bf16.mxu0 0
      %838 = vmatpush2.bf16.msra.mxu0 0
      %839 = vmatprep.subr.bf16.mxu0 0
      %840 = vmatpush2.bf16.msra.mxu0 0
      %841 = vmatprep.subr.bf16.mxu0 0
      %842 = vmatpush2.bf16.msra.mxu0 0
      %843 = vmatprep.mubr.bf16.mxu0 0
      %844 = vmatmul.mubr.bf16.gmra.mxu0 %v800
      %v845 = vpop.f32.mrf.mxu0
      %v846 = vadd.f32 0.0, %v845
      %v847 = vpop.f32.mrf.mxu0
      %v848 = vpop.f32.mrf.mxu0
      %v849 = vadd.f32 0.0, %v848
      %v850 = vpop.f32.mrf.mxu0
      %851 = vmatprep.mubr.bf16.mxu0 0
      %852 = vmatmul.mubr.bf16.gmra.mxu0 %v803
      %v853 = vpop.f32.mrf.mxu0
      %v854 = vadd.f32 0.0, %v853
      %v855 = vpop.f32.mrf.mxu0
      %v856 = vpop.f32.mrf.mxu0
      %v857 = vadd.f32 0.0, %v856
      %v858 = vpop.f32.mrf.mxu0
      %859 = vmatprep.mubr.bf16.mxu0 0
      %860 = vmatmul.mubr.bf16.gmra.mxu0 %v806
      %v861 = vpop.f32.mrf.mxu0
      %v862 = vadd.f32 0.0, %v861
      %v863 = vpop.f32.mrf.mxu0
      %v864 = vpop.f32.mrf.mxu0
      %v865 = vadd.f32 0.0, %v864
      %v866 = vpop.f32.mrf.mxu0
      %867 = vmatprep.mubr.bf16.mxu0 0
      %868 = vmatmul.mubr.bf16.gmra.mxu0 %v809
      %v869 = vpop.f32.mrf.mxu0
      %v870 = vadd.f32 0.0, %v869
      %v871 = vpop.f32.mrf.mxu0
      %v872 = vpop.f32.mrf.mxu0
      %v873 = vadd.f32 0.0, %v872
      %v874 = vpop.f32.mrf.mxu0
      %875 = vdwg.mxu0
      %v876 = vmul.f32 %v846, %v754
      %v877 = vmul.f32 %v849, %v754
      %v878 = vmul.f32 %v854, %v754
      %v879 = vmul.f32 %v857, %v754
      %v880 = vmul.f32 %v862, %v754
      %v881 = vmul.f32 %v865, %v754
      %v882 = vmul.f32 %v870, %v754
      %v883 = vmul.f32 %v873, %v754
      %s884 = scalar_lea.vmem %s3, 32
      %v885 = vld [vmem:[%s884] sm:$0xf]
      %v886 = vld [vmem:[%s884 + $0x4] sm:$0xf]
      %v887 = vld [vmem:[%s884 + $0x8] sm:$0xf]
      %v888 = vld [vmem:[%s884 + $0xc] sm:$0xf]
      %v889 = vld [vmem:[%s884 + $0x10] sm:$0xf]
      %v890 = vld [vmem:[%s884 + $0x14] sm:$0xf]
      %v891 = vld [vmem:[%s884 + $0x18] sm:$0xf]
      %v892 = vld [vmem:[%s884 + $0x1c] sm:$0xf]
      %v901 = vunpack.c.l.b16 %v885
      %v902 = vunpack.c.l.b16 %v886
      %v903 = vunpack.c.l.b16 %v887
      %v904 = vunpack.c.l.b16 %v888
      %v905 = vunpack.c.l.b16 %v889
      %v906 = vunpack.c.l.b16 %v890
      %v907 = vunpack.c.l.b16 %v891
      %v908 = vunpack.c.l.b16 %v892
      %v909 = vpack.c.b16 %v902, %v901
      %v910 = vpack.c.b16 %v904, %v903
      %v911 = vpack.c.b16 %v906, %v905
      %v912 = vpack.c.b16 %v908, %v907
      %v917 = vunpack.c.l.b16 %v723
      %v918 = vunpack.c.l.b16 %v724
      %v919 = vunpack.c.l.b16 %v725
      %v920 = vunpack.c.l.b16 %v726
      %v921 = vpack.c.b16 %v918, %v917
      %v922 = vpack.c.b16 %v920, %v919
      %923 = vrot.lane.b32.xlu0 %v921, 127
      %v924 = vpop.permute.xlu0 %923
      %925 = vrot.lane.b32.xlu0 %v922, 127
      %v926 = vpop.permute.xlu0 %925
      %v930 = vsel %vm798, %v909, 0
      %v933 = vsel %vm798, %v910, 0
      %v936 = vsel %vm798, %v911, 0
      %v939 = vsel %vm798, %v912, 0
      %941 = vmatprep.subr.bf16.mxu0 0
      %942 = vmatpush1.bf16.msra.mxu0 0
      %943 = vmatprep.subr.bf16.mxu0 0
      %944 = vmatpush1.bf16.msra.mxu0 0
      %945 = vmatprep.subr.bf16.mxu0 0
      %946 = vmatpush1.bf16.msra.mxu0 0
      %947 = vmatprep.subr.bf16.mxu0 0
      %948 = vmatpush1.bf16.msra.mxu0 0
      %949 = vmatprep.subr.bf16.mxu0 0
      %950 = vmatpush1.bf16.msra.mxu0 0
      %951 = vmatprep.subr.bf16.mxu0 0
      %952 = vmatpush1.bf16.msra.mxu0 0
      %953 = vmatprep.subr.bf16.mxu0 0
      %954 = vmatpush1.bf16.msra.mxu0 %v926
      %955 = vmatprep.subr.bf16.mxu0 0
      %956 = vmatpush1.bf16.msra.mxu0 %v924
      %957 = vmatprep.subr.bf16.mxu0 0
      %958 = vmatpush2.bf16.msra.mxu0 0
      %959 = vmatprep.subr.bf16.mxu0 0
      %960 = vmatpush2.bf16.msra.mxu0 0
      %961 = vmatprep.subr.bf16.mxu0 0
      %962 = vmatpush2.bf16.msra.mxu0 0
      %963 = vmatprep.subr.bf16.mxu0 0
      %964 = vmatpush2.bf16.msra.mxu0 0
      %965 = vmatprep.subr.bf16.mxu0 0
      %966 = vmatpush2.bf16.msra.mxu0 0
      %967 = vmatprep.subr.bf16.mxu0 0
      %968 = vmatpush2.bf16.msra.mxu0 0
      %969 = vmatprep.subr.bf16.mxu0 0
      %970 = vmatpush2.bf16.msra.mxu0 0
      %971 = vmatprep.subr.bf16.mxu0 0
      %972 = vmatpush2.bf16.msra.mxu0 0
      %973 = vmatprep.mubr.bf16.mxu0 0
      %974 = vmatmul.mubr.bf16.gmra.mxu0 %v930
      %v975 = vpop.f32.mrf.mxu0
      %v976 = vadd.f32 0.0, %v975
      %v977 = vpop.f32.mrf.mxu0
      %v978 = vpop.f32.mrf.mxu0
      %v979 = vadd.f32 0.0, %v978
      %v980 = vpop.f32.mrf.mxu0
      %981 = vmatprep.mubr.bf16.mxu0 0
      %982 = vmatmul.mubr.bf16.gmra.mxu0 %v933
      %v983 = vpop.f32.mrf.mxu0
      %v984 = vadd.f32 0.0, %v983
      %v985 = vpop.f32.mrf.mxu0
      %v986 = vpop.f32.mrf.mxu0
      %v987 = vadd.f32 0.0, %v986
      %v988 = vpop.f32.mrf.mxu0
      %989 = vmatprep.mubr.bf16.mxu0 0
      %990 = vmatmul.mubr.bf16.gmra.mxu0 %v936
      %v991 = vpop.f32.mrf.mxu0
      %v992 = vadd.f32 0.0, %v991
      %v993 = vpop.f32.mrf.mxu0
      %v994 = vpop.f32.mrf.mxu0
      %v995 = vadd.f32 0.0, %v994
      %v996 = vpop.f32.mrf.mxu0
      %997 = vmatprep.mubr.bf16.mxu0 0
      %998 = vmatmul.mubr.bf16.gmra.mxu0 %v939
      %v999 = vpop.f32.mrf.mxu0
      %v1000 = vadd.f32 0.0, %v999
      %v1001 = vpop.f32.mrf.mxu0
      %v1002 = vpop.f32.mrf.mxu0
      %v1003 = vadd.f32 0.0, %v1002
      %v1004 = vpop.f32.mrf.mxu0
      %1005 = vdwg.mxu0
      %v1006 = vadd.f32 %v876, %v976
      %v1007 = vadd.f32 %v877, %v979
      %v1008 = vadd.f32 %v878, %v984
      %v1009 = vadd.f32 %v879, %v987
      %v1010 = vadd.f32 %v880, %v992
      %v1011 = vadd.f32 %v881, %v995
      %v1012 = vadd.f32 %v882, %v1000
      %v1013 = vadd.f32 %v883, %v1003
      %s1014 = scalar_lea.vmem %s3, 64
      %v1015 = vld [vmem:[%s1014] sm:$0xf]
      %v1016 = vld [vmem:[%s1014 + $0x4] sm:$0xf]
      %v1017 = vld [vmem:[%s1014 + $0x8] sm:$0xf]
      %v1018 = vld [vmem:[%s1014 + $0xc] sm:$0xf]
      %v1019 = vld [vmem:[%s1014 + $0x10] sm:$0xf]
      %v1020 = vld [vmem:[%s1014 + $0x14] sm:$0xf]
      %v1021 = vld [vmem:[%s1014 + $0x18] sm:$0xf]
      %v1022 = vld [vmem:[%s1014 + $0x1c] sm:$0xf]
      %v1031 = vunpack.c.l.b16 %v1015
      %v1032 = vunpack.c.l.b16 %v1016
      %v1033 = vunpack.c.l.b16 %v1017
      %v1034 = vunpack.c.l.b16 %v1018
      %v1035 = vunpack.c.l.b16 %v1019
      %v1036 = vunpack.c.l.b16 %v1020
      %v1037 = vunpack.c.l.b16 %v1021
      %v1038 = vunpack.c.l.b16 %v1022
      %v1039 = vpack.c.b16 %v1032, %v1031
      %v1040 = vpack.c.b16 %v1034, %v1033
      %v1041 = vpack.c.b16 %v1036, %v1035
      %v1042 = vpack.c.b16 %v1038, %v1037
      %1043 = vrot.lane.b32.xlu0 %v794, 127
      %v1044 = vpop.permute.xlu0 %1043
      %1045 = vrot.lane.b32.xlu0 %v795, 127
      %v1046 = vpop.permute.xlu0 %1045
      %v1050 = vsel %vm798, %v1039, 0
      %v1053 = vsel %vm798, %v1040, 0
      %v1056 = vsel %vm798, %v1041, 0
      %v1059 = vsel %vm798, %v1042, 0
      %1061 = vmatprep.subr.bf16.mxu0 0
      %1062 = vmatpush1.bf16.msra.mxu0 0
      %1063 = vmatprep.subr.bf16.mxu0 0
      %1064 = vmatpush1.bf16.msra.mxu0 0
      %1065 = vmatprep.subr.bf16.mxu0 0
      %1066 = vmatpush1.bf16.msra.mxu0 0
      %1067 = vmatprep.subr.bf16.mxu0 0
      %1068 = vmatpush1.bf16.msra.mxu0 0
      %1069 = vmatprep.subr.bf16.mxu0 0
      %1070 = vmatpush1.bf16.msra.mxu0 0
      %1071 = vmatprep.subr.bf16.mxu0 0
      %1072 = vmatpush1.bf16.msra.mxu0 0
      %1073 = vmatprep.subr.bf16.mxu0 0
      %1074 = vmatpush1.bf16.msra.mxu0 %v1046
      %1075 = vmatprep.subr.bf16.mxu0 0
      %1076 = vmatpush1.bf16.msra.mxu0 %v1044
      %1077 = vmatprep.subr.bf16.mxu0 0
      %1078 = vmatpush2.bf16.msra.mxu0 0
      %1079 = vmatprep.subr.bf16.mxu0 0
      %1080 = vmatpush2.bf16.msra.mxu0 0
      %1081 = vmatprep.subr.bf16.mxu0 0
      %1082 = vmatpush2.bf16.msra.mxu0 0
      %1083 = vmatprep.subr.bf16.mxu0 0
      %1084 = vmatpush2.bf16.msra.mxu0 0
      %1085 = vmatprep.subr.bf16.mxu0 0
      %1086 = vmatpush2.bf16.msra.mxu0 0
      %1087 = vmatprep.subr.bf16.mxu0 0
      %1088 = vmatpush2.bf16.msra.mxu0 0
      %1089 = vmatprep.subr.bf16.mxu0 0
      %1090 = vmatpush2.bf16.msra.mxu0 0
      %1091 = vmatprep.subr.bf16.mxu0 0
      %1092 = vmatpush2.bf16.msra.mxu0 0
      %1093 = vmatprep.mubr.bf16.mxu0 0
      %1094 = vmatmul.mubr.bf16.gmra.mxu0 %v1050
      %v1095 = vpop.f32.mrf.mxu0
      %v1096 = vadd.f32 0.0, %v1095
      %v1097 = vpop.f32.mrf.mxu0
      %v1098 = vpop.f32.mrf.mxu0
      %v1099 = vadd.f32 0.0, %v1098
      %v1100 = vpop.f32.mrf.mxu0
      %1101 = vmatprep.mubr.bf16.mxu0 0
      %1102 = vmatmul.mubr.bf16.gmra.mxu0 %v1053
      %v1103 = vpop.f32.mrf.mxu0
      %v1104 = vadd.f32 0.0, %v1103
      %v1105 = vpop.f32.mrf.mxu0
      %v1106 = vpop.f32.mrf.mxu0
      %v1107 = vadd.f32 0.0, %v1106
      %v1108 = vpop.f32.mrf.mxu0
      %1109 = vmatprep.mubr.bf16.mxu0 0
      %1110 = vmatmul.mubr.bf16.gmra.mxu0 %v1056
      %v1111 = vpop.f32.mrf.mxu0
      %v1112 = vadd.f32 0.0, %v1111
      %v1113 = vpop.f32.mrf.mxu0
      %v1114 = vpop.f32.mrf.mxu0
      %v1115 = vadd.f32 0.0, %v1114
      %v1116 = vpop.f32.mrf.mxu0
      %1117 = vmatprep.mubr.bf16.mxu0 0
      %1118 = vmatmul.mubr.bf16.gmra.mxu0 %v1059
      %v1119 = vpop.f32.mrf.mxu0
      %v1120 = vadd.f32 0.0, %v1119
      %v1121 = vpop.f32.mrf.mxu0
      %v1122 = vpop.f32.mrf.mxu0
      %v1123 = vadd.f32 0.0, %v1122
      %v1124 = vpop.f32.mrf.mxu0
      %1125 = vdwg.mxu0
      %v1126 = vadd.f32 %v1006, %v1096
      %v1127 = vadd.f32 %v1007, %v1099
      %v1128 = vadd.f32 %v1008, %v1104
      %v1129 = vadd.f32 %v1009, %v1107
      %v1130 = vadd.f32 %v1010, %v1112
      %v1131 = vadd.f32 %v1011, %v1115
      %v1132 = vadd.f32 %v1012, %v1120
      %v1133 = vadd.f32 %v1013, %v1123
      %s1134 = scalar_lea.vmem %s3, 96
      %v1135 = vld [vmem:[%s1134] sm:$0xf]
      %v1136 = vld [vmem:[%s1134 + $0x4] sm:$0xf]
      %v1137 = vld [vmem:[%s1134 + $0x8] sm:$0xf]
      %v1138 = vld [vmem:[%s1134 + $0xc] sm:$0xf]
      %v1139 = vld [vmem:[%s1134 + $0x10] sm:$0xf]
      %v1140 = vld [vmem:[%s1134 + $0x14] sm:$0xf]
      %v1141 = vld [vmem:[%s1134 + $0x18] sm:$0xf]
      %v1142 = vld [vmem:[%s1134 + $0x1c] sm:$0xf]
      %v1151 = vunpack.c.l.b16 %v1135
      %v1152 = vunpack.c.l.b16 %v1136
      %v1153 = vunpack.c.l.b16 %v1137
      %v1154 = vunpack.c.l.b16 %v1138
      %v1155 = vunpack.c.l.b16 %v1139
      %v1156 = vunpack.c.l.b16 %v1140
      %v1157 = vunpack.c.l.b16 %v1141
      %v1158 = vunpack.c.l.b16 %v1142
      %v1159 = vpack.c.b16 %v1152, %v1151
      %v1160 = vpack.c.b16 %v1154, %v1153
      %v1161 = vpack.c.b16 %v1156, %v1155
      %v1162 = vpack.c.b16 %v1158, %v1157
      %v1167 = vunpack.c.l.b16 %v719
      %v1168 = vunpack.c.l.b16 %v720
      %v1169 = vunpack.c.l.b16 %v721
      %v1170 = vunpack.c.l.b16 %v722
      %v1171 = vpack.c.b16 %v1168, %v1167
      %v1172 = vpack.c.b16 %v1170, %v1169
      %1173 = vrot.lane.b32.xlu0 %v1171, 121
      %v1174 = vpop.permute.xlu0 %1173
      %1175 = vrot.lane.b32.xlu0 %v1172, 121
      %v1176 = vpop.permute.xlu0 %1175
      %v1180 = vsel %vm798, %v1159, 0
      %v1183 = vsel %vm798, %v1160, 0
      %v1186 = vsel %vm798, %v1161, 0
      %v1189 = vsel %vm798, %v1162, 0
      %1191 = vmatprep.subr.bf16.mxu0 0
      %1192 = vmatpush1.bf16.msra.mxu0 0
      %1193 = vmatprep.subr.bf16.mxu0 0
      %1194 = vmatpush1.bf16.msra.mxu0 0
      %1195 = vmatprep.subr.bf16.mxu0 0
      %1196 = vmatpush1.bf16.msra.mxu0 0
      %1197 = vmatprep.subr.bf16.mxu0 0
      %1198 = vmatpush1.bf16.msra.mxu0 0
      %1199 = vmatprep.subr.bf16.mxu0 0
      %1200 = vmatpush1.bf16.msra.mxu0 0
      %1201 = vmatprep.subr.bf16.mxu0 0
      %1202 = vmatpush1.bf16.msra.mxu0 0
      %1203 = vmatprep.subr.bf16.mxu0 0
      %1204 = vmatpush1.bf16.msra.mxu0 %v1176
      %1205 = vmatprep.subr.bf16.mxu0 0
      %1206 = vmatpush1.bf16.msra.mxu0 %v1174
      %1207 = vmatprep.subr.bf16.mxu0 0
      %1208 = vmatpush2.bf16.msra.mxu0 0
      %1209 = vmatprep.subr.bf16.mxu0 0
      %1210 = vmatpush2.bf16.msra.mxu0 0
      %1211 = vmatprep.subr.bf16.mxu0 0
      %1212 = vmatpush2.bf16.msra.mxu0 0
      %1213 = vmatprep.subr.bf16.mxu0 0
      %1214 = vmatpush2.bf16.msra.mxu0 0
      %1215 = vmatprep.subr.bf16.mxu0 0
      %1216 = vmatpush2.bf16.msra.mxu0 0
      %1217 = vmatprep.subr.bf16.mxu0 0
      %1218 = vmatpush2.bf16.msra.mxu0 0
      %1219 = vmatprep.subr.bf16.mxu0 0
      %1220 = vmatpush2.bf16.msra.mxu0 0
      %1221 = vmatprep.subr.bf16.mxu0 0
      %1222 = vmatpush2.bf16.msra.mxu0 0
      %1223 = vmatprep.mubr.bf16.mxu0 0
      %1224 = vmatmul.mubr.bf16.gmra.mxu0 %v1180
      %v1225 = vpop.f32.mrf.mxu0
      %v1226 = vadd.f32 0.0, %v1225
      %v1227 = vpop.f32.mrf.mxu0
      %v1228 = vpop.f32.mrf.mxu0
      %v1229 = vadd.f32 0.0, %v1228
      %v1230 = vpop.f32.mrf.mxu0
      %1231 = vmatprep.mubr.bf16.mxu0 0
      %1232 = vmatmul.mubr.bf16.gmra.mxu0 %v1183
      %v1233 = vpop.f32.mrf.mxu0
      %v1234 = vadd.f32 0.0, %v1233
      %v1235 = vpop.f32.mrf.mxu0
      %v1236 = vpop.f32.mrf.mxu0
      %v1237 = vadd.f32 0.0, %v1236
      %v1238 = vpop.f32.mrf.mxu0
      %1239 = vmatprep.mubr.bf16.mxu0 0
      %1240 = vmatmul.mubr.bf16.gmra.mxu0 %v1186
      %v1241 = vpop.f32.mrf.mxu0
      %v1242 = vadd.f32 0.0, %v1241
      %v1243 = vpop.f32.mrf.mxu0
      %v1244 = vpop.f32.mrf.mxu0
      %v1245 = vadd.f32 0.0, %v1244
      %v1246 = vpop.f32.mrf.mxu0
      %1247 = vmatprep.mubr.bf16.mxu0 0
      %1248 = vmatmul.mubr.bf16.gmra.mxu0 %v1189
      %v1249 = vpop.f32.mrf.mxu0
      %v1250 = vadd.f32 0.0, %v1249
      %v1251 = vpop.f32.mrf.mxu0
      %v1252 = vpop.f32.mrf.mxu0
      %v1253 = vadd.f32 0.0, %v1252
      %v1254 = vpop.f32.mrf.mxu0
      %1255 = vdwg.mxu0
      %v1256 = vmul.f32 %v1226, %v754
      %v1257 = vmul.f32 %v1229, %v754
      %v1258 = vmul.f32 %v1234, %v754
      %v1259 = vmul.f32 %v1237, %v754
      %v1260 = vmul.f32 %v1242, %v754
      %v1261 = vmul.f32 %v1245, %v754
      %v1262 = vmul.f32 %v1250, %v754
      %v1263 = vmul.f32 %v1253, %v754
      %v1264 = vadd.f32 %v1126, %v1256
      %v1265 = vadd.f32 %v1127, %v1257
      %v1266 = vadd.f32 %v1128, %v1258
      %v1267 = vadd.f32 %v1129, %v1259
      %v1268 = vadd.f32 %v1130, %v1260
      %v1269 = vadd.f32 %v1131, %v1261
      %v1270 = vadd.f32 %v1132, %v1262
      %v1271 = vadd.f32 %v1133, %v1263
      %s1272 = scalar_lea.vmem %s3, 128
      %v1273 = vld [vmem:[%s1272] sm:$0xf]
      %v1274 = vld [vmem:[%s1272 + $0x4] sm:$0xf]
      %v1275 = vld [vmem:[%s1272 + $0x8] sm:$0xf]
      %v1276 = vld [vmem:[%s1272 + $0xc] sm:$0xf]
      %v1277 = vld [vmem:[%s1272 + $0x10] sm:$0xf]
      %v1278 = vld [vmem:[%s1272 + $0x14] sm:$0xf]
      %v1279 = vld [vmem:[%s1272 + $0x18] sm:$0xf]
      %v1280 = vld [vmem:[%s1272 + $0x1c] sm:$0xf]
      %v1289 = vunpack.c.l.b16 %v1273
      %v1290 = vunpack.c.l.b16 %v1274
      %v1291 = vunpack.c.l.b16 %v1275
      %v1292 = vunpack.c.l.b16 %v1276
      %v1293 = vunpack.c.l.b16 %v1277
      %v1294 = vunpack.c.l.b16 %v1278
      %v1295 = vunpack.c.l.b16 %v1279
      %v1296 = vunpack.c.l.b16 %v1280
      %v1297 = vpack.c.b16 %v1290, %v1289
      %v1298 = vpack.c.b16 %v1292, %v1291
      %v1299 = vpack.c.b16 %v1294, %v1293
      %v1300 = vpack.c.b16 %v1296, %v1295
      %v1305 = vunpack.c.l.b16 %v715
      %v1306 = vunpack.c.l.b16 %v716
      %v1307 = vunpack.c.l.b16 %v717
      %v1308 = vunpack.c.l.b16 %v718
      %v1309 = vpack.c.b16 %v1306, %v1305
      %v1310 = vpack.c.b16 %v1308, %v1307
      %1311 = vrot.lane.b32.xlu0 %v1309, 120
      %v1312 = vpop.permute.xlu0 %1311
      %1313 = vrot.lane.b32.xlu0 %v1310, 120
      %v1314 = vpop.permute.xlu0 %1313
      %v1318 = vsel %vm798, %v1297, 0
      %v1321 = vsel %vm798, %v1298, 0
      %v1324 = vsel %vm798, %v1299, 0
      %v1327 = vsel %vm798, %v1300, 0
      %1329 = vmatprep.subr.bf16.mxu0 0
      %1330 = vmatpush1.bf16.msra.mxu0 0
      %1331 = vmatprep.subr.bf16.mxu0 0
      %1332 = vmatpush1.bf16.msra.mxu0 0
      %1333 = vmatprep.subr.bf16.mxu0 0
      %1334 = vmatpush1.bf16.msra.mxu0 0
      %1335 = vmatprep.subr.bf16.mxu0 0
      %1336 = vmatpush1.bf16.msra.mxu0 0
      %1337 = vmatprep.subr.bf16.mxu0 0
      %1338 = vmatpush1.bf16.msra.mxu0 0
      %1339 = vmatprep.subr.bf16.mxu0 0
      %1340 = vmatpush1.bf16.msra.mxu0 0
      %1341 = vmatprep.subr.bf16.mxu0 0
      %1342 = vmatpush1.bf16.msra.mxu0 %v1314
      %1343 = vmatprep.subr.bf16.mxu0 0
      %1344 = vmatpush1.bf16.msra.mxu0 %v1312
      %1345 = vmatprep.subr.bf16.mxu0 0
      %1346 = vmatpush2.bf16.msra.mxu0 0
      %1347 = vmatprep.subr.bf16.mxu0 0
      %1348 = vmatpush2.bf16.msra.mxu0 0
      %1349 = vmatprep.subr.bf16.mxu0 0
      %1350 = vmatpush2.bf16.msra.mxu0 0
      %1351 = vmatprep.subr.bf16.mxu0 0
      %1352 = vmatpush2.bf16.msra.mxu0 0
      %1353 = vmatprep.subr.bf16.mxu0 0
      %1354 = vmatpush2.bf16.msra.mxu0 0
      %1355 = vmatprep.subr.bf16.mxu0 0
      %1356 = vmatpush2.bf16.msra.mxu0 0
      %1357 = vmatprep.subr.bf16.mxu0 0
      %1358 = vmatpush2.bf16.msra.mxu0 0
      %1359 = vmatprep.subr.bf16.mxu0 0
      %1360 = vmatpush2.bf16.msra.mxu0 0
      %1361 = vmatprep.mubr.bf16.mxu0 0
      %1362 = vmatmul.mubr.bf16.gmra.mxu0 %v1318
      %v1363 = vpop.f32.mrf.mxu0
      %v1364 = vadd.f32 0.0, %v1363
      %v1365 = vpop.f32.mrf.mxu0
      %v1366 = vpop.f32.mrf.mxu0
      %v1367 = vadd.f32 0.0, %v1366
      %v1368 = vpop.f32.mrf.mxu0
      %1369 = vmatprep.mubr.bf16.mxu0 0
      %1370 = vmatmul.mubr.bf16.gmra.mxu0 %v1321
      %v1371 = vpop.f32.mrf.mxu0
      %v1372 = vadd.f32 0.0, %v1371
      %v1373 = vpop.f32.mrf.mxu0
      %v1374 = vpop.f32.mrf.mxu0
      %v1375 = vadd.f32 0.0, %v1374
      %v1376 = vpop.f32.mrf.mxu0
      %1377 = vmatprep.mubr.bf16.mxu0 0
      %1378 = vmatmul.mubr.bf16.gmra.mxu0 %v1324
      %v1379 = vpop.f32.mrf.mxu0
      %v1380 = vadd.f32 0.0, %v1379
      %v1381 = vpop.f32.mrf.mxu0
      %v1382 = vpop.f32.mrf.mxu0
      %v1383 = vadd.f32 0.0, %v1382
      %v1384 = vpop.f32.mrf.mxu0
      %1385 = vmatprep.mubr.bf16.mxu0 0
      %1386 = vmatmul.mubr.bf16.gmra.mxu0 %v1327
      %v1387 = vpop.f32.mrf.mxu0
      %v1388 = vadd.f32 0.0, %v1387
      %v1389 = vpop.f32.mrf.mxu0
      %v1390 = vpop.f32.mrf.mxu0
      %v1391 = vadd.f32 0.0, %v1390
      %v1392 = vpop.f32.mrf.mxu0
      %1393 = vdwg.mxu0
      %v1394 = vadd.f32 %v1264, %v1364
      %v1395 = vadd.f32 %v1265, %v1367
      %v1396 = vadd.f32 %v1266, %v1372
      %v1397 = vadd.f32 %v1267, %v1375
      %v1398 = vadd.f32 %v1268, %v1380
      %v1399 = vadd.f32 %v1269, %v1383
      %v1400 = vadd.f32 %v1270, %v1388
      %v1401 = vadd.f32 %v1271, %v1391
      %s1402 = scalar_lea.vmem %s3, 160
      %v1403 = vld [vmem:[%s1402] sm:$0xf]
      %v1404 = vld [vmem:[%s1402 + $0x4] sm:$0xf]
      %v1405 = vld [vmem:[%s1402 + $0x8] sm:$0xf]
      %v1406 = vld [vmem:[%s1402 + $0xc] sm:$0xf]
      %v1407 = vld [vmem:[%s1402 + $0x10] sm:$0xf]
      %v1408 = vld [vmem:[%s1402 + $0x14] sm:$0xf]
      %v1409 = vld [vmem:[%s1402 + $0x18] sm:$0xf]
      %v1410 = vld [vmem:[%s1402 + $0x1c] sm:$0xf]
      %v1419 = vunpack.c.l.b16 %v1403
      %v1420 = vunpack.c.l.b16 %v1404
      %v1421 = vunpack.c.l.b16 %v1405
      %v1422 = vunpack.c.l.b16 %v1406
      %v1423 = vunpack.c.l.b16 %v1407
      %v1424 = vunpack.c.l.b16 %v1408
      %v1425 = vunpack.c.l.b16 %v1409
      %v1426 = vunpack.c.l.b16 %v1410
      %v1427 = vpack.c.b16 %v1420, %v1419
      %v1428 = vpack.c.b16 %v1422, %v1421
      %v1429 = vpack.c.b16 %v1424, %v1423
      %v1430 = vpack.c.b16 %v1426, %v1425
      %1431 = vrot.lane.b32.xlu0 %v1171, 120
      %v1432 = vpop.permute.xlu0 %1431
      %1433 = vrot.lane.b32.xlu0 %v1172, 120
      %v1434 = vpop.permute.xlu0 %1433
      %v1438 = vsel %vm798, %v1427, 0
      %v1441 = vsel %vm798, %v1428, 0
      %v1444 = vsel %vm798, %v1429, 0
      %v1447 = vsel %vm798, %v1430, 0
      %1449 = vmatprep.subr.bf16.mxu0 0
      %1450 = vmatpush1.bf16.msra.mxu0 0
      %1451 = vmatprep.subr.bf16.mxu0 0
      %1452 = vmatpush1.bf16.msra.mxu0 0
      %1453 = vmatprep.subr.bf16.mxu0 0
      %1454 = vmatpush1.bf16.msra.mxu0 0
      %1455 = vmatprep.subr.bf16.mxu0 0
      %1456 = vmatpush1.bf16.msra.mxu0 0
      %1457 = vmatprep.subr.bf16.mxu0 0
      %1458 = vmatpush1.bf16.msra.mxu0 0
      %1459 = vmatprep.subr.bf16.mxu0 0
      %1460 = vmatpush1.bf16.msra.mxu0 0
      %1461 = vmatprep.subr.bf16.mxu0 0
      %1462 = vmatpush1.bf16.msra.mxu0 %v1434
      %1463 = vmatprep.subr.bf16.mxu0 0
      %1464 = vmatpush1.bf16.msra.mxu0 %v1432
      %1465 = vmatprep.subr.bf16.mxu0 0
      %1466 = vmatpush2.bf16.msra.mxu0 0
      %1467 = vmatprep.subr.bf16.mxu0 0
      %1468 = vmatpush2.bf16.msra.mxu0 0
      %1469 = vmatprep.subr.bf16.mxu0 0
      %1470 = vmatpush2.bf16.msra.mxu0 0
      %1471 = vmatprep.subr.bf16.mxu0 0
      %1472 = vmatpush2.bf16.msra.mxu0 0
      %1473 = vmatprep.subr.bf16.mxu0 0
      %1474 = vmatpush2.bf16.msra.mxu0 0
      %1475 = vmatprep.subr.bf16.mxu0 0
      %1476 = vmatpush2.bf16.msra.mxu0 0
      %1477 = vmatprep.subr.bf16.mxu0 0
      %1478 = vmatpush2.bf16.msra.mxu0 0
      %1479 = vmatprep.subr.bf16.mxu0 0
      %1480 = vmatpush2.bf16.msra.mxu0 0
      %1481 = vmatprep.mubr.bf16.mxu0 0
      %1482 = vmatmul.mubr.bf16.gmra.mxu0 %v1438
      %v1483 = vpop.f32.mrf.mxu0
      %v1484 = vadd.f32 0.0, %v1483
      %v1485 = vpop.f32.mrf.mxu0
      %v1486 = vpop.f32.mrf.mxu0
      %v1487 = vadd.f32 0.0, %v1486
      %v1488 = vpop.f32.mrf.mxu0
      %1489 = vmatprep.mubr.bf16.mxu0 0
      %1490 = vmatmul.mubr.bf16.gmra.mxu0 %v1441
      %v1491 = vpop.f32.mrf.mxu0
      %v1492 = vadd.f32 0.0, %v1491
      %v1493 = vpop.f32.mrf.mxu0
      %v1494 = vpop.f32.mrf.mxu0
      %v1495 = vadd.f32 0.0, %v1494
      %v1496 = vpop.f32.mrf.mxu0
      %1497 = vmatprep.mubr.bf16.mxu0 0
      %1498 = vmatmul.mubr.bf16.gmra.mxu0 %v1444
      %v1499 = vpop.f32.mrf.mxu0
      %v1500 = vadd.f32 0.0, %v1499
      %v1501 = vpop.f32.mrf.mxu0
      %v1502 = vpop.f32.mrf.mxu0
      %v1503 = vadd.f32 0.0, %v1502
      %v1504 = vpop.f32.mrf.mxu0
      %1505 = vmatprep.mubr.bf16.mxu0 0
      %1506 = vmatmul.mubr.bf16.gmra.mxu0 %v1447
      %v1507 = vpop.f32.mrf.mxu0
      %v1508 = vadd.f32 0.0, %v1507
      %v1509 = vpop.f32.mrf.mxu0
      %v1510 = vpop.f32.mrf.mxu0
      %v1511 = vadd.f32 0.0, %v1510
      %v1512 = vpop.f32.mrf.mxu0
      %1513 = vdwg.mxu0
      %v1514 = vadd.f32 %v1394, %v1484
      %v1515 = vadd.f32 %v1395, %v1487
      %v1516 = vadd.f32 %v1396, %v1492
      %v1517 = vadd.f32 %v1397, %v1495
      %v1518 = vadd.f32 %v1398, %v1500
      %v1519 = vadd.f32 %v1399, %v1503
      %v1520 = vadd.f32 %v1400, %v1508
      %v1521 = vadd.f32 %v1401, %v1511
      %s1522 = scalar_lea.vmem %s3, 192
      %v1523 = vld [vmem:[%s1522] sm:$0xf]
      %v1524 = vld [vmem:[%s1522 + $0x4] sm:$0xf]
      %v1525 = vld [vmem:[%s1522 + $0x8] sm:$0xf]
      %v1526 = vld [vmem:[%s1522 + $0xc] sm:$0xf]
      %v1527 = vld [vmem:[%s1522 + $0x10] sm:$0xf]
      %v1528 = vld [vmem:[%s1522 + $0x14] sm:$0xf]
      %v1529 = vld [vmem:[%s1522 + $0x18] sm:$0xf]
      %v1530 = vld [vmem:[%s1522 + $0x1c] sm:$0xf]
      %v1539 = vunpack.c.l.b16 %v1523
      %v1540 = vunpack.c.l.b16 %v1524
      %v1541 = vunpack.c.l.b16 %v1525
      %v1542 = vunpack.c.l.b16 %v1526
      %v1543 = vunpack.c.l.b16 %v1527
      %v1544 = vunpack.c.l.b16 %v1528
      %v1545 = vunpack.c.l.b16 %v1529
      %v1546 = vunpack.c.l.b16 %v1530
      %v1547 = vpack.c.b16 %v1540, %v1539
      %v1548 = vpack.c.b16 %v1542, %v1541
      %v1549 = vpack.c.b16 %v1544, %v1543
      %v1550 = vpack.c.b16 %v1546, %v1545
      %1551 = vrot.lane.b32.xlu0 %v794, 121
      %v1552 = vpop.permute.xlu0 %1551
      %1553 = vrot.lane.b32.xlu0 %v795, 121
      %v1554 = vpop.permute.xlu0 %1553
      %v1558 = vsel %vm798, %v1547, 0
      %v1561 = vsel %vm798, %v1548, 0
      %v1564 = vsel %vm798, %v1549, 0
      %v1567 = vsel %vm798, %v1550, 0
      %1569 = vmatprep.subr.bf16.mxu0 0
      %1570 = vmatpush1.bf16.msra.mxu0 0
      %1571 = vmatprep.subr.bf16.mxu0 0
      %1572 = vmatpush1.bf16.msra.mxu0 0
      %1573 = vmatprep.subr.bf16.mxu0 0
      %1574 = vmatpush1.bf16.msra.mxu0 0
      %1575 = vmatprep.subr.bf16.mxu0 0
      %1576 = vmatpush1.bf16.msra.mxu0 0
      %1577 = vmatprep.subr.bf16.mxu0 0
      %1578 = vmatpush1.bf16.msra.mxu0 0
      %1579 = vmatprep.subr.bf16.mxu0 0
      %1580 = vmatpush1.bf16.msra.mxu0 0
      %1581 = vmatprep.subr.bf16.mxu0 0
      %1582 = vmatpush1.bf16.msra.mxu0 %v1554
      %1583 = vmatprep.subr.bf16.mxu0 0
      %1584 = vmatpush1.bf16.msra.mxu0 %v1552
      %1585 = vmatprep.subr.bf16.mxu0 0
      %1586 = vmatpush2.bf16.msra.mxu0 0
      %1587 = vmatprep.subr.bf16.mxu0 0
      %1588 = vmatpush2.bf16.msra.mxu0 0
      %1589 = vmatprep.subr.bf16.mxu0 0
      %1590 = vmatpush2.bf16.msra.mxu0 0
      %1591 = vmatprep.subr.bf16.mxu0 0
      %1592 = vmatpush2.bf16.msra.mxu0 0
      %1593 = vmatprep.subr.bf16.mxu0 0
      %1594 = vmatpush2.bf16.msra.mxu0 0
      %1595 = vmatprep.subr.bf16.mxu0 0
      %1596 = vmatpush2.bf16.msra.mxu0 0
      %1597 = vmatprep.subr.bf16.mxu0 0
      %1598 = vmatpush2.bf16.msra.mxu0 0
      %1599 = vmatprep.subr.bf16.mxu0 0
      %1600 = vmatpush2.bf16.msra.mxu0 0
      %1601 = vmatprep.mubr.bf16.mxu0 0
      %1602 = vmatmul.mubr.bf16.gmra.mxu0 %v1558
      %v1603 = vpop.f32.mrf.mxu0
      %v1604 = vadd.f32 0.0, %v1603
      %v1605 = vpop.f32.mrf.mxu0
      %v1606 = vpop.f32.mrf.mxu0
      %v1607 = vadd.f32 0.0, %v1606
      %v1608 = vpop.f32.mrf.mxu0
      %1609 = vmatprep.mubr.bf16.mxu0 0
      %1610 = vmatmul.mubr.bf16.gmra.mxu0 %v1561
      %v1611 = vpop.f32.mrf.mxu0
      %v1612 = vadd.f32 0.0, %v1611
      %v1613 = vpop.f32.mrf.mxu0
      %v1614 = vpop.f32.mrf.mxu0
      %v1615 = vadd.f32 0.0, %v1614
      %v1616 = vpop.f32.mrf.mxu0
      %1617 = vmatprep.mubr.bf16.mxu0 0
      %1618 = vmatmul.mubr.bf16.gmra.mxu0 %v1564
      %v1619 = vpop.f32.mrf.mxu0
      %v1620 = vadd.f32 0.0, %v1619
      %v1621 = vpop.f32.mrf.mxu0
      %v1622 = vpop.f32.mrf.mxu0
      %v1623 = vadd.f32 0.0, %v1622
      %v1624 = vpop.f32.mrf.mxu0
      %1625 = vmatprep.mubr.bf16.mxu0 0
      %1626 = vmatmul.mubr.bf16.gmra.mxu0 %v1567
      %v1627 = vpop.f32.mrf.mxu0
      %v1628 = vadd.f32 0.0, %v1627
      %v1629 = vpop.f32.mrf.mxu0
      %v1630 = vpop.f32.mrf.mxu0
      %v1631 = vadd.f32 0.0, %v1630
      %v1632 = vpop.f32.mrf.mxu0
      %1633 = vdwg.mxu0
      %v1634 = vmul.f32 %v1604, %v754
      %v1635 = vmul.f32 %v1607, %v754
      %v1636 = vmul.f32 %v1612, %v754
      %v1637 = vmul.f32 %v1615, %v754
      %v1638 = vmul.f32 %v1620, %v754
      %v1639 = vmul.f32 %v1623, %v754
      %v1640 = vmul.f32 %v1628, %v754
      %v1641 = vmul.f32 %v1631, %v754
      %v1642 = vadd.f32 %v1514, %v1634
      %v1643 = vadd.f32 %v1515, %v1635
      %v1644 = vadd.f32 %v1516, %v1636
      %v1645 = vadd.f32 %v1517, %v1637
      %v1646 = vadd.f32 %v1518, %v1638
      %v1647 = vadd.f32 %v1519, %v1639
      %v1648 = vadd.f32 %v1520, %v1640
      %v1649 = vadd.f32 %v1521, %v1641
      %s1650 = scalar_lea.vmem %s3, 224
      %v1651 = vld [vmem:[%s1650] sm:$0xf]
      %v1652 = vld [vmem:[%s1650 + $0x4] sm:$0xf]
      %v1653 = vld [vmem:[%s1650 + $0x8] sm:$0xf]
      %v1654 = vld [vmem:[%s1650 + $0xc] sm:$0xf]
      %v1655 = vld [vmem:[%s1650 + $0x10] sm:$0xf]
      %v1656 = vld [vmem:[%s1650 + $0x14] sm:$0xf]
      %v1657 = vld [vmem:[%s1650 + $0x18] sm:$0xf]
      %v1658 = vld [vmem:[%s1650 + $0x1c] sm:$0xf]
      %v1667 = vunpack.c.l.b16 %v1651
      %v1668 = vunpack.c.l.b16 %v1652
      %v1669 = vunpack.c.l.b16 %v1653
      %v1670 = vunpack.c.l.b16 %v1654
      %v1671 = vunpack.c.l.b16 %v1655
      %v1672 = vunpack.c.l.b16 %v1656
      %v1673 = vunpack.c.l.b16 %v1657
      %v1674 = vunpack.c.l.b16 %v1658
      %v1675 = vpack.c.b16 %v1668, %v1667
      %v1676 = vpack.c.b16 %v1670, %v1669
      %v1677 = vpack.c.b16 %v1672, %v1671
      %v1678 = vpack.c.b16 %v1674, %v1673
      %1679 = vrot.lane.b32.xlu0 %v921, 120
      %v1680 = vpop.permute.xlu0 %1679
      %1681 = vrot.lane.b32.xlu0 %v922, 120
      %v1682 = vpop.permute.xlu0 %1681
      %v1686 = vsel %vm798, %v1675, 0
      %v1689 = vsel %vm798, %v1676, 0
      %v1692 = vsel %vm798, %v1677, 0
      %v1695 = vsel %vm798, %v1678, 0
      %1697 = vmatprep.subr.bf16.mxu0 0
      %1698 = vmatpush1.bf16.msra.mxu0 0
      %1699 = vmatprep.subr.bf16.mxu0 0
      %1700 = vmatpush1.bf16.msra.mxu0 0
      %1701 = vmatprep.subr.bf16.mxu0 0
      %1702 = vmatpush1.bf16.msra.mxu0 0
      %1703 = vmatprep.subr.bf16.mxu0 0
      %1704 = vmatpush1.bf16.msra.mxu0 0
      %1705 = vmatprep.subr.bf16.mxu0 0
      %1706 = vmatpush1.bf16.msra.mxu0 0
      %1707 = vmatprep.subr.bf16.mxu0 0
      %1708 = vmatpush1.bf16.msra.mxu0 0
      %1709 = vmatprep.subr.bf16.mxu0 0
      %1710 = vmatpush1.bf16.msra.mxu0 %v1682
      %1711 = vmatprep.subr.bf16.mxu0 0
      %1712 = vmatpush1.bf16.msra.mxu0 %v1680
      %1713 = vmatprep.subr.bf16.mxu0 0
      %1714 = vmatpush2.bf16.msra.mxu0 0
      %1715 = vmatprep.subr.bf16.mxu0 0
      %1716 = vmatpush2.bf16.msra.mxu0 0
      %1717 = vmatprep.subr.bf16.mxu0 0
      %1718 = vmatpush2.bf16.msra.mxu0 0
      %1719 = vmatprep.subr.bf16.mxu0 0
      %1720 = vmatpush2.bf16.msra.mxu0 0
      %1721 = vmatprep.subr.bf16.mxu0 0
      %1722 = vmatpush2.bf16.msra.mxu0 0
      %1723 = vmatprep.subr.bf16.mxu0 0
      %1724 = vmatpush2.bf16.msra.mxu0 0
      %1725 = vmatprep.subr.bf16.mxu0 0
      %1726 = vmatpush2.bf16.msra.mxu0 0
      %1727 = vmatprep.subr.bf16.mxu0 0
      %1728 = vmatpush2.bf16.msra.mxu0 0
      %1729 = vmatprep.mubr.bf16.mxu0 0
      %1730 = vmatmul.mubr.bf16.gmra.mxu0 %v1686
      %v1731 = vpop.f32.mrf.mxu0
      %v1732 = vadd.f32 0.0, %v1731
      %v1733 = vpop.f32.mrf.mxu0
      %v1734 = vpop.f32.mrf.mxu0
      %v1735 = vadd.f32 0.0, %v1734
      %v1736 = vpop.f32.mrf.mxu0
      %1737 = vmatprep.mubr.bf16.mxu0 0
      %1738 = vmatmul.mubr.bf16.gmra.mxu0 %v1689
      %v1739 = vpop.f32.mrf.mxu0
      %v1740 = vadd.f32 0.0, %v1739
      %v1741 = vpop.f32.mrf.mxu0
      %v1742 = vpop.f32.mrf.mxu0
      %v1743 = vadd.f32 0.0, %v1742
      %v1744 = vpop.f32.mrf.mxu0
      %1745 = vmatprep.mubr.bf16.mxu0 0
      %1746 = vmatmul.mubr.bf16.gmra.mxu0 %v1692
      %v1747 = vpop.f32.mrf.mxu0
      %v1748 = vadd.f32 0.0, %v1747
      %v1749 = vpop.f32.mrf.mxu0
      %v1750 = vpop.f32.mrf.mxu0
      %v1751 = vadd.f32 0.0, %v1750
      %v1752 = vpop.f32.mrf.mxu0
      %1753 = vmatprep.mubr.bf16.mxu0 0
      %1754 = vmatmul.mubr.bf16.gmra.mxu0 %v1695
      %v1755 = vpop.f32.mrf.mxu0
      %v1756 = vadd.f32 0.0, %v1755
      %v1757 = vpop.f32.mrf.mxu0
      %v1758 = vpop.f32.mrf.mxu0
      %v1759 = vadd.f32 0.0, %v1758
      %v1760 = vpop.f32.mrf.mxu0
      %1761 = vdwg.mxu0
      %v1762 = vadd.f32 %v1642, %v1732
      %v1763 = vadd.f32 %v1643, %v1735
      %v1764 = vadd.f32 %v1644, %v1740
      %v1765 = vadd.f32 %v1645, %v1743
      %v1766 = vadd.f32 %v1646, %v1748
      %v1767 = vadd.f32 %v1647, %v1751
      %v1768 = vadd.f32 %v1648, %v1756
      %v1769 = vadd.f32 %v1649, %v1759
      %s1770 = scalar_lea.vmem %s3, 256
      %v1771 = vld [vmem:[%s1770] sm:$0xf]
      %v1772 = vld [vmem:[%s1770 + $0x4] sm:$0xf]
      %v1773 = vld [vmem:[%s1770 + $0x8] sm:$0xf]
      %v1774 = vld [vmem:[%s1770 + $0xc] sm:$0xf]
      %v1775 = vld [vmem:[%s1770 + $0x10] sm:$0xf]
      %v1776 = vld [vmem:[%s1770 + $0x14] sm:$0xf]
      %v1777 = vld [vmem:[%s1770 + $0x18] sm:$0xf]
      %v1778 = vld [vmem:[%s1770 + $0x1c] sm:$0xf]
      %v1787 = vunpack.c.l.b16 %v1771
      %v1788 = vunpack.c.l.b16 %v1772
      %v1789 = vunpack.c.l.b16 %v1773
      %v1790 = vunpack.c.l.b16 %v1774
      %v1791 = vunpack.c.l.b16 %v1775
      %v1792 = vunpack.c.l.b16 %v1776
      %v1793 = vunpack.c.l.b16 %v1777
      %v1794 = vunpack.c.l.b16 %v1778
      %v1795 = vpack.c.b16 %v1788, %v1787
      %v1796 = vpack.c.b16 %v1790, %v1789
      %v1797 = vpack.c.b16 %v1792, %v1791
      %v1798 = vpack.c.b16 %v1794, %v1793
      %1799 = vrot.lane.b32.xlu0 %v794, 120
      %v1800 = vpop.permute.xlu0 %1799
      %1801 = vrot.lane.b32.xlu0 %v795, 120
      %v1802 = vpop.permute.xlu0 %1801
      %v1806 = vsel %vm798, %v1795, 0
      %v1809 = vsel %vm798, %v1796, 0
      %v1812 = vsel %vm798, %v1797, 0
      %v1815 = vsel %vm798, %v1798, 0
      %1817 = vmatprep.subr.bf16.mxu0 0
      %1818 = vmatpush1.bf16.msra.mxu0 0
      %1819 = vmatprep.subr.bf16.mxu0 0
      %1820 = vmatpush1.bf16.msra.mxu0 0
      %1821 = vmatprep.subr.bf16.mxu0 0
      %1822 = vmatpush1.bf16.msra.mxu0 0
      %1823 = vmatprep.subr.bf16.mxu0 0
      %1824 = vmatpush1.bf16.msra.mxu0 0
      %1825 = vmatprep.subr.bf16.mxu0 0
      %1826 = vmatpush1.bf16.msra.mxu0 0
      %1827 = vmatprep.subr.bf16.mxu0 0
      %1828 = vmatpush1.bf16.msra.mxu0 0
      %1829 = vmatprep.subr.bf16.mxu0 0
      %1830 = vmatpush1.bf16.msra.mxu0 %v1802
      %1831 = vmatprep.subr.bf16.mxu0 0
      %1832 = vmatpush1.bf16.msra.mxu0 %v1800
      %1833 = vmatprep.subr.bf16.mxu0 0
      %1834 = vmatpush2.bf16.msra.mxu0 0
      %1835 = vmatprep.subr.bf16.mxu0 0
      %1836 = vmatpush2.bf16.msra.mxu0 0
      %1837 = vmatprep.subr.bf16.mxu0 0
      %1838 = vmatpush2.bf16.msra.mxu0 0
      %1839 = vmatprep.subr.bf16.mxu0 0
      %1840 = vmatpush2.bf16.msra.mxu0 0
      %1841 = vmatprep.subr.bf16.mxu0 0
      %1842 = vmatpush2.bf16.msra.mxu0 0
      %1843 = vmatprep.subr.bf16.mxu0 0
      %1844 = vmatpush2.bf16.msra.mxu0 0
      %1845 = vmatprep.subr.bf16.mxu0 0
      %1846 = vmatpush2.bf16.msra.mxu0 0
      %1847 = vmatprep.subr.bf16.mxu0 0
      %1848 = vmatpush2.bf16.msra.mxu0 0
      %1849 = vmatprep.mubr.bf16.mxu0 0
      %1850 = vmatmul.mubr.bf16.gmra.mxu0 %v1806
      %v1851 = vpop.f32.mrf.mxu0
      %v1852 = vadd.f32 0.0, %v1851
      %v1853 = vpop.f32.mrf.mxu0
      %v1854 = vpop.f32.mrf.mxu0
      %v1855 = vadd.f32 0.0, %v1854
      %v1856 = vpop.f32.mrf.mxu0
      %1857 = vmatprep.mubr.bf16.mxu0 0
      %1858 = vmatmul.mubr.bf16.gmra.mxu0 %v1809
      %v1859 = vpop.f32.mrf.mxu0
      %v1860 = vadd.f32 0.0, %v1859
      %v1861 = vpop.f32.mrf.mxu0
      %v1862 = vpop.f32.mrf.mxu0
      %v1863 = vadd.f32 0.0, %v1862
      %v1864 = vpop.f32.mrf.mxu0
      %1865 = vmatprep.mubr.bf16.mxu0 0
      %1866 = vmatmul.mubr.bf16.gmra.mxu0 %v1812
      %v1867 = vpop.f32.mrf.mxu0
      %v1868 = vadd.f32 0.0, %v1867
      %v1869 = vpop.f32.mrf.mxu0
      %v1870 = vpop.f32.mrf.mxu0
      %v1871 = vadd.f32 0.0, %v1870
      %v1872 = vpop.f32.mrf.mxu0
      %1873 = vmatprep.mubr.bf16.mxu0 0
      %1874 = vmatmul.mubr.bf16.gmra.mxu0 %v1815
      %v1875 = vpop.f32.mrf.mxu0
      %v1876 = vadd.f32 0.0, %v1875
      %v1877 = vpop.f32.mrf.mxu0
      %v1878 = vpop.f32.mrf.mxu0
      %v1879 = vadd.f32 0.0, %v1878
      %v1880 = vpop.f32.mrf.mxu0
      %1881 = vdwg.mxu0
      %v1882 = vadd.f32 %v1762, %v1852
      %v1883 = vadd.f32 %v1763, %v1855
      %v1884 = vadd.f32 %v1764, %v1860
      %v1885 = vadd.f32 %v1765, %v1863
      %v1886 = vadd.f32 %v1766, %v1868
      %v1887 = vadd.f32 %v1767, %v1871
      %v1888 = vadd.f32 %v1768, %v1876
      %v1889 = vadd.f32 %v1769, %v1879
      %1890 = vmatprep.subr.bf16.mxu0 0
      %1891 = vmatpush1.bf16.msra.mxu0 0
      %1892 = vmatprep.subr.bf16.mxu0 0
      %1893 = vmatpush1.bf16.msra.mxu0 0
      %1894 = vmatprep.subr.bf16.mxu0 0
      %1895 = vmatpush1.bf16.msra.mxu0 0
      %1896 = vmatprep.subr.bf16.mxu0 0
      %1897 = vmatpush1.bf16.msra.mxu0 0
      %1898 = vmatprep.subr.bf16.mxu0 0
      %1899 = vmatpush1.bf16.msra.mxu0 0
      %1900 = vmatprep.subr.bf16.mxu0 0
      %1901 = vmatpush1.bf16.msra.mxu0 0
      %1902 = vmatprep.subr.bf16.mxu0 0
      %1903 = vmatpush1.bf16.msra.mxu0 %v1046
      %1904 = vmatprep.subr.bf16.mxu0 0
      %1905 = vmatpush1.bf16.msra.mxu0 %v1044
      %1906 = vmatprep.subr.bf16.mxu0 0
      %1907 = vmatpush2.bf16.msra.mxu0 0
      %1908 = vmatprep.subr.bf16.mxu0 0
      %1909 = vmatpush2.bf16.msra.mxu0 0
      %1910 = vmatprep.subr.bf16.mxu0 0
      %1911 = vmatpush2.bf16.msra.mxu0 0
      %1912 = vmatprep.subr.bf16.mxu0 0
      %1913 = vmatpush2.bf16.msra.mxu0 0
      %1914 = vmatprep.subr.bf16.mxu0 0
      %1915 = vmatpush2.bf16.msra.mxu0 0
      %1916 = vmatprep.subr.bf16.mxu0 0
      %1917 = vmatpush2.bf16.msra.mxu0 0
      %1918 = vmatprep.subr.bf16.mxu0 0
      %1919 = vmatpush2.bf16.msra.mxu0 0
      %1920 = vmatprep.subr.bf16.mxu0 0
      %1921 = vmatpush2.bf16.msra.mxu0 0
      %1922 = vmatprep.mubr.bf16.mxu0 0
      %1923 = vmatmul.mubr.bf16.gmra.mxu0 %v930
      %v1924 = vpop.f32.mrf.mxu0
      %v1925 = vadd.f32 0.0, %v1924
      %v1926 = vpop.f32.mrf.mxu0
      %v1927 = vpop.f32.mrf.mxu0
      %v1928 = vadd.f32 0.0, %v1927
      %v1929 = vpop.f32.mrf.mxu0
      %1930 = vmatprep.mubr.bf16.mxu0 0
      %1931 = vmatmul.mubr.bf16.gmra.mxu0 %v933
      %v1932 = vpop.f32.mrf.mxu0
      %v1933 = vadd.f32 0.0, %v1932
      %v1934 = vpop.f32.mrf.mxu0
      %v1935 = vpop.f32.mrf.mxu0
      %v1936 = vadd.f32 0.0, %v1935
      %v1937 = vpop.f32.mrf.mxu0
      %1938 = vmatprep.mubr.bf16.mxu0 0
      %1939 = vmatmul.mubr.bf16.gmra.mxu0 %v936
      %v1940 = vpop.f32.mrf.mxu0
      %v1941 = vadd.f32 0.0, %v1940
      %v1942 = vpop.f32.mrf.mxu0
      %v1943 = vpop.f32.mrf.mxu0
      %v1944 = vadd.f32 0.0, %v1943
      %v1945 = vpop.f32.mrf.mxu0
      %1946 = vmatprep.mubr.bf16.mxu0 0
      %1947 = vmatmul.mubr.bf16.gmra.mxu0 %v939
      %v1948 = vpop.f32.mrf.mxu0
      %v1949 = vadd.f32 0.0, %v1948
      %v1950 = vpop.f32.mrf.mxu0
      %v1951 = vpop.f32.mrf.mxu0
      %v1952 = vadd.f32 0.0, %v1951
      %v1953 = vpop.f32.mrf.mxu0
      %1954 = vdwg.mxu0
      %1955 = vmatprep.subr.bf16.mxu0 0
      %1956 = vmatpush1.bf16.msra.mxu0 0
      %1957 = vmatprep.subr.bf16.mxu0 0
      %1958 = vmatpush1.bf16.msra.mxu0 0
      %1959 = vmatprep.subr.bf16.mxu0 0
      %1960 = vmatpush1.bf16.msra.mxu0 0
      %1961 = vmatprep.subr.bf16.mxu0 0
      %1962 = vmatpush1.bf16.msra.mxu0 0
      %1963 = vmatprep.subr.bf16.mxu0 0
      %1964 = vmatpush1.bf16.msra.mxu0 0
      %1965 = vmatprep.subr.bf16.mxu0 0
      %1966 = vmatpush1.bf16.msra.mxu0 0
      %1967 = vmatprep.subr.bf16.mxu0 0
      %1968 = vmatpush1.bf16.msra.mxu0 %v926
      %1969 = vmatprep.subr.bf16.mxu0 0
      %1970 = vmatpush1.bf16.msra.mxu0 %v924
      %1971 = vmatprep.subr.bf16.mxu0 0
      %1972 = vmatpush2.bf16.msra.mxu0 0
      %1973 = vmatprep.subr.bf16.mxu0 0
      %1974 = vmatpush2.bf16.msra.mxu0 0
      %1975 = vmatprep.subr.bf16.mxu0 0
      %1976 = vmatpush2.bf16.msra.mxu0 0
      %1977 = vmatprep.subr.bf16.mxu0 0
      %1978 = vmatpush2.bf16.msra.mxu0 0
      %1979 = vmatprep.subr.bf16.mxu0 0
      %1980 = vmatpush2.bf16.msra.mxu0 0
      %1981 = vmatprep.subr.bf16.mxu0 0
      %1982 = vmatpush2.bf16.msra.mxu0 0
      %1983 = vmatprep.subr.bf16.mxu0 0
      %1984 = vmatpush2.bf16.msra.mxu0 0
      %1985 = vmatprep.subr.bf16.mxu0 0
      %1986 = vmatpush2.bf16.msra.mxu0 0
      %1987 = vmatprep.mubr.bf16.mxu0 0
      %1988 = vmatmul.mubr.bf16.gmra.mxu0 %v800
      %v1989 = vpop.f32.mrf.mxu0
      %v1990 = vadd.f32 %v1925, %v1989
      %v1991 = vpop.f32.mrf.mxu0
      %v1992 = vpop.f32.mrf.mxu0
      %v1993 = vadd.f32 %v1928, %v1992
      %v1994 = vpop.f32.mrf.mxu0
      %1995 = vmatprep.mubr.bf16.mxu0 0
      %1996 = vmatmul.mubr.bf16.gmra.mxu0 %v803
      %v1997 = vpop.f32.mrf.mxu0
      %v1998 = vadd.f32 %v1933, %v1997
      %v1999 = vpop.f32.mrf.mxu0
      %v2000 = vpop.f32.mrf.mxu0
      %v2001 = vadd.f32 %v1936, %v2000
      %v2002 = vpop.f32.mrf.mxu0
      %2003 = vmatprep.mubr.bf16.mxu0 0
      %2004 = vmatmul.mubr.bf16.gmra.mxu0 %v806
      %v2005 = vpop.f32.mrf.mxu0
      %v2006 = vadd.f32 %v1941, %v2005
      %v2007 = vpop.f32.mrf.mxu0
      %v2008 = vpop.f32.mrf.mxu0
      %v2009 = vadd.f32 %v1944, %v2008
      %v2010 = vpop.f32.mrf.mxu0
      %2011 = vmatprep.mubr.bf16.mxu0 0
      %2012 = vmatmul.mubr.bf16.gmra.mxu0 %v809
      %v2013 = vpop.f32.mrf.mxu0
      %v2014 = vadd.f32 %v1949, %v2013
      %v2015 = vpop.f32.mrf.mxu0
      %v2016 = vpop.f32.mrf.mxu0
      %v2017 = vadd.f32 %v1952, %v2016
      %v2018 = vpop.f32.mrf.mxu0
      %2019 = vdwg.mxu0
      %2020 = vrot.lane.b32.xlu0 %v921, 126
      %v2021 = vpop.permute.xlu0 %2020
      %2022 = vrot.lane.b32.xlu0 %v922, 126
      %v2023 = vpop.permute.xlu0 %2022
      %2026 = vmatprep.subr.bf16.mxu0 0
      %2027 = vmatpush1.bf16.msra.mxu0 0
      %2028 = vmatprep.subr.bf16.mxu0 0
      %2029 = vmatpush1.bf16.msra.mxu0 0
      %2030 = vmatprep.subr.bf16.mxu0 0
      %2031 = vmatpush1.bf16.msra.mxu0 0
      %2032 = vmatprep.subr.bf16.mxu0 0
      %2033 = vmatpush1.bf16.msra.mxu0 0
      %2034 = vmatprep.subr.bf16.mxu0 0
      %2035 = vmatpush1.bf16.msra.mxu0 0
      %2036 = vmatprep.subr.bf16.mxu0 0
      %2037 = vmatpush1.bf16.msra.mxu0 0
      %2038 = vmatprep.subr.bf16.mxu0 0
      %2039 = vmatpush1.bf16.msra.mxu0 %v2023
      %2040 = vmatprep.subr.bf16.mxu0 0
      %2041 = vmatpush1.bf16.msra.mxu0 %v2021
      %2042 = vmatprep.subr.bf16.mxu0 0
      %2043 = vmatpush2.bf16.msra.mxu0 0
      %2044 = vmatprep.subr.bf16.mxu0 0
      %2045 = vmatpush2.bf16.msra.mxu0 0
      %2046 = vmatprep.subr.bf16.mxu0 0
      %2047 = vmatpush2.bf16.msra.mxu0 0
      %2048 = vmatprep.subr.bf16.mxu0 0
      %2049 = vmatpush2.bf16.msra.mxu0 0
      %2050 = vmatprep.subr.bf16.mxu0 0
      %2051 = vmatpush2.bf16.msra.mxu0 0
      %2052 = vmatprep.subr.bf16.mxu0 0
      %2053 = vmatpush2.bf16.msra.mxu0 0
      %2054 = vmatprep.subr.bf16.mxu0 0
      %2055 = vmatpush2.bf16.msra.mxu0 0
      %2056 = vmatprep.subr.bf16.mxu0 0
      %2057 = vmatpush2.bf16.msra.mxu0 0
      %2058 = vmatprep.mubr.bf16.mxu0 0
      %2059 = vmatmul.mubr.bf16.gmra.mxu0 %v1050
      %v2060 = vpop.f32.mrf.mxu0
      %v2061 = vadd.f32 0.0, %v2060
      %v2062 = vpop.f32.mrf.mxu0
      %v2063 = vpop.f32.mrf.mxu0
      %v2064 = vadd.f32 0.0, %v2063
      %v2065 = vpop.f32.mrf.mxu0
      %2066 = vmatprep.mubr.bf16.mxu0 0
      %2067 = vmatmul.mubr.bf16.gmra.mxu0 %v1053
      %v2068 = vpop.f32.mrf.mxu0
      %v2069 = vadd.f32 0.0, %v2068
      %v2070 = vpop.f32.mrf.mxu0
      %v2071 = vpop.f32.mrf.mxu0
      %v2072 = vadd.f32 0.0, %v2071
      %v2073 = vpop.f32.mrf.mxu0
      %2074 = vmatprep.mubr.bf16.mxu0 0
      %2075 = vmatmul.mubr.bf16.gmra.mxu0 %v1056
      %v2076 = vpop.f32.mrf.mxu0
      %v2077 = vadd.f32 0.0, %v2076
      %v2078 = vpop.f32.mrf.mxu0
      %v2079 = vpop.f32.mrf.mxu0
      %v2080 = vadd.f32 0.0, %v2079
      %v2081 = vpop.f32.mrf.mxu0
      %2082 = vmatprep.mubr.bf16.mxu0 0
      %2083 = vmatmul.mubr.bf16.gmra.mxu0 %v1059
      %v2084 = vpop.f32.mrf.mxu0
      %v2085 = vadd.f32 0.0, %v2084
      %v2086 = vpop.f32.mrf.mxu0
      %v2087 = vpop.f32.mrf.mxu0
      %v2088 = vadd.f32 0.0, %v2087
      %v2089 = vpop.f32.mrf.mxu0
      %2090 = vdwg.mxu0
      %v2091 = vmul.f32 %v2061, %v757
      %v2092 = vmul.f32 %v2064, %v757
      %v2093 = vmul.f32 %v2069, %v757
      %v2094 = vmul.f32 %v2072, %v757
      %v2095 = vmul.f32 %v2077, %v757
      %v2096 = vmul.f32 %v2080, %v757
      %v2097 = vmul.f32 %v2085, %v757
      %v2098 = vmul.f32 %v2088, %v757
      %v2099 = vadd.f32 %v1990, %v2091
      %v2100 = vadd.f32 %v1993, %v2092
      %v2101 = vadd.f32 %v1998, %v2093
      %v2102 = vadd.f32 %v2001, %v2094
      %v2103 = vadd.f32 %v2006, %v2095
      %v2104 = vadd.f32 %v2009, %v2096
      %v2105 = vadd.f32 %v2014, %v2097
      %v2106 = vadd.f32 %v2017, %v2098
      %2107 = vmatprep.subr.bf16.mxu0 0
      %2108 = vmatpush1.bf16.msra.mxu0 0
      %2109 = vmatprep.subr.bf16.mxu0 0
      %2110 = vmatpush1.bf16.msra.mxu0 0
      %2111 = vmatprep.subr.bf16.mxu0 0
      %2112 = vmatpush1.bf16.msra.mxu0 0
      %2113 = vmatprep.subr.bf16.mxu0 0
      %2114 = vmatpush1.bf16.msra.mxu0 0
      %2115 = vmatprep.subr.bf16.mxu0 0
      %2116 = vmatpush1.bf16.msra.mxu0 0
      %2117 = vmatprep.subr.bf16.mxu0 0
      %2118 = vmatpush1.bf16.msra.mxu0 0
      %2119 = vmatprep.subr.bf16.mxu0 0
      %2120 = vmatpush1.bf16.msra.mxu0 %v1314
      %2121 = vmatprep.subr.bf16.mxu0 0
      %2122 = vmatpush1.bf16.msra.mxu0 %v1312
      %2123 = vmatprep.subr.bf16.mxu0 0
      %2124 = vmatpush2.bf16.msra.mxu0 0
      %2125 = vmatprep.subr.bf16.mxu0 0
      %2126 = vmatpush2.bf16.msra.mxu0 0
      %2127 = vmatprep.subr.bf16.mxu0 0
      %2128 = vmatpush2.bf16.msra.mxu0 0
      %2129 = vmatprep.subr.bf16.mxu0 0
      %2130 = vmatpush2.bf16.msra.mxu0 0
      %2131 = vmatprep.subr.bf16.mxu0 0
      %2132 = vmatpush2.bf16.msra.mxu0 0
      %2133 = vmatprep.subr.bf16.mxu0 0
      %2134 = vmatpush2.bf16.msra.mxu0 0
      %2135 = vmatprep.subr.bf16.mxu0 0
      %2136 = vmatpush2.bf16.msra.mxu0 0
      %2137 = vmatprep.subr.bf16.mxu0 0
      %2138 = vmatpush2.bf16.msra.mxu0 0
      %2139 = vmatprep.mubr.bf16.mxu0 0
      %2140 = vmatmul.mubr.bf16.gmra.mxu0 %v1180
      %v2141 = vpop.f32.mrf.mxu0
      %v2142 = vadd.f32 0.0, %v2141
      %v2143 = vpop.f32.mrf.mxu0
      %v2144 = vpop.f32.mrf.mxu0
      %v2145 = vadd.f32 0.0, %v2144
      %v2146 = vpop.f32.mrf.mxu0
      %2147 = vmatprep.mubr.bf16.mxu0 0
      %2148 = vmatmul.mubr.bf16.gmra.mxu0 %v1183
      %v2149 = vpop.f32.mrf.mxu0
      %v2150 = vadd.f32 0.0, %v2149
      %v2151 = vpop.f32.mrf.mxu0
      %v2152 = vpop.f32.mrf.mxu0
      %v2153 = vadd.f32 0.0, %v2152
      %v2154 = vpop.f32.mrf.mxu0
      %2155 = vmatprep.mubr.bf16.mxu0 0
      %2156 = vmatmul.mubr.bf16.gmra.mxu0 %v1186
      %v2157 = vpop.f32.mrf.mxu0
      %v2158 = vadd.f32 0.0, %v2157
      %v2159 = vpop.f32.mrf.mxu0
      %v2160 = vpop.f32.mrf.mxu0
      %v2161 = vadd.f32 0.0, %v2160
      %v2162 = vpop.f32.mrf.mxu0
      %2163 = vmatprep.mubr.bf16.mxu0 0
      %2164 = vmatmul.mubr.bf16.gmra.mxu0 %v1189
      %v2165 = vpop.f32.mrf.mxu0
      %v2166 = vadd.f32 0.0, %v2165
      %v2167 = vpop.f32.mrf.mxu0
      %v2168 = vpop.f32.mrf.mxu0
      %v2169 = vadd.f32 0.0, %v2168
      %v2170 = vpop.f32.mrf.mxu0
      %2171 = vdwg.mxu0
      %v2172 = vadd.f32 %v2099, %v2142
      %v2173 = vadd.f32 %v2100, %v2145
      %v2174 = vadd.f32 %v2101, %v2150
      %v2175 = vadd.f32 %v2102, %v2153
      %v2176 = vadd.f32 %v2103, %v2158
      %v2177 = vadd.f32 %v2104, %v2161
      %v2178 = vadd.f32 %v2105, %v2166
      %v2179 = vadd.f32 %v2106, %v2169
      %2180 = vmatprep.subr.bf16.mxu0 0
      %2181 = vmatpush1.bf16.msra.mxu0 0
      %2182 = vmatprep.subr.bf16.mxu0 0
      %2183 = vmatpush1.bf16.msra.mxu0 0
      %2184 = vmatprep.subr.bf16.mxu0 0
      %2185 = vmatpush1.bf16.msra.mxu0 0
      %2186 = vmatprep.subr.bf16.mxu0 0
      %2187 = vmatpush1.bf16.msra.mxu0 0
      %2188 = vmatprep.subr.bf16.mxu0 0
      %2189 = vmatpush1.bf16.msra.mxu0 0
      %2190 = vmatprep.subr.bf16.mxu0 0
      %2191 = vmatpush1.bf16.msra.mxu0 0
      %2192 = vmatprep.subr.bf16.mxu0 0
      %2193 = vmatpush1.bf16.msra.mxu0 %v1434
      %2194 = vmatprep.subr.bf16.mxu0 0
      %2195 = vmatpush1.bf16.msra.mxu0 %v1432
      %2196 = vmatprep.subr.bf16.mxu0 0
      %2197 = vmatpush2.bf16.msra.mxu0 0
      %2198 = vmatprep.subr.bf16.mxu0 0
      %2199 = vmatpush2.bf16.msra.mxu0 0
      %2200 = vmatprep.subr.bf16.mxu0 0
      %2201 = vmatpush2.bf16.msra.mxu0 0
      %2202 = vmatprep.subr.bf16.mxu0 0
      %2203 = vmatpush2.bf16.msra.mxu0 0
      %2204 = vmatprep.subr.bf16.mxu0 0
      %2205 = vmatpush2.bf16.msra.mxu0 0
      %2206 = vmatprep.subr.bf16.mxu0 0
      %2207 = vmatpush2.bf16.msra.mxu0 0
      %2208 = vmatprep.subr.bf16.mxu0 0
      %2209 = vmatpush2.bf16.msra.mxu0 0
      %2210 = vmatprep.subr.bf16.mxu0 0
      %2211 = vmatpush2.bf16.msra.mxu0 0
      %2212 = vmatprep.mubr.bf16.mxu0 0
      %2213 = vmatmul.mubr.bf16.gmra.mxu0 %v1318
      %v2214 = vpop.f32.mrf.mxu0
      %v2215 = vadd.f32 0.0, %v2214
      %v2216 = vpop.f32.mrf.mxu0
      %v2217 = vpop.f32.mrf.mxu0
      %v2218 = vadd.f32 0.0, %v2217
      %v2219 = vpop.f32.mrf.mxu0
      %2220 = vmatprep.mubr.bf16.mxu0 0
      %2221 = vmatmul.mubr.bf16.gmra.mxu0 %v1321
      %v2222 = vpop.f32.mrf.mxu0
      %v2223 = vadd.f32 0.0, %v2222
      %v2224 = vpop.f32.mrf.mxu0
      %v2225 = vpop.f32.mrf.mxu0
      %v2226 = vadd.f32 0.0, %v2225
      %v2227 = vpop.f32.mrf.mxu0
      %2228 = vmatprep.mubr.bf16.mxu0 0
      %2229 = vmatmul.mubr.bf16.gmra.mxu0 %v1324
      %v2230 = vpop.f32.mrf.mxu0
      %v2231 = vadd.f32 0.0, %v2230
      %v2232 = vpop.f32.mrf.mxu0
      %v2233 = vpop.f32.mrf.mxu0
      %v2234 = vadd.f32 0.0, %v2233
      %v2235 = vpop.f32.mrf.mxu0
      %2236 = vmatprep.mubr.bf16.mxu0 0
      %2237 = vmatmul.mubr.bf16.gmra.mxu0 %v1327
      %v2238 = vpop.f32.mrf.mxu0
      %v2239 = vadd.f32 0.0, %v2238
      %v2240 = vpop.f32.mrf.mxu0
      %v2241 = vpop.f32.mrf.mxu0
      %v2242 = vadd.f32 0.0, %v2241
      %v2243 = vpop.f32.mrf.mxu0
      %2244 = vdwg.mxu0
      %v2245 = vadd.f32 %v2172, %v2215
      %v2246 = vadd.f32 %v2173, %v2218
      %v2247 = vadd.f32 %v2174, %v2223
      %v2248 = vadd.f32 %v2175, %v2226
      %v2249 = vadd.f32 %v2176, %v2231
      %v2250 = vadd.f32 %v2177, %v2234
      %v2251 = vadd.f32 %v2178, %v2239
      %v2252 = vadd.f32 %v2179, %v2242
      %2253 = vrot.lane.b32.xlu0 %v1309, 119
      %v2254 = vpop.permute.xlu0 %2253
      %2255 = vrot.lane.b32.xlu0 %v1310, 119
      %v2256 = vpop.permute.xlu0 %2255
      %2259 = vmatprep.subr.bf16.mxu0 0
      %2260 = vmatpush1.bf16.msra.mxu0 0
      %2261 = vmatprep.subr.bf16.mxu0 0
      %2262 = vmatpush1.bf16.msra.mxu0 0
      %2263 = vmatprep.subr.bf16.mxu0 0
      %2264 = vmatpush1.bf16.msra.mxu0 0
      %2265 = vmatprep.subr.bf16.mxu0 0
      %2266 = vmatpush1.bf16.msra.mxu0 0
      %2267 = vmatprep.subr.bf16.mxu0 0
      %2268 = vmatpush1.bf16.msra.mxu0 0
      %2269 = vmatprep.subr.bf16.mxu0 0
      %2270 = vmatpush1.bf16.msra.mxu0 0
      %2271 = vmatprep.subr.bf16.mxu0 0
      %2272 = vmatpush1.bf16.msra.mxu0 %v2256
      %2273 = vmatprep.subr.bf16.mxu0 0
      %2274 = vmatpush1.bf16.msra.mxu0 %v2254
      %2275 = vmatprep.subr.bf16.mxu0 0
      %2276 = vmatpush2.bf16.msra.mxu0 0
      %2277 = vmatprep.subr.bf16.mxu0 0
      %2278 = vmatpush2.bf16.msra.mxu0 0
      %2279 = vmatprep.subr.bf16.mxu0 0
      %2280 = vmatpush2.bf16.msra.mxu0 0
      %2281 = vmatprep.subr.bf16.mxu0 0
      %2282 = vmatpush2.bf16.msra.mxu0 0
      %2283 = vmatprep.subr.bf16.mxu0 0
      %2284 = vmatpush2.bf16.msra.mxu0 0
      %2285 = vmatprep.subr.bf16.mxu0 0
      %2286 = vmatpush2.bf16.msra.mxu0 0
      %2287 = vmatprep.subr.bf16.mxu0 0
      %2288 = vmatpush2.bf16.msra.mxu0 0
      %2289 = vmatprep.subr.bf16.mxu0 0
      %2290 = vmatpush2.bf16.msra.mxu0 0
      %2291 = vmatprep.mubr.bf16.mxu0 0
      %2292 = vmatmul.mubr.bf16.gmra.mxu0 %v1438
      %v2293 = vpop.f32.mrf.mxu0
      %v2294 = vadd.f32 0.0, %v2293
      %v2295 = vpop.f32.mrf.mxu0
      %v2296 = vpop.f32.mrf.mxu0
      %v2297 = vadd.f32 0.0, %v2296
      %v2298 = vpop.f32.mrf.mxu0
      %2299 = vmatprep.mubr.bf16.mxu0 0
      %2300 = vmatmul.mubr.bf16.gmra.mxu0 %v1441
      %v2301 = vpop.f32.mrf.mxu0
      %v2302 = vadd.f32 0.0, %v2301
      %v2303 = vpop.f32.mrf.mxu0
      %v2304 = vpop.f32.mrf.mxu0
      %v2305 = vadd.f32 0.0, %v2304
      %v2306 = vpop.f32.mrf.mxu0
      %2307 = vmatprep.mubr.bf16.mxu0 0
      %2308 = vmatmul.mubr.bf16.gmra.mxu0 %v1444
      %v2309 = vpop.f32.mrf.mxu0
      %v2310 = vadd.f32 0.0, %v2309
      %v2311 = vpop.f32.mrf.mxu0
      %v2312 = vpop.f32.mrf.mxu0
      %v2313 = vadd.f32 0.0, %v2312
      %v2314 = vpop.f32.mrf.mxu0
      %2315 = vmatprep.mubr.bf16.mxu0 0
      %2316 = vmatmul.mubr.bf16.gmra.mxu0 %v1447
      %v2317 = vpop.f32.mrf.mxu0
      %v2318 = vadd.f32 0.0, %v2317
      %v2319 = vpop.f32.mrf.mxu0
      %v2320 = vpop.f32.mrf.mxu0
      %v2321 = vadd.f32 0.0, %v2320
      %v2322 = vpop.f32.mrf.mxu0
      %2323 = vdwg.mxu0
      %v2324 = vmul.f32 %v2294, %v757
      %v2325 = vmul.f32 %v2297, %v757
      %v2326 = vmul.f32 %v2302, %v757
      %v2327 = vmul.f32 %v2305, %v757
      %v2328 = vmul.f32 %v2310, %v757
      %v2329 = vmul.f32 %v2313, %v757
      %v2330 = vmul.f32 %v2318, %v757
      %v2331 = vmul.f32 %v2321, %v757
      %v2332 = vadd.f32 %v2245, %v2324
      %v2333 = vadd.f32 %v2246, %v2325
      %v2334 = vadd.f32 %v2247, %v2326
      %v2335 = vadd.f32 %v2248, %v2327
      %v2336 = vadd.f32 %v2249, %v2328
      %v2337 = vadd.f32 %v2250, %v2329
      %v2338 = vadd.f32 %v2251, %v2330
      %v2339 = vadd.f32 %v2252, %v2331
      %2340 = vmatprep.subr.bf16.mxu0 0
      %2341 = vmatpush1.bf16.msra.mxu0 0
      %2342 = vmatprep.subr.bf16.mxu0 0
      %2343 = vmatpush1.bf16.msra.mxu0 0
      %2344 = vmatprep.subr.bf16.mxu0 0
      %2345 = vmatpush1.bf16.msra.mxu0 0
      %2346 = vmatprep.subr.bf16.mxu0 0
      %2347 = vmatpush1.bf16.msra.mxu0 0
      %2348 = vmatprep.subr.bf16.mxu0 0
      %2349 = vmatpush1.bf16.msra.mxu0 0
      %2350 = vmatprep.subr.bf16.mxu0 0
      %2351 = vmatpush1.bf16.msra.mxu0 0
      %2352 = vmatprep.subr.bf16.mxu0 0
      %2353 = vmatpush1.bf16.msra.mxu0 %v1682
      %2354 = vmatprep.subr.bf16.mxu0 0
      %2355 = vmatpush1.bf16.msra.mxu0 %v1680
      %2356 = vmatprep.subr.bf16.mxu0 0
      %2357 = vmatpush2.bf16.msra.mxu0 0
      %2358 = vmatprep.subr.bf16.mxu0 0
      %2359 = vmatpush2.bf16.msra.mxu0 0
      %2360 = vmatprep.subr.bf16.mxu0 0
      %2361 = vmatpush2.bf16.msra.mxu0 0
      %2362 = vmatprep.subr.bf16.mxu0 0
      %2363 = vmatpush2.bf16.msra.mxu0 0
      %2364 = vmatprep.subr.bf16.mxu0 0
      %2365 = vmatpush2.bf16.msra.mxu0 0
      %2366 = vmatprep.subr.bf16.mxu0 0
      %2367 = vmatpush2.bf16.msra.mxu0 0
      %2368 = vmatprep.subr.bf16.mxu0 0
      %2369 = vmatpush2.bf16.msra.mxu0 0
      %2370 = vmatprep.subr.bf16.mxu0 0
      %2371 = vmatpush2.bf16.msra.mxu0 0
      %2372 = vmatprep.mubr.bf16.mxu0 0
      %2373 = vmatmul.mubr.bf16.gmra.mxu0 %v1558
      %v2374 = vpop.f32.mrf.mxu0
      %v2375 = vadd.f32 0.0, %v2374
      %v2376 = vpop.f32.mrf.mxu0
      %v2377 = vpop.f32.mrf.mxu0
      %v2378 = vadd.f32 0.0, %v2377
      %v2379 = vpop.f32.mrf.mxu0
      %2380 = vmatprep.mubr.bf16.mxu0 0
      %2381 = vmatmul.mubr.bf16.gmra.mxu0 %v1561
      %v2382 = vpop.f32.mrf.mxu0
      %v2383 = vadd.f32 0.0, %v2382
      %v2384 = vpop.f32.mrf.mxu0
      %v2385 = vpop.f32.mrf.mxu0
      %v2386 = vadd.f32 0.0, %v2385
      %v2387 = vpop.f32.mrf.mxu0
      %2388 = vmatprep.mubr.bf16.mxu0 0
      %2389 = vmatmul.mubr.bf16.gmra.mxu0 %v1564
      %v2390 = vpop.f32.mrf.mxu0
      %v2391 = vadd.f32 0.0, %v2390
      %v2392 = vpop.f32.mrf.mxu0
      %v2393 = vpop.f32.mrf.mxu0
      %v2394 = vadd.f32 0.0, %v2393
      %v2395 = vpop.f32.mrf.mxu0
      %2396 = vmatprep.mubr.bf16.mxu0 0
      %2397 = vmatmul.mubr.bf16.gmra.mxu0 %v1567
      %v2398 = vpop.f32.mrf.mxu0
      %v2399 = vadd.f32 0.0, %v2398
      %v2400 = vpop.f32.mrf.mxu0
      %v2401 = vpop.f32.mrf.mxu0
      %v2402 = vadd.f32 0.0, %v2401
      %v2403 = vpop.f32.mrf.mxu0
      %2404 = vdwg.mxu0
      %v2405 = vadd.f32 %v2332, %v2375
      %v2406 = vadd.f32 %v2333, %v2378
      %v2407 = vadd.f32 %v2334, %v2383
      %v2408 = vadd.f32 %v2335, %v2386
      %v2409 = vadd.f32 %v2336, %v2391
      %v2410 = vadd.f32 %v2337, %v2394
      %v2411 = vadd.f32 %v2338, %v2399
      %v2412 = vadd.f32 %v2339, %v2402
      %2413 = vmatprep.subr.bf16.mxu0 0
      %2414 = vmatpush1.bf16.msra.mxu0 0
      %2415 = vmatprep.subr.bf16.mxu0 0
      %2416 = vmatpush1.bf16.msra.mxu0 0
      %2417 = vmatprep.subr.bf16.mxu0 0
      %2418 = vmatpush1.bf16.msra.mxu0 0
      %2419 = vmatprep.subr.bf16.mxu0 0
      %2420 = vmatpush1.bf16.msra.mxu0 0
      %2421 = vmatprep.subr.bf16.mxu0 0
      %2422 = vmatpush1.bf16.msra.mxu0 0
      %2423 = vmatprep.subr.bf16.mxu0 0
      %2424 = vmatpush1.bf16.msra.mxu0 0
      %2425 = vmatprep.subr.bf16.mxu0 0
      %2426 = vmatpush1.bf16.msra.mxu0 %v1802
      %2427 = vmatprep.subr.bf16.mxu0 0
      %2428 = vmatpush1.bf16.msra.mxu0 %v1800
      %2429 = vmatprep.subr.bf16.mxu0 0
      %2430 = vmatpush2.bf16.msra.mxu0 0
      %2431 = vmatprep.subr.bf16.mxu0 0
      %2432 = vmatpush2.bf16.msra.mxu0 0
      %2433 = vmatprep.subr.bf16.mxu0 0
      %2434 = vmatpush2.bf16.msra.mxu0 0
      %2435 = vmatprep.subr.bf16.mxu0 0
      %2436 = vmatpush2.bf16.msra.mxu0 0
      %2437 = vmatprep.subr.bf16.mxu0 0
      %2438 = vmatpush2.bf16.msra.mxu0 0
      %2439 = vmatprep.subr.bf16.mxu0 0
      %2440 = vmatpush2.bf16.msra.mxu0 0
      %2441 = vmatprep.subr.bf16.mxu0 0
      %2442 = vmatpush2.bf16.msra.mxu0 0
      %2443 = vmatprep.subr.bf16.mxu0 0
      %2444 = vmatpush2.bf16.msra.mxu0 0
      %2445 = vmatprep.mubr.bf16.mxu0 0
      %2446 = vmatmul.mubr.bf16.gmra.mxu0 %v1686
      %v2447 = vpop.f32.mrf.mxu0
      %v2448 = vadd.f32 0.0, %v2447
      %v2449 = vpop.f32.mrf.mxu0
      %v2450 = vpop.f32.mrf.mxu0
      %v2451 = vadd.f32 0.0, %v2450
      %v2452 = vpop.f32.mrf.mxu0
      %2453 = vmatprep.mubr.bf16.mxu0 0
      %2454 = vmatmul.mubr.bf16.gmra.mxu0 %v1689
      %v2455 = vpop.f32.mrf.mxu0
      %v2456 = vadd.f32 0.0, %v2455
      %v2457 = vpop.f32.mrf.mxu0
      %v2458 = vpop.f32.mrf.mxu0
      %v2459 = vadd.f32 0.0, %v2458
      %v2460 = vpop.f32.mrf.mxu0
      %2461 = vmatprep.mubr.bf16.mxu0 0
      %2462 = vmatmul.mubr.bf16.gmra.mxu0 %v1692
      %v2463 = vpop.f32.mrf.mxu0
      %v2464 = vadd.f32 0.0, %v2463
      %v2465 = vpop.f32.mrf.mxu0
      %v2466 = vpop.f32.mrf.mxu0
      %v2467 = vadd.f32 0.0, %v2466
      %v2468 = vpop.f32.mrf.mxu0
      %2469 = vmatprep.mubr.bf16.mxu0 0
      %2470 = vmatmul.mubr.bf16.gmra.mxu0 %v1695
      %v2471 = vpop.f32.mrf.mxu0
      %v2472 = vadd.f32 0.0, %v2471
      %v2473 = vpop.f32.mrf.mxu0
      %v2474 = vpop.f32.mrf.mxu0
      %v2475 = vadd.f32 0.0, %v2474
      %v2476 = vpop.f32.mrf.mxu0
      %2477 = vdwg.mxu0
      %v2478 = vadd.f32 %v2405, %v2448
      %v2479 = vadd.f32 %v2406, %v2451
      %v2480 = vadd.f32 %v2407, %v2456
      %v2481 = vadd.f32 %v2408, %v2459
      %v2482 = vadd.f32 %v2409, %v2464
      %v2483 = vadd.f32 %v2410, %v2467
      %v2484 = vadd.f32 %v2411, %v2472
      %v2485 = vadd.f32 %v2412, %v2475
      %2486 = vrot.lane.b32.xlu0 %v921, 119
      %v2487 = vpop.permute.xlu0 %2486
      %2488 = vrot.lane.b32.xlu0 %v922, 119
      %v2489 = vpop.permute.xlu0 %2488
      %2492 = vmatprep.subr.bf16.mxu0 0
      %2493 = vmatpush1.bf16.msra.mxu0 0
      %2494 = vmatprep.subr.bf16.mxu0 0
      %2495 = vmatpush1.bf16.msra.mxu0 0
      %2496 = vmatprep.subr.bf16.mxu0 0
      %2497 = vmatpush1.bf16.msra.mxu0 0
      %2498 = vmatprep.subr.bf16.mxu0 0
      %2499 = vmatpush1.bf16.msra.mxu0 0
      %2500 = vmatprep.subr.bf16.mxu0 0
      %2501 = vmatpush1.bf16.msra.mxu0 0
      %2502 = vmatprep.subr.bf16.mxu0 0
      %2503 = vmatpush1.bf16.msra.mxu0 0
      %2504 = vmatprep.subr.bf16.mxu0 0
      %2505 = vmatpush1.bf16.msra.mxu0 %v2489
      %2506 = vmatprep.subr.bf16.mxu0 0
      %2507 = vmatpush1.bf16.msra.mxu0 %v2487
      %2508 = vmatprep.subr.bf16.mxu0 0
      %2509 = vmatpush2.bf16.msra.mxu0 0
      %2510 = vmatprep.subr.bf16.mxu0 0
      %2511 = vmatpush2.bf16.msra.mxu0 0
      %2512 = vmatprep.subr.bf16.mxu0 0
      %2513 = vmatpush2.bf16.msra.mxu0 0
      %2514 = vmatprep.subr.bf16.mxu0 0
      %2515 = vmatpush2.bf16.msra.mxu0 0
      %2516 = vmatprep.subr.bf16.mxu0 0
      %2517 = vmatpush2.bf16.msra.mxu0 0
      %2518 = vmatprep.subr.bf16.mxu0 0
      %2519 = vmatpush2.bf16.msra.mxu0 0
      %2520 = vmatprep.subr.bf16.mxu0 0
      %2521 = vmatpush2.bf16.msra.mxu0 0
      %2522 = vmatprep.subr.bf16.mxu0 0
      %2523 = vmatpush2.bf16.msra.mxu0 0
      %2524 = vmatprep.mubr.bf16.mxu0 0
      %2525 = vmatmul.mubr.bf16.gmra.mxu0 %v1806
      %v2526 = vpop.f32.mrf.mxu0
      %v2527 = vadd.f32 0.0, %v2526
      %v2528 = vpop.f32.mrf.mxu0
      %v2529 = vpop.f32.mrf.mxu0
      %v2530 = vadd.f32 0.0, %v2529
      %v2531 = vpop.f32.mrf.mxu0
      %2532 = vmatprep.mubr.bf16.mxu0 0
      %2533 = vmatmul.mubr.bf16.gmra.mxu0 %v1809
      %v2534 = vpop.f32.mrf.mxu0
      %v2535 = vadd.f32 0.0, %v2534
      %v2536 = vpop.f32.mrf.mxu0
      %v2537 = vpop.f32.mrf.mxu0
      %v2538 = vadd.f32 0.0, %v2537
      %v2539 = vpop.f32.mrf.mxu0
      %2540 = vmatprep.mubr.bf16.mxu0 0
      %2541 = vmatmul.mubr.bf16.gmra.mxu0 %v1812
      %v2542 = vpop.f32.mrf.mxu0
      %v2543 = vadd.f32 0.0, %v2542
      %v2544 = vpop.f32.mrf.mxu0
      %v2545 = vpop.f32.mrf.mxu0
      %v2546 = vadd.f32 0.0, %v2545
      %v2547 = vpop.f32.mrf.mxu0
      %2548 = vmatprep.mubr.bf16.mxu0 0
      %2549 = vmatmul.mubr.bf16.gmra.mxu0 %v1815
      %v2550 = vpop.f32.mrf.mxu0
      %v2551 = vadd.f32 0.0, %v2550
      %v2552 = vpop.f32.mrf.mxu0
      %v2553 = vpop.f32.mrf.mxu0
      %v2554 = vadd.f32 0.0, %v2553
      %v2555 = vpop.f32.mrf.mxu0
      %2556 = vdwg.mxu0
      %v2557 = vmul.f32 %v2527, %v757
      %v2558 = vmul.f32 %v2530, %v757
      %v2559 = vmul.f32 %v2535, %v757
      %v2560 = vmul.f32 %v2538, %v757
      %v2561 = vmul.f32 %v2543, %v757
      %v2562 = vmul.f32 %v2546, %v757
      %v2563 = vmul.f32 %v2551, %v757
      %v2564 = vmul.f32 %v2554, %v757
      %v2565 = vadd.f32 %v2478, %v2557
      %v2566 = vadd.f32 %v2479, %v2558
      %v2567 = vadd.f32 %v2480, %v2559
      %v2568 = vadd.f32 %v2481, %v2560
      %v2569 = vadd.f32 %v2482, %v2561
      %v2570 = vadd.f32 %v2483, %v2562
      %v2571 = vadd.f32 %v2484, %v2563
      %v2572 = vadd.f32 %v2485, %v2564
      %v2573 = vmax.f32 %v1882, %v2565
      %v2574 = vmax.f32 %v1883, %v2566
      %v2575 = vmax.f32 %v1884, %v2567
      %v2576 = vmax.f32 %v1885, %v2568
      %v2577 = vmax.f32 %v1886, %v2569
      %v2578 = vmax.f32 %v1887, %v2570
      %v2579 = vmax.f32 %v1888, %v2571
      %v2580 = vmax.f32 %v1889, %v2572
      %2581 = vmatprep.subr.bf16.mxu0 0
      %2582 = vmatpush1.bf16.msra.mxu0 0
      %2583 = vmatprep.subr.bf16.mxu0 0
      %2584 = vmatpush1.bf16.msra.mxu0 0
      %2585 = vmatprep.subr.bf16.mxu0 0
      %2586 = vmatpush1.bf16.msra.mxu0 0
      %2587 = vmatprep.subr.bf16.mxu0 0
      %2588 = vmatpush1.bf16.msra.mxu0 0
      %2589 = vmatprep.subr.bf16.mxu0 0
      %2590 = vmatpush1.bf16.msra.mxu0 0
      %2591 = vmatprep.subr.bf16.mxu0 0
      %2592 = vmatpush1.bf16.msra.mxu0 0
      %2593 = vmatprep.subr.bf16.mxu0 0
      %2594 = vmatpush1.bf16.msra.mxu0 %v1176
      %2595 = vmatprep.subr.bf16.mxu0 0
      %2596 = vmatpush1.bf16.msra.mxu0 %v1174
      %2597 = vmatprep.subr.bf16.mxu0 0
      %2598 = vmatpush2.bf16.msra.mxu0 0
      %2599 = vmatprep.subr.bf16.mxu0 0
      %2600 = vmatpush2.bf16.msra.mxu0 0
      %2601 = vmatprep.subr.bf16.mxu0 0
      %2602 = vmatpush2.bf16.msra.mxu0 0
      %2603 = vmatprep.subr.bf16.mxu0 0
      %2604 = vmatpush2.bf16.msra.mxu0 0
      %2605 = vmatprep.subr.bf16.mxu0 0
      %2606 = vmatpush2.bf16.msra.mxu0 0
      %2607 = vmatprep.subr.bf16.mxu0 0
      %2608 = vmatpush2.bf16.msra.mxu0 0
      %2609 = vmatprep.subr.bf16.mxu0 0
      %2610 = vmatpush2.bf16.msra.mxu0 0
      %2611 = vmatprep.subr.bf16.mxu0 0
      %2612 = vmatpush2.bf16.msra.mxu0 0
      %2613 = vmatprep.mubr.bf16.mxu0 0
      %2614 = vmatmul.mubr.bf16.gmra.mxu0 %v800
      %v2615 = vpop.f32.mrf.mxu0
      %v2616 = vadd.f32 0.0, %v2615
      %v2617 = vpop.f32.mrf.mxu0
      %v2618 = vpop.f32.mrf.mxu0
      %v2619 = vadd.f32 0.0, %v2618
      %v2620 = vpop.f32.mrf.mxu0
      %2621 = vmatprep.mubr.bf16.mxu0 0
      %2622 = vmatmul.mubr.bf16.gmra.mxu0 %v803
      %v2623 = vpop.f32.mrf.mxu0
      %v2624 = vadd.f32 0.0, %v2623
      %v2625 = vpop.f32.mrf.mxu0
      %v2626 = vpop.f32.mrf.mxu0
      %v2627 = vadd.f32 0.0, %v2626
      %v2628 = vpop.f32.mrf.mxu0
      %2629 = vmatprep.mubr.bf16.mxu0 0
      %2630 = vmatmul.mubr.bf16.gmra.mxu0 %v806
      %v2631 = vpop.f32.mrf.mxu0
      %v2632 = vadd.f32 0.0, %v2631
      %v2633 = vpop.f32.mrf.mxu0
      %v2634 = vpop.f32.mrf.mxu0
      %v2635 = vadd.f32 0.0, %v2634
      %v2636 = vpop.f32.mrf.mxu0
      %2637 = vmatprep.mubr.bf16.mxu0 0
      %2638 = vmatmul.mubr.bf16.gmra.mxu0 %v809
      %v2639 = vpop.f32.mrf.mxu0
      %v2640 = vadd.f32 0.0, %v2639
      %v2641 = vpop.f32.mrf.mxu0
      %v2642 = vpop.f32.mrf.mxu0
      %v2643 = vadd.f32 0.0, %v2642
      %v2644 = vpop.f32.mrf.mxu0
      %2645 = vdwg.mxu0
      %v2646 = vmul.f32 %v2616, %v754
      %v2647 = vmul.f32 %v2619, %v754
      %v2648 = vmul.f32 %v2624, %v754
      %v2649 = vmul.f32 %v2627, %v754
      %v2650 = vmul.f32 %v2632, %v754
      %v2651 = vmul.f32 %v2635, %v754
      %v2652 = vmul.f32 %v2640, %v754
      %v2653 = vmul.f32 %v2643, %v754
      %2654 = vmatprep.subr.bf16.mxu0 0
      %2655 = vmatpush1.bf16.msra.mxu0 0
      %2656 = vmatprep.subr.bf16.mxu0 0
      %2657 = vmatpush1.bf16.msra.mxu0 0
      %2658 = vmatprep.subr.bf16.mxu0 0
      %2659 = vmatpush1.bf16.msra.mxu0 0
      %2660 = vmatprep.subr.bf16.mxu0 0
      %2661 = vmatpush1.bf16.msra.mxu0 0
      %2662 = vmatprep.subr.bf16.mxu0 0
      %2663 = vmatpush1.bf16.msra.mxu0 0
      %2664 = vmatprep.subr.bf16.mxu0 0
      %2665 = vmatpush1.bf16.msra.mxu0 0
      %2666 = vmatprep.subr.bf16.mxu0 0
      %2667 = vmatpush1.bf16.msra.mxu0 %v1314
      %2668 = vmatprep.subr.bf16.mxu0 0
      %2669 = vmatpush1.bf16.msra.mxu0 %v1312
      %2670 = vmatprep.subr.bf16.mxu0 0
      %2671 = vmatpush2.bf16.msra.mxu0 0
      %2672 = vmatprep.subr.bf16.mxu0 0
      %2673 = vmatpush2.bf16.msra.mxu0 0
      %2674 = vmatprep.subr.bf16.mxu0 0
      %2675 = vmatpush2.bf16.msra.mxu0 0
      %2676 = vmatprep.subr.bf16.mxu0 0
      %2677 = vmatpush2.bf16.msra.mxu0 0
      %2678 = vmatprep.subr.bf16.mxu0 0
      %2679 = vmatpush2.bf16.msra.mxu0 0
      %2680 = vmatprep.subr.bf16.mxu0 0
      %2681 = vmatpush2.bf16.msra.mxu0 0
      %2682 = vmatprep.subr.bf16.mxu0 0
      %2683 = vmatpush2.bf16.msra.mxu0 0
      %2684 = vmatprep.subr.bf16.mxu0 0
      %2685 = vmatpush2.bf16.msra.mxu0 0
      %2686 = vmatprep.mubr.bf16.mxu0 0
      %2687 = vmatmul.mubr.bf16.gmra.mxu0 %v930
      %v2688 = vpop.f32.mrf.mxu0
      %v2689 = vadd.f32 0.0, %v2688
      %v2690 = vpop.f32.mrf.mxu0
      %v2691 = vpop.f32.mrf.mxu0
      %v2692 = vadd.f32 0.0, %v2691
      %v2693 = vpop.f32.mrf.mxu0
      %2694 = vmatprep.mubr.bf16.mxu0 0
      %2695 = vmatmul.mubr.bf16.gmra.mxu0 %v933
      %v2696 = vpop.f32.mrf.mxu0
      %v2697 = vadd.f32 0.0, %v2696
      %v2698 = vpop.f32.mrf.mxu0
      %v2699 = vpop.f32.mrf.mxu0
      %v2700 = vadd.f32 0.0, %v2699
      %v2701 = vpop.f32.mrf.mxu0
      %2702 = vmatprep.mubr.bf16.mxu0 0
      %2703 = vmatmul.mubr.bf16.gmra.mxu0 %v936
      %v2704 = vpop.f32.mrf.mxu0
      %v2705 = vadd.f32 0.0, %v2704
      %v2706 = vpop.f32.mrf.mxu0
      %v2707 = vpop.f32.mrf.mxu0
      %v2708 = vadd.f32 0.0, %v2707
      %v2709 = vpop.f32.mrf.mxu0
      %2710 = vmatprep.mubr.bf16.mxu0 0
      %2711 = vmatmul.mubr.bf16.gmra.mxu0 %v939
      %v2712 = vpop.f32.mrf.mxu0
      %v2713 = vadd.f32 0.0, %v2712
      %v2714 = vpop.f32.mrf.mxu0
      %v2715 = vpop.f32.mrf.mxu0
      %v2716 = vadd.f32 0.0, %v2715
      %v2717 = vpop.f32.mrf.mxu0
      %2718 = vdwg.mxu0
      %v2719 = vadd.f32 %v2646, %v2689
      %v2720 = vadd.f32 %v2647, %v2692
      %v2721 = vadd.f32 %v2648, %v2697
      %v2722 = vadd.f32 %v2649, %v2700
      %v2723 = vadd.f32 %v2650, %v2705
      %v2724 = vadd.f32 %v2651, %v2708
      %v2725 = vadd.f32 %v2652, %v2713
      %v2726 = vadd.f32 %v2653, %v2716
      %2727 = vmatprep.subr.bf16.mxu0 0
      %2728 = vmatpush1.bf16.msra.mxu0 0
      %2729 = vmatprep.subr.bf16.mxu0 0
      %2730 = vmatpush1.bf16.msra.mxu0 0
      %2731 = vmatprep.subr.bf16.mxu0 0
      %2732 = vmatpush1.bf16.msra.mxu0 0
      %2733 = vmatprep.subr.bf16.mxu0 0
      %2734 = vmatpush1.bf16.msra.mxu0 0
      %2735 = vmatprep.subr.bf16.mxu0 0
      %2736 = vmatpush1.bf16.msra.mxu0 0
      %2737 = vmatprep.subr.bf16.mxu0 0
      %2738 = vmatpush1.bf16.msra.mxu0 0
      %2739 = vmatprep.subr.bf16.mxu0 0
      %2740 = vmatpush1.bf16.msra.mxu0 %v1434
      %2741 = vmatprep.subr.bf16.mxu0 0
      %2742 = vmatpush1.bf16.msra.mxu0 %v1432
      %2743 = vmatprep.subr.bf16.mxu0 0
      %2744 = vmatpush2.bf16.msra.mxu0 0
      %2745 = vmatprep.subr.bf16.mxu0 0
      %2746 = vmatpush2.bf16.msra.mxu0 0
      %2747 = vmatprep.subr.bf16.mxu0 0
      %2748 = vmatpush2.bf16.msra.mxu0 0
      %2749 = vmatprep.subr.bf16.mxu0 0
      %2750 = vmatpush2.bf16.msra.mxu0 0
      %2751 = vmatprep.subr.bf16.mxu0 0
      %2752 = vmatpush2.bf16.msra.mxu0 0
      %2753 = vmatprep.subr.bf16.mxu0 0
      %2754 = vmatpush2.bf16.msra.mxu0 0
      %2755 = vmatprep.subr.bf16.mxu0 0
      %2756 = vmatpush2.bf16.msra.mxu0 0
      %2757 = vmatprep.subr.bf16.mxu0 0
      %2758 = vmatpush2.bf16.msra.mxu0 0
      %2759 = vmatprep.mubr.bf16.mxu0 0
      %2760 = vmatmul.mubr.bf16.gmra.mxu0 %v1050
      %v2761 = vpop.f32.mrf.mxu0
      %v2762 = vadd.f32 0.0, %v2761
      %v2763 = vpop.f32.mrf.mxu0
      %v2764 = vpop.f32.mrf.mxu0
      %v2765 = vadd.f32 0.0, %v2764
      %v2766 = vpop.f32.mrf.mxu0
      %2767 = vmatprep.mubr.bf16.mxu0 0
      %2768 = vmatmul.mubr.bf16.gmra.mxu0 %v1053
      %v2769 = vpop.f32.mrf.mxu0
      %v2770 = vadd.f32 0.0, %v2769
      %v2771 = vpop.f32.mrf.mxu0
      %v2772 = vpop.f32.mrf.mxu0
      %v2773 = vadd.f32 0.0, %v2772
      %v2774 = vpop.f32.mrf.mxu0
      %2775 = vmatprep.mubr.bf16.mxu0 0
      %2776 = vmatmul.mubr.bf16.gmra.mxu0 %v1056
      %v2777 = vpop.f32.mrf.mxu0
      %v2778 = vadd.f32 0.0, %v2777
      %v2779 = vpop.f32.mrf.mxu0
      %v2780 = vpop.f32.mrf.mxu0
      %v2781 = vadd.f32 0.0, %v2780
      %v2782 = vpop.f32.mrf.mxu0
      %2783 = vmatprep.mubr.bf16.mxu0 0
      %2784 = vmatmul.mubr.bf16.gmra.mxu0 %v1059
      %v2785 = vpop.f32.mrf.mxu0
      %v2786 = vadd.f32 0.0, %v2785
      %v2787 = vpop.f32.mrf.mxu0
      %v2788 = vpop.f32.mrf.mxu0
      %v2789 = vadd.f32 0.0, %v2788
      %v2790 = vpop.f32.mrf.mxu0
      %2791 = vdwg.mxu0
      %v2792 = vadd.f32 %v2719, %v2762
      %v2793 = vadd.f32 %v2720, %v2765
      %v2794 = vadd.f32 %v2721, %v2770
      %v2795 = vadd.f32 %v2722, %v2773
      %v2796 = vadd.f32 %v2723, %v2778
      %v2797 = vadd.f32 %v2724, %v2781
      %v2798 = vadd.f32 %v2725, %v2786
      %v2799 = vadd.f32 %v2726, %v2789
      %2800 = vmatprep.subr.bf16.mxu0 0
      %2801 = vmatpush1.bf16.msra.mxu0 0
      %2802 = vmatprep.subr.bf16.mxu0 0
      %2803 = vmatpush1.bf16.msra.mxu0 0
      %2804 = vmatprep.subr.bf16.mxu0 0
      %2805 = vmatpush1.bf16.msra.mxu0 0
      %2806 = vmatprep.subr.bf16.mxu0 0
      %2807 = vmatpush1.bf16.msra.mxu0 0
      %2808 = vmatprep.subr.bf16.mxu0 0
      %2809 = vmatpush1.bf16.msra.mxu0 0
      %2810 = vmatprep.subr.bf16.mxu0 0
      %2811 = vmatpush1.bf16.msra.mxu0 0
      %2812 = vmatprep.subr.bf16.mxu0 0
      %2813 = vmatpush1.bf16.msra.mxu0 %v1554
      %2814 = vmatprep.subr.bf16.mxu0 0
      %2815 = vmatpush1.bf16.msra.mxu0 %v1552
      %2816 = vmatprep.subr.bf16.mxu0 0
      %2817 = vmatpush2.bf16.msra.mxu0 0
      %2818 = vmatprep.subr.bf16.mxu0 0
      %2819 = vmatpush2.bf16.msra.mxu0 0
      %2820 = vmatprep.subr.bf16.mxu0 0
      %2821 = vmatpush2.bf16.msra.mxu0 0
      %2822 = vmatprep.subr.bf16.mxu0 0
      %2823 = vmatpush2.bf16.msra.mxu0 0
      %2824 = vmatprep.subr.bf16.mxu0 0
      %2825 = vmatpush2.bf16.msra.mxu0 0
      %2826 = vmatprep.subr.bf16.mxu0 0
      %2827 = vmatpush2.bf16.msra.mxu0 0
      %2828 = vmatprep.subr.bf16.mxu0 0
      %2829 = vmatpush2.bf16.msra.mxu0 0
      %2830 = vmatprep.subr.bf16.mxu0 0
      %2831 = vmatpush2.bf16.msra.mxu0 0
      %2832 = vmatprep.mubr.bf16.mxu0 0
      %2833 = vmatmul.mubr.bf16.gmra.mxu0 %v1180
      %v2834 = vpop.f32.mrf.mxu0
      %v2835 = vadd.f32 0.0, %v2834
      %v2836 = vpop.f32.mrf.mxu0
      %v2837 = vpop.f32.mrf.mxu0
      %v2838 = vadd.f32 0.0, %v2837
      %v2839 = vpop.f32.mrf.mxu0
      %2840 = vmatprep.mubr.bf16.mxu0 0
      %2841 = vmatmul.mubr.bf16.gmra.mxu0 %v1183
      %v2842 = vpop.f32.mrf.mxu0
      %v2843 = vadd.f32 0.0, %v2842
      %v2844 = vpop.f32.mrf.mxu0
      %v2845 = vpop.f32.mrf.mxu0
      %v2846 = vadd.f32 0.0, %v2845
      %v2847 = vpop.f32.mrf.mxu0
      %2848 = vmatprep.mubr.bf16.mxu0 0
      %2849 = vmatmul.mubr.bf16.gmra.mxu0 %v1186
      %v2850 = vpop.f32.mrf.mxu0
      %v2851 = vadd.f32 0.0, %v2850
      %v2852 = vpop.f32.mrf.mxu0
      %v2853 = vpop.f32.mrf.mxu0
      %v2854 = vadd.f32 0.0, %v2853
      %v2855 = vpop.f32.mrf.mxu0
      %2856 = vmatprep.mubr.bf16.mxu0 0
      %2857 = vmatmul.mubr.bf16.gmra.mxu0 %v1189
      %v2858 = vpop.f32.mrf.mxu0
      %v2859 = vadd.f32 0.0, %v2858
      %v2860 = vpop.f32.mrf.mxu0
      %v2861 = vpop.f32.mrf.mxu0
      %v2862 = vadd.f32 0.0, %v2861
      %v2863 = vpop.f32.mrf.mxu0
      %2864 = vdwg.mxu0
      %v2865 = vmul.f32 %v2835, %v754
      %v2866 = vmul.f32 %v2838, %v754
      %v2867 = vmul.f32 %v2843, %v754
      %v2868 = vmul.f32 %v2846, %v754
      %v2869 = vmul.f32 %v2851, %v754
      %v2870 = vmul.f32 %v2854, %v754
      %v2871 = vmul.f32 %v2859, %v754
      %v2872 = vmul.f32 %v2862, %v754
      %v2873 = vadd.f32 %v2792, %v2865
      %v2874 = vadd.f32 %v2793, %v2866
      %v2875 = vadd.f32 %v2794, %v2867
      %v2876 = vadd.f32 %v2795, %v2868
      %v2877 = vadd.f32 %v2796, %v2869
      %v2878 = vadd.f32 %v2797, %v2870
      %v2879 = vadd.f32 %v2798, %v2871
      %v2880 = vadd.f32 %v2799, %v2872
      %2881 = vmatprep.subr.bf16.mxu0 0
      %2882 = vmatpush1.bf16.msra.mxu0 0
      %2883 = vmatprep.subr.bf16.mxu0 0
      %2884 = vmatpush1.bf16.msra.mxu0 0
      %2885 = vmatprep.subr.bf16.mxu0 0
      %2886 = vmatpush1.bf16.msra.mxu0 0
      %2887 = vmatprep.subr.bf16.mxu0 0
      %2888 = vmatpush1.bf16.msra.mxu0 0
      %2889 = vmatprep.subr.bf16.mxu0 0
      %2890 = vmatpush1.bf16.msra.mxu0 0
      %2891 = vmatprep.subr.bf16.mxu0 0
      %2892 = vmatpush1.bf16.msra.mxu0 0
      %2893 = vmatprep.subr.bf16.mxu0 0
      %2894 = vmatpush1.bf16.msra.mxu0 %v1682
      %2895 = vmatprep.subr.bf16.mxu0 0
      %2896 = vmatpush1.bf16.msra.mxu0 %v1680
      %2897 = vmatprep.subr.bf16.mxu0 0
      %2898 = vmatpush2.bf16.msra.mxu0 0
      %2899 = vmatprep.subr.bf16.mxu0 0
      %2900 = vmatpush2.bf16.msra.mxu0 0
      %2901 = vmatprep.subr.bf16.mxu0 0
      %2902 = vmatpush2.bf16.msra.mxu0 0
      %2903 = vmatprep.subr.bf16.mxu0 0
      %2904 = vmatpush2.bf16.msra.mxu0 0
      %2905 = vmatprep.subr.bf16.mxu0 0
      %2906 = vmatpush2.bf16.msra.mxu0 0
      %2907 = vmatprep.subr.bf16.mxu0 0
      %2908 = vmatpush2.bf16.msra.mxu0 0
      %2909 = vmatprep.subr.bf16.mxu0 0
      %2910 = vmatpush2.bf16.msra.mxu0 0
      %2911 = vmatprep.subr.bf16.mxu0 0
      %2912 = vmatpush2.bf16.msra.mxu0 0
      %2913 = vmatprep.mubr.bf16.mxu0 0
      %2914 = vmatmul.mubr.bf16.gmra.mxu0 %v1318
      %v2915 = vpop.f32.mrf.mxu0
      %v2916 = vadd.f32 0.0, %v2915
      %v2917 = vpop.f32.mrf.mxu0
      %v2918 = vpop.f32.mrf.mxu0
      %v2919 = vadd.f32 0.0, %v2918
      %v2920 = vpop.f32.mrf.mxu0
      %2921 = vmatprep.mubr.bf16.mxu0 0
      %2922 = vmatmul.mubr.bf16.gmra.mxu0 %v1321
      %v2923 = vpop.f32.mrf.mxu0
      %v2924 = vadd.f32 0.0, %v2923
      %v2925 = vpop.f32.mrf.mxu0
      %v2926 = vpop.f32.mrf.mxu0
      %v2927 = vadd.f32 0.0, %v2926
      %v2928 = vpop.f32.mrf.mxu0
      %2929 = vmatprep.mubr.bf16.mxu0 0
      %2930 = vmatmul.mubr.bf16.gmra.mxu0 %v1324
      %v2931 = vpop.f32.mrf.mxu0
      %v2932 = vadd.f32 0.0, %v2931
      %v2933 = vpop.f32.mrf.mxu0
      %v2934 = vpop.f32.mrf.mxu0
      %v2935 = vadd.f32 0.0, %v2934
      %v2936 = vpop.f32.mrf.mxu0
      %2937 = vmatprep.mubr.bf16.mxu0 0
      %2938 = vmatmul.mubr.bf16.gmra.mxu0 %v1327
      %v2939 = vpop.f32.mrf.mxu0
      %v2940 = vadd.f32 0.0, %v2939
      %v2941 = vpop.f32.mrf.mxu0
      %v2942 = vpop.f32.mrf.mxu0
      %v2943 = vadd.f32 0.0, %v2942
      %v2944 = vpop.f32.mrf.mxu0
      %2945 = vdwg.mxu0
      %v2946 = vadd.f32 %v2873, %v2916
      %v2947 = vadd.f32 %v2874, %v2919
      %v2948 = vadd.f32 %v2875, %v2924
      %v2949 = vadd.f32 %v2876, %v2927
      %v2950 = vadd.f32 %v2877, %v2932
      %v2951 = vadd.f32 %v2878, %v2935
      %v2952 = vadd.f32 %v2879, %v2940
      %v2953 = vadd.f32 %v2880, %v2943
      %2954 = vmatprep.subr.bf16.mxu0 0
      %2955 = vmatpush1.bf16.msra.mxu0 0
      %2956 = vmatprep.subr.bf16.mxu0 0
      %2957 = vmatpush1.bf16.msra.mxu0 0
      %2958 = vmatprep.subr.bf16.mxu0 0
      %2959 = vmatpush1.bf16.msra.mxu0 0
      %2960 = vmatprep.subr.bf16.mxu0 0
      %2961 = vmatpush1.bf16.msra.mxu0 0
      %2962 = vmatprep.subr.bf16.mxu0 0
      %2963 = vmatpush1.bf16.msra.mxu0 0
      %2964 = vmatprep.subr.bf16.mxu0 0
      %2965 = vmatpush1.bf16.msra.mxu0 0
      %2966 = vmatprep.subr.bf16.mxu0 0
      %2967 = vmatpush1.bf16.msra.mxu0 %v1802
      %2968 = vmatprep.subr.bf16.mxu0 0
      %2969 = vmatpush1.bf16.msra.mxu0 %v1800
      %2970 = vmatprep.subr.bf16.mxu0 0
      %2971 = vmatpush2.bf16.msra.mxu0 0
      %2972 = vmatprep.subr.bf16.mxu0 0
      %2973 = vmatpush2.bf16.msra.mxu0 0
      %2974 = vmatprep.subr.bf16.mxu0 0
      %2975 = vmatpush2.bf16.msra.mxu0 0
      %2976 = vmatprep.subr.bf16.mxu0 0
      %2977 = vmatpush2.bf16.msra.mxu0 0
      %2978 = vmatprep.subr.bf16.mxu0 0
      %2979 = vmatpush2.bf16.msra.mxu0 0
      %2980 = vmatprep.subr.bf16.mxu0 0
      %2981 = vmatpush2.bf16.msra.mxu0 0
      %2982 = vmatprep.subr.bf16.mxu0 0
      %2983 = vmatpush2.bf16.msra.mxu0 0
      %2984 = vmatprep.subr.bf16.mxu0 0
      %2985 = vmatpush2.bf16.msra.mxu0 0
      %2986 = vmatprep.mubr.bf16.mxu0 0
      %2987 = vmatmul.mubr.bf16.gmra.mxu0 %v1438
      %v2988 = vpop.f32.mrf.mxu0
      %v2989 = vadd.f32 0.0, %v2988
      %v2990 = vpop.f32.mrf.mxu0
      %v2991 = vpop.f32.mrf.mxu0
      %v2992 = vadd.f32 0.0, %v2991
      %v2993 = vpop.f32.mrf.mxu0
      %2994 = vmatprep.mubr.bf16.mxu0 0
      %2995 = vmatmul.mubr.bf16.gmra.mxu0 %v1441
      %v2996 = vpop.f32.mrf.mxu0
      %v2997 = vadd.f32 0.0, %v2996
      %v2998 = vpop.f32.mrf.mxu0
      %v2999 = vpop.f32.mrf.mxu0
      %v3000 = vadd.f32 0.0, %v2999
      %v3001 = vpop.f32.mrf.mxu0
      %3002 = vmatprep.mubr.bf16.mxu0 0
      %3003 = vmatmul.mubr.bf16.gmra.mxu0 %v1444
      %v3004 = vpop.f32.mrf.mxu0
      %v3005 = vadd.f32 0.0, %v3004
      %v3006 = vpop.f32.mrf.mxu0
      %v3007 = vpop.f32.mrf.mxu0
      %v3008 = vadd.f32 0.0, %v3007
      %v3009 = vpop.f32.mrf.mxu0
      %3010 = vmatprep.mubr.bf16.mxu0 0
      %3011 = vmatmul.mubr.bf16.gmra.mxu0 %v1447
      %v3012 = vpop.f32.mrf.mxu0
      %v3013 = vadd.f32 0.0, %v3012
      %v3014 = vpop.f32.mrf.mxu0
      %v3015 = vpop.f32.mrf.mxu0
      %v3016 = vadd.f32 0.0, %v3015
      %v3017 = vpop.f32.mrf.mxu0
      %3018 = vdwg.mxu0
      %v3019 = vadd.f32 %v2946, %v2989
      %v3020 = vadd.f32 %v2947, %v2992
      %v3021 = vadd.f32 %v2948, %v2997
      %v3022 = vadd.f32 %v2949, %v3000
      %v3023 = vadd.f32 %v2950, %v3005
      %v3024 = vadd.f32 %v2951, %v3008
      %v3025 = vadd.f32 %v2952, %v3013
      %v3026 = vadd.f32 %v2953, %v3016
      %3027 = vrot.lane.b32.xlu0 %v1171, 114
      %v3028 = vpop.permute.xlu0 %3027
      %3029 = vrot.lane.b32.xlu0 %v1172, 114
      %v3030 = vpop.permute.xlu0 %3029
      %3033 = vmatprep.subr.bf16.mxu0 0
      %3034 = vmatpush1.bf16.msra.mxu0 0
      %3035 = vmatprep.subr.bf16.mxu0 0
      %3036 = vmatpush1.bf16.msra.mxu0 0
      %3037 = vmatprep.subr.bf16.mxu0 0
      %3038 = vmatpush1.bf16.msra.mxu0 0
      %3039 = vmatprep.subr.bf16.mxu0 0
      %3040 = vmatpush1.bf16.msra.mxu0 0
      %3041 = vmatprep.subr.bf16.mxu0 0
      %3042 = vmatpush1.bf16.msra.mxu0 0
      %3043 = vmatprep.subr.bf16.mxu0 0
      %3044 = vmatpush1.bf16.msra.mxu0 0
      %3045 = vmatprep.subr.bf16.mxu0 0
      %3046 = vmatpush1.bf16.msra.mxu0 %v3030
      %3047 = vmatprep.subr.bf16.mxu0 0
      %3048 = vmatpush1.bf16.msra.mxu0 %v3028
      %3049 = vmatprep.subr.bf16.mxu0 0
      %3050 = vmatpush2.bf16.msra.mxu0 0
      %3051 = vmatprep.subr.bf16.mxu0 0
      %3052 = vmatpush2.bf16.msra.mxu0 0
      %3053 = vmatprep.subr.bf16.mxu0 0
      %3054 = vmatpush2.bf16.msra.mxu0 0
      %3055 = vmatprep.subr.bf16.mxu0 0
      %3056 = vmatpush2.bf16.msra.mxu0 0
      %3057 = vmatprep.subr.bf16.mxu0 0
      %3058 = vmatpush2.bf16.msra.mxu0 0
      %3059 = vmatprep.subr.bf16.mxu0 0
      %3060 = vmatpush2.bf16.msra.mxu0 0
      %3061 = vmatprep.subr.bf16.mxu0 0
      %3062 = vmatpush2.bf16.msra.mxu0 0
      %3063 = vmatprep.subr.bf16.mxu0 0
      %3064 = vmatpush2.bf16.msra.mxu0 0
      %3065 = vmatprep.mubr.bf16.mxu0 0
      %3066 = vmatmul.mubr.bf16.gmra.mxu0 %v1558
      %v3067 = vpop.f32.mrf.mxu0
      %v3068 = vadd.f32 0.0, %v3067
      %v3069 = vpop.f32.mrf.mxu0
      %v3070 = vpop.f32.mrf.mxu0
      %v3071 = vadd.f32 0.0, %v3070
      %v3072 = vpop.f32.mrf.mxu0
      %3073 = vmatprep.mubr.bf16.mxu0 0
      %3074 = vmatmul.mubr.bf16.gmra.mxu0 %v1561
      %v3075 = vpop.f32.mrf.mxu0
      %v3076 = vadd.f32 0.0, %v3075
      %v3077 = vpop.f32.mrf.mxu0
      %v3078 = vpop.f32.mrf.mxu0
      %v3079 = vadd.f32 0.0, %v3078
      %v3080 = vpop.f32.mrf.mxu0
      %3081 = vmatprep.mubr.bf16.mxu0 0
      %3082 = vmatmul.mubr.bf16.gmra.mxu0 %v1564
      %v3083 = vpop.f32.mrf.mxu0
      %v3084 = vadd.f32 0.0, %v3083
      %v3085 = vpop.f32.mrf.mxu0
      %v3086 = vpop.f32.mrf.mxu0
      %v3087 = vadd.f32 0.0, %v3086
      %v3088 = vpop.f32.mrf.mxu0
      %3089 = vmatprep.mubr.bf16.mxu0 0
      %3090 = vmatmul.mubr.bf16.gmra.mxu0 %v1567
      %v3091 = vpop.f32.mrf.mxu0
      %v3092 = vadd.f32 0.0, %v3091
      %v3093 = vpop.f32.mrf.mxu0
      %v3094 = vpop.f32.mrf.mxu0
      %v3095 = vadd.f32 0.0, %v3094
      %v3096 = vpop.f32.mrf.mxu0
      %3097 = vdwg.mxu0
      %v3098 = vmul.f32 %v3068, %v754
      %v3099 = vmul.f32 %v3071, %v754
      %v3100 = vmul.f32 %v3076, %v754
      %v3101 = vmul.f32 %v3079, %v754
      %v3102 = vmul.f32 %v3084, %v754
      %v3103 = vmul.f32 %v3087, %v754
      %v3104 = vmul.f32 %v3092, %v754
      %v3105 = vmul.f32 %v3095, %v754
      %v3106 = vadd.f32 %v3019, %v3098
      %v3107 = vadd.f32 %v3020, %v3099
      %v3108 = vadd.f32 %v3021, %v3100
      %v3109 = vadd.f32 %v3022, %v3101
      %v3110 = vadd.f32 %v3023, %v3102
      %v3111 = vadd.f32 %v3024, %v3103
      %v3112 = vadd.f32 %v3025, %v3104
      %v3113 = vadd.f32 %v3026, %v3105
      %3114 = vrot.lane.b32.xlu0 %v1309, 113
      %v3115 = vpop.permute.xlu0 %3114
      %3116 = vrot.lane.b32.xlu0 %v1310, 113
      %v3117 = vpop.permute.xlu0 %3116
      %3120 = vmatprep.subr.bf16.mxu0 0
      %3121 = vmatpush1.bf16.msra.mxu0 0
      %3122 = vmatprep.subr.bf16.mxu0 0
      %3123 = vmatpush1.bf16.msra.mxu0 0
      %3124 = vmatprep.subr.bf16.mxu0 0
      %3125 = vmatpush1.bf16.msra.mxu0 0
      %3126 = vmatprep.subr.bf16.mxu0 0
      %3127 = vmatpush1.bf16.msra.mxu0 0
      %3128 = vmatprep.subr.bf16.mxu0 0
      %3129 = vmatpush1.bf16.msra.mxu0 0
      %3130 = vmatprep.subr.bf16.mxu0 0
      %3131 = vmatpush1.bf16.msra.mxu0 0
      %3132 = vmatprep.subr.bf16.mxu0 0
      %3133 = vmatpush1.bf16.msra.mxu0 %v3117
      %3134 = vmatprep.subr.bf16.mxu0 0
      %3135 = vmatpush1.bf16.msra.mxu0 %v3115
      %3136 = vmatprep.subr.bf16.mxu0 0
      %3137 = vmatpush2.bf16.msra.mxu0 0
      %3138 = vmatprep.subr.bf16.mxu0 0
      %3139 = vmatpush2.bf16.msra.mxu0 0
      %3140 = vmatprep.subr.bf16.mxu0 0
      %3141 = vmatpush2.bf16.msra.mxu0 0
      %3142 = vmatprep.subr.bf16.mxu0 0
      %3143 = vmatpush2.bf16.msra.mxu0 0
      %3144 = vmatprep.subr.bf16.mxu0 0
      %3145 = vmatpush2.bf16.msra.mxu0 0
      %3146 = vmatprep.subr.bf16.mxu0 0
      %3147 = vmatpush2.bf16.msra.mxu0 0
      %3148 = vmatprep.subr.bf16.mxu0 0
      %3149 = vmatpush2.bf16.msra.mxu0 0
      %3150 = vmatprep.subr.bf16.mxu0 0
      %3151 = vmatpush2.bf16.msra.mxu0 0
      %3152 = vmatprep.mubr.bf16.mxu0 0
      %3153 = vmatmul.mubr.bf16.gmra.mxu0 %v1686
      %v3154 = vpop.f32.mrf.mxu0
      %v3155 = vadd.f32 0.0, %v3154
      %v3156 = vpop.f32.mrf.mxu0
      %v3157 = vpop.f32.mrf.mxu0
      %v3158 = vadd.f32 0.0, %v3157
      %v3159 = vpop.f32.mrf.mxu0
      %3160 = vmatprep.mubr.bf16.mxu0 0
      %3161 = vmatmul.mubr.bf16.gmra.mxu0 %v1689
      %v3162 = vpop.f32.mrf.mxu0
      %v3163 = vadd.f32 0.0, %v3162
      %v3164 = vpop.f32.mrf.mxu0
      %v3165 = vpop.f32.mrf.mxu0
      %v3166 = vadd.f32 0.0, %v3165
      %v3167 = vpop.f32.mrf.mxu0
      %3168 = vmatprep.mubr.bf16.mxu0 0
      %3169 = vmatmul.mubr.bf16.gmra.mxu0 %v1692
      %v3170 = vpop.f32.mrf.mxu0
      %v3171 = vadd.f32 0.0, %v3170
      %v3172 = vpop.f32.mrf.mxu0
      %v3173 = vpop.f32.mrf.mxu0
      %v3174 = vadd.f32 0.0, %v3173
      %v3175 = vpop.f32.mrf.mxu0
      %3176 = vmatprep.mubr.bf16.mxu0 0
      %3177 = vmatmul.mubr.bf16.gmra.mxu0 %v1695
      %v3178 = vpop.f32.mrf.mxu0
      %v3179 = vadd.f32 0.0, %v3178
      %v3180 = vpop.f32.mrf.mxu0
      %v3181 = vpop.f32.mrf.mxu0
      %v3182 = vadd.f32 0.0, %v3181
      %v3183 = vpop.f32.mrf.mxu0
      %3184 = vdwg.mxu0
      %v3185 = vadd.f32 %v3106, %v3155
      %v3186 = vadd.f32 %v3107, %v3158
      %v3187 = vadd.f32 %v3108, %v3163
      %v3188 = vadd.f32 %v3109, %v3166
      %v3189 = vadd.f32 %v3110, %v3171
      %v3190 = vadd.f32 %v3111, %v3174
      %v3191 = vadd.f32 %v3112, %v3179
      %v3192 = vadd.f32 %v3113, %v3182
      %3193 = vrot.lane.b32.xlu0 %v1171, 113
      %v3194 = vpop.permute.xlu0 %3193
      %3195 = vrot.lane.b32.xlu0 %v1172, 113
      %v3196 = vpop.permute.xlu0 %3195
      %3199 = vmatprep.subr.bf16.mxu0 0
      %3200 = vmatpush1.bf16.msra.mxu0 0
      %3201 = vmatprep.subr.bf16.mxu0 0
      %3202 = vmatpush1.bf16.msra.mxu0 0
      %3203 = vmatprep.subr.bf16.mxu0 0
      %3204 = vmatpush1.bf16.msra.mxu0 0
      %3205 = vmatprep.subr.bf16.mxu0 0
      %3206 = vmatpush1.bf16.msra.mxu0 0
      %3207 = vmatprep.subr.bf16.mxu0 0
      %3208 = vmatpush1.bf16.msra.mxu0 0
      %3209 = vmatprep.subr.bf16.mxu0 0
      %3210 = vmatpush1.bf16.msra.mxu0 0
      %3211 = vmatprep.subr.bf16.mxu0 0
      %3212 = vmatpush1.bf16.msra.mxu0 %v3196
      %3213 = vmatprep.subr.bf16.mxu0 0
      %3214 = vmatpush1.bf16.msra.mxu0 %v3194
      %3215 = vmatprep.subr.bf16.mxu0 0
      %3216 = vmatpush2.bf16.msra.mxu0 0
      %3217 = vmatprep.subr.bf16.mxu0 0
      %3218 = vmatpush2.bf16.msra.mxu0 0
      %3219 = vmatprep.subr.bf16.mxu0 0
      %3220 = vmatpush2.bf16.msra.mxu0 0
      %3221 = vmatprep.subr.bf16.mxu0 0
      %3222 = vmatpush2.bf16.msra.mxu0 0
      %3223 = vmatprep.subr.bf16.mxu0 0
      %3224 = vmatpush2.bf16.msra.mxu0 0
      %3225 = vmatprep.subr.bf16.mxu0 0
      %3226 = vmatpush2.bf16.msra.mxu0 0
      %3227 = vmatprep.subr.bf16.mxu0 0
      %3228 = vmatpush2.bf16.msra.mxu0 0
      %3229 = vmatprep.subr.bf16.mxu0 0
      %3230 = vmatpush2.bf16.msra.mxu0 0
      %3231 = vmatprep.mubr.bf16.mxu0 0
      %3232 = vmatmul.mubr.bf16.gmra.mxu0 %v1806
      %v3233 = vpop.f32.mrf.mxu0
      %v3234 = vadd.f32 0.0, %v3233
      %v3235 = vpop.f32.mrf.mxu0
      %v3236 = vpop.f32.mrf.mxu0
      %v3237 = vadd.f32 0.0, %v3236
      %v3238 = vpop.f32.mrf.mxu0
      %3239 = vmatprep.mubr.bf16.mxu0 0
      %3240 = vmatmul.mubr.bf16.gmra.mxu0 %v1809
      %v3241 = vpop.f32.mrf.mxu0
      %v3242 = vadd.f32 0.0, %v3241
      %v3243 = vpop.f32.mrf.mxu0
      %v3244 = vpop.f32.mrf.mxu0
      %v3245 = vadd.f32 0.0, %v3244
      %v3246 = vpop.f32.mrf.mxu0
      %3247 = vmatprep.mubr.bf16.mxu0 0
      %3248 = vmatmul.mubr.bf16.gmra.mxu0 %v1812
      %v3249 = vpop.f32.mrf.mxu0
      %v3250 = vadd.f32 0.0, %v3249
      %v3251 = vpop.f32.mrf.mxu0
      %v3252 = vpop.f32.mrf.mxu0
      %v3253 = vadd.f32 0.0, %v3252
      %v3254 = vpop.f32.mrf.mxu0
      %3255 = vmatprep.mubr.bf16.mxu0 0
      %3256 = vmatmul.mubr.bf16.gmra.mxu0 %v1815
      %v3257 = vpop.f32.mrf.mxu0
      %v3258 = vadd.f32 0.0, %v3257
      %v3259 = vpop.f32.mrf.mxu0
      %v3260 = vpop.f32.mrf.mxu0
      %v3261 = vadd.f32 0.0, %v3260
      %v3262 = vpop.f32.mrf.mxu0
      %3263 = vdwg.mxu0
      %v3264 = vadd.f32 %v3185, %v3234
      %v3265 = vadd.f32 %v3186, %v3237
      %v3266 = vadd.f32 %v3187, %v3242
      %v3267 = vadd.f32 %v3188, %v3245
      %v3268 = vadd.f32 %v3189, %v3250
      %v3269 = vadd.f32 %v3190, %v3253
      %v3270 = vadd.f32 %v3191, %v3258
      %v3271 = vadd.f32 %v3192, %v3261
      %v3272 = vmax.f32 %v2573, %v3264
      %v3273 = vmax.f32 %v2574, %v3265
      %v3274 = vmax.f32 %v2575, %v3266
      %v3275 = vmax.f32 %v2576, %v3267
      %v3276 = vmax.f32 %v2577, %v3268
      %v3277 = vmax.f32 %v2578, %v3269
      %v3278 = vmax.f32 %v2579, %v3270
      %v3279 = vmax.f32 %v2580, %v3271
      %3280 = vmatprep.subr.bf16.mxu0 0
      %3281 = vmatpush1.bf16.msra.mxu0 0
      %3282 = vmatprep.subr.bf16.mxu0 0
      %3283 = vmatpush1.bf16.msra.mxu0 0
      %3284 = vmatprep.subr.bf16.mxu0 0
      %3285 = vmatpush1.bf16.msra.mxu0 0
      %3286 = vmatprep.subr.bf16.mxu0 0
      %3287 = vmatpush1.bf16.msra.mxu0 0
      %3288 = vmatprep.subr.bf16.mxu0 0
      %3289 = vmatpush1.bf16.msra.mxu0 0
      %3290 = vmatprep.subr.bf16.mxu0 0
      %3291 = vmatpush1.bf16.msra.mxu0 0
      %3292 = vmatprep.subr.bf16.mxu0 0
      %3293 = vmatpush1.bf16.msra.mxu0 %v1434
      %3294 = vmatprep.subr.bf16.mxu0 0
      %3295 = vmatpush1.bf16.msra.mxu0 %v1432
      %3296 = vmatprep.subr.bf16.mxu0 0
      %3297 = vmatpush2.bf16.msra.mxu0 0
      %3298 = vmatprep.subr.bf16.mxu0 0
      %3299 = vmatpush2.bf16.msra.mxu0 0
      %3300 = vmatprep.subr.bf16.mxu0 0
      %3301 = vmatpush2.bf16.msra.mxu0 0
      %3302 = vmatprep.subr.bf16.mxu0 0
      %3303 = vmatpush2.bf16.msra.mxu0 0
      %3304 = vmatprep.subr.bf16.mxu0 0
      %3305 = vmatpush2.bf16.msra.mxu0 0
      %3306 = vmatprep.subr.bf16.mxu0 0
      %3307 = vmatpush2.bf16.msra.mxu0 0
      %3308 = vmatprep.subr.bf16.mxu0 0
      %3309 = vmatpush2.bf16.msra.mxu0 0
      %3310 = vmatprep.subr.bf16.mxu0 0
      %3311 = vmatpush2.bf16.msra.mxu0 0
      %3312 = vmatprep.mubr.bf16.mxu0 0
      %3313 = vmatmul.mubr.bf16.gmra.mxu0 %v930
      %v3314 = vpop.f32.mrf.mxu0
      %v3315 = vadd.f32 0.0, %v3314
      %v3316 = vpop.f32.mrf.mxu0
      %v3317 = vpop.f32.mrf.mxu0
      %v3318 = vadd.f32 0.0, %v3317
      %v3319 = vpop.f32.mrf.mxu0
      %3320 = vmatprep.mubr.bf16.mxu0 0
      %3321 = vmatmul.mubr.bf16.gmra.mxu0 %v933
      %v3322 = vpop.f32.mrf.mxu0
      %v3323 = vadd.f32 0.0, %v3322
      %v3324 = vpop.f32.mrf.mxu0
      %v3325 = vpop.f32.mrf.mxu0
      %v3326 = vadd.f32 0.0, %v3325
      %v3327 = vpop.f32.mrf.mxu0
      %3328 = vmatprep.mubr.bf16.mxu0 0
      %3329 = vmatmul.mubr.bf16.gmra.mxu0 %v936
      %v3330 = vpop.f32.mrf.mxu0
      %v3331 = vadd.f32 0.0, %v3330
      %v3332 = vpop.f32.mrf.mxu0
      %v3333 = vpop.f32.mrf.mxu0
      %v3334 = vadd.f32 0.0, %v3333
      %v3335 = vpop.f32.mrf.mxu0
      %3336 = vmatprep.mubr.bf16.mxu0 0
      %3337 = vmatmul.mubr.bf16.gmra.mxu0 %v939
      %v3338 = vpop.f32.mrf.mxu0
      %v3339 = vadd.f32 0.0, %v3338
      %v3340 = vpop.f32.mrf.mxu0
      %v3341 = vpop.f32.mrf.mxu0
      %v3342 = vadd.f32 0.0, %v3341
      %v3343 = vpop.f32.mrf.mxu0
      %3344 = vdwg.mxu0
      %3345 = vmatprep.subr.bf16.mxu0 0
      %3346 = vmatpush1.bf16.msra.mxu0 0
      %3347 = vmatprep.subr.bf16.mxu0 0
      %3348 = vmatpush1.bf16.msra.mxu0 0
      %3349 = vmatprep.subr.bf16.mxu0 0
      %3350 = vmatpush1.bf16.msra.mxu0 0
      %3351 = vmatprep.subr.bf16.mxu0 0
      %3352 = vmatpush1.bf16.msra.mxu0 0
      %3353 = vmatprep.subr.bf16.mxu0 0
      %3354 = vmatpush1.bf16.msra.mxu0 0
      %3355 = vmatprep.subr.bf16.mxu0 0
      %3356 = vmatpush1.bf16.msra.mxu0 0
      %3357 = vmatprep.subr.bf16.mxu0 0
      %3358 = vmatpush1.bf16.msra.mxu0 %v1314
      %3359 = vmatprep.subr.bf16.mxu0 0
      %3360 = vmatpush1.bf16.msra.mxu0 %v1312
      %3361 = vmatprep.subr.bf16.mxu0 0
      %3362 = vmatpush2.bf16.msra.mxu0 0
      %3363 = vmatprep.subr.bf16.mxu0 0
      %3364 = vmatpush2.bf16.msra.mxu0 0
      %3365 = vmatprep.subr.bf16.mxu0 0
      %3366 = vmatpush2.bf16.msra.mxu0 0
      %3367 = vmatprep.subr.bf16.mxu0 0
      %3368 = vmatpush2.bf16.msra.mxu0 0
      %3369 = vmatprep.subr.bf16.mxu0 0
      %3370 = vmatpush2.bf16.msra.mxu0 0
      %3371 = vmatprep.subr.bf16.mxu0 0
      %3372 = vmatpush2.bf16.msra.mxu0 0
      %3373 = vmatprep.subr.bf16.mxu0 0
      %3374 = vmatpush2.bf16.msra.mxu0 0
      %3375 = vmatprep.subr.bf16.mxu0 0
      %3376 = vmatpush2.bf16.msra.mxu0 0
      %3377 = vmatprep.mubr.bf16.mxu0 0
      %3378 = vmatmul.mubr.bf16.gmra.mxu0 %v800
      %v3379 = vpop.f32.mrf.mxu0
      %v3380 = vadd.f32 %v3315, %v3379
      %v3381 = vpop.f32.mrf.mxu0
      %v3382 = vpop.f32.mrf.mxu0
      %v3383 = vadd.f32 %v3318, %v3382
      %v3384 = vpop.f32.mrf.mxu0
      %3385 = vmatprep.mubr.bf16.mxu0 0
      %3386 = vmatmul.mubr.bf16.gmra.mxu0 %v803
      %v3387 = vpop.f32.mrf.mxu0
      %v3388 = vadd.f32 %v3323, %v3387
      %v3389 = vpop.f32.mrf.mxu0
      %v3390 = vpop.f32.mrf.mxu0
      %v3391 = vadd.f32 %v3326, %v3390
      %v3392 = vpop.f32.mrf.mxu0
      %3393 = vmatprep.mubr.bf16.mxu0 0
      %3394 = vmatmul.mubr.bf16.gmra.mxu0 %v806
      %v3395 = vpop.f32.mrf.mxu0
      %v3396 = vadd.f32 %v3331, %v3395
      %v3397 = vpop.f32.mrf.mxu0
      %v3398 = vpop.f32.mrf.mxu0
      %v3399 = vadd.f32 %v3334, %v3398
      %v3400 = vpop.f32.mrf.mxu0
      %3401 = vmatprep.mubr.bf16.mxu0 0
      %3402 = vmatmul.mubr.bf16.gmra.mxu0 %v809
      %v3403 = vpop.f32.mrf.mxu0
      %v3404 = vadd.f32 %v3339, %v3403
      %v3405 = vpop.f32.mrf.mxu0
      %v3406 = vpop.f32.mrf.mxu0
      %v3407 = vadd.f32 %v3342, %v3406
      %v3408 = vpop.f32.mrf.mxu0
      %3409 = vdwg.mxu0
      %3410 = vmatprep.subr.bf16.mxu0 0
      %3411 = vmatpush1.bf16.msra.mxu0 0
      %3412 = vmatprep.subr.bf16.mxu0 0
      %3413 = vmatpush1.bf16.msra.mxu0 0
      %3414 = vmatprep.subr.bf16.mxu0 0
      %3415 = vmatpush1.bf16.msra.mxu0 0
      %3416 = vmatprep.subr.bf16.mxu0 0
      %3417 = vmatpush1.bf16.msra.mxu0 0
      %3418 = vmatprep.subr.bf16.mxu0 0
      %3419 = vmatpush1.bf16.msra.mxu0 0
      %3420 = vmatprep.subr.bf16.mxu0 0
      %3421 = vmatpush1.bf16.msra.mxu0 0
      %3422 = vmatprep.subr.bf16.mxu0 0
      %3423 = vmatpush1.bf16.msra.mxu0 %v2256
      %3424 = vmatprep.subr.bf16.mxu0 0
      %3425 = vmatpush1.bf16.msra.mxu0 %v2254
      %3426 = vmatprep.subr.bf16.mxu0 0
      %3427 = vmatpush2.bf16.msra.mxu0 0
      %3428 = vmatprep.subr.bf16.mxu0 0
      %3429 = vmatpush2.bf16.msra.mxu0 0
      %3430 = vmatprep.subr.bf16.mxu0 0
      %3431 = vmatpush2.bf16.msra.mxu0 0
      %3432 = vmatprep.subr.bf16.mxu0 0
      %3433 = vmatpush2.bf16.msra.mxu0 0
      %3434 = vmatprep.subr.bf16.mxu0 0
      %3435 = vmatpush2.bf16.msra.mxu0 0
      %3436 = vmatprep.subr.bf16.mxu0 0
      %3437 = vmatpush2.bf16.msra.mxu0 0
      %3438 = vmatprep.subr.bf16.mxu0 0
      %3439 = vmatpush2.bf16.msra.mxu0 0
      %3440 = vmatprep.subr.bf16.mxu0 0
      %3441 = vmatpush2.bf16.msra.mxu0 0
      %3442 = vmatprep.mubr.bf16.mxu0 0
      %3443 = vmatmul.mubr.bf16.gmra.mxu0 %v1050
      %v3444 = vpop.f32.mrf.mxu0
      %v3445 = vadd.f32 0.0, %v3444
      %v3446 = vpop.f32.mrf.mxu0
      %v3447 = vpop.f32.mrf.mxu0
      %v3448 = vadd.f32 0.0, %v3447
      %v3449 = vpop.f32.mrf.mxu0
      %3450 = vmatprep.mubr.bf16.mxu0 0
      %3451 = vmatmul.mubr.bf16.gmra.mxu0 %v1053
      %v3452 = vpop.f32.mrf.mxu0
      %v3453 = vadd.f32 0.0, %v3452
      %v3454 = vpop.f32.mrf.mxu0
      %v3455 = vpop.f32.mrf.mxu0
      %v3456 = vadd.f32 0.0, %v3455
      %v3457 = vpop.f32.mrf.mxu0
      %3458 = vmatprep.mubr.bf16.mxu0 0
      %3459 = vmatmul.mubr.bf16.gmra.mxu0 %v1056
      %v3460 = vpop.f32.mrf.mxu0
      %v3461 = vadd.f32 0.0, %v3460
      %v3462 = vpop.f32.mrf.mxu0
      %v3463 = vpop.f32.mrf.mxu0
      %v3464 = vadd.f32 0.0, %v3463
      %v3465 = vpop.f32.mrf.mxu0
      %3466 = vmatprep.mubr.bf16.mxu0 0
      %3467 = vmatmul.mubr.bf16.gmra.mxu0 %v1059
      %v3468 = vpop.f32.mrf.mxu0
      %v3469 = vadd.f32 0.0, %v3468
      %v3470 = vpop.f32.mrf.mxu0
      %v3471 = vpop.f32.mrf.mxu0
      %v3472 = vadd.f32 0.0, %v3471
      %v3473 = vpop.f32.mrf.mxu0
      %3474 = vdwg.mxu0
      %v3475 = vmul.f32 %v3445, %v757
      %v3476 = vmul.f32 %v3448, %v757
      %v3477 = vmul.f32 %v3453, %v757
      %v3478 = vmul.f32 %v3456, %v757
      %v3479 = vmul.f32 %v3461, %v757
      %v3480 = vmul.f32 %v3464, %v757
      %v3481 = vmul.f32 %v3469, %v757
      %v3482 = vmul.f32 %v3472, %v757
      %v3483 = vadd.f32 %v3380, %v3475
      %v3484 = vadd.f32 %v3383, %v3476
      %v3485 = vadd.f32 %v3388, %v3477
      %v3486 = vadd.f32 %v3391, %v3478
      %v3487 = vadd.f32 %v3396, %v3479
      %v3488 = vadd.f32 %v3399, %v3480
      %v3489 = vadd.f32 %v3404, %v3481
      %v3490 = vadd.f32 %v3407, %v3482
      %3491 = vmatprep.subr.bf16.mxu0 0
      %3492 = vmatpush1.bf16.msra.mxu0 0
      %3493 = vmatprep.subr.bf16.mxu0 0
      %3494 = vmatpush1.bf16.msra.mxu0 0
      %3495 = vmatprep.subr.bf16.mxu0 0
      %3496 = vmatpush1.bf16.msra.mxu0 0
      %3497 = vmatprep.subr.bf16.mxu0 0
      %3498 = vmatpush1.bf16.msra.mxu0 0
      %3499 = vmatprep.subr.bf16.mxu0 0
      %3500 = vmatpush1.bf16.msra.mxu0 0
      %3501 = vmatprep.subr.bf16.mxu0 0
      %3502 = vmatpush1.bf16.msra.mxu0 0
      %3503 = vmatprep.subr.bf16.mxu0 0
      %3504 = vmatpush1.bf16.msra.mxu0 %v1682
      %3505 = vmatprep.subr.bf16.mxu0 0
      %3506 = vmatpush1.bf16.msra.mxu0 %v1680
      %3507 = vmatprep.subr.bf16.mxu0 0
      %3508 = vmatpush2.bf16.msra.mxu0 0
      %3509 = vmatprep.subr.bf16.mxu0 0
      %3510 = vmatpush2.bf16.msra.mxu0 0
      %3511 = vmatprep.subr.bf16.mxu0 0
      %3512 = vmatpush2.bf16.msra.mxu0 0
      %3513 = vmatprep.subr.bf16.mxu0 0
      %3514 = vmatpush2.bf16.msra.mxu0 0
      %3515 = vmatprep.subr.bf16.mxu0 0
      %3516 = vmatpush2.bf16.msra.mxu0 0
      %3517 = vmatprep.subr.bf16.mxu0 0
      %3518 = vmatpush2.bf16.msra.mxu0 0
      %3519 = vmatprep.subr.bf16.mxu0 0
      %3520 = vmatpush2.bf16.msra.mxu0 0
      %3521 = vmatprep.subr.bf16.mxu0 0
      %3522 = vmatpush2.bf16.msra.mxu0 0
      %3523 = vmatprep.mubr.bf16.mxu0 0
      %3524 = vmatmul.mubr.bf16.gmra.mxu0 %v1180
      %v3525 = vpop.f32.mrf.mxu0
      %v3526 = vadd.f32 0.0, %v3525
      %v3527 = vpop.f32.mrf.mxu0
      %v3528 = vpop.f32.mrf.mxu0
      %v3529 = vadd.f32 0.0, %v3528
      %v3530 = vpop.f32.mrf.mxu0
      %3531 = vmatprep.mubr.bf16.mxu0 0
      %3532 = vmatmul.mubr.bf16.gmra.mxu0 %v1183
      %v3533 = vpop.f32.mrf.mxu0
      %v3534 = vadd.f32 0.0, %v3533
      %v3535 = vpop.f32.mrf.mxu0
      %v3536 = vpop.f32.mrf.mxu0
      %v3537 = vadd.f32 0.0, %v3536
      %v3538 = vpop.f32.mrf.mxu0
      %3539 = vmatprep.mubr.bf16.mxu0 0
      %3540 = vmatmul.mubr.bf16.gmra.mxu0 %v1186
      %v3541 = vpop.f32.mrf.mxu0
      %v3542 = vadd.f32 0.0, %v3541
      %v3543 = vpop.f32.mrf.mxu0
      %v3544 = vpop.f32.mrf.mxu0
      %v3545 = vadd.f32 0.0, %v3544
      %v3546 = vpop.f32.mrf.mxu0
      %3547 = vmatprep.mubr.bf16.mxu0 0
      %3548 = vmatmul.mubr.bf16.gmra.mxu0 %v1189
      %v3549 = vpop.f32.mrf.mxu0
      %v3550 = vadd.f32 0.0, %v3549
      %v3551 = vpop.f32.mrf.mxu0
      %v3552 = vpop.f32.mrf.mxu0
      %v3553 = vadd.f32 0.0, %v3552
      %v3554 = vpop.f32.mrf.mxu0
      %3555 = vdwg.mxu0
      %v3556 = vadd.f32 %v3483, %v3526
      %v3557 = vadd.f32 %v3484, %v3529
      %v3558 = vadd.f32 %v3485, %v3534
      %v3559 = vadd.f32 %v3486, %v3537
      %v3560 = vadd.f32 %v3487, %v3542
      %v3561 = vadd.f32 %v3488, %v3545
      %v3562 = vadd.f32 %v3489, %v3550
      %v3563 = vadd.f32 %v3490, %v3553
      %3564 = vmatprep.subr.bf16.mxu0 0
      %3565 = vmatpush1.bf16.msra.mxu0 0
      %3566 = vmatprep.subr.bf16.mxu0 0
      %3567 = vmatpush1.bf16.msra.mxu0 0
      %3568 = vmatprep.subr.bf16.mxu0 0
      %3569 = vmatpush1.bf16.msra.mxu0 0
      %3570 = vmatprep.subr.bf16.mxu0 0
      %3571 = vmatpush1.bf16.msra.mxu0 0
      %3572 = vmatprep.subr.bf16.mxu0 0
      %3573 = vmatpush1.bf16.msra.mxu0 0
      %3574 = vmatprep.subr.bf16.mxu0 0
      %3575 = vmatpush1.bf16.msra.mxu0 0
      %3576 = vmatprep.subr.bf16.mxu0 0
      %3577 = vmatpush1.bf16.msra.mxu0 %v1802
      %3578 = vmatprep.subr.bf16.mxu0 0
      %3579 = vmatpush1.bf16.msra.mxu0 %v1800
      %3580 = vmatprep.subr.bf16.mxu0 0
      %3581 = vmatpush2.bf16.msra.mxu0 0
      %3582 = vmatprep.subr.bf16.mxu0 0
      %3583 = vmatpush2.bf16.msra.mxu0 0
      %3584 = vmatprep.subr.bf16.mxu0 0
      %3585 = vmatpush2.bf16.msra.mxu0 0
      %3586 = vmatprep.subr.bf16.mxu0 0
      %3587 = vmatpush2.bf16.msra.mxu0 0
      %3588 = vmatprep.subr.bf16.mxu0 0
      %3589 = vmatpush2.bf16.msra.mxu0 0
      %3590 = vmatprep.subr.bf16.mxu0 0
      %3591 = vmatpush2.bf16.msra.mxu0 0
      %3592 = vmatprep.subr.bf16.mxu0 0
      %3593 = vmatpush2.bf16.msra.mxu0 0
      %3594 = vmatprep.subr.bf16.mxu0 0
      %3595 = vmatpush2.bf16.msra.mxu0 0
      %3596 = vmatprep.mubr.bf16.mxu0 0
      %3597 = vmatmul.mubr.bf16.gmra.mxu0 %v1318
      %v3598 = vpop.f32.mrf.mxu0
      %v3599 = vadd.f32 0.0, %v3598
      %v3600 = vpop.f32.mrf.mxu0
      %v3601 = vpop.f32.mrf.mxu0
      %v3602 = vadd.f32 0.0, %v3601
      %v3603 = vpop.f32.mrf.mxu0
      %3604 = vmatprep.mubr.bf16.mxu0 0
      %3605 = vmatmul.mubr.bf16.gmra.mxu0 %v1321
      %v3606 = vpop.f32.mrf.mxu0
      %v3607 = vadd.f32 0.0, %v3606
      %v3608 = vpop.f32.mrf.mxu0
      %v3609 = vpop.f32.mrf.mxu0
      %v3610 = vadd.f32 0.0, %v3609
      %v3611 = vpop.f32.mrf.mxu0
      %3612 = vmatprep.mubr.bf16.mxu0 0
      %3613 = vmatmul.mubr.bf16.gmra.mxu0 %v1324
      %v3614 = vpop.f32.mrf.mxu0
      %v3615 = vadd.f32 0.0, %v3614
      %v3616 = vpop.f32.mrf.mxu0
      %v3617 = vpop.f32.mrf.mxu0
      %v3618 = vadd.f32 0.0, %v3617
      %v3619 = vpop.f32.mrf.mxu0
      %3620 = vmatprep.mubr.bf16.mxu0 0
      %3621 = vmatmul.mubr.bf16.gmra.mxu0 %v1327
      %v3622 = vpop.f32.mrf.mxu0
      %v3623 = vadd.f32 0.0, %v3622
      %v3624 = vpop.f32.mrf.mxu0
      %v3625 = vpop.f32.mrf.mxu0
      %v3626 = vadd.f32 0.0, %v3625
      %v3627 = vpop.f32.mrf.mxu0
      %3628 = vdwg.mxu0
      %v3629 = vadd.f32 %v3556, %v3599
      %v3630 = vadd.f32 %v3557, %v3602
      %v3631 = vadd.f32 %v3558, %v3607
      %v3632 = vadd.f32 %v3559, %v3610
      %v3633 = vadd.f32 %v3560, %v3615
      %v3634 = vadd.f32 %v3561, %v3618
      %v3635 = vadd.f32 %v3562, %v3623
      %v3636 = vadd.f32 %v3563, %v3626
      %3637 = vmatprep.subr.bf16.mxu0 0
      %3638 = vmatpush1.bf16.msra.mxu0 0
      %3639 = vmatprep.subr.bf16.mxu0 0
      %3640 = vmatpush1.bf16.msra.mxu0 0
      %3641 = vmatprep.subr.bf16.mxu0 0
      %3642 = vmatpush1.bf16.msra.mxu0 0
      %3643 = vmatprep.subr.bf16.mxu0 0
      %3644 = vmatpush1.bf16.msra.mxu0 0
      %3645 = vmatprep.subr.bf16.mxu0 0
      %3646 = vmatpush1.bf16.msra.mxu0 0
      %3647 = vmatprep.subr.bf16.mxu0 0
      %3648 = vmatpush1.bf16.msra.mxu0 0
      %3649 = vmatprep.subr.bf16.mxu0 0
      %3650 = vmatpush1.bf16.msra.mxu0 %v2489
      %3651 = vmatprep.subr.bf16.mxu0 0
      %3652 = vmatpush1.bf16.msra.mxu0 %v2487
      %3653 = vmatprep.subr.bf16.mxu0 0
      %3654 = vmatpush2.bf16.msra.mxu0 0
      %3655 = vmatprep.subr.bf16.mxu0 0
      %3656 = vmatpush2.bf16.msra.mxu0 0
      %3657 = vmatprep.subr.bf16.mxu0 0
      %3658 = vmatpush2.bf16.msra.mxu0 0
      %3659 = vmatprep.subr.bf16.mxu0 0
      %3660 = vmatpush2.bf16.msra.mxu0 0
      %3661 = vmatprep.subr.bf16.mxu0 0
      %3662 = vmatpush2.bf16.msra.mxu0 0
      %3663 = vmatprep.subr.bf16.mxu0 0
      %3664 = vmatpush2.bf16.msra.mxu0 0
      %3665 = vmatprep.subr.bf16.mxu0 0
      %3666 = vmatpush2.bf16.msra.mxu0 0
      %3667 = vmatprep.subr.bf16.mxu0 0
      %3668 = vmatpush2.bf16.msra.mxu0 0
      %3669 = vmatprep.mubr.bf16.mxu0 0
      %3670 = vmatmul.mubr.bf16.gmra.mxu0 %v1438
      %v3671 = vpop.f32.mrf.mxu0
      %v3672 = vadd.f32 0.0, %v3671
      %v3673 = vpop.f32.mrf.mxu0
      %v3674 = vpop.f32.mrf.mxu0
      %v3675 = vadd.f32 0.0, %v3674
      %v3676 = vpop.f32.mrf.mxu0
      %3677 = vmatprep.mubr.bf16.mxu0 0
      %3678 = vmatmul.mubr.bf16.gmra.mxu0 %v1441
      %v3679 = vpop.f32.mrf.mxu0
      %v3680 = vadd.f32 0.0, %v3679
      %v3681 = vpop.f32.mrf.mxu0
      %v3682 = vpop.f32.mrf.mxu0
      %v3683 = vadd.f32 0.0, %v3682
      %v3684 = vpop.f32.mrf.mxu0
      %3685 = vmatprep.mubr.bf16.mxu0 0
      %3686 = vmatmul.mubr.bf16.gmra.mxu0 %v1444
      %v3687 = vpop.f32.mrf.mxu0
      %v3688 = vadd.f32 0.0, %v3687
      %v3689 = vpop.f32.mrf.mxu0
      %v3690 = vpop.f32.mrf.mxu0
      %v3691 = vadd.f32 0.0, %v3690
      %v3692 = vpop.f32.mrf.mxu0
      %3693 = vmatprep.mubr.bf16.mxu0 0
      %3694 = vmatmul.mubr.bf16.gmra.mxu0 %v1447
      %v3695 = vpop.f32.mrf.mxu0
      %v3696 = vadd.f32 0.0, %v3695
      %v3697 = vpop.f32.mrf.mxu0
      %v3698 = vpop.f32.mrf.mxu0
      %v3699 = vadd.f32 0.0, %v3698
      %v3700 = vpop.f32.mrf.mxu0
      %3701 = vdwg.mxu0
      %v3702 = vmul.f32 %v3672, %v757
      %v3703 = vmul.f32 %v3675, %v757
      %v3704 = vmul.f32 %v3680, %v757
      %v3705 = vmul.f32 %v3683, %v757
      %v3706 = vmul.f32 %v3688, %v757
      %v3707 = vmul.f32 %v3691, %v757
      %v3708 = vmul.f32 %v3696, %v757
      %v3709 = vmul.f32 %v3699, %v757
      %v3710 = vadd.f32 %v3629, %v3702
      %v3711 = vadd.f32 %v3630, %v3703
      %v3712 = vadd.f32 %v3631, %v3704
      %v3713 = vadd.f32 %v3632, %v3705
      %v3714 = vadd.f32 %v3633, %v3706
      %v3715 = vadd.f32 %v3634, %v3707
      %v3716 = vadd.f32 %v3635, %v3708
      %v3717 = vadd.f32 %v3636, %v3709
      %3718 = vmatprep.subr.bf16.mxu0 0
      %3719 = vmatpush1.bf16.msra.mxu0 0
      %3720 = vmatprep.subr.bf16.mxu0 0
      %3721 = vmatpush1.bf16.msra.mxu0 0
      %3722 = vmatprep.subr.bf16.mxu0 0
      %3723 = vmatpush1.bf16.msra.mxu0 0
      %3724 = vmatprep.subr.bf16.mxu0 0
      %3725 = vmatpush1.bf16.msra.mxu0 0
      %3726 = vmatprep.subr.bf16.mxu0 0
      %3727 = vmatpush1.bf16.msra.mxu0 0
      %3728 = vmatprep.subr.bf16.mxu0 0
      %3729 = vmatpush1.bf16.msra.mxu0 0
      %3730 = vmatprep.subr.bf16.mxu0 0
      %3731 = vmatpush1.bf16.msra.mxu0 %v3117
      %3732 = vmatprep.subr.bf16.mxu0 0
      %3733 = vmatpush1.bf16.msra.mxu0 %v3115
      %3734 = vmatprep.subr.bf16.mxu0 0
      %3735 = vmatpush2.bf16.msra.mxu0 0
      %3736 = vmatprep.subr.bf16.mxu0 0
      %3737 = vmatpush2.bf16.msra.mxu0 0
      %3738 = vmatprep.subr.bf16.mxu0 0
      %3739 = vmatpush2.bf16.msra.mxu0 0
      %3740 = vmatprep.subr.bf16.mxu0 0
      %3741 = vmatpush2.bf16.msra.mxu0 0
      %3742 = vmatprep.subr.bf16.mxu0 0
      %3743 = vmatpush2.bf16.msra.mxu0 0
      %3744 = vmatprep.subr.bf16.mxu0 0
      %3745 = vmatpush2.bf16.msra.mxu0 0
      %3746 = vmatprep.subr.bf16.mxu0 0
      %3747 = vmatpush2.bf16.msra.mxu0 0
      %3748 = vmatprep.subr.bf16.mxu0 0
      %3749 = vmatpush2.bf16.msra.mxu0 0
      %3750 = vmatprep.mubr.bf16.mxu0 0
      %3751 = vmatmul.mubr.bf16.gmra.mxu0 %v1558
      %v3752 = vpop.f32.mrf.mxu0
      %v3753 = vadd.f32 0.0, %v3752
      %v3754 = vpop.f32.mrf.mxu0
      %v3755 = vpop.f32.mrf.mxu0
      %v3756 = vadd.f32 0.0, %v3755
      %v3757 = vpop.f32.mrf.mxu0
      %3758 = vmatprep.mubr.bf16.mxu0 0
      %3759 = vmatmul.mubr.bf16.gmra.mxu0 %v1561
      %v3760 = vpop.f32.mrf.mxu0
      %v3761 = vadd.f32 0.0, %v3760
      %v3762 = vpop.f32.mrf.mxu0
      %v3763 = vpop.f32.mrf.mxu0
      %v3764 = vadd.f32 0.0, %v3763
      %v3765 = vpop.f32.mrf.mxu0
      %3766 = vmatprep.mubr.bf16.mxu0 0
      %3767 = vmatmul.mubr.bf16.gmra.mxu0 %v1564
      %v3768 = vpop.f32.mrf.mxu0
      %v3769 = vadd.f32 0.0, %v3768
      %v3770 = vpop.f32.mrf.mxu0
      %v3771 = vpop.f32.mrf.mxu0
      %v3772 = vadd.f32 0.0, %v3771
      %v3773 = vpop.f32.mrf.mxu0
      %3774 = vmatprep.mubr.bf16.mxu0 0
      %3775 = vmatmul.mubr.bf16.gmra.mxu0 %v1567
      %v3776 = vpop.f32.mrf.mxu0
      %v3777 = vadd.f32 0.0, %v3776
      %v3778 = vpop.f32.mrf.mxu0
      %v3779 = vpop.f32.mrf.mxu0
      %v3780 = vadd.f32 0.0, %v3779
      %v3781 = vpop.f32.mrf.mxu0
      %3782 = vdwg.mxu0
      %v3783 = vadd.f32 %v3710, %v3753
      %v3784 = vadd.f32 %v3711, %v3756
      %v3785 = vadd.f32 %v3712, %v3761
      %v3786 = vadd.f32 %v3713, %v3764
      %v3787 = vadd.f32 %v3714, %v3769
      %v3788 = vadd.f32 %v3715, %v3772
      %v3789 = vadd.f32 %v3716, %v3777
      %v3790 = vadd.f32 %v3717, %v3780
      %3791 = vmatprep.subr.bf16.mxu0 0
      %3792 = vmatpush1.bf16.msra.mxu0 0
      %3793 = vmatprep.subr.bf16.mxu0 0
      %3794 = vmatpush1.bf16.msra.mxu0 0
      %3795 = vmatprep.subr.bf16.mxu0 0
      %3796 = vmatpush1.bf16.msra.mxu0 0
      %3797 = vmatprep.subr.bf16.mxu0 0
      %3798 = vmatpush1.bf16.msra.mxu0 0
      %3799 = vmatprep.subr.bf16.mxu0 0
      %3800 = vmatpush1.bf16.msra.mxu0 0
      %3801 = vmatprep.subr.bf16.mxu0 0
      %3802 = vmatpush1.bf16.msra.mxu0 0
      %3803 = vmatprep.subr.bf16.mxu0 0
      %3804 = vmatpush1.bf16.msra.mxu0 %v3196
      %3805 = vmatprep.subr.bf16.mxu0 0
      %3806 = vmatpush1.bf16.msra.mxu0 %v3194
      %3807 = vmatprep.subr.bf16.mxu0 0
      %3808 = vmatpush2.bf16.msra.mxu0 0
      %3809 = vmatprep.subr.bf16.mxu0 0
      %3810 = vmatpush2.bf16.msra.mxu0 0
      %3811 = vmatprep.subr.bf16.mxu0 0
      %3812 = vmatpush2.bf16.msra.mxu0 0
      %3813 = vmatprep.subr.bf16.mxu0 0
      %3814 = vmatpush2.bf16.msra.mxu0 0
      %3815 = vmatprep.subr.bf16.mxu0 0
      %3816 = vmatpush2.bf16.msra.mxu0 0
      %3817 = vmatprep.subr.bf16.mxu0 0
      %3818 = vmatpush2.bf16.msra.mxu0 0
      %3819 = vmatprep.subr.bf16.mxu0 0
      %3820 = vmatpush2.bf16.msra.mxu0 0
      %3821 = vmatprep.subr.bf16.mxu0 0
      %3822 = vmatpush2.bf16.msra.mxu0 0
      %3823 = vmatprep.mubr.bf16.mxu0 0
      %3824 = vmatmul.mubr.bf16.gmra.mxu0 %v1686
      %v3825 = vpop.f32.mrf.mxu0
      %v3826 = vadd.f32 0.0, %v3825
      %v3827 = vpop.f32.mrf.mxu0
      %v3828 = vpop.f32.mrf.mxu0
      %v3829 = vadd.f32 0.0, %v3828
      %v3830 = vpop.f32.mrf.mxu0
      %3831 = vmatprep.mubr.bf16.mxu0 0
      %3832 = vmatmul.mubr.bf16.gmra.mxu0 %v1689
      %v3833 = vpop.f32.mrf.mxu0
      %v3834 = vadd.f32 0.0, %v3833
      %v3835 = vpop.f32.mrf.mxu0
      %v3836 = vpop.f32.mrf.mxu0
      %v3837 = vadd.f32 0.0, %v3836
      %v3838 = vpop.f32.mrf.mxu0
      %3839 = vmatprep.mubr.bf16.mxu0 0
      %3840 = vmatmul.mubr.bf16.gmra.mxu0 %v1692
      %v3841 = vpop.f32.mrf.mxu0
      %v3842 = vadd.f32 0.0, %v3841
      %v3843 = vpop.f32.mrf.mxu0
      %v3844 = vpop.f32.mrf.mxu0
      %v3845 = vadd.f32 0.0, %v3844
      %v3846 = vpop.f32.mrf.mxu0
      %3847 = vmatprep.mubr.bf16.mxu0 0
      %3848 = vmatmul.mubr.bf16.gmra.mxu0 %v1695
      %v3849 = vpop.f32.mrf.mxu0
      %v3850 = vadd.f32 0.0, %v3849
      %v3851 = vpop.f32.mrf.mxu0
      %v3852 = vpop.f32.mrf.mxu0
      %v3853 = vadd.f32 0.0, %v3852
      %v3854 = vpop.f32.mrf.mxu0
      %3855 = vdwg.mxu0
      %v3856 = vadd.f32 %v3783, %v3826
      %v3857 = vadd.f32 %v3784, %v3829
      %v3858 = vadd.f32 %v3785, %v3834
      %v3859 = vadd.f32 %v3786, %v3837
      %v3860 = vadd.f32 %v3787, %v3842
      %v3861 = vadd.f32 %v3788, %v3845
      %v3862 = vadd.f32 %v3789, %v3850
      %v3863 = vadd.f32 %v3790, %v3853
      %3864 = vrot.lane.b32.xlu0 %v1309, 112
      %v3865 = vpop.permute.xlu0 %3864
      %3866 = vrot.lane.b32.xlu0 %v1310, 112
      %v3867 = vpop.permute.xlu0 %3866
      %3870 = vmatprep.subr.bf16.mxu0 0
      %3871 = vmatpush1.bf16.msra.mxu0 0
      %3872 = vmatprep.subr.bf16.mxu0 0
      %3873 = vmatpush1.bf16.msra.mxu0 0
      %3874 = vmatprep.subr.bf16.mxu0 0
      %3875 = vmatpush1.bf16.msra.mxu0 0
      %3876 = vmatprep.subr.bf16.mxu0 0
      %3877 = vmatpush1.bf16.msra.mxu0 0
      %3878 = vmatprep.subr.bf16.mxu0 0
      %3879 = vmatpush1.bf16.msra.mxu0 0
      %3880 = vmatprep.subr.bf16.mxu0 0
      %3881 = vmatpush1.bf16.msra.mxu0 0
      %3882 = vmatprep.subr.bf16.mxu0 0
      %3883 = vmatpush1.bf16.msra.mxu0 %v3867
      %3884 = vmatprep.subr.bf16.mxu0 0
      %3885 = vmatpush1.bf16.msra.mxu0 %v3865
      %3886 = vmatprep.subr.bf16.mxu0 0
      %3887 = vmatpush2.bf16.msra.mxu0 0
      %3888 = vmatprep.subr.bf16.mxu0 0
      %3889 = vmatpush2.bf16.msra.mxu0 0
      %3890 = vmatprep.subr.bf16.mxu0 0
      %3891 = vmatpush2.bf16.msra.mxu0 0
      %3892 = vmatprep.subr.bf16.mxu0 0
      %3893 = vmatpush2.bf16.msra.mxu0 0
      %3894 = vmatprep.subr.bf16.mxu0 0
      %3895 = vmatpush2.bf16.msra.mxu0 0
      %3896 = vmatprep.subr.bf16.mxu0 0
      %3897 = vmatpush2.bf16.msra.mxu0 0
      %3898 = vmatprep.subr.bf16.mxu0 0
      %3899 = vmatpush2.bf16.msra.mxu0 0
      %3900 = vmatprep.subr.bf16.mxu0 0
      %3901 = vmatpush2.bf16.msra.mxu0 0
      %3902 = vmatprep.mubr.bf16.mxu0 0
      %3903 = vmatmul.mubr.bf16.gmra.mxu0 %v1806
      %v3904 = vpop.f32.mrf.mxu0
      %v3905 = vadd.f32 0.0, %v3904
      %v3906 = vpop.f32.mrf.mxu0
      %v3907 = vpop.f32.mrf.mxu0
      %v3908 = vadd.f32 0.0, %v3907
      %v3909 = vpop.f32.mrf.mxu0
      %3910 = vmatprep.mubr.bf16.mxu0 0
      %3911 = vmatmul.mubr.bf16.gmra.mxu0 %v1809
      %v3912 = vpop.f32.mrf.mxu0
      %v3913 = vadd.f32 0.0, %v3912
      %v3914 = vpop.f32.mrf.mxu0
      %v3915 = vpop.f32.mrf.mxu0
      %v3916 = vadd.f32 0.0, %v3915
      %v3917 = vpop.f32.mrf.mxu0
      %3918 = vmatprep.mubr.bf16.mxu0 0
      %3919 = vmatmul.mubr.bf16.gmra.mxu0 %v1812
      %v3920 = vpop.f32.mrf.mxu0
      %v3921 = vadd.f32 0.0, %v3920
      %v3922 = vpop.f32.mrf.mxu0
      %v3923 = vpop.f32.mrf.mxu0
      %v3924 = vadd.f32 0.0, %v3923
      %v3925 = vpop.f32.mrf.mxu0
      %3926 = vmatprep.mubr.bf16.mxu0 0
      %3927 = vmatmul.mubr.bf16.gmra.mxu0 %v1815
      %v3928 = vpop.f32.mrf.mxu0
      %v3929 = vadd.f32 0.0, %v3928
      %v3930 = vpop.f32.mrf.mxu0
      %v3931 = vpop.f32.mrf.mxu0
      %v3932 = vadd.f32 0.0, %v3931
      %v3933 = vpop.f32.mrf.mxu0
      %3934 = vdwg.mxu0
      %v3935 = vmul.f32 %v3905, %v757
      %v3936 = vmul.f32 %v3908, %v757
      %v3937 = vmul.f32 %v3913, %v757
      %v3938 = vmul.f32 %v3916, %v757
      %v3939 = vmul.f32 %v3921, %v757
      %v3940 = vmul.f32 %v3924, %v757
      %v3941 = vmul.f32 %v3929, %v757
      %v3942 = vmul.f32 %v3932, %v757
      %v3943 = vadd.f32 %v3856, %v3935
      %v3944 = vadd.f32 %v3857, %v3936
      %v3945 = vadd.f32 %v3858, %v3937
      %v3946 = vadd.f32 %v3859, %v3938
      %v3947 = vadd.f32 %v3860, %v3939
      %v3948 = vadd.f32 %v3861, %v3940
      %v3949 = vadd.f32 %v3862, %v3941
      %v3950 = vadd.f32 %v3863, %v3942
      %v3951 = vmax.f32 %v3272, %v3943
      %v3952 = vmax.f32 %v3273, %v3944
      %v3953 = vmax.f32 %v3274, %v3945
      %v3954 = vmax.f32 %v3275, %v3946
      %v3955 = vmax.f32 %v3276, %v3947
      %v3956 = vmax.f32 %v3277, %v3948
      %v3957 = vmax.f32 %v3278, %v3949
      %v3958 = vmax.f32 %v3279, %v3950
      %v3959 = vld [vmem:[%s4] sm:$0xff]
      %v3960 = vld [vmem:[%s4 + $0x8] sm:$0xff]
      %v3961 = vld [vmem:[%s4 + $0x10] sm:$0xff]
      %v3962 = vld [vmem:[%s4 + $0x18] sm:$0xff]
      %v3963 = vld [vmem:[%s4 + $0x20] sm:$0xff]
      %v3964 = vld [vmem:[%s4 + $0x28] sm:$0xff]
      %v3965 = vld [vmem:[%s4 + $0x30] sm:$0xff]
      %v3966 = vld [vmem:[%s4 + $0x38] sm:$0xff]
      %3968 = vset.pattern.permute.xlu0 0
      %3969 = vperm.xlu0 %3968, %v3959
      %v3970 = vpop.permute.xlu0 %3969
      %3973 = vset.pattern.permute.xlu0 0
      %3974 = vperm.xlu0 %3973, %v3960
      %v3975 = vpop.permute.xlu0 %3974
      %3978 = vset.pattern.permute.xlu0 0
      %3979 = vperm.xlu0 %3978, %v3961
      %v3980 = vpop.permute.xlu0 %3979
      %3983 = vset.pattern.permute.xlu0 0
      %3984 = vperm.xlu0 %3983, %v3962
      %v3985 = vpop.permute.xlu0 %3984
      %3988 = vset.pattern.permute.xlu0 0
      %3989 = vperm.xlu0 %3988, %v3963
      %v3990 = vpop.permute.xlu0 %3989
      %3993 = vset.pattern.permute.xlu0 0
      %3994 = vperm.xlu0 %3993, %v3964
      %v3995 = vpop.permute.xlu0 %3994
      %3998 = vset.pattern.permute.xlu0 0
      %3999 = vperm.xlu0 %3998, %v3965
      %v4000 = vpop.permute.xlu0 %3999
      %4003 = vset.pattern.permute.xlu0 0
      %4004 = vperm.xlu0 %4003, %v3966
      %v4005 = vpop.permute.xlu0 %4004
      %v4007 = vadd.f32 %v3951, %v3970
      %v4008 = vadd.f32 %v3952, %v3975
      %v4009 = vadd.f32 %v3953, %v3980
      %v4010 = vadd.f32 %v3954, %v3985
      %v4011 = vadd.f32 %v3955, %v3990
      %v4012 = vadd.f32 %v3956, %v3995
      %v4013 = vadd.f32 %v3957, %v4000
      %v4014 = vadd.f32 %v3958, %v4005
      %v4015 = vmax.f32 %v4007, 0.0
      %v4016 = vmax.f32 %v4008, 0.0
      %v4017 = vmax.f32 %v4009, 0.0
      %v4018 = vmax.f32 %v4010, 0.0
      %v4019 = vmax.f32 %v4011, 0.0
      %v4020 = vmax.f32 %v4012, 0.0
      %v4021 = vmax.f32 %v4013, 0.0
      %v4022 = vmax.f32 %v4014, 0.0
      %v4023 = vpack.c.bf16 %v4016, %v4015
      %v4024 = vpack.c.bf16 %v4018, %v4017
      %v4025 = vpack.c.bf16 %v4020, %v4019
      %v4026 = vpack.c.bf16 %v4022, %v4021
      %v4031 = vunpack.c.l.b16 %v4023
      %v4032 = vunpack.c.h.b16 %v4023
      %v4033 = vunpack.c.l.b16 %v4024
      %v4034 = vunpack.c.h.b16 %v4024
      %v4035 = vunpack.c.l.b16 %v4025
      %v4036 = vunpack.c.h.b16 %v4025
      %v4037 = vunpack.c.l.b16 %v4026
      %v4038 = vunpack.c.h.b16 %v4026
      %v4039 = vpack.c.b16 %v4031, %v4031
      %v4040 = vpack.c.b16 %v4032, %v4032
      %v4041 = vpack.c.b16 %v4033, %v4033
      %v4042 = vpack.c.b16 %v4034, %v4034
      %v4043 = vpack.c.b16 %v4035, %v4035
      %v4044 = vpack.c.b16 %v4036, %v4036
      %v4045 = vpack.c.b16 %v4037, %v4037
      %v4046 = vpack.c.b16 %v4038, %v4038
      %vm4055 = vcmask 396288
      %4056 = vst.msk [vmem:[%s224] sm:$0xf] %vm4055, %v4039
      %4057 = vst.msk [vmem:[%s224 + $0x4] sm:$0xf] %vm4055, %v4040
      %4058 = vst.msk [vmem:[%s224 + $0x8] sm:$0xf] %vm4055, %v4041
      %4059 = vst.msk [vmem:[%s224 + $0xc] sm:$0xf] %vm4055, %v4042
      %4060 = vst.msk [vmem:[%s224 + $0x10] sm:$0xf] %vm4055, %v4043
      %4061 = vst.msk [vmem:[%s224 + $0x14] sm:$0xf] %vm4055, %v4044
      %4062 = vst.msk [vmem:[%s224 + $0x18] sm:$0xf] %vm4055, %v4045
      %4063 = vst.msk [vmem:[%s224 + $0x1c] sm:$0xf] %vm4055, %v4046
      %p4064 = scmp.lt.s32.totalorder %s16, 1
      %s4065 = scalar_select %p4064, %s16, 1
      %s4066 = smul.addr %s4065, 8
      %s4067 = smul.addr %s4066, 4
      %s4068 = scalar_lea.vmem %s5, %s4067
      // Predicated region
      $region41: #{simple_cnn_forward.2} parent=39 // pred_check
        %p4069 = pneg %p144
      $region42: #{simple_cnn_forward.2} parent=39 // pred_check_branch
        %4071 = sbr.rel (%p4069) target = $region44
      $region43: #{simple_cnn_forward.2} parent=39 // pred_region
        _
      $region44: #{simple_cnn_forward.2} parent=39 // pred_fallthru
        _
    $region40: #{simple_cnn_forward.2} parent=5 // pred_fallthru
      _
    %p4072 = scmp.le.s32.totalorder 2, %s11
    // Predicated region
    $region45: #{simple_cnn_forward.2} parent=5 // pred_check
      %p4073 = pneg %p4072
    $region46: #{simple_cnn_forward.2} parent=5 // pred_check_branch
      %4075 = sbr.rel (%p4073) target = $region48
    $region47: #{simple_cnn_forward.2} parent=5 // pred_region
      %s4076 = ssub.s32 %s11, 2
      // Predicated region
      $region49: #{simple_cnn_forward.2} parent=47 // pred_check
        %p4077 = pneg %p150
      $region50: #{simple_cnn_forward.2} parent=47 // pred_check_branch
        %4079 = sbr.rel (%p4077) target = $region52
      $region51: #{simple_cnn_forward.2} parent=47 // pred_region
        %p4080 = scmp.lt.s32.totalorder %s17, 1
        %s4081 = scalar_select %p4080, %s17, 1
        %s4082 = smul.addr %s4081, 8
        %s4083 = smul.addr %s4082, 4
        %s4084 = scalar_lea.vmem %s5, %s4083
      $region52: #{simple_cnn_forward.2} parent=47 // pred_fallthru
        _
    $region48: #{simple_cnn_forward.2} parent=5 // pred_fallthru
      _
  $region6: #{simple_cnn_forward.2} parent=0 // loop_footer
    %s15 = sadd.s32 1, %s11
  $region7: #{simple_cnn_forward.2} parent=0 // loop_footer_branch
    %10 = sbr.rel target = $region3
  $region8: #{simple_cnn_forward.2} parent=0 // loop_exit
    _

// kernel: simple_cnn_forward.3
$region0: #{simple_cnn_forward.3}
  #allocation0 [shape = 'u32[]', space=smem, size = 0x4, offset = 0x4, fixed_abs, tag = 'smem constant byte address 0x4 - core index']
  #allocation1 [shape = 'u32[144,128]{1,0:T(1,128)}', space=vmem, size = 0x12000, scoped, tag = 'internal scratch']
  %s0 = inlined_call_operand.vmem [shape: bf16[2,3136], index: 0, kind: input, shape index: {}]
  %s1 = inlined_call_operand.vmem [shape: bf16[2,3136,64], index: 1, kind: input, shape index: {}]
  %s2 = inlined_call_operand.vmem [shape: f32[2,1,64], index: 2, kind: input, shape index: {}]
  %s3 = inlined_call_operand.vmem [shape: bf16[2,64,128], index: 3, kind: input, shape index: {}]
  %s4 = inlined_call_operand.vmem [shape: f32[2,2,128], index: 4, kind: output, shape index: {}]
  %s5 = sld [smem:[#allocation0]]
  $region49: #{simple_cnn_forward.3} parent=0
    _
  %s7 = ssub.s32 1, %s5
  %s8 = scalar_select 0, %s7, %s5
  loop: start=0, step=1, limit=4
  $region2: #{simple_cnn_forward.3} parent=0 // loop_pre_header
    _
  $region3: #{simple_cnn_forward.3} parent=0 // loop_header
    %s10 = sphi 0, %s14
    %p11 = scmp.ge.s32.totalorder %s10, 4
    %s18 = sphi 0, %s18
    %s20 = sphi 0, %s18
    %s21 = sphi 0, %s20
    %s35 = sphi 0, %s21
    %s41 = sphi 0, %s43
    %s44 = sphi 0, %s41
    %s45 = sphi 0, %s44
    %s61 = sphi 0, %s45
    %s67 = sphi 0, %s69
    %s70 = sphi 0, %s67
    %s71 = sphi 0, %s70
    %s87 = sphi 0, %s71
    %s93 = sphi 0, %s95
    %s96 = sphi 0, %s93
    %s97 = sphi 0, %s96
    %s113 = sphi 0, %s97
    %s119 = sphi 0, %s121
    %s122 = sphi 0, %s119
    %s123 = sphi 0, %s122
    %s139 = sphi 0, %s123
  $region4: #{simple_cnn_forward.3} parent=0 // loop_header_branch
    %13 = sbr.rel (%p11) target = $region8
  $region5: #{simple_cnn_forward.3} parent=0 // loop_body
    %s15 = ssub.s32 %s10, 1
    %s16 = ssub.s32 %s10, 2
    %s17 = sadd.s32 %s10, 1
    %s19 = sadd.s32 %s18, 1
    %p22 = scmp.eq.s32.totalorder %s10, 1
    %p23 = scmp.ne.s32.totalorder %s18, %s20
    %p24 = scmp.eq.s32.totalorder %s10, 0
    %p25 = por %p23, %p24
    %p26 = scmp.ne.s32.totalorder %s18, %s20
    %p27 = scmp.eq.s32.totalorder %s15, 1
    %p28 = por %p26, %p27
    %p29 = scmp.ne.s32.totalorder %s20, %s21
    %p30 = scmp.eq.s32.totalorder %s15, 0
    %p31 = por %p29, %p30
    %p32 = scmp.ne.s32.totalorder %s20, %s21
    %p33 = scmp.eq.s32.totalorder %s16, 1
    %p34 = por %p32, %p33
    %p36 = scmp.ne.s32.totalorder %s21, %s35
    %p37 = scmp.eq.s32.totalorder %s16, 0
    %p38 = por %p36, %p37
    %s39 = ssub.s32 %s10, %s17
    %p40 = scmp.eq.s32.totalorder %s39, 0
    %s42 = sadd.s32 %s41, 1
    %s43 = scalar_select %p40, %s41, %s42
    %p46 = pneg %p40
    %p47 = scmp.eq.s32.totalorder %s10, 1
    %p48 = por %p46, %p47
    %p49 = scmp.ne.s32.totalorder %s41, %s44
    %p50 = scmp.eq.s32.totalorder %s10, 0
    %p51 = por %p49, %p50
    %p52 = scmp.ne.s32.totalorder %s41, %s44
    %p53 = scmp.eq.s32.totalorder %s15, 1
    %p54 = por %p52, %p53
    %p55 = scmp.ne.s32.totalorder %s44, %s45
    %p56 = scmp.eq.s32.totalorder %s15, 0
    %p57 = por %p55, %p56
    %p58 = scmp.ne.s32.totalorder %s44, %s45
    %p59 = scmp.eq.s32.totalorder %s16, 1
    %p60 = por %p58, %p59
    %p62 = scmp.ne.s32.totalorder %s45, %s61
    %p63 = scmp.eq.s32.totalorder %s16, 0
    %p64 = por %p62, %p63
    %s65 = ssub.s32 %s10, %s17
    %p66 = scmp.eq.s32.totalorder %s65, 0
    %s68 = sadd.s32 %s67, 1
    %s69 = scalar_select %p66, %s67, %s68
    %p72 = pneg %p66
    %p73 = scmp.eq.s32.totalorder %s10, 1
    %p74 = por %p72, %p73
    %p75 = scmp.ne.s32.totalorder %s67, %s70
    %p76 = scmp.eq.s32.totalorder %s10, 0
    %p77 = por %p75, %p76
    %p78 = scmp.ne.s32.totalorder %s67, %s70
    %p79 = scmp.eq.s32.totalorder %s15, 1
    %p80 = por %p78, %p79
    %p81 = scmp.ne.s32.totalorder %s70, %s71
    %p82 = scmp.eq.s32.totalorder %s15, 0
    %p83 = por %p81, %p82
    %p84 = scmp.ne.s32.totalorder %s70, %s71
    %p85 = scmp.eq.s32.totalorder %s16, 1
    %p86 = por %p84, %p85
    %p88 = scmp.ne.s32.totalorder %s71, %s87
    %p89 = scmp.eq.s32.totalorder %s16, 0
    %p90 = por %p88, %p89
    %s91 = ssub.s32 %s10, %s17
    %p92 = scmp.eq.s32.totalorder %s91, 0
    %s94 = sadd.s32 %s93, 1
    %s95 = scalar_select %p92, %s93, %s94
    %p98 = pneg %p92
    %p99 = scmp.eq.s32.totalorder %s10, 1
    %p100 = por %p98, %p99
    %p101 = scmp.ne.s32.totalorder %s93, %s96
    %p102 = scmp.eq.s32.totalorder %s10, 0
    %p103 = por %p101, %p102
    %p104 = scmp.ne.s32.totalorder %s93, %s96
    %p105 = scmp.eq.s32.totalorder %s15, 1
    %p106 = por %p104, %p105
    %p107 = scmp.ne.s32.totalorder %s96, %s97
    %p108 = scmp.eq.s32.totalorder %s15, 0
    %p109 = por %p107, %p108
    %p110 = scmp.ne.s32.totalorder %s96, %s97
    %p111 = scmp.eq.s32.totalorder %s16, 1
    %p112 = por %p110, %p111
    %p114 = scmp.ne.s32.totalorder %s97, %s113
    %p115 = scmp.eq.s32.totalorder %s16, 0
    %p116 = por %p114, %p115
    %s117 = ssub.s32 %s10, %s17
    %p118 = scmp.eq.s32.totalorder %s117, 0
    %s120 = sadd.s32 %s119, 1
    %s121 = scalar_select %p118, %s119, %s120
    %p124 = pneg %p118
    %p125 = scmp.eq.s32.totalorder %s10, 1
    %p126 = por %p124, %p125
    %p127 = scmp.ne.s32.totalorder %s119, %s122
    %p128 = scmp.eq.s32.totalorder %s10, 0
    %p129 = por %p127, %p128
    %p130 = scmp.ne.s32.totalorder %s119, %s122
    %p131 = scmp.eq.s32.totalorder %s15, 1
    %p132 = por %p130, %p131
    %p133 = scmp.ne.s32.totalorder %s122, %s123
    %p134 = scmp.eq.s32.totalorder %s15, 0
    %p135 = por %p133, %p134
    %p136 = scmp.ne.s32.totalorder %s122, %s123
    %p137 = scmp.eq.s32.totalorder %s16, 1
    %p138 = por %p136, %p137
    %p140 = scmp.ne.s32.totalorder %s123, %s139
    %p141 = scmp.eq.s32.totalorder %s16, 0
    %p142 = por %p140, %p141
    %p143 = scmp.le.s32.totalorder 1, %s10
    %p144 = scmp.lt.s32.totalorder %s10, 3
    %p145 = pnand %p143, %p144
    %p146 = pneg %p145
    // Predicated region
    $region9: #{simple_cnn_forward.3} parent=5 // pred_check
      _
    $region10: #{simple_cnn_forward.3} parent=5 // pred_check_branch
      %148 = sbr.rel (%p145) target = $region12
    $region11: #{simple_cnn_forward.3} parent=5 // pred_region
      %s149 = ssub.s32 %s10, 1
      // Predicated region
      $region13: #{simple_cnn_forward.3} parent=11 // pred_check
        %p150 = pneg %p31
      $region14: #{simple_cnn_forward.3} parent=11 // pred_check_branch
        %152 = sbr.rel (%p150) target = $region16
      $region15: #{simple_cnn_forward.3} parent=11 // pred_region
        _
      $region16: #{simple_cnn_forward.3} parent=11 // pred_fallthru
        _
    $region12: #{simple_cnn_forward.3} parent=5 // pred_fallthru
      _
    %p153 = scmp.lt.s32.totalorder %s10, 2
    // Predicated region
    $region17: #{simple_cnn_forward.3} parent=5 // pred_check
      %p154 = pneg %p153
    $region18: #{simple_cnn_forward.3} parent=5 // pred_check_branch
      %156 = sbr.rel (%p154) target = $region20
    $region19: #{simple_cnn_forward.3} parent=5 // pred_region
      // Predicated region
      $region21: #{simple_cnn_forward.3} parent=19 // pred_check
        %p157 = pneg %p51
      $region22: #{simple_cnn_forward.3} parent=19 // pred_check_branch
        %159 = sbr.rel (%p157) target = $region24
      $region23: #{simple_cnn_forward.3} parent=19 // pred_region
        %p160 = scmp.lt.s32.totalorder %s10, 1
        %s161 = scalar_select %p160, %s10, 1
        %s162 = smul.addr %s161, 392
        %s163 = smul.addr %s162, 4
        %s164 = scalar_lea.vmem %s1, %s163
      $region24: #{simple_cnn_forward.3} parent=19 // pred_fallthru
        _
      // Predicated region
      $region25: #{simple_cnn_forward.3} parent=19 // pred_check
        %p165 = pneg %p77
      $region26: #{simple_cnn_forward.3} parent=19 // pred_check_branch
        %167 = sbr.rel (%p165) target = $region28
      $region27: #{simple_cnn_forward.3} parent=19 // pred_region
        %p168 = scmp.lt.s32.totalorder %s10, 1
        %s169 = scalar_select %p168, %s10, 1
        %s170 = scalar_lea.vmem %s2, %s169
      $region28: #{simple_cnn_forward.3} parent=19 // pred_fallthru
        _
      // Predicated region
      $region29: #{simple_cnn_forward.3} parent=19 // pred_check
        %p171 = pneg %p103
      $region30: #{simple_cnn_forward.3} parent=19 // pred_check_branch
        %173 = sbr.rel (%p171) target = $region32
      $region31: #{simple_cnn_forward.3} parent=19 // pred_region
        %p174 = scmp.lt.s32.totalorder %s10, 1
        %s175 = scalar_select %p174, %s10, 1
        %s176 = smul.addr %s175, 8
        %s177 = smul.addr %s176, 4
        %s178 = scalar_lea.vmem %s3, %s177
      $region32: #{simple_cnn_forward.3} parent=19 // pred_fallthru
        _
    $region20: #{simple_cnn_forward.3} parent=5 // pred_fallthru
      _
    %p179 = scmp.le.s32.totalorder 1, %s10
    %p180 = scmp.lt.s32.totalorder %s10, 3
    %p181 = pnand %p179, %p180
    %p182 = pneg %p181
    // Predicated region
    $region33: #{simple_cnn_forward.3} parent=5 // pred_check
      _
    $region34: #{simple_cnn_forward.3} parent=5 // pred_check_branch
      %184 = sbr.rel (%p181) target = $region36
    $region35: #{simple_cnn_forward.3} parent=5 // pred_region
      %s185 = ssub.s32 %s10, 1
      %p186 = pneg %p31
      %p187 = pneg %p28
      %p188 = scmp.lt.s32.totalorder %s15, 1
      %s189 = scalar_select %p188, %s15, 1
      %s190 = smul.addr %s189, 392
      %s191 = smul.addr %s190, 4
      %s192 = scalar_lea.vmem %s1, %s191
      %p193 = pneg %p57
      %p194 = pneg %p54
      %p195 = scmp.lt.s32.totalorder %s15, 1
      %s196 = scalar_select %p195, %s15, 1
      %s197 = scalar_lea.vmem %s2, %s196
      %p198 = pneg %p83
      %p199 = pneg %p80
      %p200 = scmp.lt.s32.totalorder %s15, 1
      %s201 = scalar_select %p200, %s15, 1
      %s202 = smul.addr %s201, 8
      %s203 = smul.addr %s202, 4
      %s204 = scalar_lea.vmem %s3, %s203
      %p205 = pneg %p109
      %p206 = pneg %p106
      %p207 = pneg %p135
      %p208 = pneg %p132
      %p209 = scmp.lt.s32.totalorder %s15, 1
      %s210 = scalar_select %p209, %s15, 1
      %s211 = smul.addr %s210, 2
      %s212 = scalar_lea.vmem %s4, %s211
      %p213 = scmp.lt.s32.totalorder %s15, 1
      %s214 = scalar_select %p213, %s15, 1
      %s215 = smul.addr %s214, 392
      %s216 = smul.addr %s215, 4
      %s217 = scalar_lea.vmem %s1, %s216
      %p218 = scmp.lt.s32.totalorder %s15, 1
      %s219 = scalar_select %p218, %s15, 1
      %s220 = scalar_lea.vmem %s2, %s219
      %p221 = scmp.lt.s32.totalorder %s15, 1
      %s222 = scalar_select %p221, %s15, 1
      %s223 = smul.addr %s222, 8
      %s224 = smul.addr %s223, 4
      %s225 = scalar_lea.vmem %s3, %s224
      %p226 = scmp.lt.s32.totalorder %s15, 1
      %s227 = scalar_select %p226, %s15, 1
      %s228 = smul.addr %s227, 2
      %s229 = scalar_lea.vmem %s4, %s228
      %v231 = vld [vmem:[%s0] sm:$0xff]
      %v232 = vld [vmem:[%s0 + $0x8] sm:$0xff]
      %v233 = vld [vmem:[%s0 + $0x10] sm:$0xff]
      %v234 = vld [vmem:[%s0 + $0x18] sm:$0x1]
      %v235 = vld [vmem:[%s217] sm:$0xf]
      %v236 = vld [vmem:[%s217 + $0x4] sm:$0xf]
      %v237 = vld [vmem:[%s217 + $0x8] sm:$0xf]
      %v238 = vld [vmem:[%s217 + $0xc] sm:$0xf]
      %v239 = vld [vmem:[%s217 + $0x10] sm:$0xf]
      %v240 = vld [vmem:[%s217 + $0x14] sm:$0xf]
      %v241 = vld [vmem:[%s217 + $0x18] sm:$0xf]
      %v242 = vld [vmem:[%s217 + $0x1c] sm:$0xf]
      %v243 = vld [vmem:[%s217 + $0x20] sm:$0xf]
      %v244 = vld [vmem:[%s217 + $0x24] sm:$0xf]
      %v245 = vld [vmem:[%s217 + $0x28] sm:$0xf]
      %v246 = vld [vmem:[%s217 + $0x2c] sm:$0xf]
      %v247 = vld [vmem:[%s217 + $0x30] sm:$0xf]
      %v248 = vld [vmem:[%s217 + $0x34] sm:$0xf]
      %v249 = vld [vmem:[%s217 + $0x38] sm:$0xf]
      %v250 = vld [vmem:[%s217 + $0x3c] sm:$0xf]
      %v251 = vld [vmem:[%s217 + $0x40] sm:$0xf]
      %v252 = vld [vmem:[%s217 + $0x44] sm:$0xf]
      %v253 = vld [vmem:[%s217 + $0x48] sm:$0xf]
      %v254 = vld [vmem:[%s217 + $0x4c] sm:$0xf]
      %v255 = vld [vmem:[%s217 + $0x50] sm:$0xf]
      %v256 = vld [vmem:[%s217 + $0x54] sm:$0xf]
      %v257 = vld [vmem:[%s217 + $0x58] sm:$0xf]
      %v258 = vld [vmem:[%s217 + $0x5c] sm:$0xf]
      %v259 = vld [vmem:[%s217 + $0x60] sm:$0xf]
      %v260 = vld [vmem:[%s217 + $0x64] sm:$0xf]
      %v261 = vld [vmem:[%s217 + $0x68] sm:$0xf]
      %v262 = vld [vmem:[%s217 + $0x6c] sm:$0xf]
      %v263 = vld [vmem:[%s217 + $0x70] sm:$0xf]
      %v264 = vld [vmem:[%s217 + $0x74] sm:$0xf]
      %v265 = vld [vmem:[%s217 + $0x78] sm:$0xf]
      %v266 = vld [vmem:[%s217 + $0x7c] sm:$0xf]
      %v267 = vld [vmem:[%s217 + $0x80] sm:$0xf]
      %v268 = vld [vmem:[%s217 + $0x84] sm:$0xf]
      %v269 = vld [vmem:[%s217 + $0x88] sm:$0xf]
      %v270 = vld [vmem:[%s217 + $0x8c] sm:$0xf]
      %v271 = vld [vmem:[%s217 + $0x90] sm:$0xf]
      %v272 = vld [vmem:[%s217 + $0x94] sm:$0xf]
      %v273 = vld [vmem:[%s217 + $0x98] sm:$0xf]
      %v274 = vld [vmem:[%s217 + $0x9c] sm:$0xf]
      %v275 = vld [vmem:[%s217 + $0xa0] sm:$0xf]
      %v276 = vld [vmem:[%s217 + $0xa4] sm:$0xf]
      %v277 = vld [vmem:[%s217 + $0xa8] sm:$0xf]
      %v278 = vld [vmem:[%s217 + $0xac] sm:$0xf]
      %v279 = vld [vmem:[%s217 + $0xb0] sm:$0xf]
      %v280 = vld [vmem:[%s217 + $0xb4] sm:$0xf]
      %v281 = vld [vmem:[%s217 + $0xb8] sm:$0xf]
      %v282 = vld [vmem:[%s217 + $0xbc] sm:$0xf]
      %v283 = vld [vmem:[%s217 + $0xc0] sm:$0xf]
      %v284 = vld [vmem:[%s217 + $0xc4] sm:$0xf]
      %v285 = vld [vmem:[%s217 + $0xc8] sm:$0xf]
      %v286 = vld [vmem:[%s217 + $0xcc] sm:$0xf]
      %v287 = vld [vmem:[%s217 + $0xd0] sm:$0xf]
      %v288 = vld [vmem:[%s217 + $0xd4] sm:$0xf]
      %v289 = vld [vmem:[%s217 + $0xd8] sm:$0xf]
      %v290 = vld [vmem:[%s217 + $0xdc] sm:$0xf]
      %v291 = vld [vmem:[%s217 + $0xe0] sm:$0xf]
      %v292 = vld [vmem:[%s217 + $0xe4] sm:$0xf]
      %v293 = vld [vmem:[%s217 + $0xe8] sm:$0xf]
      %v294 = vld [vmem:[%s217 + $0xec] sm:$0xf]
      %v295 = vld [vmem:[%s217 + $0xf0] sm:$0xf]
      %v296 = vld [vmem:[%s217 + $0xf4] sm:$0xf]
      %v297 = vld [vmem:[%s217 + $0xf8] sm:$0xf]
      %v298 = vld [vmem:[%s217 + $0xfc] sm:$0xf]
      %v299 = vld [vmem:[%s217 + $0x100] sm:$0xf]
      %v300 = vld [vmem:[%s217 + $0x104] sm:$0xf]
      %v301 = vld [vmem:[%s217 + $0x108] sm:$0xf]
      %v302 = vld [vmem:[%s217 + $0x10c] sm:$0xf]
      %v303 = vld [vmem:[%s217 + $0x110] sm:$0xf]
      %v304 = vld [vmem:[%s217 + $0x114] sm:$0xf]
      %v305 = vld [vmem:[%s217 + $0x118] sm:$0xf]
      %v306 = vld [vmem:[%s217 + $0x11c] sm:$0xf]
      %v307 = vld [vmem:[%s217 + $0x120] sm:$0xf]
      %v308 = vld [vmem:[%s217 + $0x124] sm:$0xf]
      %v309 = vld [vmem:[%s217 + $0x128] sm:$0xf]
      %v310 = vld [vmem:[%s217 + $0x12c] sm:$0xf]
      %v311 = vld [vmem:[%s217 + $0x130] sm:$0xf]
      %v312 = vld [vmem:[%s217 + $0x134] sm:$0xf]
      %v313 = vld [vmem:[%s217 + $0x138] sm:$0xf]
      %v314 = vld [vmem:[%s217 + $0x13c] sm:$0xf]
      %v315 = vld [vmem:[%s217 + $0x140] sm:$0xf]
      %v316 = vld [vmem:[%s217 + $0x144] sm:$0xf]
      %v317 = vld [vmem:[%s217 + $0x148] sm:$0xf]
      %v318 = vld [vmem:[%s217 + $0x14c] sm:$0xf]
      %v319 = vld [vmem:[%s217 + $0x150] sm:$0xf]
      %v320 = vld [vmem:[%s217 + $0x154] sm:$0xf]
      %v321 = vld [vmem:[%s217 + $0x158] sm:$0xf]
      %v322 = vld [vmem:[%s217 + $0x15c] sm:$0xf]
      %v323 = vld [vmem:[%s217 + $0x160] sm:$0xf]
      %v324 = vld [vmem:[%s217 + $0x164] sm:$0xf]
      %v325 = vld [vmem:[%s217 + $0x168] sm:$0xf]
      %v326 = vld [vmem:[%s217 + $0x16c] sm:$0xf]
      %v327 = vld [vmem:[%s217 + $0x170] sm:$0xf]
      %v328 = vld [vmem:[%s217 + $0x174] sm:$0xf]
      %v329 = vld [vmem:[%s217 + $0x178] sm:$0xf]
      %v330 = vld [vmem:[%s217 + $0x17c] sm:$0xf]
      %v331 = vld [vmem:[%s217 + $0x180] sm:$0xf]
      %v332 = vld [vmem:[%s217 + $0x184] sm:$0xf]
      %v333 = vld [vmem:[%s217 + $0x188] sm:$0xf]
      %v334 = vld [vmem:[%s217 + $0x18c] sm:$0xf]
      %v335 = vld [vmem:[%s217 + $0x190] sm:$0xf]
      %v336 = vld [vmem:[%s217 + $0x194] sm:$0xf]
      %v337 = vld [vmem:[%s217 + $0x198] sm:$0xf]
      %v338 = vld [vmem:[%s217 + $0x19c] sm:$0xf]
      %v339 = vld [vmem:[%s217 + $0x1a0] sm:$0xf]
      %v340 = vld [vmem:[%s217 + $0x1a4] sm:$0xf]
      %v341 = vld [vmem:[%s217 + $0x1a8] sm:$0xf]
      %v342 = vld [vmem:[%s217 + $0x1ac] sm:$0xf]
      %v343 = vld [vmem:[%s217 + $0x1b0] sm:$0xf]
      %v344 = vld [vmem:[%s217 + $0x1b4] sm:$0xf]
      %v345 = vld [vmem:[%s217 + $0x1b8] sm:$0xf]
      %v346 = vld [vmem:[%s217 + $0x1bc] sm:$0xf]
      %v347 = vld [vmem:[%s217 + $0x1c0] sm:$0xf]
      %v348 = vld [vmem:[%s217 + $0x1c4] sm:$0xf]
      %v349 = vld [vmem:[%s217 + $0x1c8] sm:$0xf]
      %v350 = vld [vmem:[%s217 + $0x1cc] sm:$0xf]
      %v351 = vld [vmem:[%s217 + $0x1d0] sm:$0xf]
      %v352 = vld [vmem:[%s217 + $0x1d4] sm:$0xf]
      %v353 = vld [vmem:[%s217 + $0x1d8] sm:$0xf]
      %v354 = vld [vmem:[%s217 + $0x1dc] sm:$0xf]
      %v355 = vld [vmem:[%s217 + $0x1e0] sm:$0xf]
      %v356 = vld [vmem:[%s217 + $0x1e4] sm:$0xf]
      %v357 = vld [vmem:[%s217 + $0x1e8] sm:$0xf]
      %v358 = vld [vmem:[%s217 + $0x1ec] sm:$0xf]
      %v359 = vld [vmem:[%s217 + $0x1f0] sm:$0xf]
      %v360 = vld [vmem:[%s217 + $0x1f4] sm:$0xf]
      %v361 = vld [vmem:[%s217 + $0x1f8] sm:$0xf]
      %v362 = vld [vmem:[%s217 + $0x1fc] sm:$0xf]
      %v363 = vld [vmem:[%s217 + $0x200] sm:$0xf]
      %v364 = vld [vmem:[%s217 + $0x204] sm:$0xf]
      %v365 = vld [vmem:[%s217 + $0x208] sm:$0xf]
      %v366 = vld [vmem:[%s217 + $0x20c] sm:$0xf]
      %v367 = vld [vmem:[%s217 + $0x210] sm:$0xf]
      %v368 = vld [vmem:[%s217 + $0x214] sm:$0xf]
      %v369 = vld [vmem:[%s217 + $0x218] sm:$0xf]
      %v370 = vld [vmem:[%s217 + $0x21c] sm:$0xf]
      %v371 = vld [vmem:[%s217 + $0x220] sm:$0xf]
      %v372 = vld [vmem:[%s217 + $0x224] sm:$0xf]
      %v373 = vld [vmem:[%s217 + $0x228] sm:$0xf]
      %v374 = vld [vmem:[%s217 + $0x22c] sm:$0xf]
      %v375 = vld [vmem:[%s217 + $0x230] sm:$0xf]
      %v376 = vld [vmem:[%s217 + $0x234] sm:$0xf]
      %v377 = vld [vmem:[%s217 + $0x238] sm:$0xf]
      %v378 = vld [vmem:[%s217 + $0x23c] sm:$0xf]
      %v379 = vld [vmem:[%s217 + $0x240] sm:$0xf]
      %v380 = vld [vmem:[%s217 + $0x244] sm:$0xf]
      %v381 = vld [vmem:[%s217 + $0x248] sm:$0xf]
      %v382 = vld [vmem:[%s217 + $0x24c] sm:$0xf]
      %v383 = vld [vmem:[%s217 + $0x250] sm:$0xf]
      %v384 = vld [vmem:[%s217 + $0x254] sm:$0xf]
      %v385 = vld [vmem:[%s217 + $0x258] sm:$0xf]
      %v386 = vld [vmem:[%s217 + $0x25c] sm:$0xf]
      %v387 = vld [vmem:[%s217 + $0x260] sm:$0xf]
      %v388 = vld [vmem:[%s217 + $0x264] sm:$0xf]
      %v389 = vld [vmem:[%s217 + $0x268] sm:$0xf]
      %v390 = vld [vmem:[%s217 + $0x26c] sm:$0xf]
      %v391 = vld [vmem:[%s217 + $0x270] sm:$0xf]
      %v392 = vld [vmem:[%s217 + $0x274] sm:$0xf]
      %v393 = vld [vmem:[%s217 + $0x278] sm:$0xf]
      %v394 = vld [vmem:[%s217 + $0x27c] sm:$0xf]
      %v395 = vld [vmem:[%s217 + $0x280] sm:$0xf]
      %v396 = vld [vmem:[%s217 + $0x284] sm:$0xf]
      %v397 = vld [vmem:[%s217 + $0x288] sm:$0xf]
      %v398 = vld [vmem:[%s217 + $0x28c] sm:$0xf]
      %v399 = vld [vmem:[%s217 + $0x290] sm:$0xf]
      %v400 = vld [vmem:[%s217 + $0x294] sm:$0xf]
      %v401 = vld [vmem:[%s217 + $0x298] sm:$0xf]
      %v402 = vld [vmem:[%s217 + $0x29c] sm:$0xf]
      %v403 = vld [vmem:[%s217 + $0x2a0] sm:$0xf]
      %v404 = vld [vmem:[%s217 + $0x2a4] sm:$0xf]
      %v405 = vld [vmem:[%s217 + $0x2a8] sm:$0xf]
      %v406 = vld [vmem:[%s217 + $0x2ac] sm:$0xf]
      %v407 = vld [vmem:[%s217 + $0x2b0] sm:$0xf]
      %v408 = vld [vmem:[%s217 + $0x2b4] sm:$0xf]
      %v409 = vld [vmem:[%s217 + $0x2b8] sm:$0xf]
      %v410 = vld [vmem:[%s217 + $0x2bc] sm:$0xf]
      %v411 = vld [vmem:[%s217 + $0x2c0] sm:$0xf]
      %v412 = vld [vmem:[%s217 + $0x2c4] sm:$0xf]
      %v413 = vld [vmem:[%s217 + $0x2c8] sm:$0xf]
      %v414 = vld [vmem:[%s217 + $0x2cc] sm:$0xf]
      %v415 = vld [vmem:[%s217 + $0x2d0] sm:$0xf]
      %v416 = vld [vmem:[%s217 + $0x2d4] sm:$0xf]
      %v417 = vld [vmem:[%s217 + $0x2d8] sm:$0xf]
      %v418 = vld [vmem:[%s217 + $0x2dc] sm:$0xf]
      %v419 = vld [vmem:[%s217 + $0x2e0] sm:$0xf]
      %v420 = vld [vmem:[%s217 + $0x2e4] sm:$0xf]
      %v421 = vld [vmem:[%s217 + $0x2e8] sm:$0xf]
      %v422 = vld [vmem:[%s217 + $0x2ec] sm:$0xf]
      %v423 = vld [vmem:[%s217 + $0x2f0] sm:$0xf]
      %v424 = vld [vmem:[%s217 + $0x2f4] sm:$0xf]
      %v425 = vld [vmem:[%s217 + $0x2f8] sm:$0xf]
      %v426 = vld [vmem:[%s217 + $0x2fc] sm:$0xf]
      %v427 = vld [vmem:[%s217 + $0x300] sm:$0xf]
      %v428 = vld [vmem:[%s217 + $0x304] sm:$0xf]
      %v429 = vld [vmem:[%s217 + $0x308] sm:$0xf]
      %v430 = vld [vmem:[%s217 + $0x30c] sm:$0xf]
      %v431 = vld [vmem:[%s217 + $0x310] sm:$0xf]
      %v432 = vld [vmem:[%s217 + $0x314] sm:$0xf]
      %v433 = vld [vmem:[%s217 + $0x318] sm:$0xf]
      %v434 = vld [vmem:[%s217 + $0x31c] sm:$0xf]
      %v435 = vld [vmem:[%s217 + $0x320] sm:$0xf]
      %v436 = vld [vmem:[%s217 + $0x324] sm:$0xf]
      %v437 = vld [vmem:[%s217 + $0x328] sm:$0xf]
      %v438 = vld [vmem:[%s217 + $0x32c] sm:$0xf]
      %v439 = vld [vmem:[%s217 + $0x330] sm:$0xf]
      %v440 = vld [vmem:[%s217 + $0x334] sm:$0xf]
      %v441 = vld [vmem:[%s217 + $0x338] sm:$0xf]
      %v442 = vld [vmem:[%s217 + $0x33c] sm:$0xf]
      %v443 = vld [vmem:[%s217 + $0x340] sm:$0xf]
      %v444 = vld [vmem:[%s217 + $0x344] sm:$0xf]
      %v445 = vld [vmem:[%s217 + $0x348] sm:$0xf]
      %v446 = vld [vmem:[%s217 + $0x34c] sm:$0xf]
      %v447 = vld [vmem:[%s217 + $0x350] sm:$0xf]
      %v448 = vld [vmem:[%s217 + $0x354] sm:$0xf]
      %v449 = vld [vmem:[%s217 + $0x358] sm:$0xf]
      %v450 = vld [vmem:[%s217 + $0x35c] sm:$0xf]
      %v451 = vld [vmem:[%s217 + $0x360] sm:$0xf]
      %v452 = vld [vmem:[%s217 + $0x364] sm:$0xf]
      %v453 = vld [vmem:[%s217 + $0x368] sm:$0xf]
      %v454 = vld [vmem:[%s217 + $0x36c] sm:$0xf]
      %v455 = vld [vmem:[%s217 + $0x370] sm:$0xf]
      %v456 = vld [vmem:[%s217 + $0x374] sm:$0xf]
      %v457 = vld [vmem:[%s217 + $0x378] sm:$0xf]
      %v458 = vld [vmem:[%s217 + $0x37c] sm:$0xf]
      %v459 = vld [vmem:[%s217 + $0x380] sm:$0xf]
      %v460 = vld [vmem:[%s217 + $0x384] sm:$0xf]
      %v461 = vld [vmem:[%s217 + $0x388] sm:$0xf]
      %v462 = vld [vmem:[%s217 + $0x38c] sm:$0xf]
      %v463 = vld [vmem:[%s217 + $0x390] sm:$0xf]
      %v464 = vld [vmem:[%s217 + $0x394] sm:$0xf]
      %v465 = vld [vmem:[%s217 + $0x398] sm:$0xf]
      %v466 = vld [vmem:[%s217 + $0x39c] sm:$0xf]
      %v467 = vld [vmem:[%s217 + $0x3a0] sm:$0xf]
      %v468 = vld [vmem:[%s217 + $0x3a4] sm:$0xf]
      %v469 = vld [vmem:[%s217 + $0x3a8] sm:$0xf]
      %v470 = vld [vmem:[%s217 + $0x3ac] sm:$0xf]
      %v471 = vld [vmem:[%s217 + $0x3b0] sm:$0xf]
      %v472 = vld [vmem:[%s217 + $0x3b4] sm:$0xf]
      %v473 = vld [vmem:[%s217 + $0x3b8] sm:$0xf]
      %v474 = vld [vmem:[%s217 + $0x3bc] sm:$0xf]
      %v475 = vld [vmem:[%s217 + $0x3c0] sm:$0xf]
      %v476 = vld [vmem:[%s217 + $0x3c4] sm:$0xf]
      %v477 = vld [vmem:[%s217 + $0x3c8] sm:$0xf]
      %v478 = vld [vmem:[%s217 + $0x3cc] sm:$0xf]
      %v479 = vld [vmem:[%s217 + $0x3d0] sm:$0xf]
      %v480 = vld [vmem:[%s217 + $0x3d4] sm:$0xf]
      %v481 = vld [vmem:[%s217 + $0x3d8] sm:$0xf]
      %v482 = vld [vmem:[%s217 + $0x3dc] sm:$0xf]
      %v483 = vld [vmem:[%s217 + $0x3e0] sm:$0xf]
      %v484 = vld [vmem:[%s217 + $0x3e4] sm:$0xf]
      %v485 = vld [vmem:[%s217 + $0x3e8] sm:$0xf]
      %v486 = vld [vmem:[%s217 + $0x3ec] sm:$0xf]
      %v487 = vld [vmem:[%s217 + $0x3f0] sm:$0xf]
      %v488 = vld [vmem:[%s217 + $0x3f4] sm:$0xf]
      %v489 = vld [vmem:[%s217 + $0x3f8] sm:$0xf]
      %v490 = vld [vmem:[%s217 + $0x3fc] sm:$0xf]
      %v491 = vld [vmem:[%s217 + $0x400] sm:$0xf]
      %v492 = vld [vmem:[%s217 + $0x404] sm:$0xf]
      %v493 = vld [vmem:[%s217 + $0x408] sm:$0xf]
      %v494 = vld [vmem:[%s217 + $0x40c] sm:$0xf]
      %v495 = vld [vmem:[%s217 + $0x410] sm:$0xf]
      %v496 = vld [vmem:[%s217 + $0x414] sm:$0xf]
      %v497 = vld [vmem:[%s217 + $0x418] sm:$0xf]
      %v498 = vld [vmem:[%s217 + $0x41c] sm:$0xf]
      %v499 = vld [vmem:[%s217 + $0x420] sm:$0xf]
      %v500 = vld [vmem:[%s217 + $0x424] sm:$0xf]
      %v501 = vld [vmem:[%s217 + $0x428] sm:$0xf]
      %v502 = vld [vmem:[%s217 + $0x42c] sm:$0xf]
      %v503 = vld [vmem:[%s217 + $0x430] sm:$0xf]
      %v504 = vld [vmem:[%s217 + $0x434] sm:$0xf]
      %v505 = vld [vmem:[%s217 + $0x438] sm:$0xf]
      %v506 = vld [vmem:[%s217 + $0x43c] sm:$0xf]
      %v507 = vld [vmem:[%s217 + $0x440] sm:$0xf]
      %v508 = vld [vmem:[%s217 + $0x444] sm:$0xf]
      %v509 = vld [vmem:[%s217 + $0x448] sm:$0xf]
      %v510 = vld [vmem:[%s217 + $0x44c] sm:$0xf]
      %v511 = vld [vmem:[%s217 + $0x450] sm:$0xf]
      %v512 = vld [vmem:[%s217 + $0x454] sm:$0xf]
      %v513 = vld [vmem:[%s217 + $0x458] sm:$0xf]
      %v514 = vld [vmem:[%s217 + $0x45c] sm:$0xf]
      %v515 = vld [vmem:[%s217 + $0x460] sm:$0xf]
      %v516 = vld [vmem:[%s217 + $0x464] sm:$0xf]
      %v517 = vld [vmem:[%s217 + $0x468] sm:$0xf]
      %v518 = vld [vmem:[%s217 + $0x46c] sm:$0xf]
      %v519 = vld [vmem:[%s217 + $0x470] sm:$0xf]
      %v520 = vld [vmem:[%s217 + $0x474] sm:$0xf]
      %v521 = vld [vmem:[%s217 + $0x478] sm:$0xf]
      %v522 = vld [vmem:[%s217 + $0x47c] sm:$0xf]
      %v523 = vld [vmem:[%s217 + $0x480] sm:$0xf]
      %v524 = vld [vmem:[%s217 + $0x484] sm:$0xf]
      %v525 = vld [vmem:[%s217 + $0x488] sm:$0xf]
      %v526 = vld [vmem:[%s217 + $0x48c] sm:$0xf]
      %v527 = vld [vmem:[%s217 + $0x490] sm:$0xf]
      %v528 = vld [vmem:[%s217 + $0x494] sm:$0xf]
      %v529 = vld [vmem:[%s217 + $0x498] sm:$0xf]
      %v530 = vld [vmem:[%s217 + $0x49c] sm:$0xf]
      %v531 = vld [vmem:[%s217 + $0x4a0] sm:$0xf]
      %v532 = vld [vmem:[%s217 + $0x4a4] sm:$0xf]
      %v533 = vld [vmem:[%s217 + $0x4a8] sm:$0xf]
      %v534 = vld [vmem:[%s217 + $0x4ac] sm:$0xf]
      %v535 = vld [vmem:[%s217 + $0x4b0] sm:$0xf]
      %v536 = vld [vmem:[%s217 + $0x4b4] sm:$0xf]
      %v537 = vld [vmem:[%s217 + $0x4b8] sm:$0xf]
      %v538 = vld [vmem:[%s217 + $0x4bc] sm:$0xf]
      %v539 = vld [vmem:[%s217 + $0x4c0] sm:$0xf]
      %v540 = vld [vmem:[%s217 + $0x4c4] sm:$0xf]
      %v541 = vld [vmem:[%s217 + $0x4c8] sm:$0xf]
      %v542 = vld [vmem:[%s217 + $0x4cc] sm:$0xf]
      %v543 = vld [vmem:[%s217 + $0x4d0] sm:$0xf]
      %v544 = vld [vmem:[%s217 + $0x4d4] sm:$0xf]
      %v545 = vld [vmem:[%s217 + $0x4d8] sm:$0xf]
      %v546 = vld [vmem:[%s217 + $0x4dc] sm:$0xf]
      %v547 = vld [vmem:[%s217 + $0x4e0] sm:$0xf]
      %v548 = vld [vmem:[%s217 + $0x4e4] sm:$0xf]
      %v549 = vld [vmem:[%s217 + $0x4e8] sm:$0xf]
      %v550 = vld [vmem:[%s217 + $0x4ec] sm:$0xf]
      %v551 = vld [vmem:[%s217 + $0x4f0] sm:$0xf]
      %v552 = vld [vmem:[%s217 + $0x4f4] sm:$0xf]
      %v553 = vld [vmem:[%s217 + $0x4f8] sm:$0xf]
      %v554 = vld [vmem:[%s217 + $0x4fc] sm:$0xf]
      %v555 = vld [vmem:[%s217 + $0x500] sm:$0xf]
      %v556 = vld [vmem:[%s217 + $0x504] sm:$0xf]
      %v557 = vld [vmem:[%s217 + $0x508] sm:$0xf]
      %v558 = vld [vmem:[%s217 + $0x50c] sm:$0xf]
      %v559 = vld [vmem:[%s217 + $0x510] sm:$0xf]
      %v560 = vld [vmem:[%s217 + $0x514] sm:$0xf]
      %v561 = vld [vmem:[%s217 + $0x518] sm:$0xf]
      %v562 = vld [vmem:[%s217 + $0x51c] sm:$0xf]
      %v563 = vld [vmem:[%s217 + $0x520] sm:$0xf]
      %v564 = vld [vmem:[%s217 + $0x524] sm:$0xf]
      %v565 = vld [vmem:[%s217 + $0x528] sm:$0xf]
      %v566 = vld [vmem:[%s217 + $0x52c] sm:$0xf]
      %v567 = vld [vmem:[%s217 + $0x530] sm:$0xf]
      %v568 = vld [vmem:[%s217 + $0x534] sm:$0xf]
      %v569 = vld [vmem:[%s217 + $0x538] sm:$0xf]
      %v570 = vld [vmem:[%s217 + $0x53c] sm:$0xf]
      %v571 = vld [vmem:[%s217 + $0x540] sm:$0xf]
      %v572 = vld [vmem:[%s217 + $0x544] sm:$0xf]
      %v573 = vld [vmem:[%s217 + $0x548] sm:$0xf]
      %v574 = vld [vmem:[%s217 + $0x54c] sm:$0xf]
      %v575 = vld [vmem:[%s217 + $0x550] sm:$0xf]
      %v576 = vld [vmem:[%s217 + $0x554] sm:$0xf]
      %v577 = vld [vmem:[%s217 + $0x558] sm:$0xf]
      %v578 = vld [vmem:[%s217 + $0x55c] sm:$0xf]
      %v579 = vld [vmem:[%s217 + $0x560] sm:$0xf]
      %v580 = vld [vmem:[%s217 + $0x564] sm:$0xf]
      %v581 = vld [vmem:[%s217 + $0x568] sm:$0xf]
      %v582 = vld [vmem:[%s217 + $0x56c] sm:$0xf]
      %v583 = vld [vmem:[%s217 + $0x570] sm:$0xf]
      %v584 = vld [vmem:[%s217 + $0x574] sm:$0xf]
      %v585 = vld [vmem:[%s217 + $0x578] sm:$0xf]
      %v586 = vld [vmem:[%s217 + $0x57c] sm:$0xf]
      %v587 = vld [vmem:[%s217 + $0x580] sm:$0xf]
      %v588 = vld [vmem:[%s217 + $0x584] sm:$0xf]
      %v589 = vld [vmem:[%s217 + $0x588] sm:$0xf]
      %v590 = vld [vmem:[%s217 + $0x58c] sm:$0xf]
      %v591 = vld [vmem:[%s217 + $0x590] sm:$0xf]
      %v592 = vld [vmem:[%s217 + $0x594] sm:$0xf]
      %v593 = vld [vmem:[%s217 + $0x598] sm:$0xf]
      %v594 = vld [vmem:[%s217 + $0x59c] sm:$0xf]
      %v595 = vld [vmem:[%s217 + $0x5a0] sm:$0xf]
      %v596 = vld [vmem:[%s217 + $0x5a4] sm:$0xf]
      %v597 = vld [vmem:[%s217 + $0x5a8] sm:$0xf]
      %v598 = vld [vmem:[%s217 + $0x5ac] sm:$0xf]
      %v599 = vld [vmem:[%s217 + $0x5b0] sm:$0xf]
      %v600 = vld [vmem:[%s217 + $0x5b4] sm:$0xf]
      %v601 = vld [vmem:[%s217 + $0x5b8] sm:$0xf]
      %v602 = vld [vmem:[%s217 + $0x5bc] sm:$0xf]
      %v603 = vld [vmem:[%s217 + $0x5c0] sm:$0xf]
      %v604 = vld [vmem:[%s217 + $0x5c4] sm:$0xf]
      %v605 = vld [vmem:[%s217 + $0x5c8] sm:$0xf]
      %v606 = vld [vmem:[%s217 + $0x5cc] sm:$0xf]
      %v607 = vld [vmem:[%s217 + $0x5d0] sm:$0xf]
      %v608 = vld [vmem:[%s217 + $0x5d4] sm:$0xf]
      %v609 = vld [vmem:[%s217 + $0x5d8] sm:$0xf]
      %v610 = vld [vmem:[%s217 + $0x5dc] sm:$0xf]
      %v611 = vld [vmem:[%s217 + $0x5e0] sm:$0xf]
      %v612 = vld [vmem:[%s217 + $0x5e4] sm:$0xf]
      %v613 = vld [vmem:[%s217 + $0x5e8] sm:$0xf]
      %v614 = vld [vmem:[%s217 + $0x5ec] sm:$0xf]
      %v615 = vld [vmem:[%s217 + $0x5f0] sm:$0xf]
      %v616 = vld [vmem:[%s217 + $0x5f4] sm:$0xf]
      %v617 = vld [vmem:[%s217 + $0x5f8] sm:$0xf]
      %v618 = vld [vmem:[%s217 + $0x5fc] sm:$0xf]
      %v619 = vld [vmem:[%s217 + $0x600] sm:$0xf]
      %v620 = vld [vmem:[%s217 + $0x604] sm:$0xf]
      %v621 = vld [vmem:[%s217 + $0x608] sm:$0xf]
      %v622 = vld [vmem:[%s217 + $0x60c] sm:$0xf]
      %v623 = vld [vmem:[%s217 + $0x610] sm:$0xf]
      %v624 = vld [vmem:[%s217 + $0x614] sm:$0xf]
      %v625 = vld [vmem:[%s217 + $0x618] sm:$0xf]
      %v626 = vld [vmem:[%s217 + $0x61c] sm:$0xf]
      %v627 = vld [vmem:[%s220] sm:$0x1]
      %v629 = vlaneseq
      %v630 = vshrl.u32 %v629, 7
      %v631 = vsub.s32 0, %v630
      %v632 = vrot.slane %v627, %v631
      %v638 = vcombine.high %v231, %v231
      %v640 = vunpack.c.l.s4 1966171168
      %v641 = vunpack.c.0.s8 %v640
      %v642 = vlaneseq
      %v643 = vshrl.u32 %v642, 7
      %v644 = vsub.s32 %v641, %v643
      %v645 = vrot.slane %v231, %v644
      %v647 = vunpack.c.l.s4 1966171168
      %v648 = vunpack.c.0.s8 %v647
      %v649 = vlaneseq
      %v650 = vshrl.u32 %v649, 7
      %v651 = vsub.s32 %v648, %v650
      %v652 = vrot.slane %v638, %v651
      %v653 = vcombine.high %v645, %v645
      %v654 = vcombine.high %v652, %v652
      %v656 = vunpack.c.l.s4 1966171168
      %v657 = vunpack.c.0.s8 %v656
      %v658 = vlaneseq
      %v659 = vshrl.u32 %v658, 7
      %v660 = vsub.s32 %v657, %v659
      %v661 = vrot.slane %v645, %v660
      %v663 = vunpack.c.l.s4 1966171168
      %v664 = vunpack.c.0.s8 %v663
      %v665 = vlaneseq
      %v666 = vshrl.u32 %v665, 7
      %v667 = vsub.s32 %v664, %v666
      %v668 = vrot.slane %v652, %v667
      %v670 = vunpack.c.l.s4 1966171168
      %v671 = vunpack.c.0.s8 %v670
      %v672 = vlaneseq
      %v673 = vshrl.u32 %v672, 7
      %v674 = vsub.s32 %v671, %v673
      %v675 = vrot.slane %v653, %v674
      %v677 = vunpack.c.l.s4 1966171168
      %v678 = vunpack.c.0.s8 %v677
      %v679 = vlaneseq
      %v680 = vshrl.u32 %v679, 7
      %v681 = vsub.s32 %v678, %v680
      %v682 = vrot.slane %v654, %v681
      %v683 = vcombine.high %v661, %v661
      %v684 = vcombine.high %v668, %v668
      %v685 = vcombine.high %v675, %v675
      %v686 = vcombine.high %v682, %v682
      %v687 = vcombine.high %v232, %v232
      %v689 = vunpack.c.l.s4 1966171168
      %v690 = vunpack.c.0.s8 %v689
      %v691 = vlaneseq
      %v692 = vshrl.u32 %v691, 7
      %v693 = vsub.s32 %v690, %v692
      %v694 = vrot.slane %v232, %v693
      %v696 = vunpack.c.l.s4 1966171168
      %v697 = vunpack.c.0.s8 %v696
      %v698 = vlaneseq
      %v699 = vshrl.u32 %v698, 7
      %v700 = vsub.s32 %v697, %v699
      %v701 = vrot.slane %v687, %v700
      %v702 = vcombine.high %v694, %v694
      %v703 = vcombine.high %v701, %v701
      %v705 = vunpack.c.l.s4 1966171168
      %v706 = vunpack.c.0.s8 %v705
      %v707 = vlaneseq
      %v708 = vshrl.u32 %v707, 7
      %v709 = vsub.s32 %v706, %v708
      %v710 = vrot.slane %v694, %v709
      %v712 = vunpack.c.l.s4 1966171168
      %v713 = vunpack.c.0.s8 %v712
      %v714 = vlaneseq
      %v715 = vshrl.u32 %v714, 7
      %v716 = vsub.s32 %v713, %v715
      %v717 = vrot.slane %v701, %v716
      %v719 = vunpack.c.l.s4 1966171168
      %v720 = vunpack.c.0.s8 %v719
      %v721 = vlaneseq
      %v722 = vshrl.u32 %v721, 7
      %v723 = vsub.s32 %v720, %v722
      %v724 = vrot.slane %v702, %v723
      %v726 = vunpack.c.l.s4 1966171168
      %v727 = vunpack.c.0.s8 %v726
      %v728 = vlaneseq
      %v729 = vshrl.u32 %v728, 7
      %v730 = vsub.s32 %v727, %v729
      %v731 = vrot.slane %v703, %v730
      %v732 = vcombine.high %v710, %v710
      %v733 = vcombine.high %v717, %v717
      %v734 = vcombine.high %v724, %v724
      %v735 = vcombine.high %v731, %v731
      %v736 = vcombine.high %v233, %v233
      %v738 = vunpack.c.l.s4 1966171168
      %v739 = vunpack.c.0.s8 %v738
      %v740 = vlaneseq
      %v741 = vshrl.u32 %v740, 7
      %v742 = vsub.s32 %v739, %v741
      %v743 = vrot.slane %v233, %v742
      %v745 = vunpack.c.l.s4 1966171168
      %v746 = vunpack.c.0.s8 %v745
      %v747 = vlaneseq
      %v748 = vshrl.u32 %v747, 7
      %v749 = vsub.s32 %v746, %v748
      %v750 = vrot.slane %v736, %v749
      %v751 = vcombine.high %v743, %v743
      %v752 = vcombine.high %v750, %v750
      %v754 = vunpack.c.l.s4 1966171168
      %v755 = vunpack.c.0.s8 %v754
      %v756 = vlaneseq
      %v757 = vshrl.u32 %v756, 7
      %v758 = vsub.s32 %v755, %v757
      %v759 = vrot.slane %v743, %v758
      %v761 = vunpack.c.l.s4 1966171168
      %v762 = vunpack.c.0.s8 %v761
      %v763 = vlaneseq
      %v764 = vshrl.u32 %v763, 7
      %v765 = vsub.s32 %v762, %v764
      %v766 = vrot.slane %v750, %v765
      %v768 = vunpack.c.l.s4 1966171168
      %v769 = vunpack.c.0.s8 %v768
      %v770 = vlaneseq
      %v771 = vshrl.u32 %v770, 7
      %v772 = vsub.s32 %v769, %v771
      %v773 = vrot.slane %v751, %v772
      %v775 = vunpack.c.l.s4 1966171168
      %v776 = vunpack.c.0.s8 %v775
      %v777 = vlaneseq
      %v778 = vshrl.u32 %v777, 7
      %v779 = vsub.s32 %v776, %v778
      %v780 = vrot.slane %v752, %v779
      %v781 = vcombine.high %v759, %v759
      %v782 = vcombine.high %v766, %v766
      %v783 = vcombine.high %v773, %v773
      %v784 = vcombine.high %v780, %v780
      %v786 = vunpack.c.l.s4 1966171168
      %v787 = vunpack.c.0.s8 %v786
      %v788 = vlaneseq
      %v789 = vshrl.u32 %v788, 7
      %v790 = vsub.s32 %v787, %v789
      %v791 = vrot.slane %v234, %v790
      %v793 = vunpack.c.l.s4 1966171168
      %v794 = vunpack.c.0.s8 %v793
      %v795 = vlaneseq
      %v796 = vshrl.u32 %v795, 7
      %v797 = vsub.s32 %v794, %v796
      %v798 = vrot.slane %v791, %v797
      %v1215 = vunpack.c.l.b16 %v235
      %v1216 = vunpack.c.l.b16 %v236
      %v1217 = vunpack.c.l.b16 %v237
      %v1218 = vunpack.c.l.b16 %v238
      %v1219 = vunpack.c.l.b16 %v239
      %v1220 = vunpack.c.l.b16 %v240
      %v1221 = vunpack.c.l.b16 %v241
      %v1222 = vunpack.c.l.b16 %v242
      %v1223 = vunpack.c.l.b16 %v243
      %v1224 = vunpack.c.l.b16 %v244
      %v1225 = vunpack.c.l.b16 %v245
      %v1226 = vunpack.c.l.b16 %v246
      %v1227 = vunpack.c.l.b16 %v247
      %v1228 = vunpack.c.l.b16 %v248
      %v1229 = vunpack.c.l.b16 %v249
      %v1230 = vunpack.c.l.b16 %v250
      %v1231 = vunpack.c.l.b16 %v251
      %v1232 = vunpack.c.l.b16 %v252
      %v1233 = vunpack.c.l.b16 %v253
      %v1234 = vunpack.c.l.b16 %v254
      %v1235 = vunpack.c.l.b16 %v255
      %v1236 = vunpack.c.l.b16 %v256
      %v1237 = vunpack.c.l.b16 %v257
      %v1238 = vunpack.c.l.b16 %v258
      %v1239 = vunpack.c.l.b16 %v259
      %v1240 = vunpack.c.l.b16 %v260
      %v1241 = vunpack.c.l.b16 %v261
      %v1242 = vunpack.c.l.b16 %v262
      %v1243 = vunpack.c.l.b16 %v263
      %v1244 = vunpack.c.l.b16 %v264
      %v1245 = vunpack.c.l.b16 %v265
      %v1246 = vunpack.c.l.b16 %v266
      %v1247 = vunpack.c.l.b16 %v267
      %v1248 = vunpack.c.l.b16 %v268
      %v1249 = vunpack.c.l.b16 %v269
      %v1250 = vunpack.c.l.b16 %v270
      %v1251 = vunpack.c.l.b16 %v271
      %v1252 = vunpack.c.l.b16 %v272
      %v1253 = vunpack.c.l.b16 %v273
      %v1254 = vunpack.c.l.b16 %v274
      %v1255 = vunpack.c.l.b16 %v275
      %v1256 = vunpack.c.l.b16 %v276
      %v1257 = vunpack.c.l.b16 %v277
      %v1258 = vunpack.c.l.b16 %v278
      %v1259 = vunpack.c.l.b16 %v279
      %v1260 = vunpack.c.l.b16 %v280
      %v1261 = vunpack.c.l.b16 %v281
      %v1262 = vunpack.c.l.b16 %v282
      %v1263 = vunpack.c.l.b16 %v283
      %v1264 = vunpack.c.l.b16 %v284
      %v1265 = vunpack.c.l.b16 %v285
      %v1266 = vunpack.c.l.b16 %v286
      %v1267 = vunpack.c.l.b16 %v287
      %v1268 = vunpack.c.l.b16 %v288
      %v1269 = vunpack.c.l.b16 %v289
      %v1270 = vunpack.c.l.b16 %v290
      %v1271 = vunpack.c.l.b16 %v291
      %v1272 = vunpack.c.l.b16 %v292
      %v1273 = vunpack.c.l.b16 %v293
      %v1274 = vunpack.c.l.b16 %v294
      %v1275 = vunpack.c.l.b16 %v295
      %v1276 = vunpack.c.l.b16 %v296
      %v1277 = vunpack.c.l.b16 %v297
      %v1278 = vunpack.c.l.b16 %v298
      %v1279 = vunpack.c.l.b16 %v299
      %v1280 = vunpack.c.l.b16 %v300
      %v1281 = vunpack.c.l.b16 %v301
      %v1282 = vunpack.c.l.b16 %v302
      %v1283 = vunpack.c.l.b16 %v303
      %v1284 = vunpack.c.l.b16 %v304
      %v1285 = vunpack.c.l.b16 %v305
      %v1286 = vunpack.c.l.b16 %v306
      %v1287 = vunpack.c.l.b16 %v307
      %v1288 = vunpack.c.l.b16 %v308
      %v1289 = vunpack.c.l.b16 %v309
      %v1290 = vunpack.c.l.b16 %v310
      %v1291 = vunpack.c.l.b16 %v311
      %v1292 = vunpack.c.l.b16 %v312
      %v1293 = vunpack.c.l.b16 %v313
      %v1294 = vunpack.c.l.b16 %v314
      %v1295 = vunpack.c.l.b16 %v315
      %v1296 = vunpack.c.l.b16 %v316
      %v1297 = vunpack.c.l.b16 %v317
      %v1298 = vunpack.c.l.b16 %v318
      %v1299 = vunpack.c.l.b16 %v319
      %v1300 = vunpack.c.l.b16 %v320
      %v1301 = vunpack.c.l.b16 %v321
      %v1302 = vunpack.c.l.b16 %v322
      %v1303 = vunpack.c.l.b16 %v323
      %v1304 = vunpack.c.l.b16 %v324
      %v1305 = vunpack.c.l.b16 %v325
      %v1306 = vunpack.c.l.b16 %v326
      %v1307 = vunpack.c.l.b16 %v327
      %v1308 = vunpack.c.l.b16 %v328
      %v1309 = vunpack.c.l.b16 %v329
      %v1310 = vunpack.c.l.b16 %v330
      %v1311 = vunpack.c.l.b16 %v331
      %v1312 = vunpack.c.l.b16 %v332
      %v1313 = vunpack.c.l.b16 %v333
      %v1314 = vunpack.c.l.b16 %v334
      %v1315 = vunpack.c.l.b16 %v335
      %v1316 = vunpack.c.l.b16 %v336
      %v1317 = vunpack.c.l.b16 %v337
      %v1318 = vunpack.c.l.b16 %v338
      %v1319 = vunpack.c.l.b16 %v339
      %v1320 = vunpack.c.l.b16 %v340
      %v1321 = vunpack.c.l.b16 %v341
      %v1322 = vunpack.c.l.b16 %v342
      %v1323 = vunpack.c.l.b16 %v343
      %v1324 = vunpack.c.l.b16 %v344
      %v1325 = vunpack.c.l.b16 %v345
      %v1326 = vunpack.c.l.b16 %v346
      %v1327 = vunpack.c.l.b16 %v347
      %v1328 = vunpack.c.l.b16 %v348
      %v1329 = vunpack.c.l.b16 %v349
      %v1330 = vunpack.c.l.b16 %v350
      %v1331 = vunpack.c.l.b16 %v351
      %v1332 = vunpack.c.l.b16 %v352
      %v1333 = vunpack.c.l.b16 %v353
      %v1334 = vunpack.c.l.b16 %v354
      %v1335 = vunpack.c.l.b16 %v355
      %v1336 = vunpack.c.l.b16 %v356
      %v1337 = vunpack.c.l.b16 %v357
      %v1338 = vunpack.c.l.b16 %v358
      %v1339 = vunpack.c.l.b16 %v359
      %v1340 = vunpack.c.l.b16 %v360
      %v1341 = vunpack.c.l.b16 %v361
      %v1342 = vunpack.c.l.b16 %v362
      %v1343 = vunpack.c.l.b16 %v363
      %v1344 = vunpack.c.l.b16 %v364
      %v1345 = vunpack.c.l.b16 %v365
      %v1346 = vunpack.c.l.b16 %v366
      %v1347 = vunpack.c.l.b16 %v367
      %v1348 = vunpack.c.l.b16 %v368
      %v1349 = vunpack.c.l.b16 %v369
      %v1350 = vunpack.c.l.b16 %v370
      %v1351 = vunpack.c.l.b16 %v371
      %v1352 = vunpack.c.l.b16 %v372
      %v1353 = vunpack.c.l.b16 %v373
      %v1354 = vunpack.c.l.b16 %v374
      %v1355 = vunpack.c.l.b16 %v375
      %v1356 = vunpack.c.l.b16 %v376
      %v1357 = vunpack.c.l.b16 %v377
      %v1358 = vunpack.c.l.b16 %v378
      %v1359 = vunpack.c.l.b16 %v379
      %v1360 = vunpack.c.l.b16 %v380
      %v1361 = vunpack.c.l.b16 %v381
      %v1362 = vunpack.c.l.b16 %v382
      %v1363 = vunpack.c.l.b16 %v383
      %v1364 = vunpack.c.l.b16 %v384
      %v1365 = vunpack.c.l.b16 %v385
      %v1366 = vunpack.c.l.b16 %v386
      %v1367 = vunpack.c.l.b16 %v387
      %v1368 = vunpack.c.l.b16 %v388
      %v1369 = vunpack.c.l.b16 %v389
      %v1370 = vunpack.c.l.b16 %v390
      %v1371 = vunpack.c.l.b16 %v391
      %v1372 = vunpack.c.l.b16 %v392
      %v1373 = vunpack.c.l.b16 %v393
      %v1374 = vunpack.c.l.b16 %v394
      %v1375 = vunpack.c.l.b16 %v395
      %v1376 = vunpack.c.l.b16 %v396
      %v1377 = vunpack.c.l.b16 %v397
      %v1378 = vunpack.c.l.b16 %v398
      %v1379 = vunpack.c.l.b16 %v399
      %v1380 = vunpack.c.l.b16 %v400
      %v1381 = vunpack.c.l.b16 %v401
      %v1382 = vunpack.c.l.b16 %v402
      %v1383 = vunpack.c.l.b16 %v403
      %v1384 = vunpack.c.l.b16 %v404
      %v1385 = vunpack.c.l.b16 %v405
      %v1386 = vunpack.c.l.b16 %v406
      %v1387 = vunpack.c.l.b16 %v407
      %v1388 = vunpack.c.l.b16 %v408
      %v1389 = vunpack.c.l.b16 %v409
      %v1390 = vunpack.c.l.b16 %v410
      %v1391 = vunpack.c.l.b16 %v411
      %v1392 = vunpack.c.l.b16 %v412
      %v1393 = vunpack.c.l.b16 %v413
      %v1394 = vunpack.c.l.b16 %v414
      %v1395 = vunpack.c.l.b16 %v415
      %v1396 = vunpack.c.l.b16 %v416
      %v1397 = vunpack.c.l.b16 %v417
      %v1398 = vunpack.c.l.b16 %v418
      %v1399 = vunpack.c.l.b16 %v419
      %v1400 = vunpack.c.l.b16 %v420
      %v1401 = vunpack.c.l.b16 %v421
      %v1402 = vunpack.c.l.b16 %v422
      %v1403 = vunpack.c.l.b16 %v423
      %v1404 = vunpack.c.l.b16 %v424
      %v1405 = vunpack.c.l.b16 %v425
      %v1406 = vunpack.c.l.b16 %v426
      %v1407 = vunpack.c.l.b16 %v427
      %v1408 = vunpack.c.l.b16 %v428
      %v1409 = vunpack.c.l.b16 %v429
      %v1410 = vunpack.c.l.b16 %v430
      %v1411 = vunpack.c.l.b16 %v431
      %v1412 = vunpack.c.l.b16 %v432
      %v1413 = vunpack.c.l.b16 %v433
      %v1414 = vunpack.c.l.b16 %v434
      %v1415 = vunpack.c.l.b16 %v435
      %v1416 = vunpack.c.l.b16 %v436
      %v1417 = vunpack.c.l.b16 %v437
      %v1418 = vunpack.c.l.b16 %v438
      %v1419 = vunpack.c.l.b16 %v439
      %v1420 = vunpack.c.l.b16 %v440
      %v1421 = vunpack.c.l.b16 %v441
      %v1422 = vunpack.c.l.b16 %v442
      %v1423 = vunpack.c.l.b16 %v443
      %v1424 = vunpack.c.l.b16 %v444
      %v1425 = vunpack.c.l.b16 %v445
      %v1426 = vunpack.c.l.b16 %v446
      %v1427 = vunpack.c.l.b16 %v447
      %v1428 = vunpack.c.l.b16 %v448
      %v1429 = vunpack.c.l.b16 %v449
      %v1430 = vunpack.c.l.b16 %v450
      %v1431 = vunpack.c.l.b16 %v451
      %v1432 = vunpack.c.l.b16 %v452
      %v1433 = vunpack.c.l.b16 %v453
      %v1434 = vunpack.c.l.b16 %v454
      %v1435 = vunpack.c.l.b16 %v455
      %v1436 = vunpack.c.l.b16 %v456
      %v1437 = vunpack.c.l.b16 %v457
      %v1438 = vunpack.c.l.b16 %v458
      %v1439 = vunpack.c.l.b16 %v459
      %v1440 = vunpack.c.l.b16 %v460
      %v1441 = vunpack.c.l.b16 %v461
      %v1442 = vunpack.c.l.b16 %v462
      %v1443 = vunpack.c.l.b16 %v463
      %v1444 = vunpack.c.l.b16 %v464
      %v1445 = vunpack.c.l.b16 %v465
      %v1446 = vunpack.c.l.b16 %v466
      %v1447 = vunpack.c.l.b16 %v467
      %v1448 = vunpack.c.l.b16 %v468
      %v1449 = vunpack.c.l.b16 %v469
      %v1450 = vunpack.c.l.b16 %v470
      %v1451 = vunpack.c.l.b16 %v471
      %v1452 = vunpack.c.l.b16 %v472
      %v1453 = vunpack.c.l.b16 %v473
      %v1454 = vunpack.c.l.b16 %v474
      %v1455 = vunpack.c.l.b16 %v475
      %v1456 = vunpack.c.l.b16 %v476
      %v1457 = vunpack.c.l.b16 %v477
      %v1458 = vunpack.c.l.b16 %v478
      %v1459 = vunpack.c.l.b16 %v479
      %v1460 = vunpack.c.l.b16 %v480
      %v1461 = vunpack.c.l.b16 %v481
      %v1462 = vunpack.c.l.b16 %v482
      %v1463 = vunpack.c.l.b16 %v483
      %v1464 = vunpack.c.l.b16 %v484
      %v1465 = vunpack.c.l.b16 %v485
      %v1466 = vunpack.c.l.b16 %v486
      %v1467 = vunpack.c.l.b16 %v487
      %v1468 = vunpack.c.l.b16 %v488
      %v1469 = vunpack.c.l.b16 %v489
      %v1470 = vunpack.c.l.b16 %v490
      %v1471 = vunpack.c.l.b16 %v491
      %v1472 = vunpack.c.l.b16 %v492
      %v1473 = vunpack.c.l.b16 %v493
      %v1474 = vunpack.c.l.b16 %v494
      %v1475 = vunpack.c.l.b16 %v495
      %v1476 = vunpack.c.l.b16 %v496
      %v1477 = vunpack.c.l.b16 %v497
      %v1478 = vunpack.c.l.b16 %v498
      %v1479 = vunpack.c.l.b16 %v499
      %v1480 = vunpack.c.l.b16 %v500
      %v1481 = vunpack.c.l.b16 %v501
      %v1482 = vunpack.c.l.b16 %v502
      %v1483 = vunpack.c.l.b16 %v503
      %v1484 = vunpack.c.l.b16 %v504
      %v1485 = vunpack.c.l.b16 %v505
      %v1486 = vunpack.c.l.b16 %v506
      %v1487 = vunpack.c.l.b16 %v507
      %v1488 = vunpack.c.l.b16 %v508
      %v1489 = vunpack.c.l.b16 %v509
      %v1490 = vunpack.c.l.b16 %v510
      %v1491 = vunpack.c.l.b16 %v511
      %v1492 = vunpack.c.l.b16 %v512
      %v1493 = vunpack.c.l.b16 %v513
      %v1494 = vunpack.c.l.b16 %v514
      %v1495 = vunpack.c.l.b16 %v515
      %v1496 = vunpack.c.l.b16 %v516
      %v1497 = vunpack.c.l.b16 %v517
      %v1498 = vunpack.c.l.b16 %v518
      %v1499 = vunpack.c.l.b16 %v519
      %v1500 = vunpack.c.l.b16 %v520
      %v1501 = vunpack.c.l.b16 %v521
      %v1502 = vunpack.c.l.b16 %v522
      %v1503 = vunpack.c.l.b16 %v523
      %v1504 = vunpack.c.l.b16 %v524
      %v1505 = vunpack.c.l.b16 %v525
      %v1506 = vunpack.c.l.b16 %v526
      %v1507 = vunpack.c.l.b16 %v527
      %v1508 = vunpack.c.l.b16 %v528
      %v1509 = vunpack.c.l.b16 %v529
      %v1510 = vunpack.c.l.b16 %v530
      %v1511 = vunpack.c.l.b16 %v531
      %v1512 = vunpack.c.l.b16 %v532
      %v1513 = vunpack.c.l.b16 %v533
      %v1514 = vunpack.c.l.b16 %v534
      %v1515 = vunpack.c.l.b16 %v535
      %v1516 = vunpack.c.l.b16 %v536
      %v1517 = vunpack.c.l.b16 %v537
      %v1518 = vunpack.c.l.b16 %v538
      %v1519 = vunpack.c.l.b16 %v539
      %v1520 = vunpack.c.l.b16 %v540
      %v1521 = vunpack.c.l.b16 %v541
      %v1522 = vunpack.c.l.b16 %v542
      %v1523 = vunpack.c.l.b16 %v543
      %v1524 = vunpack.c.l.b16 %v544
      %v1525 = vunpack.c.l.b16 %v545
      %v1526 = vunpack.c.l.b16 %v546
      %v1527 = vunpack.c.l.b16 %v547
      %v1528 = vunpack.c.l.b16 %v548
      %v1529 = vunpack.c.l.b16 %v549
      %v1530 = vunpack.c.l.b16 %v550
      %v1531 = vunpack.c.l.b16 %v551
      %v1532 = vunpack.c.l.b16 %v552
      %v1533 = vunpack.c.l.b16 %v553
      %v1534 = vunpack.c.l.b16 %v554
      %v1535 = vunpack.c.l.b16 %v555
      %v1536 = vunpack.c.l.b16 %v556
      %v1537 = vunpack.c.l.b16 %v557
      %v1538 = vunpack.c.l.b16 %v558
      %v1539 = vunpack.c.l.b16 %v559
      %v1540 = vunpack.c.l.b16 %v560
      %v1541 = vunpack.c.l.b16 %v561
      %v1542 = vunpack.c.l.b16 %v562
      %v1543 = vunpack.c.l.b16 %v563
      %v1544 = vunpack.c.l.b16 %v564
      %v1545 = vunpack.c.l.b16 %v565
      %v1546 = vunpack.c.l.b16 %v566
      %v1547 = vunpack.c.l.b16 %v567
      %v1548 = vunpack.c.l.b16 %v568
      %v1549 = vunpack.c.l.b16 %v569
      %v1550 = vunpack.c.l.b16 %v570
      %v1551 = vunpack.c.l.b16 %v571
      %v1552 = vunpack.c.l.b16 %v572
      %v1553 = vunpack.c.l.b16 %v573
      %v1554 = vunpack.c.l.b16 %v574
      %v1555 = vunpack.c.l.b16 %v575
      %v1556 = vunpack.c.l.b16 %v576
      %v1557 = vunpack.c.l.b16 %v577
      %v1558 = vunpack.c.l.b16 %v578
      %v1559 = vunpack.c.l.b16 %v579
      %v1560 = vunpack.c.l.b16 %v580
      %v1561 = vunpack.c.l.b16 %v581
      %v1562 = vunpack.c.l.b16 %v582
      %v1563 = vunpack.c.l.b16 %v583
      %v1564 = vunpack.c.l.b16 %v584
      %v1565 = vunpack.c.l.b16 %v585
      %v1566 = vunpack.c.l.b16 %v586
      %v1567 = vunpack.c.l.b16 %v587
      %v1568 = vunpack.c.l.b16 %v588
      %v1569 = vunpack.c.l.b16 %v589
      %v1570 = vunpack.c.l.b16 %v590
      %v1571 = vunpack.c.l.b16 %v591
      %v1572 = vunpack.c.l.b16 %v592
      %v1573 = vunpack.c.l.b16 %v593
      %v1574 = vunpack.c.l.b16 %v594
      %v1575 = vunpack.c.l.b16 %v595
      %v1576 = vunpack.c.l.b16 %v596
      %v1577 = vunpack.c.l.b16 %v597
      %v1578 = vunpack.c.l.b16 %v598
      %v1579 = vunpack.c.l.b16 %v599
      %v1580 = vunpack.c.l.b16 %v600
      %v1581 = vunpack.c.l.b16 %v601
      %v1582 = vunpack.c.l.b16 %v602
      %v1583 = vunpack.c.l.b16 %v603
      %v1584 = vunpack.c.l.b16 %v604
      %v1585 = vunpack.c.l.b16 %v605
      %v1586 = vunpack.c.l.b16 %v606
      %v1587 = vunpack.c.l.b16 %v607
      %v1588 = vunpack.c.l.b16 %v608
      %v1589 = vunpack.c.l.b16 %v609
      %v1590 = vunpack.c.l.b16 %v610
      %v1591 = vunpack.c.l.b16 %v611
      %v1592 = vunpack.c.l.b16 %v612
      %v1593 = vunpack.c.l.b16 %v613
      %v1594 = vunpack.c.l.b16 %v614
      %v1595 = vunpack.c.l.b16 %v615
      %v1596 = vunpack.c.l.b16 %v616
      %v1597 = vunpack.c.l.b16 %v617
      %v1598 = vunpack.c.l.b16 %v618
      %v1599 = vunpack.c.l.b16 %v619
      %v1600 = vunpack.c.l.b16 %v620
      %v1601 = vunpack.c.l.b16 %v621
      %v1602 = vunpack.c.l.b16 %v622
      %v1603 = vunpack.c.l.b16 %v623
      %v1604 = vunpack.c.l.b16 %v624
      %v1605 = vunpack.c.l.b16 %v625
      %v1606 = vunpack.c.l.b16 %v626
      %v1607 = vpack.c.b16 %v1216, %v1215
      %v1608 = vpack.c.b16 %v1218, %v1217
      %v1609 = vpack.c.b16 %v1220, %v1219
      %v1610 = vpack.c.b16 %v1222, %v1221
      %v1611 = vpack.c.b16 %v1224, %v1223
      %v1612 = vpack.c.b16 %v1226, %v1225
      %v1613 = vpack.c.b16 %v1228, %v1227
      %v1614 = vpack.c.b16 %v1230, %v1229
      %v1615 = vpack.c.b16 %v1232, %v1231
      %v1616 = vpack.c.b16 %v1234, %v1233
      %v1617 = vpack.c.b16 %v1236, %v1235
      %v1618 = vpack.c.b16 %v1238, %v1237
      %v1619 = vpack.c.b16 %v1240, %v1239
      %v1620 = vpack.c.b16 %v1242, %v1241
      %v1621 = vpack.c.b16 %v1244, %v1243
      %v1622 = vpack.c.b16 %v1246, %v1245
      %v1623 = vpack.c.b16 %v1248, %v1247
      %v1624 = vpack.c.b16 %v1250, %v1249
      %v1625 = vpack.c.b16 %v1252, %v1251
      %v1626 = vpack.c.b16 %v1254, %v1253
      %v1627 = vpack.c.b16 %v1256, %v1255
      %v1628 = vpack.c.b16 %v1258, %v1257
      %v1629 = vpack.c.b16 %v1260, %v1259
      %v1630 = vpack.c.b16 %v1262, %v1261
      %v1631 = vpack.c.b16 %v1264, %v1263
      %v1632 = vpack.c.b16 %v1266, %v1265
      %v1633 = vpack.c.b16 %v1268, %v1267
      %v1634 = vpack.c.b16 %v1270, %v1269
      %v1635 = vpack.c.b16 %v1272, %v1271
      %v1636 = vpack.c.b16 %v1274, %v1273
      %v1637 = vpack.c.b16 %v1276, %v1275
      %v1638 = vpack.c.b16 %v1278, %v1277
      %v1639 = vpack.c.b16 %v1280, %v1279
      %v1640 = vpack.c.b16 %v1282, %v1281
      %v1641 = vpack.c.b16 %v1284, %v1283
      %v1642 = vpack.c.b16 %v1286, %v1285
      %v1643 = vpack.c.b16 %v1288, %v1287
      %v1644 = vpack.c.b16 %v1290, %v1289
      %v1645 = vpack.c.b16 %v1292, %v1291
      %v1646 = vpack.c.b16 %v1294, %v1293
      %v1647 = vpack.c.b16 %v1296, %v1295
      %v1648 = vpack.c.b16 %v1298, %v1297
      %v1649 = vpack.c.b16 %v1300, %v1299
      %v1650 = vpack.c.b16 %v1302, %v1301
      %v1651 = vpack.c.b16 %v1304, %v1303
      %v1652 = vpack.c.b16 %v1306, %v1305
      %v1653 = vpack.c.b16 %v1308, %v1307
      %v1654 = vpack.c.b16 %v1310, %v1309
      %v1655 = vpack.c.b16 %v1312, %v1311
      %v1656 = vpack.c.b16 %v1314, %v1313
      %v1657 = vpack.c.b16 %v1316, %v1315
      %v1658 = vpack.c.b16 %v1318, %v1317
      %v1659 = vpack.c.b16 %v1320, %v1319
      %v1660 = vpack.c.b16 %v1322, %v1321
      %v1661 = vpack.c.b16 %v1324, %v1323
      %v1662 = vpack.c.b16 %v1326, %v1325
      %v1663 = vpack.c.b16 %v1328, %v1327
      %v1664 = vpack.c.b16 %v1330, %v1329
      %v1665 = vpack.c.b16 %v1332, %v1331
      %v1666 = vpack.c.b16 %v1334, %v1333
      %v1667 = vpack.c.b16 %v1336, %v1335
      %v1668 = vpack.c.b16 %v1338, %v1337
      %v1669 = vpack.c.b16 %v1340, %v1339
      %v1670 = vpack.c.b16 %v1342, %v1341
      %v1671 = vpack.c.b16 %v1344, %v1343
      %v1672 = vpack.c.b16 %v1346, %v1345
      %v1673 = vpack.c.b16 %v1348, %v1347
      %v1674 = vpack.c.b16 %v1350, %v1349
      %v1675 = vpack.c.b16 %v1352, %v1351
      %v1676 = vpack.c.b16 %v1354, %v1353
      %v1677 = vpack.c.b16 %v1356, %v1355
      %v1678 = vpack.c.b16 %v1358, %v1357
      %v1679 = vpack.c.b16 %v1360, %v1359
      %v1680 = vpack.c.b16 %v1362, %v1361
      %v1681 = vpack.c.b16 %v1364, %v1363
      %v1682 = vpack.c.b16 %v1366, %v1365
      %v1683 = vpack.c.b16 %v1368, %v1367
      %v1684 = vpack.c.b16 %v1370, %v1369
      %v1685 = vpack.c.b16 %v1372, %v1371
      %v1686 = vpack.c.b16 %v1374, %v1373
      %v1687 = vpack.c.b16 %v1376, %v1375
      %v1688 = vpack.c.b16 %v1378, %v1377
      %v1689 = vpack.c.b16 %v1380, %v1379
      %v1690 = vpack.c.b16 %v1382, %v1381
      %v1691 = vpack.c.b16 %v1384, %v1383
      %v1692 = vpack.c.b16 %v1386, %v1385
      %v1693 = vpack.c.b16 %v1388, %v1387
      %v1694 = vpack.c.b16 %v1390, %v1389
      %v1695 = vpack.c.b16 %v1392, %v1391
      %v1696 = vpack.c.b16 %v1394, %v1393
      %v1697 = vpack.c.b16 %v1396, %v1395
      %v1698 = vpack.c.b16 %v1398, %v1397
      %v1699 = vpack.c.b16 %v1400, %v1399
      %v1700 = vpack.c.b16 %v1402, %v1401
      %v1701 = vpack.c.b16 %v1404, %v1403
      %v1702 = vpack.c.b16 %v1406, %v1405
      %v1703 = vpack.c.b16 %v1408, %v1407
      %v1704 = vpack.c.b16 %v1410, %v1409
      %v1705 = vpack.c.b16 %v1412, %v1411
      %v1706 = vpack.c.b16 %v1414, %v1413
      %v1707 = vpack.c.b16 %v1416, %v1415
      %v1708 = vpack.c.b16 %v1418, %v1417
      %v1709 = vpack.c.b16 %v1420, %v1419
      %v1710 = vpack.c.b16 %v1422, %v1421
      %v1711 = vpack.c.b16 %v1424, %v1423
      %v1712 = vpack.c.b16 %v1426, %v1425
      %v1713 = vpack.c.b16 %v1428, %v1427
      %v1714 = vpack.c.b16 %v1430, %v1429
      %v1715 = vpack.c.b16 %v1432, %v1431
      %v1716 = vpack.c.b16 %v1434, %v1433
      %v1717 = vpack.c.b16 %v1436, %v1435
      %v1718 = vpack.c.b16 %v1438, %v1437
      %v1719 = vpack.c.b16 %v1440, %v1439
      %v1720 = vpack.c.b16 %v1442, %v1441
      %v1721 = vpack.c.b16 %v1444, %v1443
      %v1722 = vpack.c.b16 %v1446, %v1445
      %v1723 = vpack.c.b16 %v1448, %v1447
      %v1724 = vpack.c.b16 %v1450, %v1449
      %v1725 = vpack.c.b16 %v1452, %v1451
      %v1726 = vpack.c.b16 %v1454, %v1453
      %v1727 = vpack.c.b16 %v1456, %v1455
      %v1728 = vpack.c.b16 %v1458, %v1457
      %v1729 = vpack.c.b16 %v1460, %v1459
      %v1730 = vpack.c.b16 %v1462, %v1461
      %v1731 = vpack.c.b16 %v1464, %v1463
      %v1732 = vpack.c.b16 %v1466, %v1465
      %v1733 = vpack.c.b16 %v1468, %v1467
      %v1734 = vpack.c.b16 %v1470, %v1469
      %v1735 = vpack.c.b16 %v1472, %v1471
      %v1736 = vpack.c.b16 %v1474, %v1473
      %v1737 = vpack.c.b16 %v1476, %v1475
      %v1738 = vpack.c.b16 %v1478, %v1477
      %v1739 = vpack.c.b16 %v1480, %v1479
      %v1740 = vpack.c.b16 %v1482, %v1481
      %v1741 = vpack.c.b16 %v1484, %v1483
      %v1742 = vpack.c.b16 %v1486, %v1485
      %v1743 = vpack.c.b16 %v1488, %v1487
      %v1744 = vpack.c.b16 %v1490, %v1489
      %v1745 = vpack.c.b16 %v1492, %v1491
      %v1746 = vpack.c.b16 %v1494, %v1493
      %v1747 = vpack.c.b16 %v1496, %v1495
      %v1748 = vpack.c.b16 %v1498, %v1497
      %v1749 = vpack.c.b16 %v1500, %v1499
      %v1750 = vpack.c.b16 %v1502, %v1501
      %v1751 = vpack.c.b16 %v1504, %v1503
      %v1752 = vpack.c.b16 %v1506, %v1505
      %v1753 = vpack.c.b16 %v1508, %v1507
      %v1754 = vpack.c.b16 %v1510, %v1509
      %v1755 = vpack.c.b16 %v1512, %v1511
      %v1756 = vpack.c.b16 %v1514, %v1513
      %v1757 = vpack.c.b16 %v1516, %v1515
      %v1758 = vpack.c.b16 %v1518, %v1517
      %v1759 = vpack.c.b16 %v1520, %v1519
      %v1760 = vpack.c.b16 %v1522, %v1521
      %v1761 = vpack.c.b16 %v1524, %v1523
      %v1762 = vpack.c.b16 %v1526, %v1525
      %v1763 = vpack.c.b16 %v1528, %v1527
      %v1764 = vpack.c.b16 %v1530, %v1529
      %v1765 = vpack.c.b16 %v1532, %v1531
      %v1766 = vpack.c.b16 %v1534, %v1533
      %v1767 = vpack.c.b16 %v1536, %v1535
      %v1768 = vpack.c.b16 %v1538, %v1537
      %v1769 = vpack.c.b16 %v1540, %v1539
      %v1770 = vpack.c.b16 %v1542, %v1541
      %v1771 = vpack.c.b16 %v1544, %v1543
      %v1772 = vpack.c.b16 %v1546, %v1545
      %v1773 = vpack.c.b16 %v1548, %v1547
      %v1774 = vpack.c.b16 %v1550, %v1549
      %v1775 = vpack.c.b16 %v1552, %v1551
      %v1776 = vpack.c.b16 %v1554, %v1553
      %v1777 = vpack.c.b16 %v1556, %v1555
      %v1778 = vpack.c.b16 %v1558, %v1557
      %v1779 = vpack.c.b16 %v1560, %v1559
      %v1780 = vpack.c.b16 %v1562, %v1561
      %v1781 = vpack.c.b16 %v1564, %v1563
      %v1782 = vpack.c.b16 %v1566, %v1565
      %v1783 = vpack.c.b16 %v1568, %v1567
      %v1784 = vpack.c.b16 %v1570, %v1569
      %v1785 = vpack.c.b16 %v1572, %v1571
      %v1786 = vpack.c.b16 %v1574, %v1573
      %v1787 = vpack.c.b16 %v1576, %v1575
      %v1788 = vpack.c.b16 %v1578, %v1577
      %v1789 = vpack.c.b16 %v1580, %v1579
      %v1790 = vpack.c.b16 %v1582, %v1581
      %v1791 = vpack.c.b16 %v1584, %v1583
      %v1792 = vpack.c.b16 %v1586, %v1585
      %v1793 = vpack.c.b16 %v1588, %v1587
      %v1794 = vpack.c.b16 %v1590, %v1589
      %v1795 = vpack.c.b16 %v1592, %v1591
      %v1796 = vpack.c.b16 %v1594, %v1593
      %v1797 = vpack.c.b16 %v1596, %v1595
      %v1798 = vpack.c.b16 %v1598, %v1597
      %v1799 = vpack.c.b16 %v1600, %v1599
      %v1800 = vpack.c.b16 %v1602, %v1601
      %v1801 = vpack.c.b16 %v1604, %v1603
      %v1802 = vpack.c.b16 %v1606, %v1605
      %vm1999 = vcmask 523264
      %v2001 = vsel %vm1999, %v798, 0
      %2003 = vmatprep.subr.bf16.mxu0 0
      %2004 = vmatpush1.bf16.msra.mxu0 %v1614
      %2005 = vmatprep.subr.bf16.mxu0 0
      %2006 = vmatpush1.bf16.msra.mxu0 %v1613
      %2007 = vmatprep.subr.bf16.mxu0 0
      %2008 = vmatpush1.bf16.msra.mxu0 %v1612
      %2009 = vmatprep.subr.bf16.mxu0 0
      %2010 = vmatpush1.bf16.msra.mxu0 %v1611
      %2011 = vmatprep.subr.bf16.mxu0 0
      %2012 = vmatpush1.bf16.msra.mxu0 %v1610
      %2013 = vmatprep.subr.bf16.mxu0 0
      %2014 = vmatpush1.bf16.msra.mxu0 %v1609
      %2015 = vmatprep.subr.bf16.mxu0 0
      %2016 = vmatpush1.bf16.msra.mxu0 %v1608
      %2017 = vmatprep.subr.bf16.mxu0 0
      %2018 = vmatpush1.bf16.msra.mxu0 %v1607
      %2019 = vmatprep.subr.bf16.mxu0 0
      %2020 = vmatpush2.bf16.msra.mxu0 %v1622
      %2021 = vmatprep.subr.bf16.mxu0 0
      %2022 = vmatpush2.bf16.msra.mxu0 %v1621
      %2023 = vmatprep.subr.bf16.mxu0 0
      %2024 = vmatpush2.bf16.msra.mxu0 %v1620
      %2025 = vmatprep.subr.bf16.mxu0 0
      %2026 = vmatpush2.bf16.msra.mxu0 %v1619
      %2027 = vmatprep.subr.bf16.mxu0 0
      %2028 = vmatpush2.bf16.msra.mxu0 %v1618
      %2029 = vmatprep.subr.bf16.mxu0 0
      %2030 = vmatpush2.bf16.msra.mxu0 %v1617
      %2031 = vmatprep.subr.bf16.mxu0 0
      %2032 = vmatpush2.bf16.msra.mxu0 %v1616
      %2033 = vmatprep.subr.bf16.mxu0 0
      %2034 = vmatpush2.bf16.msra.mxu0 %v1615
      %2035 = vmatprep.mubr.bf16.mxu0 %v675
      %2036 = vmatmul.mubr.bf16.gmra.mxu0 %v661
      %v2037 = vpop.f32.mrf.mxu0
      %v2038 = vadd.f32 %v632, %v2037
      %v2039 = vpop.f32.mrf.mxu0
      %v2040 = vpop.f32.mrf.mxu0
      %v2041 = vpop.f32.mrf.mxu0
      %2042 = vdwg.mxu0
      %2043 = vmatprep.subr.bf16.mxu0 0
      %2044 = vmatpush1.bf16.msra.mxu0 %v1630
      %2045 = vmatprep.subr.bf16.mxu0 0
      %2046 = vmatpush1.bf16.msra.mxu0 %v1629
      %2047 = vmatprep.subr.bf16.mxu0 0
      %2048 = vmatpush1.bf16.msra.mxu0 %v1628
      %2049 = vmatprep.subr.bf16.mxu0 0
      %2050 = vmatpush1.bf16.msra.mxu0 %v1627
      %2051 = vmatprep.subr.bf16.mxu0 0
      %2052 = vmatpush1.bf16.msra.mxu0 %v1626
      %2053 = vmatprep.subr.bf16.mxu0 0
      %2054 = vmatpush1.bf16.msra.mxu0 %v1625
      %2055 = vmatprep.subr.bf16.mxu0 0
      %2056 = vmatpush1.bf16.msra.mxu0 %v1624
      %2057 = vmatprep.subr.bf16.mxu0 0
      %2058 = vmatpush1.bf16.msra.mxu0 %v1623
      %2059 = vmatprep.subr.bf16.mxu0 0
      %2060 = vmatpush2.bf16.msra.mxu0 %v1638
      %2061 = vmatprep.subr.bf16.mxu0 0
      %2062 = vmatpush2.bf16.msra.mxu0 %v1637
      %2063 = vmatprep.subr.bf16.mxu0 0
      %2064 = vmatpush2.bf16.msra.mxu0 %v1636
      %2065 = vmatprep.subr.bf16.mxu0 0
      %2066 = vmatpush2.bf16.msra.mxu0 %v1635
      %2067 = vmatprep.subr.bf16.mxu0 0
      %2068 = vmatpush2.bf16.msra.mxu0 %v1634
      %2069 = vmatprep.subr.bf16.mxu0 0
      %2070 = vmatpush2.bf16.msra.mxu0 %v1633
      %2071 = vmatprep.subr.bf16.mxu0 0
      %2072 = vmatpush2.bf16.msra.mxu0 %v1632
      %2073 = vmatprep.subr.bf16.mxu0 0
      %2074 = vmatpush2.bf16.msra.mxu0 %v1631
      %2075 = vmatprep.mubr.bf16.mxu0 %v685
      %2076 = vmatmul.mubr.bf16.gmra.mxu0 %v683
      %v2077 = vpop.f32.mrf.mxu0
      %v2078 = vadd.f32 %v2038, %v2077
      %v2079 = vpop.f32.mrf.mxu0
      %v2080 = vpop.f32.mrf.mxu0
      %v2081 = vpop.f32.mrf.mxu0
      %2082 = vdwg.mxu0
      %2083 = vmatprep.subr.bf16.mxu0 0
      %2084 = vmatpush1.bf16.msra.mxu0 %v1646
      %2085 = vmatprep.subr.bf16.mxu0 0
      %2086 = vmatpush1.bf16.msra.mxu0 %v1645
      %2087 = vmatprep.subr.bf16.mxu0 0
      %2088 = vmatpush1.bf16.msra.mxu0 %v1644
      %2089 = vmatprep.subr.bf16.mxu0 0
      %2090 = vmatpush1.bf16.msra.mxu0 %v1643
      %2091 = vmatprep.subr.bf16.mxu0 0
      %2092 = vmatpush1.bf16.msra.mxu0 %v1642
      %2093 = vmatprep.subr.bf16.mxu0 0
      %2094 = vmatpush1.bf16.msra.mxu0 %v1641
      %2095 = vmatprep.subr.bf16.mxu0 0
      %2096 = vmatpush1.bf16.msra.mxu0 %v1640
      %2097 = vmatprep.subr.bf16.mxu0 0
      %2098 = vmatpush1.bf16.msra.mxu0 %v1639
      %2099 = vmatprep.subr.bf16.mxu0 0
      %2100 = vmatpush2.bf16.msra.mxu0 %v1654
      %2101 = vmatprep.subr.bf16.mxu0 0
      %2102 = vmatpush2.bf16.msra.mxu0 %v1653
      %2103 = vmatprep.subr.bf16.mxu0 0
      %2104 = vmatpush2.bf16.msra.mxu0 %v1652
      %2105 = vmatprep.subr.bf16.mxu0 0
      %2106 = vmatpush2.bf16.msra.mxu0 %v1651
      %2107 = vmatprep.subr.bf16.mxu0 0
      %2108 = vmatpush2.bf16.msra.mxu0 %v1650
      %2109 = vmatprep.subr.bf16.mxu0 0
      %2110 = vmatpush2.bf16.msra.mxu0 %v1649
      %2111 = vmatprep.subr.bf16.mxu0 0
      %2112 = vmatpush2.bf16.msra.mxu0 %v1648
      %2113 = vmatprep.subr.bf16.mxu0 0
      %2114 = vmatpush2.bf16.msra.mxu0 %v1647
      %2115 = vmatprep.mubr.bf16.mxu0 %v682
      %2116 = vmatmul.mubr.bf16.gmra.mxu0 %v668
      %v2117 = vpop.f32.mrf.mxu0
      %v2118 = vadd.f32 %v2078, %v2117
      %v2119 = vpop.f32.mrf.mxu0
      %v2120 = vpop.f32.mrf.mxu0
      %v2121 = vpop.f32.mrf.mxu0
      %2122 = vdwg.mxu0
      %2123 = vmatprep.subr.bf16.mxu0 0
      %2124 = vmatpush1.bf16.msra.mxu0 %v1662
      %2125 = vmatprep.subr.bf16.mxu0 0
      %2126 = vmatpush1.bf16.msra.mxu0 %v1661
      %2127 = vmatprep.subr.bf16.mxu0 0
      %2128 = vmatpush1.bf16.msra.mxu0 %v1660
      %2129 = vmatprep.subr.bf16.mxu0 0
      %2130 = vmatpush1.bf16.msra.mxu0 %v1659
      %2131 = vmatprep.subr.bf16.mxu0 0
      %2132 = vmatpush1.bf16.msra.mxu0 %v1658
      %2133 = vmatprep.subr.bf16.mxu0 0
      %2134 = vmatpush1.bf16.msra.mxu0 %v1657
      %2135 = vmatprep.subr.bf16.mxu0 0
      %2136 = vmatpush1.bf16.msra.mxu0 %v1656
      %2137 = vmatprep.subr.bf16.mxu0 0
      %2138 = vmatpush1.bf16.msra.mxu0 %v1655
      %2139 = vmatprep.subr.bf16.mxu0 0
      %2140 = vmatpush2.bf16.msra.mxu0 %v1670
      %2141 = vmatprep.subr.bf16.mxu0 0
      %2142 = vmatpush2.bf16.msra.mxu0 %v1669
      %2143 = vmatprep.subr.bf16.mxu0 0
      %2144 = vmatpush2.bf16.msra.mxu0 %v1668
      %2145 = vmatprep.subr.bf16.mxu0 0
      %2146 = vmatpush2.bf16.msra.mxu0 %v1667
      %2147 = vmatprep.subr.bf16.mxu0 0
      %2148 = vmatpush2.bf16.msra.mxu0 %v1666
      %2149 = vmatprep.subr.bf16.mxu0 0
      %2150 = vmatpush2.bf16.msra.mxu0 %v1665
      %2151 = vmatprep.subr.bf16.mxu0 0
      %2152 = vmatpush2.bf16.msra.mxu0 %v1664
      %2153 = vmatprep.subr.bf16.mxu0 0
      %2154 = vmatpush2.bf16.msra.mxu0 %v1663
      %2155 = vmatprep.mubr.bf16.mxu0 %v686
      %2156 = vmatmul.mubr.bf16.gmra.mxu0 %v684
      %v2157 = vpop.f32.mrf.mxu0
      %v2158 = vadd.f32 %v2118, %v2157
      %v2159 = vpop.f32.mrf.mxu0
      %v2160 = vpop.f32.mrf.mxu0
      %v2161 = vpop.f32.mrf.mxu0
      %2162 = vdwg.mxu0
      %2163 = vmatprep.subr.bf16.mxu0 0
      %2164 = vmatpush1.bf16.msra.mxu0 %v1678
      %2165 = vmatprep.subr.bf16.mxu0 0
      %2166 = vmatpush1.bf16.msra.mxu0 %v1677
      %2167 = vmatprep.subr.bf16.mxu0 0
      %2168 = vmatpush1.bf16.msra.mxu0 %v1676
      %2169 = vmatprep.subr.bf16.mxu0 0
      %2170 = vmatpush1.bf16.msra.mxu0 %v1675
      %2171 = vmatprep.subr.bf16.mxu0 0
      %2172 = vmatpush1.bf16.msra.mxu0 %v1674
      %2173 = vmatprep.subr.bf16.mxu0 0
      %2174 = vmatpush1.bf16.msra.mxu0 %v1673
      %2175 = vmatprep.subr.bf16.mxu0 0
      %2176 = vmatpush1.bf16.msra.mxu0 %v1672
      %2177 = vmatprep.subr.bf16.mxu0 0
      %2178 = vmatpush1.bf16.msra.mxu0 %v1671
      %2179 = vmatprep.subr.bf16.mxu0 0
      %2180 = vmatpush2.bf16.msra.mxu0 %v1686
      %2181 = vmatprep.subr.bf16.mxu0 0
      %2182 = vmatpush2.bf16.msra.mxu0 %v1685
      %2183 = vmatprep.subr.bf16.mxu0 0
      %2184 = vmatpush2.bf16.msra.mxu0 %v1684
      %2185 = vmatprep.subr.bf16.mxu0 0
      %2186 = vmatpush2.bf16.msra.mxu0 %v1683
      %2187 = vmatprep.subr.bf16.mxu0 0
      %2188 = vmatpush2.bf16.msra.mxu0 %v1682
      %2189 = vmatprep.subr.bf16.mxu0 0
      %2190 = vmatpush2.bf16.msra.mxu0 %v1681
      %2191 = vmatprep.subr.bf16.mxu0 0
      %2192 = vmatpush2.bf16.msra.mxu0 %v1680
      %2193 = vmatprep.subr.bf16.mxu0 0
      %2194 = vmatpush2.bf16.msra.mxu0 %v1679
      %2195 = vmatprep.mubr.bf16.mxu0 %v724
      %2196 = vmatmul.mubr.bf16.gmra.mxu0 %v710
      %v2197 = vpop.f32.mrf.mxu0
      %v2198 = vadd.f32 %v2158, %v2197
      %v2199 = vpop.f32.mrf.mxu0
      %v2200 = vpop.f32.mrf.mxu0
      %v2201 = vpop.f32.mrf.mxu0
      %2202 = vdwg.mxu0
      %2203 = vmatprep.subr.bf16.mxu0 0
      %2204 = vmatpush1.bf16.msra.mxu0 %v1694
      %2205 = vmatprep.subr.bf16.mxu0 0
      %2206 = vmatpush1.bf16.msra.mxu0 %v1693
      %2207 = vmatprep.subr.bf16.mxu0 0
      %2208 = vmatpush1.bf16.msra.mxu0 %v1692
      %2209 = vmatprep.subr.bf16.mxu0 0
      %2210 = vmatpush1.bf16.msra.mxu0 %v1691
      %2211 = vmatprep.subr.bf16.mxu0 0
      %2212 = vmatpush1.bf16.msra.mxu0 %v1690
      %2213 = vmatprep.subr.bf16.mxu0 0
      %2214 = vmatpush1.bf16.msra.mxu0 %v1689
      %2215 = vmatprep.subr.bf16.mxu0 0
      %2216 = vmatpush1.bf16.msra.mxu0 %v1688
      %2217 = vmatprep.subr.bf16.mxu0 0
      %2218 = vmatpush1.bf16.msra.mxu0 %v1687
      %2219 = vmatprep.subr.bf16.mxu0 0
      %2220 = vmatpush2.bf16.msra.mxu0 %v1702
      %2221 = vmatprep.subr.bf16.mxu0 0
      %2222 = vmatpush2.bf16.msra.mxu0 %v1701
      %2223 = vmatprep.subr.bf16.mxu0 0
      %2224 = vmatpush2.bf16.msra.mxu0 %v1700
      %2225 = vmatprep.subr.bf16.mxu0 0
      %2226 = vmatpush2.bf16.msra.mxu0 %v1699
      %2227 = vmatprep.subr.bf16.mxu0 0
      %2228 = vmatpush2.bf16.msra.mxu0 %v1698
      %2229 = vmatprep.subr.bf16.mxu0 0
      %2230 = vmatpush2.bf16.msra.mxu0 %v1697
      %2231 = vmatprep.subr.bf16.mxu0 0
      %2232 = vmatpush2.bf16.msra.mxu0 %v1696
      %2233 = vmatprep.subr.bf16.mxu0 0
      %2234 = vmatpush2.bf16.msra.mxu0 %v1695
      %2235 = vmatprep.mubr.bf16.mxu0 %v734
      %2236 = vmatmul.mubr.bf16.gmra.mxu0 %v732
      %v2237 = vpop.f32.mrf.mxu0
      %v2238 = vadd.f32 %v2198, %v2237
      %v2239 = vpop.f32.mrf.mxu0
      %v2240 = vpop.f32.mrf.mxu0
      %v2241 = vpop.f32.mrf.mxu0
      %2242 = vdwg.mxu0
      %2243 = vmatprep.subr.bf16.mxu0 0
      %2244 = vmatpush1.bf16.msra.mxu0 %v1710
      %2245 = vmatprep.subr.bf16.mxu0 0
      %2246 = vmatpush1.bf16.msra.mxu0 %v1709
      %2247 = vmatprep.subr.bf16.mxu0 0
      %2248 = vmatpush1.bf16.msra.mxu0 %v1708
      %2249 = vmatprep.subr.bf16.mxu0 0
      %2250 = vmatpush1.bf16.msra.mxu0 %v1707
      %2251 = vmatprep.subr.bf16.mxu0 0
      %2252 = vmatpush1.bf16.msra.mxu0 %v1706
      %2253 = vmatprep.subr.bf16.mxu0 0
      %2254 = vmatpush1.bf16.msra.mxu0 %v1705
      %2255 = vmatprep.subr.bf16.mxu0 0
      %2256 = vmatpush1.bf16.msra.mxu0 %v1704
      %2257 = vmatprep.subr.bf16.mxu0 0
      %2258 = vmatpush1.bf16.msra.mxu0 %v1703
      %2259 = vmatprep.subr.bf16.mxu0 0
      %2260 = vmatpush2.bf16.msra.mxu0 %v1718
      %2261 = vmatprep.subr.bf16.mxu0 0
      %2262 = vmatpush2.bf16.msra.mxu0 %v1717
      %2263 = vmatprep.subr.bf16.mxu0 0
      %2264 = vmatpush2.bf16.msra.mxu0 %v1716
      %2265 = vmatprep.subr.bf16.mxu0 0
      %2266 = vmatpush2.bf16.msra.mxu0 %v1715
      %2267 = vmatprep.subr.bf16.mxu0 0
      %2268 = vmatpush2.bf16.msra.mxu0 %v1714
      %2269 = vmatprep.subr.bf16.mxu0 0
      %2270 = vmatpush2.bf16.msra.mxu0 %v1713
      %2271 = vmatprep.subr.bf16.mxu0 0
      %2272 = vmatpush2.bf16.msra.mxu0 %v1712
      %2273 = vmatprep.subr.bf16.mxu0 0
      %2274 = vmatpush2.bf16.msra.mxu0 %v1711
      %2275 = vmatprep.mubr.bf16.mxu0 %v731
      %2276 = vmatmul.mubr.bf16.gmra.mxu0 %v717
      %v2277 = vpop.f32.mrf.mxu0
      %v2278 = vadd.f32 %v2238, %v2277
      %v2279 = vpop.f32.mrf.mxu0
      %v2280 = vpop.f32.mrf.mxu0
      %v2281 = vpop.f32.mrf.mxu0
      %2282 = vdwg.mxu0
      %2283 = vmatprep.subr.bf16.mxu0 0
      %2284 = vmatpush1.bf16.msra.mxu0 %v1726
      %2285 = vmatprep.subr.bf16.mxu0 0
      %2286 = vmatpush1.bf16.msra.mxu0 %v1725
      %2287 = vmatprep.subr.bf16.mxu0 0
      %2288 = vmatpush1.bf16.msra.mxu0 %v1724
      %2289 = vmatprep.subr.bf16.mxu0 0
      %2290 = vmatpush1.bf16.msra.mxu0 %v1723
      %2291 = vmatprep.subr.bf16.mxu0 0
      %2292 = vmatpush1.bf16.msra.mxu0 %v1722
      %2293 = vmatprep.subr.bf16.mxu0 0
      %2294 = vmatpush1.bf16.msra.mxu0 %v1721
      %2295 = vmatprep.subr.bf16.mxu0 0
      %2296 = vmatpush1.bf16.msra.mxu0 %v1720
      %2297 = vmatprep.subr.bf16.mxu0 0
      %2298 = vmatpush1.bf16.msra.mxu0 %v1719
      %2299 = vmatprep.subr.bf16.mxu0 0
      %2300 = vmatpush2.bf16.msra.mxu0 %v1734
      %2301 = vmatprep.subr.bf16.mxu0 0
      %2302 = vmatpush2.bf16.msra.mxu0 %v1733
      %2303 = vmatprep.subr.bf16.mxu0 0
      %2304 = vmatpush2.bf16.msra.mxu0 %v1732
      %2305 = vmatprep.subr.bf16.mxu0 0
      %2306 = vmatpush2.bf16.msra.mxu0 %v1731
      %2307 = vmatprep.subr.bf16.mxu0 0
      %2308 = vmatpush2.bf16.msra.mxu0 %v1730
      %2309 = vmatprep.subr.bf16.mxu0 0
      %2310 = vmatpush2.bf16.msra.mxu0 %v1729
      %2311 = vmatprep.subr.bf16.mxu0 0
      %2312 = vmatpush2.bf16.msra.mxu0 %v1728
      %2313 = vmatprep.subr.bf16.mxu0 0
      %2314 = vmatpush2.bf16.msra.mxu0 %v1727
      %2315 = vmatprep.mubr.bf16.mxu0 %v735
      %2316 = vmatmul.mubr.bf16.gmra.mxu0 %v733
      %v2317 = vpop.f32.mrf.mxu0
      %v2318 = vadd.f32 %v2278, %v2317
      %v2319 = vpop.f32.mrf.mxu0
      %v2320 = vpop.f32.mrf.mxu0
      %v2321 = vpop.f32.mrf.mxu0
      %2322 = vdwg.mxu0
      %2323 = vmatprep.subr.bf16.mxu0 0
      %2324 = vmatpush1.bf16.msra.mxu0 %v1742
      %2325 = vmatprep.subr.bf16.mxu0 0
      %2326 = vmatpush1.bf16.msra.mxu0 %v1741
      %2327 = vmatprep.subr.bf16.mxu0 0
      %2328 = vmatpush1.bf16.msra.mxu0 %v1740
      %2329 = vmatprep.subr.bf16.mxu0 0
      %2330 = vmatpush1.bf16.msra.mxu0 %v1739
      %2331 = vmatprep.subr.bf16.mxu0 0
      %2332 = vmatpush1.bf16.msra.mxu0 %v1738
      %2333 = vmatprep.subr.bf16.mxu0 0
      %2334 = vmatpush1.bf16.msra.mxu0 %v1737
      %2335 = vmatprep.subr.bf16.mxu0 0
      %2336 = vmatpush1.bf16.msra.mxu0 %v1736
      %2337 = vmatprep.subr.bf16.mxu0 0
      %2338 = vmatpush1.bf16.msra.mxu0 %v1735
      %2339 = vmatprep.subr.bf16.mxu0 0
      %2340 = vmatpush2.bf16.msra.mxu0 %v1750
      %2341 = vmatprep.subr.bf16.mxu0 0
      %2342 = vmatpush2.bf16.msra.mxu0 %v1749
      %2343 = vmatprep.subr.bf16.mxu0 0
      %2344 = vmatpush2.bf16.msra.mxu0 %v1748
      %2345 = vmatprep.subr.bf16.mxu0 0
      %2346 = vmatpush2.bf16.msra.mxu0 %v1747
      %2347 = vmatprep.subr.bf16.mxu0 0
      %2348 = vmatpush2.bf16.msra.mxu0 %v1746
      %2349 = vmatprep.subr.bf16.mxu0 0
      %2350 = vmatpush2.bf16.msra.mxu0 %v1745
      %2351 = vmatprep.subr.bf16.mxu0 0
      %2352 = vmatpush2.bf16.msra.mxu0 %v1744
      %2353 = vmatprep.subr.bf16.mxu0 0
      %2354 = vmatpush2.bf16.msra.mxu0 %v1743
      %2355 = vmatprep.mubr.bf16.mxu0 %v773
      %2356 = vmatmul.mubr.bf16.gmra.mxu0 %v759
      %v2357 = vpop.f32.mrf.mxu0
      %v2358 = vadd.f32 %v2318, %v2357
      %v2359 = vpop.f32.mrf.mxu0
      %v2360 = vpop.f32.mrf.mxu0
      %v2361 = vpop.f32.mrf.mxu0
      %2362 = vdwg.mxu0
      %2363 = vmatprep.subr.bf16.mxu0 0
      %2364 = vmatpush1.bf16.msra.mxu0 %v1758
      %2365 = vmatprep.subr.bf16.mxu0 0
      %2366 = vmatpush1.bf16.msra.mxu0 %v1757
      %2367 = vmatprep.subr.bf16.mxu0 0
      %2368 = vmatpush1.bf16.msra.mxu0 %v1756
      %2369 = vmatprep.subr.bf16.mxu0 0
      %2370 = vmatpush1.bf16.msra.mxu0 %v1755
      %2371 = vmatprep.subr.bf16.mxu0 0
      %2372 = vmatpush1.bf16.msra.mxu0 %v1754
      %2373 = vmatprep.subr.bf16.mxu0 0
      %2374 = vmatpush1.bf16.msra.mxu0 %v1753
      %2375 = vmatprep.subr.bf16.mxu0 0
      %2376 = vmatpush1.bf16.msra.mxu0 %v1752
      %2377 = vmatprep.subr.bf16.mxu0 0
      %2378 = vmatpush1.bf16.msra.mxu0 %v1751
      %2379 = vmatprep.subr.bf16.mxu0 0
      %2380 = vmatpush2.bf16.msra.mxu0 %v1766
      %2381 = vmatprep.subr.bf16.mxu0 0
      %2382 = vmatpush2.bf16.msra.mxu0 %v1765
      %2383 = vmatprep.subr.bf16.mxu0 0
      %2384 = vmatpush2.bf16.msra.mxu0 %v1764
      %2385 = vmatprep.subr.bf16.mxu0 0
      %2386 = vmatpush2.bf16.msra.mxu0 %v1763
      %2387 = vmatprep.subr.bf16.mxu0 0
      %2388 = vmatpush2.bf16.msra.mxu0 %v1762
      %2389 = vmatprep.subr.bf16.mxu0 0
      %2390 = vmatpush2.bf16.msra.mxu0 %v1761
      %2391 = vmatprep.subr.bf16.mxu0 0
      %2392 = vmatpush2.bf16.msra.mxu0 %v1760
      %2393 = vmatprep.subr.bf16.mxu0 0
      %2394 = vmatpush2.bf16.msra.mxu0 %v1759
      %2395 = vmatprep.mubr.bf16.mxu0 %v783
      %2396 = vmatmul.mubr.bf16.gmra.mxu0 %v781
      %v2397 = vpop.f32.mrf.mxu0
      %v2398 = vadd.f32 %v2358, %v2397
      %v2399 = vpop.f32.mrf.mxu0
      %v2400 = vpop.f32.mrf.mxu0
      %v2401 = vpop.f32.mrf.mxu0
      %2402 = vdwg.mxu0
      %2403 = vmatprep.subr.bf16.mxu0 0
      %2404 = vmatpush1.bf16.msra.mxu0 %v1774
      %2405 = vmatprep.subr.bf16.mxu0 0
      %2406 = vmatpush1.bf16.msra.mxu0 %v1773
      %2407 = vmatprep.subr.bf16.mxu0 0
      %2408 = vmatpush1.bf16.msra.mxu0 %v1772
      %2409 = vmatprep.subr.bf16.mxu0 0
      %2410 = vmatpush1.bf16.msra.mxu0 %v1771
      %2411 = vmatprep.subr.bf16.mxu0 0
      %2412 = vmatpush1.bf16.msra.mxu0 %v1770
      %2413 = vmatprep.subr.bf16.mxu0 0
      %2414 = vmatpush1.bf16.msra.mxu0 %v1769
      %2415 = vmatprep.subr.bf16.mxu0 0
      %2416 = vmatpush1.bf16.msra.mxu0 %v1768
      %2417 = vmatprep.subr.bf16.mxu0 0
      %2418 = vmatpush1.bf16.msra.mxu0 %v1767
      %2419 = vmatprep.subr.bf16.mxu0 0
      %2420 = vmatpush2.bf16.msra.mxu0 %v1782
      %2421 = vmatprep.subr.bf16.mxu0 0
      %2422 = vmatpush2.bf16.msra.mxu0 %v1781
      %2423 = vmatprep.subr.bf16.mxu0 0
      %2424 = vmatpush2.bf16.msra.mxu0 %v1780
      %2425 = vmatprep.subr.bf16.mxu0 0
      %2426 = vmatpush2.bf16.msra.mxu0 %v1779
      %2427 = vmatprep.subr.bf16.mxu0 0
      %2428 = vmatpush2.bf16.msra.mxu0 %v1778
      %2429 = vmatprep.subr.bf16.mxu0 0
      %2430 = vmatpush2.bf16.msra.mxu0 %v1777
      %2431 = vmatprep.subr.bf16.mxu0 0
      %2432 = vmatpush2.bf16.msra.mxu0 %v1776
      %2433 = vmatprep.subr.bf16.mxu0 0
      %2434 = vmatpush2.bf16.msra.mxu0 %v1775
      %2435 = vmatprep.mubr.bf16.mxu0 %v780
      %2436 = vmatmul.mubr.bf16.gmra.mxu0 %v766
      %v2437 = vpop.f32.mrf.mxu0
      %v2438 = vadd.f32 %v2398, %v2437
      %v2439 = vpop.f32.mrf.mxu0
      %v2440 = vpop.f32.mrf.mxu0
      %v2441 = vpop.f32.mrf.mxu0
      %2442 = vdwg.mxu0
      %2443 = vmatprep.subr.bf16.mxu0 0
      %2444 = vmatpush1.bf16.msra.mxu0 %v1790
      %2445 = vmatprep.subr.bf16.mxu0 0
      %2446 = vmatpush1.bf16.msra.mxu0 %v1789
      %2447 = vmatprep.subr.bf16.mxu0 0
      %2448 = vmatpush1.bf16.msra.mxu0 %v1788
      %2449 = vmatprep.subr.bf16.mxu0 0
      %2450 = vmatpush1.bf16.msra.mxu0 %v1787
      %2451 = vmatprep.subr.bf16.mxu0 0
      %2452 = vmatpush1.bf16.msra.mxu0 %v1786
      %2453 = vmatprep.subr.bf16.mxu0 0
      %2454 = vmatpush1.bf16.msra.mxu0 %v1785
      %2455 = vmatprep.subr.bf16.mxu0 0
      %2456 = vmatpush1.bf16.msra.mxu0 %v1784
      %2457 = vmatprep.subr.bf16.mxu0 0
      %2458 = vmatpush1.bf16.msra.mxu0 %v1783
      %2459 = vmatprep.subr.bf16.mxu0 0
      %2460 = vmatpush2.bf16.msra.mxu0 %v1798
      %2461 = vmatprep.subr.bf16.mxu0 0
      %2462 = vmatpush2.bf16.msra.mxu0 %v1797
      %2463 = vmatprep.subr.bf16.mxu0 0
      %2464 = vmatpush2.bf16.msra.mxu0 %v1796
      %2465 = vmatprep.subr.bf16.mxu0 0
      %2466 = vmatpush2.bf16.msra.mxu0 %v1795
      %2467 = vmatprep.subr.bf16.mxu0 0
      %2468 = vmatpush2.bf16.msra.mxu0 %v1794
      %2469 = vmatprep.subr.bf16.mxu0 0
      %2470 = vmatpush2.bf16.msra.mxu0 %v1793
      %2471 = vmatprep.subr.bf16.mxu0 0
      %2472 = vmatpush2.bf16.msra.mxu0 %v1792
      %2473 = vmatprep.subr.bf16.mxu0 0
      %2474 = vmatpush2.bf16.msra.mxu0 %v1791
      %2475 = vmatprep.mubr.bf16.mxu0 %v784
      %2476 = vmatmul.mubr.bf16.gmra.mxu0 %v782
      %v2477 = vpop.f32.mrf.mxu0
      %v2478 = vadd.f32 %v2438, %v2477
      %v2479 = vpop.f32.mrf.mxu0
      %v2480 = vpop.f32.mrf.mxu0
      %v2481 = vpop.f32.mrf.mxu0
      %2482 = vdwg.mxu0
      %2483 = vmatprep.subr.bf16.mxu0 0
      %2484 = vmatpush1.bf16.msra.mxu0 0
      %2485 = vmatprep.subr.bf16.mxu0 0
      %2486 = vmatpush1.bf16.msra.mxu0 0
      %2487 = vmatprep.subr.bf16.mxu0 0
      %2488 = vmatpush1.bf16.msra.mxu0 0
      %2489 = vmatprep.subr.bf16.mxu0 0
      %2490 = vmatpush1.bf16.msra.mxu0 0
      %2491 = vmatprep.subr.bf16.mxu0 0
      %2492 = vmatpush1.bf16.msra.mxu0 %v1802
      %2493 = vmatprep.subr.bf16.mxu0 0
      %2494 = vmatpush1.bf16.msra.mxu0 %v1801
      %2495 = vmatprep.subr.bf16.mxu0 0
      %2496 = vmatpush1.bf16.msra.mxu0 %v1800
      %2497 = vmatprep.subr.bf16.mxu0 0
      %2498 = vmatpush1.bf16.msra.mxu0 %v1799
      %2499 = vmatprep.subr.bf16.mxu0 0
      %2500 = vmatpush2.bf16.msra.mxu0 0
      %2501 = vmatprep.subr.bf16.mxu0 0
      %2502 = vmatpush2.bf16.msra.mxu0 0
      %2503 = vmatprep.subr.bf16.mxu0 0
      %2504 = vmatpush2.bf16.msra.mxu0 0
      %2505 = vmatprep.subr.bf16.mxu0 0
      %2506 = vmatpush2.bf16.msra.mxu0 0
      %2507 = vmatprep.subr.bf16.mxu0 0
      %2508 = vmatpush2.bf16.msra.mxu0 0
      %2509 = vmatprep.subr.bf16.mxu0 0
      %2510 = vmatpush2.bf16.msra.mxu0 0
      %2511 = vmatprep.subr.bf16.mxu0 0
      %2512 = vmatpush2.bf16.msra.mxu0 0
      %2513 = vmatprep.subr.bf16.mxu0 0
      %2514 = vmatpush2.bf16.msra.mxu0 0
      %2515 = vmatprep.mubr.bf16.mxu0 0
      %2516 = vmatmul.mubr.bf16.gmra.mxu0 %v2001
      %v2517 = vpop.f32.mrf.mxu0
      %v2518 = vadd.f32 %v2478, %v2517
      %v2519 = vpop.f32.mrf.mxu0
      %v2520 = vpop.f32.mrf.mxu0
      %v2521 = vpop.f32.mrf.mxu0
      %2522 = vdwg.mxu0
      %v2523 = vmax.f32 %v2518, 0.0
      %v2524 = vpack.c.bf16 %v2523, %v2523
      %v2525 = vld [vmem:[%s225] sm:$0xf]
      %v2526 = vld [vmem:[%s225 + $0x4] sm:$0xf]
      %v2527 = vld [vmem:[%s225 + $0x8] sm:$0xf]
      %v2528 = vld [vmem:[%s225 + $0xc] sm:$0xf]
      %v2529 = vld [vmem:[%s225 + $0x10] sm:$0xf]
      %v2530 = vld [vmem:[%s225 + $0x14] sm:$0xf]
      %v2531 = vld [vmem:[%s225 + $0x18] sm:$0xf]
      %v2532 = vld [vmem:[%s225 + $0x1c] sm:$0xf]
      %v2541 = vunpack.c.l.b16 %v2525
      %v2542 = vunpack.c.l.b16 %v2526
      %v2543 = vunpack.c.l.b16 %v2527
      %v2544 = vunpack.c.l.b16 %v2528
      %v2545 = vunpack.c.l.b16 %v2529
      %v2546 = vunpack.c.l.b16 %v2530
      %v2547 = vunpack.c.l.b16 %v2531
      %v2548 = vunpack.c.l.b16 %v2532
      %v2549 = vpack.c.b16 %v2542, %v2541
      %v2550 = vpack.c.b16 %v2544, %v2543
      %v2551 = vpack.c.b16 %v2546, %v2545
      %v2552 = vpack.c.b16 %v2548, %v2547
      %v2558 = vsel %vm1999, %v2524, 0
      %2560 = vmatprep.subr.bf16.mxu0 0
      %2561 = vmatpush1.bf16.msra.mxu0 0
      %2562 = vmatprep.subr.bf16.mxu0 0
      %2563 = vmatpush1.bf16.msra.mxu0 0
      %2564 = vmatprep.subr.bf16.mxu0 0
      %2565 = vmatpush1.bf16.msra.mxu0 0
      %2566 = vmatprep.subr.bf16.mxu0 0
      %2567 = vmatpush1.bf16.msra.mxu0 0
      %2568 = vmatprep.subr.bf16.mxu0 0
      %2569 = vmatpush1.bf16.msra.mxu0 %v2552
      %2570 = vmatprep.subr.bf16.mxu0 0
      %2571 = vmatpush1.bf16.msra.mxu0 %v2551
      %2572 = vmatprep.subr.bf16.mxu0 0
      %2573 = vmatpush1.bf16.msra.mxu0 %v2550
      %2574 = vmatprep.subr.bf16.mxu0 0
      %2575 = vmatpush1.bf16.msra.mxu0 %v2549
      %2576 = vmatprep.subr.bf16.mxu0 0
      %2577 = vmatpush2.bf16.msra.mxu0 0
      %2578 = vmatprep.subr.bf16.mxu0 0
      %2579 = vmatpush2.bf16.msra.mxu0 0
      %2580 = vmatprep.subr.bf16.mxu0 0
      %2581 = vmatpush2.bf16.msra.mxu0 0
      %2582 = vmatprep.subr.bf16.mxu0 0
      %2583 = vmatpush2.bf16.msra.mxu0 0
      %2584 = vmatprep.subr.bf16.mxu0 0
      %2585 = vmatpush2.bf16.msra.mxu0 0
      %2586 = vmatprep.subr.bf16.mxu0 0
      %2587 = vmatpush2.bf16.msra.mxu0 0
      %2588 = vmatprep.subr.bf16.mxu0 0
      %2589 = vmatpush2.bf16.msra.mxu0 0
      %2590 = vmatprep.subr.bf16.mxu0 0
      %2591 = vmatpush2.bf16.msra.mxu0 0
      %2592 = vmatprep.mubr.bf16.mxu0 0
      %2593 = vmatmul.mubr.bf16.gmra.mxu0 %v2558
      %v2594 = vpop.f32.mrf.mxu0
      %v2595 = vadd.f32 0.0, %v2594
      %v2596 = vpop.f32.mrf.mxu0
      %v2597 = vpop.f32.mrf.mxu0
      %v2598 = vpop.f32.mrf.mxu0
      %2599 = vdwg.mxu0
      %2600 = vst [vmem:[%s229] sm:$0x3] %v2595
      %p2601 = scmp.lt.s32.totalorder %s15, 1
      %s2602 = scalar_select %p2601, %s15, 1
      %s2603 = smul.addr %s2602, 2
      %s2604 = scalar_lea.vmem %s4, %s2603
      // Predicated region
      $region37: #{simple_cnn_forward.3} parent=35 // pred_check
        %p2605 = pneg %p132
      $region38: #{simple_cnn_forward.3} parent=35 // pred_check_branch
        %2607 = sbr.rel (%p2605) target = $region40
      $region39: #{simple_cnn_forward.3} parent=35 // pred_region
        _
      $region40: #{simple_cnn_forward.3} parent=35 // pred_fallthru
        _
    $region36: #{simple_cnn_forward.3} parent=5 // pred_fallthru
      _
    %p2608 = scmp.le.s32.totalorder 2, %s10
    // Predicated region
    $region41: #{simple_cnn_forward.3} parent=5 // pred_check
      %p2609 = pneg %p2608
    $region42: #{simple_cnn_forward.3} parent=5 // pred_check_branch
      %2611 = sbr.rel (%p2609) target = $region44
    $region43: #{simple_cnn_forward.3} parent=5 // pred_region
      %s2612 = ssub.s32 %s10, 2
      // Predicated region
      $region45: #{simple_cnn_forward.3} parent=43 // pred_check
        %p2613 = pneg %p138
      $region46: #{simple_cnn_forward.3} parent=43 // pred_check_branch
        %2615 = sbr.rel (%p2613) target = $region48
      $region47: #{simple_cnn_forward.3} parent=43 // pred_region
        %p2616 = scmp.lt.s32.totalorder %s16, 1
        %s2617 = scalar_select %p2616, %s16, 1
        %s2618 = smul.addr %s2617, 2
        %s2619 = scalar_lea.vmem %s4, %s2618
      $region48: #{simple_cnn_forward.3} parent=43 // pred_fallthru
        _
    $region44: #{simple_cnn_forward.3} parent=5 // pred_fallthru
      _
  $region6: #{simple_cnn_forward.3} parent=0 // loop_footer
    %s14 = sadd.s32 1, %s10
  $region7: #{simple_cnn_forward.3} parent=0 // loop_footer_branch
    %9 = sbr.rel target = $region3
  $region8: #{simple_cnn_forward.3} parent=0 // loop_exit
    _

</llo_original>
